<compile_context>
chip_gen: v7x
topology: tpu7x:2x2x1
jax: 0.10.0
libtpu: 0.0.40
codegen_flags: <defaults>
</compile_context>

<pallas_src>
import math

import jax
import jax.numpy as jnp
from jax.experimental import pallas as pl
from jax.experimental.pallas import tpu as pltpu

MATMUL_DTYPE = jnp.bfloat16   # MXU operands; accumulation & gate math stay f32
ACT_DTYPE = jnp.float32       # activations between layers / outputs

LANE = 128
SUBLANE = 8


# ----------------------------------------------------------------------------
# helpers
# ----------------------------------------------------------------------------
def _largest_divisor_leq(n, cap):
    best = 1
    for d in range(1, n + 1):
        if n % d == 0 and d <= cap:
            best = d
    return best


def _pick_time_chunk(T, B, din_total, H, budget_bytes=12 << 20):
    """Largest divisor Tc of T whose per-chunk working set fits the VMEM budget."""
    best = 1
    for Tc in range(1, T + 1):
        if T % Tc:
            continue
        TcB = Tc * B
        working = (2 * TcB * din_total * 4 * 2    # fwd+rev activation windows (dbl buf)
                   + 2 * TcB * H * 4 * 2          # y_f / y_b output windows  (dbl buf)
                   + 2 * TcB * 4 * H * 4)         # gx scratch (both directions)
        if working <= budget_bytes:
            best = Tc
    return best


def _bilstm_vmem_limit(S, TcB, Din, H):
    act = 2 * S * TcB * Din * 4 * 2
    y = 2 * TcB * H * 4 * 2
    gx = 2 * TcB * 4 * H * 4
    w = (2 * S * Din * 4 * H + 2 * H * 4 * H) * 2 * 2
    total = act + y + gx + w + (1 << 20)
    return int(min(max(2 * total, 16 << 20), 48 << 20))


# ----------------------------------------------------------------------------
# BatchNorm2d: per-channel (= per-timestep) batch statistics over (B, D),
# tiled over the time/channel axis ("parallel" grid -> pipelined DMA).
# ----------------------------------------------------------------------------
def bn_kernel(x_ref, gamma_ref, beta_ref, o_ref):
    x = x_ref[...].astype(jnp.float32)                               # (Tt, B, D)
    n = x.shape[1] * x.shape[2]
    mean = jnp.sum(jnp.sum(x, axis=2, keepdims=True), axis=1, keepdims=True) / n
    diff = x - mean
    var = jnp.sum(jnp.sum(diff * diff, axis=2, keepdims=True), axis=1, keepdims=True) / n
    o_ref[...] = (diff * jax.lax.rsqrt(var + 1e-5) * gamma_ref[...]
                  + beta_ref[...]).astype(o_ref.dtype)


def batch_norm(x_tbd, gamma, beta, tile_t=None):
    # TODO(synk): running-stats update / eval-mode BN not modelled (train-mode stats).
    T, B, D = x_tbd.shape
    if tile_t is None:
        tile_t = _largest_divisor_leq(T, max(1, pl.cdiv(512, max(1, B))))
    assert T % tile_t == 0, (T, tile_t)
    return pl.pallas_call(
        bn_kernel,
        out_shape=jax.ShapeDtypeStruct(x_tbd.shape, x_tbd.dtype),
        grid_spec=pltpu.PrefetchScalarGridSpec(
            num_scalar_prefetch=0,
            grid=(T // tile_t,),
            in_specs=[
                pl.BlockSpec((tile_t, B, D), lambda i: (i, 0, 0)),
                pl.BlockSpec((tile_t, 1, 1), lambda i: (i, 0, 0)),
                pl.BlockSpec((tile_t, 1, 1), lambda i: (i, 0, 0)),
            ],
            out_specs=pl.BlockSpec((tile_t, B, D), lambda i: (i, 0, 0)),
        ),
        compiler_params=pltpu.CompilerParams(dimension_semantics=("parallel",)),
    )(x_tbd, gamma, beta)


# ----------------------------------------------------------------------------
# Fused bidirectional LSTM layer: both directions interleaved in ONE kernel,
# sequential grid over time chunks, recurrence fully in-kernel.
# ----------------------------------------------------------------------------
def _make_bilstm_kernel(S, Tc, B, H):
    unroll = max(1, min(4, Tc))

    def kernel(*refs):
        # inputs: S fwd-ordered activation halves, S rev-ordered halves,
        #         wx, wh, b, h0, c0;  outputs: y_f, y_b, hT, cT;  scratch: gx
        xf = refs[0:S]
        xr = refs[S:2 * S]
        wx_ref, wh_ref, b_ref, h0_ref, c0_ref = refs[2 * S:2 * S + 5]
        yf_ref, yb_ref, hT_ref, cT_ref = refs[2 * S + 5:2 * S + 9]
        gx_sc = refs[2 * S + 9]

        gi = pl.program_id(0)

        # h/c carry lives in the grid-resident hT/cT output buffers
        @pl.when(gi == 0)
        def _():
            hT_ref[...] = h0_ref[...]
            cT_ref[...] = c0_ref[...]

        # --- hoisted per-chunk input projection: one (Tc*B,Din)@(Din,4H) matmul
        #     per input half per direction (bf16 operands, f32 accumulation)
        gx_f = jnp.dot(xf[0][...].astype(MATMUL_DTYPE), wx_ref[0, 0],
                       preferred_element_type=jnp.float32)
        gx_b = jnp.dot(xr[0][...].astype(MATMUL_DTYPE), wx_ref[1, 0],
                       preferred_element_type=jnp.float32)
        for s in range(1, S):                 # static unroll (S is 1 or 2)
            gx_f = gx_f + jnp.dot(xf[s][...].astype(MATMUL_DTYPE), wx_ref[0, s],
                                  preferred_element_type=jnp.float32)
            gx_b = gx_b + jnp.dot(xr[s][...].astype(MATMUL_DTYPE), wx_ref[1, s],
                                  preferred_element_type=jnp.float32)
        gx_sc[0] = gx_f + b_ref[0]            # (Tc*B, 4H), bias broadcast over rows
        gx_sc[1] = gx_b + b_ref[1]

        wh = wh_ref[...]                      # (2, H, 4H) bf16, resident for the loop

        def step(t, carry):
            h, c = carry                      # (2, B, H) f32; [0]=fwd, [1]=bwd
            rf = pl.multiple_of(t * B, B)               # fwd walks chunk 0..Tc-1
            rb = pl.multiple_of((Tc - 1 - t) * B, B)    # bwd walks chunk Tc-1..0
            gates_f = gx_sc[0, pl.ds(rf, B), :] + jnp.dot(
                h[0].astype(MATMUL_DTYPE), wh[0], preferred_element_type=jnp.float32)
            gates_b = gx_sc[1, pl.ds(rb, B), :] + jnp.dot(
                h[1].astype(MATMUL_DTYPE), wh[1], preferred_element_type=jnp.float32)
            gates = jnp.stack([gates_f, gates_b])       # (2, B, 4H)
            # gate columns were repacked i|f|o|g -> one sigmoid + one tanh dispatch
            sig = jax.nn.sigmoid(gates[..., :3 * H])    # i | f | o
            gg = jnp.tanh(gates[..., 3 * H:])           # g
            c_new = sig[..., H:2 * H] * c + sig[..., :H] * gg
            h_new = sig[..., 2 * H:3 * H] * jnp.tanh(c_new)
            yf_ref[pl.ds(rf, B), :] = h_new[0].astype(yf_ref.dtype)
            yb_ref[pl.ds(rb, B), :] = h_new[1].astype(yb_ref.dtype)
            return h_new, c_new

        h_fin, c_fin = jax.lax.fori_loop(
            0, Tc, step,
            (hT_ref[...].astype(jnp.float32), cT_ref[...].astype(jnp.float32)),
            unroll=unroll)
        hT_ref[...] = h_fin.astype(hT_ref.dtype)
        cT_ref[...] = c_fin.astype(cT_ref.dtype)

    return kernel


def bilstm_layer(x_halves, layer_params, h0, c0, time_chunk=None):
    """One bidirectional LSTM layer.

    x_halves: tuple of time-major activations, each (T*B, Din_half)
              (1 half = raw input, 2 halves = previous layer's fwd/bwd outputs)
    returns:  (y_fwd, y_bwd) each (T*B, H) time-major, hT (2,B,H), cT (2,B,H)
    """
    S = len(x_halves)
    TB, Din = x_halves[0].shape
    wx, wh, b = layer_params["wx"], layer_params["wh"], layer_params["b"]
    H = wh.shape[1]
    B = h0.shape[1]
    T = TB // B
    if time_chunk is None:
        time_chunk = _pick_time_chunk(T, B, S * Din, H)
    Tc = time_chunk
    assert T % Tc == 0, (T, Tc)
    NC = T // Tc
    TcB = Tc * B

    fwd_spec = pl.BlockSpec((TcB, Din), lambda g: (g, 0))
    rev_spec = pl.BlockSpec((TcB, Din), lambda g: (NC - 1 - g, 0))
    const3 = lambda g: (0, 0, 0)

    in_specs = ([fwd_spec] * S + [rev_spec] * S + [
        pl.BlockSpec((2, S, Din, 4 * H), lambda g: (0, 0, 0, 0)),  # W_ih^T halves (i|f|o|g)
        pl.BlockSpec((2, H, 4 * H), const3),                        # W_hh^T
        pl.BlockSpec((2, 1, 4 * H), const3),                        # b_ih + b_hh
        pl.BlockSpec((2, B, H), const3),                            # h0
        pl.BlockSpec((2, B, H), const3),                            # c0
    ])
    out_specs = [
        pl.BlockSpec((TcB, H), lambda g: (g, 0)),            # y forward half
        pl.BlockSpec((TcB, H), lambda g: (NC - 1 - g, 0)),   # y backward half
        pl.BlockSpec((2, B, H), const3),                     # h_T (carry, resident)
        pl.BlockSpec((2, B, H), const3),                     # c_T (carry, resident)
    ]

    y_f, y_b, hT, cT = pl.pallas_call(
        _make_bilstm_kernel(S, Tc, B, H),
        out_shape=(
            jax.ShapeDtypeStruct((TB, H), ACT_DTYPE),
            jax.ShapeDtypeStruct((TB, H), ACT_DTYPE),
            jax.ShapeDtypeStruct((2, B, H), jnp.float32),
            jax.ShapeDtypeStruct((2, B, H), jnp.float32),
        ),
        grid_spec=pltpu.PrefetchScalarGridSpec(
            num_scalar_prefetch=0,
            grid=(NC,),
            in_specs=in_specs,
            out_specs=out_specs,
            scratch_shapes=[pltpu.VMEM((2, TcB, 4 * H), jnp.float32)],
        ),
        compiler_params=pltpu.CompilerParams(
            dimension_semantics=("arbitrary",),          # sequential recurrence carry
            vmem_limit_bytes=_bilstm_vmem_limit(S, TcB, Din, H),
        ),
    )(*x_halves, *x_halves, wx, wh, b, h0, c0)
    return (y_f, y_b), hT, cT


# ----------------------------------------------------------------------------
# Final Linear: row-tiled batched matmul over all timesteps, halves fused
# (no concat), lane-dense 128-padded output columns.
# ----------------------------------------------------------------------------
def linear_kernel(yf_ref, yb_ref, w_ref, b_ref, o_ref):
    o_ref[...] = (jnp.dot(yf_ref[...].astype(MATMUL_DTYPE), w_ref[0],
                          preferred_element_type=jnp.float32)
                  + jnp.dot(yb_ref[...].astype(MATMUL_DTYPE), w_ref[1],
                            preferred_element_type=jnp.float32)
                  + b_ref[...]).astype(o_ref.dtype)


def linear_head(y_halves, w, b, row_tile=512):
    y_f, y_b = y_halves
    TB, H = y_f.shape
    out_pad = w.shape[2]
    rt = min(row_tile, TB)                 # TB is a multiple of 8 (batch is padded)
    return pl.pallas_call(
        linear_kernel,
        out_shape=jax.ShapeDtypeStruct((TB, out_pad), jnp.float32),
        grid_spec=pltpu.PrefetchScalarGridSpec(
            num_scalar_prefetch=0,
            grid=(pl.cdiv(TB, rt),),
            in_specs=[
                pl.BlockSpec((rt, H), lambda i: (i, 0)),
                pl.BlockSpec((rt, H), lambda i: (i, 0)),
                pl.BlockSpec((2, H, out_pad), lambda i: (0, 0, 0)),
                pl.BlockSpec((1, out_pad), lambda i: (0, 0)),
            ],
            out_specs=pl.BlockSpec((rt, out_pad), lambda i: (i, 0)),
        ),
        compiler_params=pltpu.CompilerParams(dimension_semantics=("parallel",)),
    )(y_f, y_b, w, b)


# ----------------------------------------------------------------------------
# Parameter init (deterministic; shapes follow the PyTorch module __init__)
# ----------------------------------------------------------------------------
def _init_lstm_dir(key, in_dim, H):
    k1, k2, k3, k4 = jax.random.split(key, 4)
    bound = 1.0 / math.sqrt(H)
    w_ih = jax.random.uniform(k1, (4 * H, in_dim), jnp.float32, -bound, bound)
    w_hh = jax.random.uniform(k2, (4 * H, H), jnp.float32, -bound, bound)
    b_ih = jax.random.uniform(k3, (4 * H,), jnp.float32, -bound, bound)
    b_hh = jax.random.uniform(k4, (4 * H,), jnp.float32, -bound, bound)
    return w_ih, w_hh, b_ih + b_hh


def _reorder_ifog(w):
    # PyTorch gate order i|f|g|o (on the 4H axis) -> i|f|o|g so the three sigmoid
    # gates are one contiguous slice and tanh a single tail slice.
    H = w.shape[-1] // 4
    return jnp.concatenate([w[..., :2 * H], w[..., 3 * H:], w[..., 2 * H:3 * H]], axis=-1)


def _pack_layer(kf, kb, half_dims, H):
    """half_dims: widths of the input halves ((D,) for layer1, (H,H) for mid layers)."""
    packed_wx, packed_wh, packed_b = [], [], []
    for key in (kf, kb):
        w_ih, w_hh, bias = _init_lstm_dir(key, sum(half_dims), H)
        halves, off = [], 0
        for hd in half_dims:
            halves.append(_reorder_ifog(w_ih[:, off:off + hd].T))     # (hd, 4H)
            off += hd
        packed_wx.append(jnp.stack(halves))                           # (S, hd, 4H)
        packed_wh.append(_reorder_ifog(w_hh.T))                       # (H, 4H)
        packed_b.append(_reorder_ifog(bias)[None, :])                 # (1, 4H)
    return dict(
        wx=jnp.stack(packed_wx).astype(MATMUL_DTYPE),   # (2, S, hd, 4H)  bf16
        wh=jnp.stack(packed_wh).astype(MATMUL_DTYPE),   # (2, H, 4H)      bf16
        b=jnp.stack(packed_b),                          # (2, 1, 4H)      f32
    )


def init_params(key, input_size, hidden_size, output_size, max_len):
    ks = jax.random.split(key, 8)
    H = hidden_size
    params = {
        "bn_gamma": jnp.ones((max_len, 1, 1), jnp.float32),
        "bn_beta": jnp.zeros((max_len, 1, 1), jnp.float32),
        "l1": _pack_layer(ks[0], ks[1], (input_size,), H),
        "l2": _pack_layer(ks[2], ks[3], (H, H), H),
        "l3": _pack_layer(ks[4], ks[5], (H, H), H),
    }
    bound = 1.0 / math.sqrt(2 * H)
    w_out = jax.random.uniform(ks[6], (output_size, 2 * H), jnp.float32, -bound, bound)
    b_out = jax.random.uniform(ks[7], (output_size,), jnp.float32, -bound, bound)
    out_pad = max(LANE, ((output_size + LANE - 1) // LANE) * LANE)   # lane-dense output
    w_pad = jnp.zeros((2, H, out_pad), jnp.float32)
    w_pad = w_pad.at[0, :, :output_size].set(w_out[:, :H].T)
    w_pad = w_pad.at[1, :, :output_size].set(w_out[:, H:].T)
    params["w_out"] = w_pad.astype(MATMUL_DTYPE)                      # (2, H, out_pad)
    params["b_out"] = jnp.zeros((1, out_pad), jnp.float32).at[0, :output_size].set(b_out)
    return params


# ----------------------------------------------------------------------------
# Full model forward
# ----------------------------------------------------------------------------
def model_forward(frame_nchw, hidden, frame_length, params, *,
                  output_size, time_chunk=None, bn_tile=None):
    # frame: (B, C=T, 1, input_size) NCHW — the channel axis is the time axis,
    # matching nn.BatchNorm2d(max_length).
    # TODO(synk): frame_length ignored — pack_padded_sequence masking not modelled.
    del frame_length
    B, T, _, D = frame_nchw.shape
    x_tbd = jnp.transpose(frame_nchw.reshape(B, T, D), (1, 0, 2))        # (T, B, D)
    xn = batch_norm(x_tbd, params["bn_gamma"][:T], params["bn_beta"][:T],
                    tile_t=bn_tile)                                      # (T, B, D)

    # pad batch to a sublane multiple so per-step slices/stores are (8,128)-aligned
    Bp = ((B + SUBLANE - 1) // SUBLANE) * SUBLANE
    h, c = hidden                                                        # (2, B, H) each
    if Bp != B:
        xn = jnp.pad(xn, ((0, 0), (0, Bp - B), (0, 0)))
        h = jnp.pad(h, ((0, 0), (0, Bp - B), (0, 0)))
        c = jnp.pad(c, ((0, 0), (0, Bp - B), (0, 0)))

    x_halves = (xn.reshape(T * Bp, D),)      # free row-major reshape -> time-major rows

    # nn.Dropout -> identity.  TODO(synk): stochastic train-mode dropout not modelled.
    y, h, c = bilstm_layer(x_halves, params["l1"], h, c, time_chunk)     # lstm1
    y, h, c = bilstm_layer(y, params["l2"], h, c, time_chunk)            # lstm2
    y, h, c = bilstm_layer(y, params["l3"], h, c, time_chunk)            # lstm3
    y, h, c = bilstm_layer(y, params["l3"], h, c, time_chunk)            # lstm3 reused (as in PyTorch)

    out = linear_head(y, params["w_out"], params["b_out"])               # (T*Bp, out_pad)
    out = out.reshape(T, Bp, -1)[:, :B, :output_size]                    # drop padding
    return jnp.transpose(out, (1, 0, 2))                                 # (B, T, out)


if __name__ == "__main__":
    # small shapes consistent with the module's forward
    B, T, INPUT, HIDDEN, OUTPUT = 2, 8, 16, 32, 8

    key = jax.random.PRNGKey(0)
    kp, kx = jax.random.split(key)
    params = init_params(kp, INPUT, HIDDEN, OUTPUT, T)

    frame = jax.random.normal(kx, (B, T, 1, INPUT), jnp.float32)   # NCHW
    h0 = jnp.zeros((2, B, HIDDEN), jnp.float32)                    # initHidden()
    c0 = jnp.zeros((2, B, HIDDEN), jnp.float32)
    frame_length = jnp.full((B,), T, jnp.int32)                    # full-length sequences

    fwd = jax.jit(model_forward,
                  static_argnames=("output_size", "time_chunk", "bn_tile"))
    # time_chunk=4 / bn_tile=4 exercise the multi-chunk (grid>1) paths at demo sizes.
    out = fwd(frame, (h0, c0), frame_length, params,
              output_size=OUTPUT, time_chunk=4, bn_tile=4)
    out = jax.block_until_ready(out)
    assert out.shape == (B, T, OUTPUT), out.shape
    assert bool(jnp.all(jnp.isfinite(out)))
    print("KERNEL_OK")
</pallas_src>

<mosaic_0001>
module attributes {stable_mosaic.version = 11 : i64} {
  func.func @bn_kernel(%arg0: i32, %arg1: memref<4x2x16xf32, #tpu.memory_space<vmem>>, %arg2: memref<4x1x1xf32, #tpu.memory_space<vmem>>, %arg3: memref<4x1x1xf32, #tpu.memory_space<vmem>>, %arg4: memref<4x2x16xf32, #tpu.memory_space<vmem>>) attributes {dimension_semantics = [#tpu.dimension_semantics<parallel>], iteration_bounds = array<i64: 2>, scalar_prefetch = 0 : i64, scratch_operands = 0 : i64, tpu.core_type = #tpu.core_type<tc>, window_params = [{transform_indices = @transform_0, window_bounds = array<i64: 4, 2, 16>}, {transform_indices = @transform_1, window_bounds = array<i64: 4, 1, 1>}, {transform_indices = @transform_2, window_bounds = array<i64: 4, 1, 1>}, {transform_indices = @transform_3, window_bounds = array<i64: 4, 2, 16>}]} {
    %c0 = arith.constant 0 : index
    %c0_0 = arith.constant 0 : index
    %c0_1 = arith.constant 0 : index
    %0 = vector.load %arg1[%c0, %c0_0, %c0_1] : memref<4x2x16xf32, #tpu.memory_space<vmem>>, vector<4x2x16xf32>
    %cst = arith.constant dense<0.000000e+00> : vector<4x2xf32>
    %1 = vector.multi_reduction <add>, %0, %cst [2] : vector<4x2x16xf32> to vector<4x2xf32>
    %2 = vector.shape_cast %1 : vector<4x2xf32> to vector<4x2x1xf32>
    %cst_2 = arith.constant dense<0.000000e+00> : vector<4x1xf32>
    %3 = vector.multi_reduction <add>, %2, %cst_2 [1] : vector<4x2x1xf32> to vector<4x1xf32>
    %4 = vector.shape_cast %3 : vector<4x1xf32> to vector<4x1x1xf32>
    %cst_3 = arith.constant 3.200000e+01 : f32
    %5 = vector.broadcast %cst_3 : f32 to vector<4x1x1xf32>
    %6 = arith.divf %4, %5 : vector<4x1x1xf32>
    %7 = vector.broadcast %6 : vector<4x1x1xf32> to vector<4x2x16xf32>
    %8 = arith.subf %0, %7 : vector<4x2x16xf32>
    %9 = arith.mulf %8, %8 : vector<4x2x16xf32>
    %cst_4 = arith.constant dense<0.000000e+00> : vector<4x2xf32>
    %10 = vector.multi_reduction <add>, %9, %cst_4 [2] : vector<4x2x16xf32> to vector<4x2xf32>
    %11 = vector.shape_cast %10 : vector<4x2xf32> to vector<4x2x1xf32>
    %cst_5 = arith.constant dense<0.000000e+00> : vector<4x1xf32>
    %12 = vector.multi_reduction <add>, %11, %cst_5 [1] : vector<4x2x1xf32> to vector<4x1xf32>
    %13 = vector.shape_cast %12 : vector<4x1xf32> to vector<4x1x1xf32>
    %cst_6 = arith.constant 3.200000e+01 : f32
    %14 = vector.broadcast %cst_6 : f32 to vector<4x1x1xf32>
    %15 = arith.divf %13, %14 : vector<4x1x1xf32>
    %cst_7 = arith.constant 9.99999974E-6 : f32
    %16 = vector.broadcast %cst_7 : f32 to vector<4x1x1xf32>
    %17 = arith.addf %15, %16 : vector<4x1x1xf32>
    %18 = math.rsqrt %17 : vector<4x1x1xf32>
    %19 = vector.broadcast %18 : vector<4x1x1xf32> to vector<4x2x16xf32>
    %20 = arith.mulf %8, %19 : vector<4x2x16xf32>
    %c0_8 = arith.constant 0 : index
    %c0_9 = arith.constant 0 : index
    %c0_10 = arith.constant 0 : index
    %21 = vector.load %arg2[%c0_8, %c0_9, %c0_10] : memref<4x1x1xf32, #tpu.memory_space<vmem>>, vector<4x1x1xf32>
    %22 = vector.broadcast %21 : vector<4x1x1xf32> to vector<4x2x16xf32>
    %23 = arith.mulf %20, %22 : vector<4x2x16xf32>
    %c0_11 = arith.constant 0 : index
    %c0_12 = arith.constant 0 : index
    %c0_13 = arith.constant 0 : index
    %24 = vector.load %arg3[%c0_11, %c0_12, %c0_13] : memref<4x1x1xf32, #tpu.memory_space<vmem>>, vector<4x1x1xf32>
    %25 = vector.broadcast %24 : vector<4x1x1xf32> to vector<4x2x16xf32>
    %26 = arith.addf %23, %25 : vector<4x2x16xf32>
    %c0_14 = arith.constant 0 : index
    %c0_15 = arith.constant 0 : index
    %c0_16 = arith.constant 0 : index
    %27 = vector.load %arg4[%c0_14, %c0_15, %c0_16] : memref<4x2x16xf32, #tpu.memory_space<vmem>>, vector<4x2x16xf32>
    tpu.vector_store %arg4[%c0_14, %c0_15, %c0_16], %26 {strides = array<i32>} : memref<4x2x16xf32, #tpu.memory_space<vmem>>, vector<4x2x16xf32>,
    return
  }
  func.func @transform_0(%arg0: i32) -> (i32, i32, i32) {
    %c0_i32 = arith.constant 0 : i32
    %c0_i32_0 = arith.constant 0 : i32
    %c0_i32_1 = arith.constant 0 : i32
    return %arg0, %c0_i32, %c0_i32_0 : i32, i32, i32
  }
  func.func @transform_1(%arg0: i32) -> (i32, i32, i32) {
    %c0_i32 = arith.constant 0 : i32
    %c0_i32_0 = arith.constant 0 : i32
    %c0_i32_1 = arith.constant 0 : i32
    return %arg0, %c0_i32, %c0_i32_0 : i32, i32, i32
  }
  func.func @transform_2(%arg0: i32) -> (i32, i32, i32) {
    %c0_i32 = arith.constant 0 : i32
    %c0_i32_0 = arith.constant 0 : i32
    %c0_i32_1 = arith.constant 0 : i32
    return %arg0, %c0_i32, %c0_i32_0 : i32, i32, i32
  }
  func.func @transform_3(%arg0: i32) -> (i32, i32, i32) {
    %c0_i32 = arith.constant 0 : i32
    %c0_i32_0 = arith.constant 0 : i32
    %c0_i32_1 = arith.constant 0 : i32
    return %arg0, %c0_i32, %c0_i32_0 : i32, i32, i32
  }
}

module attributes {stable_mosaic.version = 11 : i64} {
  func.func @kernel(%arg0: i32, %arg1: memref<32x16xf32, #tpu.memory_space<vmem>>, %arg2: memref<32x16xf32, #tpu.memory_space<vmem>>, %arg3: memref<2x1x16x128xbf16, #tpu.memory_space<vmem>>, %arg4: memref<2x32x128xbf16, #tpu.memory_space<vmem>>, %arg5: memref<2x1x128xf32, #tpu.memory_space<vmem>>, %arg6: memref<2x8x32xf32, #tpu.memory_space<vmem>>, %arg7: memref<2x8x32xf32, #tpu.memory_space<vmem>>, %arg8: memref<32x32xf32, #tpu.memory_space<vmem>>, %arg9: memref<32x32xf32, #tpu.memory_space<vmem>>, %arg10: memref<2x8x32xf32, #tpu.memory_space<vmem>>, %arg11: memref<2x8x32xf32, #tpu.memory_space<vmem>>, %arg12: memref<2x32x128xf32, #tpu.memory_space<vmem>>) attributes {dimension_semantics = [#tpu.dimension_semantics<arbitrary>], iteration_bounds = array<i64: 2>, scalar_prefetch = 0 : i64, scratch_operands = 1 : i64, tpu.core_type = #tpu.core_type<tc>, window_params = [{transform_indices = @transform_0, window_bounds = array<i64: 32, 16>}, {transform_indices = @transform_1, window_bounds = array<i64: 32, 16>}, {pipeline_mode = #tpu.pipeline_mode<synchronous>, transform_indices = @transform_2, window_bounds = array<i64: 2, 1, 16, 128>}, {pipeline_mode = #tpu.pipeline_mode<synchronous>, transform_indices = @transform_3, window_bounds = array<i64: 2, 32, 128>}, {pipeline_mode = #tpu.pipeline_mode<synchronous>, transform_indices = @transform_4, window_bounds = array<i64: 2, 1, 128>}, {pipeline_mode = #tpu.pipeline_mode<synchronous>, transform_indices = @transform_5, window_bounds = array<i64: 2, 8, 32>}, {pipeline_mode = #tpu.pipeline_mode<synchronous>, transform_indices = @transform_6, window_bounds = array<i64: 2, 8, 32>}, {transform_indices = @transform_7, window_bounds = array<i64: 32, 32>}, {transform_indices = @transform_8, window_bounds = array<i64: 32, 32>}, {pipeline_mode = #tpu.pipeline_mode<synchronous>, transform_indices = @transform_9, window_bounds = array<i64: 2, 8, 32>}, {pipeline_mode = #tpu.pipeline_mode<synchronous>, transform_indices = @transform_10, window_bounds = array<i64: 2, 8, 32>}]} {
    %c0_i32 = arith.constant 0 : i32
    %0 = arith.cmpi eq, %arg0, %c0_i32 : i32
    %1 = arith.extui %0 : i1 to i32
    %c0_i32_0 = arith.constant 0 : i32
    %2 = arith.cmpi ne, %1, %c0_i32_0 : i32
    scf.if %2 {
      %c0_87 = arith.constant 0 : index
      %c0_88 = arith.constant 0 : index
      %c0_89 = arith.constant 0 : index
      %240 = vector.load %arg6[%c0_87, %c0_88, %c0_89] : memref<2x8x32xf32, #tpu.memory_space<vmem>>, vector<2x8x32xf32>
      %c0_90 = arith.constant 0 : index
      %c0_91 = arith.constant 0 : index
      %c0_92 = arith.constant 0 : index
      %241 = vector.load %arg10[%c0_90, %c0_91, %c0_92] : memref<2x8x32xf32, #tpu.memory_space<vmem>>, vector<2x8x32xf32>
      tpu.vector_store %arg10[%c0_90, %c0_91, %c0_92], %240 {strides = array<i32>} : memref<2x8x32xf32, #tpu.memory_space<vmem>>, vector<2x8x32xf32>,
      %c0_93 = arith.constant 0 : index
      %c0_94 = arith.constant 0 : index
      %c0_95 = arith.constant 0 : index
      %242 = vector.load %arg7[%c0_93, %c0_94, %c0_95] : memref<2x8x32xf32, #tpu.memory_space<vmem>>, vector<2x8x32xf32>
      %c0_96 = arith.constant 0 : index
      %c0_97 = arith.constant 0 : index
      %c0_98 = arith.constant 0 : index
      %243 = vector.load %arg11[%c0_96, %c0_97, %c0_98] : memref<2x8x32xf32, #tpu.memory_space<vmem>>, vector<2x8x32xf32>
      tpu.vector_store %arg11[%c0_96, %c0_97, %c0_98], %242 {strides = array<i32>} : memref<2x8x32xf32, #tpu.memory_space<vmem>>, vector<2x8x32xf32>,
    } else {
    }
    %c0 = arith.constant 0 : index
    %c0_1 = arith.constant 0 : index
    %3 = vector.load %arg1[%c0, %c0_1] : memref<32x16xf32, #tpu.memory_space<vmem>>, vector<32x16xf32>
    %4 = arith.truncf %3 : vector<32x16xf32> to vector<32x16xbf16>
    %c0_2 = arith.constant 0 : index
    %c0_3 = arith.constant 0 : index
    %c0_4 = arith.constant 0 : index
    %c0_5 = arith.constant 0 : index
    %5 = vector.load %arg3[%c0_2, %c0_3, %c0_4, %c0_5] : memref<2x1x16x128xbf16, #tpu.memory_space<vmem>>, vector<1x1x16x128xbf16>
    %6 = vector.shape_cast %5 : vector<1x1x16x128xbf16> to vector<16x128xbf16>
    %cst = arith.constant dense<0.000000e+00> : vector<32x128xf32>
    %7 = tpu.matmul %4, %6, %cst {dimension_numbers = #tpu.dot_dimension_numbers<[1], [0], [0], [1], [0, 0, 1, 1], [], []>} : vector<32x16xbf16>, vector<16x128xbf16>, vector<32x128xf32> -> vector<32x128xf32>
    %c0_6 = arith.constant 0 : index
    %c0_7 = arith.constant 0 : index
    %8 = vector.load %arg2[%c0_6, %c0_7] : memref<32x16xf32, #tpu.memory_space<vmem>>, vector<32x16xf32>
    %9 = arith.truncf %8 : vector<32x16xf32> to vector<32x16xbf16>
    %c1 = arith.constant 1 : index
    %c0_8 = arith.constant 0 : index
    %c0_9 = arith.constant 0 : index
    %c0_10 = arith.constant 0 : index
    %10 = vector.load %arg3[%c1, %c0_8, %c0_9, %c0_10] : memref<2x1x16x128xbf16, #tpu.memory_space<vmem>>, vector<1x1x16x128xbf16>
    %11 = vector.shape_cast %10 : vector<1x1x16x128xbf16> to vector<16x128xbf16>
    %cst_11 = arith.constant dense<0.000000e+00> : vector<32x128xf32>
    %12 = tpu.matmul %9, %11, %cst_11 {dimension_numbers = #tpu.dot_dimension_numbers<[1], [0], [0], [1], [0, 0, 1, 1], [], []>} : vector<32x16xbf16>, vector<16x128xbf16>, vector<32x128xf32> -> vector<32x128xf32>
    %c0_12 = arith.constant 0 : index
    %c0_13 = arith.constant 0 : index
    %c0_14 = arith.constant 0 : index
    %13 = vector.load %arg5[%c0_12, %c0_13, %c0_14] : memref<2x1x128xf32, #tpu.memory_space<vmem>>, vector<1x1x128xf32>
    %14 = vector.shape_cast %13 : vector<1x1x128xf32> to vector<1x128xf32>
    %15 = vector.broadcast %14 : vector<1x128xf32> to vector<32x128xf32>
    %16 = arith.addf %7, %15 : vector<32x128xf32>
    %c0_15 = arith.constant 0 : index
    %c0_16 = arith.constant 0 : index
    %c0_17 = arith.constant 0 : index
    %17 = vector.load %arg12[%c0_15, %c0_16, %c0_17] : memref<2x32x128xf32, #tpu.memory_space<vmem>>, vector<1x32x128xf32>
    %18 = vector.shape_cast %17 : vector<1x32x128xf32> to vector<32x128xf32>
    %19 = vector.shape_cast %16 : vector<32x128xf32> to vector<1x32x128xf32>
    tpu.vector_store %arg12[%c0_15, %c0_16, %c0_17], %19 {strides = array<i32>} : memref<2x32x128xf32, #tpu.memory_space<vmem>>, vector<1x32x128xf32>,
    %c1_18 = arith.constant 1 : index
    %c0_19 = arith.constant 0 : index
    %c0_20 = arith.constant 0 : index
    %20 = vector.load %arg5[%c1_18, %c0_19, %c0_20] : memref<2x1x128xf32, #tpu.memory_space<vmem>>, vector<1x1x128xf32>
    %21 = vector.shape_cast %20 : vector<1x1x128xf32> to vector<1x128xf32>
    %22 = vector.broadcast %21 : vector<1x128xf32> to vector<32x128xf32>
    %23 = arith.addf %12, %22 : vector<32x128xf32>
    %c1_21 = arith.constant 1 : index
    %c0_22 = arith.constant 0 : index
    %c0_23 = arith.constant 0 : index
    %24 = vector.load %arg12[%c1_21, %c0_22, %c0_23] : memref<2x32x128xf32, #tpu.memory_space<vmem>>, vector<1x32x128xf32>
    %25 = vector.shape_cast %24 : vector<1x32x128xf32> to vector<32x128xf32>
    %26 = vector.shape_cast %23 : vector<32x128xf32> to vector<1x32x128xf32>
    tpu.vector_store %arg12[%c1_21, %c0_22, %c0_23], %26 {strides = array<i32>} : memref<2x32x128xf32, #tpu.memory_space<vmem>>, vector<1x32x128xf32>,
    %c0_24 = arith.constant 0 : index
    %c0_25 = arith.constant 0 : index
    %c0_26 = arith.constant 0 : index
    %27 = vector.load %arg4[%c0_24, %c0_25, %c0_26] : memref<2x32x128xbf16, #tpu.memory_space<vmem>>, vector<2x32x128xbf16>
    %c0_27 = arith.constant 0 : index
    %c0_28 = arith.constant 0 : index
    %c0_29 = arith.constant 0 : index
    %28 = vector.load %arg10[%c0_27, %c0_28, %c0_29] : memref<2x8x32xf32, #tpu.memory_space<vmem>>, vector<2x8x32xf32>
    %c0_30 = arith.constant 0 : index
    %c0_31 = arith.constant 0 : index
    %c0_32 = arith.constant 0 : index
    %29 = vector.load %arg11[%c0_30, %c0_31, %c0_32] : memref<2x8x32xf32, #tpu.memory_space<vmem>>, vector<2x8x32xf32>
    %c0_i32_33 = arith.constant 0 : i32
    %c8_i32 = arith.constant 8 : i32
    %30 = arith.muli %c0_i32_33, %c8_i32 : i32
    %31 = tpu.assume_multiple %30, 8 : i32
    %c3_i32 = arith.constant 3 : i32
    %32 = arith.subi %c3_i32, %c0_i32_33 : i32
    %c8_i32_34 = arith.constant 8 : i32
    %33 = arith.muli %32, %c8_i32_34 : i32
    %34 = tpu.assume_multiple %33, 8 : i32
    %c0_35 = arith.constant 0 : index
    %35 = arith.index_cast %31 : i32 to index
    %c0_36 = arith.constant 0 : index
    %36 = vector.load %arg12[%c0_35, %35, %c0_36] : memref<2x32x128xf32, #tpu.memory_space<vmem>>, vector<1x8x128xf32>
    %37 = vector.shape_cast %36 : vector<1x8x128xf32> to vector<8x128xf32>
    %38 = vector.extract_strided_slice %28 {offsets = [0, 0, 0], sizes = [1, 8, 32], strides = [1, 1, 1]} : vector<2x8x32xf32> to vector<1x8x32xf32>
    %39 = vector.shape_cast %38 : vector<1x8x32xf32> to vector<8x32xf32>
    %40 = arith.truncf %39 : vector<8x32xf32> to vector<8x32xbf16>
    %41 = vector.extract_strided_slice %27 {offsets = [0, 0, 0], sizes = [1, 32, 128], strides = [1, 1, 1]} : vector<2x32x128xbf16> to vector<1x32x128xbf16>
    %42 = vector.shape_cast %41 : vector<1x32x128xbf16> to vector<32x128xbf16>
    %cst_37 = arith.constant dense<0.000000e+00> : vector<8x128xf32>
    %43 = tpu.matmul %40, %42, %cst_37 {dimension_numbers = #tpu.dot_dimension_numbers<[1], [0], [0], [1], [0, 0, 1, 1], [], []>} : vector<8x32xbf16>, vector<32x128xbf16>, vector<8x128xf32> -> vector<8x128xf32>
    %44 = arith.addf %37, %43 : vector<8x128xf32>
    %c1_38 = arith.constant 1 : index
    %45 = arith.index_cast %34 : i32 to index
    %c0_39 = arith.constant 0 : index
    %46 = vector.load %arg12[%c1_38, %45, %c0_39] : memref<2x32x128xf32, #tpu.memory_space<vmem>>, vector<1x8x128xf32>
    %47 = vector.shape_cast %46 : vector<1x8x128xf32> to vector<8x128xf32>
    %48 = vector.extract_strided_slice %28 {offsets = [1, 0, 0], sizes = [1, 8, 32], strides = [1, 1, 1]} : vector<2x8x32xf32> to vector<1x8x32xf32>
    %49 = vector.shape_cast %48 : vector<1x8x32xf32> to vector<8x32xf32>
    %50 = arith.truncf %49 : vector<8x32xf32> to vector<8x32xbf16>
    %51 = vector.extract_strided_slice %27 {offsets = [1, 0, 0], sizes = [1, 32, 128], strides = [1, 1, 1]} : vector<2x32x128xbf16> to vector<1x32x128xbf16>
    %52 = vector.shape_cast %51 : vector<1x32x128xbf16> to vector<32x128xbf16>
    %cst_40 = arith.constant dense<0.000000e+00> : vector<8x128xf32>
    %53 = tpu.matmul %50, %52, %cst_40 {dimension_numbers = #tpu.dot_dimension_numbers<[1], [0], [0], [1], [0, 0, 1, 1], [], []>} : vector<8x32xbf16>, vector<32x128xbf16>, vector<8x128xf32> -> vector<8x128xf32>
    %54 = arith.addf %47, %53 : vector<8x128xf32>
    %55 = vector.shape_cast %44 : vector<8x128xf32> to vector<1x8x128xf32>
    %56 = vector.shape_cast %54 : vector<8x128xf32> to vector<1x8x128xf32>
    %57 = tpu.concatenate %55, %56 in 0 : vector<1x8x128xf32>, vector<1x8x128xf32> -> vector<2x8x128xf32>
    %58 = vector.extract_strided_slice %57 {offsets = [0, 0, 0], sizes = [2, 8, 96], strides = [1, 1, 1]} : vector<2x8x128xf32> to vector<2x8x96xf32>
    %59 = arith.negf %58 : vector<2x8x96xf32>
    %60 = math.exp %59 : vector<2x8x96xf32>
    %cst_41 = arith.constant 1.000000e+00 : f32
    %61 = vector.broadcast %cst_41 : f32 to vector<2x8x96xf32>
    %62 = arith.addf %61, %60 : vector<2x8x96xf32>
    %63 = arith.divf %61, %62 : vector<2x8x96xf32>
    %64 = vector.extract_strided_slice %57 {offsets = [0, 0, 96], sizes = [2, 8, 32], strides = [1, 1, 1]} : vector<2x8x128xf32> to vector<2x8x32xf32>
    %65 = math.tanh %64 : vector<2x8x32xf32>
    %66 = vector.extract_strided_slice %63 {offsets = [0, 0, 32], sizes = [2, 8, 32], strides = [1, 1, 1]} : vector<2x8x96xf32> to vector<2x8x32xf32>
    %67 = arith.mulf %66, %29 : vector<2x8x32xf32>
    %68 = vector.extract_strided_slice %63 {offsets = [0, 0, 0], sizes = [2, 8, 32], strides = [1, 1, 1]} : vector<2x8x96xf32> to vector<2x8x32xf32>
    %69 = arith.mulf %68, %65 : vector<2x8x32xf32>
    %70 = arith.addf %67, %69 : vector<2x8x32xf32>
    %71 = vector.extract_strided_slice %63 {offsets = [0, 0, 64], sizes = [2, 8, 32], strides = [1, 1, 1]} : vector<2x8x96xf32> to vector<2x8x32xf32>
    %72 = math.tanh %70 : vector<2x8x32xf32>
    %73 = arith.mulf %71, %72 : vector<2x8x32xf32>
    %74 = vector.extract_strided_slice %73 {offsets = [0, 0, 0], sizes = [1, 8, 32], strides = [1, 1, 1]} : vector<2x8x32xf32> to vector<1x8x32xf32>
    %75 = vector.shape_cast %74 : vector<1x8x32xf32> to vector<8x32xf32>
    %76 = arith.index_cast %31 : i32 to index
    %c0_42 = arith.constant 0 : index
    %77 = vector.load %arg8[%76, %c0_42] : memref<32x32xf32, #tpu.memory_space<vmem>>, vector<8x32xf32>
    tpu.vector_store %arg8[%76, %c0_42], %75 {strides = array<i32>} : memref<32x32xf32, #tpu.memory_space<vmem>>, vector<8x32xf32>,
    %78 = vector.extract_strided_slice %73 {offsets = [1, 0, 0], sizes = [1, 8, 32], strides = [1, 1, 1]} : vector<2x8x32xf32> to vector<1x8x32xf32>
    %79 = vector.shape_cast %78 : vector<1x8x32xf32> to vector<8x32xf32>
    %80 = arith.index_cast %34 : i32 to index
    %c0_43 = arith.constant 0 : index
    %81 = vector.load %arg9[%80, %c0_43] : memref<32x32xf32, #tpu.memory_space<vmem>>, vector<8x32xf32>
    tpu.vector_store %arg9[%80, %c0_43], %79 {strides = array<i32>} : memref<32x32xf32, #tpu.memory_space<vmem>>, vector<8x32xf32>,
    %c1_i32 = arith.constant 1 : i32
    %c8_i32_44 = arith.constant 8 : i32
    %82 = arith.muli %c1_i32, %c8_i32_44 : i32
    %83 = tpu.assume_multiple %82, 8 : i32
    %c3_i32_45 = arith.constant 3 : i32
    %84 = arith.subi %c3_i32_45, %c1_i32 : i32
    %c8_i32_46 = arith.constant 8 : i32
    %85 = arith.muli %84, %c8_i32_46 : i32
    %86 = tpu.assume_multiple %85, 8 : i32
    %c0_47 = arith.constant 0 : index
    %87 = arith.index_cast %83 : i32 to index
    %c0_48 = arith.constant 0 : index
    %88 = vector.load %arg12[%c0_47, %87, %c0_48] : memref<2x32x128xf32, #tpu.memory_space<vmem>>, vector<1x8x128xf32>
    %89 = vector.shape_cast %88 : vector<1x8x128xf32> to vector<8x128xf32>
    %90 = vector.extract_strided_slice %73 {offsets = [0, 0, 0], sizes = [1, 8, 32], strides = [1, 1, 1]} : vector<2x8x32xf32> to vector<1x8x32xf32>
    %91 = vector.shape_cast %90 : vector<1x8x32xf32> to vector<8x32xf32>
    %92 = arith.truncf %91 : vector<8x32xf32> to vector<8x32xbf16>
    %93 = vector.extract_strided_slice %27 {offsets = [0, 0, 0], sizes = [1, 32, 128], strides = [1, 1, 1]} : vector<2x32x128xbf16> to vector<1x32x128xbf16>
    %94 = vector.shape_cast %93 : vector<1x32x128xbf16> to vector<32x128xbf16>
    %cst_49 = arith.constant dense<0.000000e+00> : vector<8x128xf32>
    %95 = tpu.matmul %92, %94, %cst_49 {dimension_numbers = #tpu.dot_dimension_numbers<[1], [0], [0], [1], [0, 0, 1, 1], [], []>} : vector<8x32xbf16>, vector<32x128xbf16>, vector<8x128xf32> -> vector<8x128xf32>
    %96 = arith.addf %89, %95 : vector<8x128xf32>
    %c1_50 = arith.constant 1 : index
    %97 = arith.index_cast %86 : i32 to index
    %c0_51 = arith.constant 0 : index
    %98 = vector.load %arg12[%c1_50, %97, %c0_51] : memref<2x32x128xf32, #tpu.memory_space<vmem>>, vector<1x8x128xf32>
    %99 = vector.shape_cast %98 : vector<1x8x128xf32> to vector<8x128xf32>
    %100 = vector.extract_strided_slice %73 {offsets = [1, 0, 0], sizes = [1, 8, 32], strides = [1, 1, 1]} : vector<2x8x32xf32> to vector<1x8x32xf32>
    %101 = vector.shape_cast %100 : vector<1x8x32xf32> to vector<8x32xf32>
    %102 = arith.truncf %101 : vector<8x32xf32> to vector<8x32xbf16>
    %103 = vector.extract_strided_slice %27 {offsets = [1, 0, 0], sizes = [1, 32, 128], strides = [1, 1, 1]} : vector<2x32x128xbf16> to vector<1x32x128xbf16>
    %104 = vector.shape_cast %103 : vector<1x32x128xbf16> to vector<32x128xbf16>
    %cst_52 = arith.constant dense<0.000000e+00> : vector<8x128xf32>
    %105 = tpu.matmul %102, %104, %cst_52 {dimension_numbers = #tpu.dot_dimension_numbers<[1], [0], [0], [1], [0, 0, 1, 1], [], []>} : vector<8x32xbf16>, vector<32x128xbf16>, vector<8x128xf32> -> vector<8x128xf32>
    %106 = arith.addf %99, %105 : vector<8x128xf32>
    %107 = vector.shape_cast %96 : vector<8x128xf32> to vector<1x8x128xf32>
    %108 = vector.shape_cast %106 : vector<8x128xf32> to vector<1x8x128xf32>
    %109 = tpu.concatenate %107, %108 in 0 : vector<1x8x128xf32>, vector<1x8x128xf32> -> vector<2x8x128xf32>
    %110 = vector.extract_strided_slice %109 {offsets = [0, 0, 0], sizes = [2, 8, 96], strides = [1, 1, 1]} : vector<2x8x128xf32> to vector<2x8x96xf32>
    %111 = arith.negf %110 : vector<2x8x96xf32>
    %112 = math.exp %111 : vector<2x8x96xf32>
    %cst_53 = arith.constant 1.000000e+00 : f32
    %113 = vector.broadcast %cst_53 : f32 to vector<2x8x96xf32>
    %114 = arith.addf %113, %112 : vector<2x8x96xf32>
    %115 = arith.divf %113, %114 : vector<2x8x96xf32>
    %116 = vector.extract_strided_slice %109 {offsets = [0, 0, 96], sizes = [2, 8, 32], strides = [1, 1, 1]} : vector<2x8x128xf32> to vector<2x8x32xf32>
    %117 = math.tanh %116 : vector<2x8x32xf32>
    %118 = vector.extract_strided_slice %115 {offsets = [0, 0, 32], sizes = [2, 8, 32], strides = [1, 1, 1]} : vector<2x8x96xf32> to vector<2x8x32xf32>
    %119 = arith.mulf %118, %70 : vector<2x8x32xf32>
    %120 = vector.extract_strided_slice %115 {offsets = [0, 0, 0], sizes = [2, 8, 32], strides = [1, 1, 1]} : vector<2x8x96xf32> to vector<2x8x32xf32>
    %121 = arith.mulf %120, %117 : vector<2x8x32xf32>
    %122 = arith.addf %119, %121 : vector<2x8x32xf32>
    %123 = vector.extract_strided_slice %115 {offsets = [0, 0, 64], sizes = [2, 8, 32], strides = [1, 1, 1]} : vector<2x8x96xf32> to vector<2x8x32xf32>
    %124 = math.tanh %122 : vector<2x8x32xf32>
    %125 = arith.mulf %123, %124 : vector<2x8x32xf32>
    %126 = vector.extract_strided_slice %125 {offsets = [0, 0, 0], sizes = [1, 8, 32], strides = [1, 1, 1]} : vector<2x8x32xf32> to vector<1x8x32xf32>
    %127 = vector.shape_cast %126 : vector<1x8x32xf32> to vector<8x32xf32>
    %128 = arith.index_cast %83 : i32 to index
    %c0_54 = arith.constant 0 : index
    %129 = vector.load %arg8[%128, %c0_54] : memref<32x32xf32, #tpu.memory_space<vmem>>, vector<8x32xf32>
    tpu.vector_store %arg8[%128, %c0_54], %127 {strides = array<i32>} : memref<32x32xf32, #tpu.memory_space<vmem>>, vector<8x32xf32>,
    %130 = vector.extract_strided_slice %125 {offsets = [1, 0, 0], sizes = [1, 8, 32], strides = [1, 1, 1]} : vector<2x8x32xf32> to vector<1x8x32xf32>
    %131 = vector.shape_cast %130 : vector<1x8x32xf32> to vector<8x32xf32>
    %132 = arith.index_cast %86 : i32 to index
    %c0_55 = arith.constant 0 : index
    %133 = vector.load %arg9[%132, %c0_55] : memref<32x32xf32, #tpu.memory_space<vmem>>, vector<8x32xf32>
    tpu.vector_store %arg9[%132, %c0_55], %131 {strides = array<i32>} : memref<32x32xf32, #tpu.memory_space<vmem>>, vector<8x32xf32>,
    %c2_i32 = arith.constant 2 : i32
    %c8_i32_56 = arith.constant 8 : i32
    %134 = arith.muli %c2_i32, %c8_i32_56 : i32
    %135 = tpu.assume_multiple %134, 8 : i32
    %c3_i32_57 = arith.constant 3 : i32
    %136 = arith.subi %c3_i32_57, %c2_i32 : i32
    %c8_i32_58 = arith.constant 8 : i32
    %137 = arith.muli %136, %c8_i32_58 : i32
    %138 = tpu.assume_multiple %137, 8 : i32
    %c0_59 = arith.constant 0 : index
    %139 = arith.index_cast %135 : i32 to index
    %c0_60 = arith.constant 0 : index
    %140 = vector.load %arg12[%c0_59, %139, %c0_60] : memref<2x32x128xf32, #tpu.memory_space<vmem>>, vector<1x8x128xf32>
    %141 = vector.shape_cast %140 : vector<1x8x128xf32> to vector<8x128xf32>
    %142 = vector.extract_strided_slice %125 {offsets = [0, 0, 0], sizes = [1, 8, 32], strides = [1, 1, 1]} : vector<2x8x32xf32> to vector<1x8x32xf32>
    %143 = vector.shape_cast %142 : vector<1x8x32xf32> to vector<8x32xf32>
    %144 = arith.truncf %143 : vector<8x32xf32> to vector<8x32xbf16>
    %145 = vector.extract_strided_slice %27 {offsets = [0, 0, 0], sizes = [1, 32, 128], strides = [1, 1, 1]} : vector<2x32x128xbf16> to vector<1x32x128xbf16>
    %146 = vector.shape_cast %145 : vector<1x32x128xbf16> to vector<32x128xbf16>
    %cst_61 = arith.constant dense<0.000000e+00> : vector<8x128xf32>
    %147 = tpu.matmul %144, %146, %cst_61 {dimension_numbers = #tpu.dot_dimension_numbers<[1], [0], [0], [1], [0, 0, 1, 1], [], []>} : vector<8x32xbf16>, vector<32x128xbf16>, vector<8x128xf32> -> vector<8x128xf32>
    %148 = arith.addf %141, %147 : vector<8x128xf32>
    %c1_62 = arith.constant 1 : index
    %149 = arith.index_cast %138 : i32 to index
    %c0_63 = arith.constant 0 : index
    %150 = vector.load %arg12[%c1_62, %149, %c0_63] : memref<2x32x128xf32, #tpu.memory_space<vmem>>, vector<1x8x128xf32>
    %151 = vector.shape_cast %150 : vector<1x8x128xf32> to vector<8x128xf32>
    %152 = vector.extract_strided_slice %125 {offsets = [1, 0, 0], sizes = [1, 8, 32], strides = [1, 1, 1]} : vector<2x8x32xf32> to vector<1x8x32xf32>
    %153 = vector.shape_cast %152 : vector<1x8x32xf32> to vector<8x32xf32>
    %154 = arith.truncf %153 : vector<8x32xf32> to vector<8x32xbf16>
    %155 = vector.extract_strided_slice %27 {offsets = [1, 0, 0], sizes = [1, 32, 128], strides = [1, 1, 1]} : vector<2x32x128xbf16> to vector<1x32x128xbf16>
    %156 = vector.shape_cast %155 : vector<1x32x128xbf16> to vector<32x128xbf16>
    %cst_64 = arith.constant dense<0.000000e+00> : vector<8x128xf32>
    %157 = tpu.matmul %154, %156, %cst_64 {dimension_numbers = #tpu.dot_dimension_numbers<[1], [0], [0], [1], [0, 0, 1, 1], [], []>} : vector<8x32xbf16>, vector<32x128xbf16>, vector<8x128xf32> -> vector<8x128xf32>
    %158 = arith.addf %151, %157 : vector<8x128xf32>
    %159 = vector.shape_cast %148 : vector<8x128xf32> to vector<1x8x128xf32>
    %160 = vector.shape_cast %158 : vector<8x128xf32> to vector<1x8x128xf32>
    %161 = tpu.concatenate %159, %160 in 0 : vector<1x8x128xf32>, vector<1x8x128xf32> -> vector<2x8x128xf32>
    %162 = vector.extract_strided_slice %161 {offsets = [0, 0, 0], sizes = [2, 8, 96], strides = [1, 1, 1]} : vector<2x8x128xf32> to vector<2x8x96xf32>
    %163 = arith.negf %162 : vector<2x8x96xf32>
    %164 = math.exp %163 : vector<2x8x96xf32>
    %cst_65 = arith.constant 1.000000e+00 : f32
    %165 = vector.broadcast %cst_65 : f32 to vector<2x8x96xf32>
    %166 = arith.addf %165, %164 : vector<2x8x96xf32>
    %167 = arith.divf %165, %166 : vector<2x8x96xf32>
    %168 = vector.extract_strided_slice %161 {offsets = [0, 0, 96], sizes = [2, 8, 32], strides = [1, 1, 1]} : vector<2x8x128xf32> to vector<2x8x32xf32>
    %169 = math.tanh %168 : vector<2x8x32xf32>
    %170 = vector.extract_strided_slice %167 {offsets = [0, 0, 32], sizes = [2, 8, 32], strides = [1, 1, 1]} : vector<2x8x96xf32> to vector<2x8x32xf32>
    %171 = arith.mulf %170, %122 : vector<2x8x32xf32>
    %172 = vector.extract_strided_slice %167 {offsets = [0, 0, 0], sizes = [2, 8, 32], strides = [1, 1, 1]} : vector<2x8x96xf32> to vector<2x8x32xf32>
    %173 = arith.mulf %172, %169 : vector<2x8x32xf32>
    %174 = arith.addf %171, %173 : vector<2x8x32xf32>
    %175 = vector.extract_strided_slice %167 {offsets = [0, 0, 64], sizes = [2, 8, 32], strides = [1, 1, 1]} : vector<2x8x96xf32> to vector<2x8x32xf32>
    %176 = math.tanh %174 : vector<2x8x32xf32>
    %177 = arith.mulf %175, %176 : vector<2x8x32xf32>
    %178 = vector.extract_strided_slice %177 {offsets = [0, 0, 0], sizes = [1, 8, 32], strides = [1, 1, 1]} : vector<2x8x32xf32> to vector<1x8x32xf32>
    %179 = vector.shape_cast %178 : vector<1x8x32xf32> to vector<8x32xf32>
    %180 = arith.index_cast %135 : i32 to index
    %c0_66 = arith.constant 0 : index
    %181 = vector.load %arg8[%180, %c0_66] : memref<32x32xf32, #tpu.memory_space<vmem>>, vector<8x32xf32>
    tpu.vector_store %arg8[%180, %c0_66], %179 {strides = array<i32>} : memref<32x32xf32, #tpu.memory_space<vmem>>, vector<8x32xf32>,
    %182 = vector.extract_strided_slice %177 {offsets = [1, 0, 0], sizes = [1, 8, 32], strides = [1, 1, 1]} : vector<2x8x32xf32> to vector<1x8x32xf32>
    %183 = vector.shape_cast %182 : vector<1x8x32xf32> to vector<8x32xf32>
    %184 = arith.index_cast %138 : i32 to index
    %c0_67 = arith.constant 0 : index
    %185 = vector.load %arg9[%184, %c0_67] : memref<32x32xf32, #tpu.memory_space<vmem>>, vector<8x32xf32>
    tpu.vector_store %arg9[%184, %c0_67], %183 {strides = array<i32>} : memref<32x32xf32, #tpu.memory_space<vmem>>, vector<8x32xf32>,
    %c3_i32_68 = arith.constant 3 : i32
    %c8_i32_69 = arith.constant 8 : i32
    %186 = arith.muli %c3_i32_68, %c8_i32_69 : i32
    %187 = tpu.assume_multiple %186, 8 : i32
    %c3_i32_70 = arith.constant 3 : i32
    %188 = arith.subi %c3_i32_70, %c3_i32_68 : i32
    %c8_i32_71 = arith.constant 8 : i32
    %189 = arith.muli %188, %c8_i32_71 : i32
    %190 = tpu.assume_multiple %189, 8 : i32
    %c0_72 = arith.constant 0 : index
    %191 = arith.index_cast %187 : i32 to index
    %c0_73 = arith.constant 0 : index
    %192 = vector.load %arg12[%c0_72, %191, %c0_73] : memref<2x32x128xf32, #tpu.memory_space<vmem>>, vector<1x8x128xf32>
    %193 = vector.shape_cast %192 : vector<1x8x128xf32> to vector<8x128xf32>
    %194 = vector.extract_strided_slice %177 {offsets = [0, 0, 0], sizes = [1, 8, 32], strides = [1, 1, 1]} : vector<2x8x32xf32> to vector<1x8x32xf32>
    %195 = vector.shape_cast %194 : vector<1x8x32xf32> to vector<8x32xf32>
    %196 = arith.truncf %195 : vector<8x32xf32> to vector<8x32xbf16>
    %197 = vector.extract_strided_slice %27 {offsets = [0, 0, 0], sizes = [1, 32, 128], strides = [1, 1, 1]} : vector<2x32x128xbf16> to vector<1x32x128xbf16>
    %198 = vector.shape_cast %197 : vector<1x32x128xbf16> to vector<32x128xbf16>
    %cst_74 = arith.constant dense<0.000000e+00> : vector<8x128xf32>
    %199 = tpu.matmul %196, %198, %cst_74 {dimension_numbers = #tpu.dot_dimension_numbers<[1], [0], [0], [1], [0, 0, 1, 1], [], []>} : vector<8x32xbf16>, vector<32x128xbf16>, vector<8x128xf32> -> vector<8x128xf32>
    %200 = arith.addf %193, %199 : vector<8x128xf32>
    %c1_75 = arith.constant 1 : index
    %201 = arith.index_cast %190 : i32 to index
    %c0_76 = arith.constant 0 : index
    %202 = vector.load %arg12[%c1_75, %201, %c0_76] : memref<2x32x128xf32, #tpu.memory_space<vmem>>, vector<1x8x128xf32>
    %203 = vector.shape_cast %202 : vector<1x8x128xf32> to vector<8x128xf32>
    %204 = vector.extract_strided_slice %177 {offsets = [1, 0, 0], sizes = [1, 8, 32], strides = [1, 1, 1]} : vector<2x8x32xf32> to vector<1x8x32xf32>
    %205 = vector.shape_cast %204 : vector<1x8x32xf32> to vector<8x32xf32>
    %206 = arith.truncf %205 : vector<8x32xf32> to vector<8x32xbf16>
    %207 = vector.extract_strided_slice %27 {offsets = [1, 0, 0], sizes = [1, 32, 128], strides = [1, 1, 1]} : vector<2x32x128xbf16> to vector<1x32x128xbf16>
    %208 = vector.shape_cast %207 : vector<1x32x128xbf16> to vector<32x128xbf16>
    %cst_77 = arith.constant dense<0.000000e+00> : vector<8x128xf32>
    %209 = tpu.matmul %206, %208, %cst_77 {dimension_numbers = #tpu.dot_dimension_numbers<[1], [0], [0], [1], [0, 0, 1, 1], [], []>} : vector<8x32xbf16>, vector<32x128xbf16>, vector<8x128xf32> -> vector<8x128xf32>
    %210 = arith.addf %203, %209 : vector<8x128xf32>
    %211 = vector.shape_cast %200 : vector<8x128xf32> to vector<1x8x128xf32>
    %212 = vector.shape_cast %210 : vector<8x128xf32> to vector<1x8x128xf32>
    %213 = tpu.concatenate %211, %212 in 0 : vector<1x8x128xf32>, vector<1x8x128xf32> -> vector<2x8x128xf32>
    %214 = vector.extract_strided_slice %213 {offsets = [0, 0, 0], sizes = [2, 8, 96], strides = [1, 1, 1]} : vector<2x8x128xf32> to vector<2x8x96xf32>
    %215 = arith.negf %214 : vector<2x8x96xf32>
    %216 = math.exp %215 : vector<2x8x96xf32>
    %cst_78 = arith.constant 1.000000e+00 : f32
    %217 = vector.broadcast %cst_78 : f32 to vector<2x8x96xf32>
    %218 = arith.addf %217, %216 : vector<2x8x96xf32>
    %219 = arith.divf %217, %218 : vector<2x8x96xf32>
    %220 = vector.extract_strided_slice %213 {offsets = [0, 0, 96], sizes = [2, 8, 32], strides = [1, 1, 1]} : vector<2x8x128xf32> to vector<2x8x32xf32>
    %221 = math.tanh %220 : vector<2x8x32xf32>
    %222 = vector.extract_strided_slice %219 {offsets = [0, 0, 32], sizes = [2, 8, 32], strides = [1, 1, 1]} : vector<2x8x96xf32> to vector<2x8x32xf32>
    %223 = arith.mulf %222, %174 : vector<2x8x32xf32>
    %224 = vector.extract_strided_slice %219 {offsets = [0, 0, 0], sizes = [2, 8, 32], strides = [1, 1, 1]} : vector<2x8x96xf32> to vector<2x8x32xf32>
    %225 = arith.mulf %224, %221 : vector<2x8x32xf32>
    %226 = arith.addf %223, %225 : vector<2x8x32xf32>
    %227 = vector.extract_strided_slice %219 {offsets = [0, 0, 64], sizes = [2, 8, 32], strides = [1, 1, 1]} : vector<2x8x96xf32> to vector<2x8x32xf32>
    %228 = math.tanh %226 : vector<2x8x32xf32>
    %229 = arith.mulf %227, %228 : vector<2x8x32xf32>
    %230 = vector.extract_strided_slice %229 {offsets = [0, 0, 0], sizes = [1, 8, 32], strides = [1, 1, 1]} : vector<2x8x32xf32> to vector<1x8x32xf32>
    %231 = vector.shape_cast %230 : vector<1x8x32xf32> to vector<8x32xf32>
    %232 = arith.index_cast %187 : i32 to index
    %c0_79 = arith.constant 0 : index
    %233 = vector.load %arg8[%232, %c0_79] : memref<32x32xf32, #tpu.memory_space<vmem>>, vector<8x32xf32>
    tpu.vector_store %arg8[%232, %c0_79], %231 {strides = array<i32>} : memref<32x32xf32, #tpu.memory_space<vmem>>, vector<8x32xf32>,
    %234 = vector.extract_strided_slice %229 {offsets = [1, 0, 0], sizes = [1, 8, 32], strides = [1, 1, 1]} : vector<2x8x32xf32> to vector<1x8x32xf32>
    %235 = vector.shape_cast %234 : vector<1x8x32xf32> to vector<8x32xf32>
    %236 = arith.index_cast %190 : i32 to index
    %c0_80 = arith.constant 0 : index
    %237 = vector.load %arg9[%236, %c0_80] : memref<32x32xf32, #tpu.memory_space<vmem>>, vector<8x32xf32>
    tpu.vector_store %arg9[%236, %c0_80], %235 {strides = array<i32>} : memref<32x32xf32, #tpu.memory_space<vmem>>, vector<8x32xf32>,
    %c4_i32 = arith.constant 4 : i32
    %c0_81 = arith.constant 0 : index
    %c0_82 = arith.constant 0 : index
    %c0_83 = arith.constant 0 : index
    %238 = vector.load %arg10[%c0_81, %c0_82, %c0_83] : memref<2x8x32xf32, #tpu.memory_space<vmem>>, vector<2x8x32xf32>
    tpu.vector_store %arg10[%c0_81, %c0_82, %c0_83], %229 {strides = array<i32>} : memref<2x8x32xf32, #tpu.memory_space<vmem>>, vector<2x8x32xf32>,
    %c0_84 = arith.constant 0 : index
    %c0_85 = arith.constant 0 : index
    %c0_86 = arith.constant 0 : index
    %239 = vector.load %arg11[%c0_84, %c0_85, %c0_86] : memref<2x8x32xf32, #tpu.memory_space<vmem>>, vector<2x8x32xf32>
    tpu.vector_store %arg11[%c0_84, %c0_85, %c0_86], %226 {strides = array<i32>} : memref<2x8x32xf32, #tpu.memory_space<vmem>>, vector<2x8x32xf32>,
    return
  }
  func.func @transform_0(%arg0: i32) -> (i32, i32) {
    %c0_i32 = arith.constant 0 : i32
    %c0_i32_0 = arith.constant 0 : i32
    return %arg0, %c0_i32 : i32, i32
  }
  func.func @transform_1(%arg0: i32) -> (i32, i32) {
    %c1_i32 = arith.constant 1 : i32
    %0 = arith.subi %c1_i32, %arg0 : i32
    %c0_i32 = arith.constant 0 : i32
    %c0_i32_0 = arith.constant 0 : i32
    return %0, %c0_i32 : i32, i32
  }
  func.func @transform_2(%arg0: i32) -> (i32, i32, i32, i32) {
    %c0_i32 = arith.constant 0 : i32
    %c0_i32_0 = arith.constant 0 : i32
    %c0_i32_1 = arith.constant 0 : i32
    %c0_i32_2 = arith.constant 0 : i32
    %c0_i32_3 = arith.constant 0 : i32
    return %c0_i32, %c0_i32_0, %c0_i32_1, %c0_i32_2 : i32, i32, i32, i32
  }
  func.func @transform_3(%arg0: i32) -> (i32, i32, i32) {
    %c0_i32 = arith.constant 0 : i32
    %c0_i32_0 = arith.constant 0 : i32
    %c0_i32_1 = arith.constant 0 : i32
    %c0_i32_2 = arith.constant 0 : i32
    return %c0_i32, %c0_i32_0, %c0_i32_1 : i32, i32, i32
  }
  func.func @transform_4(%arg0: i32) -> (i32, i32, i32) {
    %c0_i32 = arith.constant 0 : i32
    %c0_i32_0 = arith.constant 0 : i32
    %c0_i32_1 = arith.constant 0 : i32
    %c0_i32_2 = arith.constant 0 : i32
    return %c0_i32, %c0_i32_0, %c0_i32_1 : i32, i32, i32
  }
  func.func @transform_5(%arg0: i32) -> (i32, i32, i32) {
    %c0_i32 = arith.constant 0 : i32
    %c0_i32_0 = arith.constant 0 : i32
    %c0_i32_1 = arith.constant 0 : i32
    %c0_i32_2 = arith.constant 0 : i32
    return %c0_i32, %c0_i32_0, %c0_i32_1 : i32, i32, i32
  }
  func.func @transform_6(%arg0: i32) -> (i32, i32, i32) {
    %c0_i32 = arith.constant 0 : i32
    %c0_i32_0 = arith.constant 0 : i32
    %c0_i32_1 = arith.constant 0 : i32
    %c0_i32_2 = arith.constant 0 : i32
    return %c0_i32, %c0_i32_0, %c0_i32_1 : i32, i32, i32
  }
  func.func @transform_7(%arg0: i32) -> (i32, i32) {
    %c0_i32 = arith.constant 0 : i32
    %c0_i32_0 = arith.constant 0 : i32
    return %arg0, %c0_i32 : i32, i32
  }
  func.func @transform_8(%arg0: i32) -> (i32, i32) {
    %c1_i32 = arith.constant 1 : i32
    %0 = arith.subi %c1_i32, %arg0 : i32
    %c0_i32 = arith.constant 0 : i32
    %c0_i32_0 = arith.constant 0 : i32
    return %0, %c0_i32 : i32, i32
  }
  func.func @transform_9(%arg0: i32) -> (i32, i32, i32) {
    %c0_i32 = arith.constant 0 : i32
    %c0_i32_0 = arith.constant 0 : i32
    %c0_i32_1 = arith.constant 0 : i32
    %c0_i32_2 = arith.constant 0 : i32
    return %c0_i32, %c0_i32_0, %c0_i32_1 : i32, i32, i32
  }
  func.func @transform_10(%arg0: i32) -> (i32, i32, i32) {
    %c0_i32 = arith.constant 0 : i32
    %c0_i32_0 = arith.constant 0 : i32
    %c0_i32_1 = arith.constant 0 : i32
    %c0_i32_2 = arith.constant 0 : i32
    return %c0_i32, %c0_i32_0, %c0_i32_1 : i32, i32, i32
  }
}

module attributes {stable_mosaic.version = 11 : i64} {
  func.func @kernel(%arg0: i32, %arg1: memref<32x32xf32, #tpu.memory_space<vmem>>, %arg2: memref<32x32xf32, #tpu.memory_space<vmem>>, %arg3: memref<32x32xf32, #tpu.memory_space<vmem>>, %arg4: memref<32x32xf32, #tpu.memory_space<vmem>>, %arg5: memref<2x2x32x128xbf16, #tpu.memory_space<vmem>>, %arg6: memref<2x32x128xbf16, #tpu.memory_space<vmem>>, %arg7: memref<2x1x128xf32, #tpu.memory_space<vmem>>, %arg8: memref<2x8x32xf32, #tpu.memory_space<vmem>>, %arg9: memref<2x8x32xf32, #tpu.memory_space<vmem>>, %arg10: memref<32x32xf32, #tpu.memory_space<vmem>>, %arg11: memref<32x32xf32, #tpu.memory_space<vmem>>, %arg12: memref<2x8x32xf32, #tpu.memory_space<vmem>>, %arg13: memref<2x8x32xf32, #tpu.memory_space<vmem>>, %arg14: memref<2x32x128xf32, #tpu.memory_space<vmem>>) attributes {dimension_semantics = [#tpu.dimension_semantics<arbitrary>], iteration_bounds = array<i64: 2>, scalar_prefetch = 0 : i64, scratch_operands = 1 : i64, tpu.core_type = #tpu.core_type<tc>, window_params = [{transform_indices = @transform_0, window_bounds = array<i64: 32, 32>}, {transform_indices = @transform_1, window_bounds = array<i64: 32, 32>}, {transform_indices = @transform_2, window_bounds = array<i64: 32, 32>}, {transform_indices = @transform_3, window_bounds = array<i64: 32, 32>}, {pipeline_mode = #tpu.pipeline_mode<synchronous>, transform_indices = @transform_4, window_bounds = array<i64: 2, 2, 32, 128>}, {pipeline_mode = #tpu.pipeline_mode<synchronous>, transform_indices = @transform_5, window_bounds = array<i64: 2, 32, 128>}, {pipeline_mode = #tpu.pipeline_mode<synchronous>, transform_indices = @transform_6, window_bounds = array<i64: 2, 1, 128>}, {pipeline_mode = #tpu.pipeline_mode<synchronous>, transform_indices = @transform_7, window_bounds = array<i64: 2, 8, 32>}, {pipeline_mode = #tpu.pipeline_mode<synchronous>, transform_indices = @transform_8, window_bounds = array<i64: 2, 8, 32>}, {transform_indices = @transform_9, window_bounds = array<i64: 32, 32>}, {transform_indices = @transform_10, window_bounds = array<i64: 32, 32>}, {pipeline_mode = #tpu.pipeline_mode<synchronous>, transform_indices = @transform_11, window_bounds = array<i64: 2, 8, 32>}, {pipeline_mode = #tpu.pipeline_mode<synchronous>, transform_indices = @transform_12, window_bounds = array<i64: 2, 8, 32>}]} {
    %c0_i32 = arith.constant 0 : i32
    %0 = arith.cmpi eq, %arg0, %c0_i32 : i32
    %1 = arith.extui %0 : i1 to i32
    %c0_i32_0 = arith.constant 0 : i32
    %2 = arith.cmpi ne, %1, %c0_i32_0 : i32
    scf.if %2 {
      %c0_101 = arith.constant 0 : index
      %c0_102 = arith.constant 0 : index
      %c0_103 = arith.constant 0 : index
      %252 = vector.load %arg8[%c0_101, %c0_102, %c0_103] : memref<2x8x32xf32, #tpu.memory_space<vmem>>, vector<2x8x32xf32>
      %c0_104 = arith.constant 0 : index
      %c0_105 = arith.constant 0 : index
      %c0_106 = arith.constant 0 : index
      %253 = vector.load %arg12[%c0_104, %c0_105, %c0_106] : memref<2x8x32xf32, #tpu.memory_space<vmem>>, vector<2x8x32xf32>
      tpu.vector_store %arg12[%c0_104, %c0_105, %c0_106], %252 {strides = array<i32>} : memref<2x8x32xf32, #tpu.memory_space<vmem>>, vector<2x8x32xf32>,
      %c0_107 = arith.constant 0 : index
      %c0_108 = arith.constant 0 : index
      %c0_109 = arith.constant 0 : index
      %254 = vector.load %arg9[%c0_107, %c0_108, %c0_109] : memref<2x8x32xf32, #tpu.memory_space<vmem>>, vector<2x8x32xf32>
      %c0_110 = arith.constant 0 : index
      %c0_111 = arith.constant 0 : index
      %c0_112 = arith.constant 0 : index
      %255 = vector.load %arg13[%c0_110, %c0_111, %c0_112] : memref<2x8x32xf32, #tpu.memory_space<vmem>>, vector<2x8x32xf32>
      tpu.vector_store %arg13[%c0_110, %c0_111, %c0_112], %254 {strides = array<i32>} : memref<2x8x32xf32, #tpu.memory_space<vmem>>, vector<2x8x32xf32>,
    } else {
    }
    %c0 = arith.constant 0 : index
    %c0_1 = arith.constant 0 : index
    %3 = vector.load %arg1[%c0, %c0_1] : memref<32x32xf32, #tpu.memory_space<vmem>>, vector<32x32xf32>
    %4 = arith.truncf %3 : vector<32x32xf32> to vector<32x32xbf16>
    %c0_2 = arith.constant 0 : index
    %c0_3 = arith.constant 0 : index
    %c0_4 = arith.constant 0 : index
    %c0_5 = arith.constant 0 : index
    %5 = vector.load %arg5[%c0_2, %c0_3, %c0_4, %c0_5] : memref<2x2x32x128xbf16, #tpu.memory_space<vmem>>, vector<1x1x32x128xbf16>
    %6 = vector.shape_cast %5 : vector<1x1x32x128xbf16> to vector<32x128xbf16>
    %cst = arith.constant dense<0.000000e+00> : vector<32x128xf32>
    %7 = tpu.matmul %4, %6, %cst {dimension_numbers = #tpu.dot_dimension_numbers<[1], [0], [0], [1], [0, 0, 1, 1], [], []>} : vector<32x32xbf16>, vector<32x128xbf16>, vector<32x128xf32> -> vector<32x128xf32>
    %c0_6 = arith.constant 0 : index
    %c0_7 = arith.constant 0 : index
    %8 = vector.load %arg3[%c0_6, %c0_7] : memref<32x32xf32, #tpu.memory_space<vmem>>, vector<32x32xf32>
    %9 = arith.truncf %8 : vector<32x32xf32> to vector<32x32xbf16>
    %c1 = arith.constant 1 : index
    %c0_8 = arith.constant 0 : index
    %c0_9 = arith.constant 0 : index
    %c0_10 = arith.constant 0 : index
    %10 = vector.load %arg5[%c1, %c0_8, %c0_9, %c0_10] : memref<2x2x32x128xbf16, #tpu.memory_space<vmem>>, vector<1x1x32x128xbf16>
    %11 = vector.shape_cast %10 : vector<1x1x32x128xbf16> to vector<32x128xbf16>
    %cst_11 = arith.constant dense<0.000000e+00> : vector<32x128xf32>
    %12 = tpu.matmul %9, %11, %cst_11 {dimension_numbers = #tpu.dot_dimension_numbers<[1], [0], [0], [1], [0, 0, 1, 1], [], []>} : vector<32x32xbf16>, vector<32x128xbf16>, vector<32x128xf32> -> vector<32x128xf32>
    %c0_12 = arith.constant 0 : index
    %c0_13 = arith.constant 0 : index
    %13 = vector.load %arg2[%c0_12, %c0_13] : memref<32x32xf32, #tpu.memory_space<vmem>>, vector<32x32xf32>
    %14 = arith.truncf %13 : vector<32x32xf32> to vector<32x32xbf16>
    %c0_14 = arith.constant 0 : index
    %c1_15 = arith.constant 1 : index
    %c0_16 = arith.constant 0 : index
    %c0_17 = arith.constant 0 : index
    %15 = vector.load %arg5[%c0_14, %c1_15, %c0_16, %c0_17] : memref<2x2x32x128xbf16, #tpu.memory_space<vmem>>, vector<1x1x32x128xbf16>
    %16 = vector.shape_cast %15 : vector<1x1x32x128xbf16> to vector<32x128xbf16>
    %cst_18 = arith.constant dense<0.000000e+00> : vector<32x128xf32>
    %17 = tpu.matmul %14, %16, %cst_18 {dimension_numbers = #tpu.dot_dimension_numbers<[1], [0], [0], [1], [0, 0, 1, 1], [], []>} : vector<32x32xbf16>, vector<32x128xbf16>, vector<32x128xf32> -> vector<32x128xf32>
    %18 = arith.addf %7, %17 : vector<32x128xf32>
    %c0_19 = arith.constant 0 : index
    %c0_20 = arith.constant 0 : index
    %19 = vector.load %arg4[%c0_19, %c0_20] : memref<32x32xf32, #tpu.memory_space<vmem>>, vector<32x32xf32>
    %20 = arith.truncf %19 : vector<32x32xf32> to vector<32x32xbf16>
    %c1_21 = arith.constant 1 : index
    %c1_22 = arith.constant 1 : index
    %c0_23 = arith.constant 0 : index
    %c0_24 = arith.constant 0 : index
    %21 = vector.load %arg5[%c1_21, %c1_22, %c0_23, %c0_24] : memref<2x2x32x128xbf16, #tpu.memory_space<vmem>>, vector<1x1x32x128xbf16>
    %22 = vector.shape_cast %21 : vector<1x1x32x128xbf16> to vector<32x128xbf16>
    %cst_25 = arith.constant dense<0.000000e+00> : vector<32x128xf32>
    %23 = tpu.matmul %20, %22, %cst_25 {dimension_numbers = #tpu.dot_dimension_numbers<[1], [0], [0], [1], [0, 0, 1, 1], [], []>} : vector<32x32xbf16>, vector<32x128xbf16>, vector<32x128xf32> -> vector<32x128xf32>
    %24 = arith.addf %12, %23 : vector<32x128xf32>
    %c0_26 = arith.constant 0 : index
    %c0_27 = arith.constant 0 : index
    %c0_28 = arith.constant 0 : index
    %25 = vector.load %arg7[%c0_26, %c0_27, %c0_28] : memref<2x1x128xf32, #tpu.memory_space<vmem>>, vector<1x1x128xf32>
    %26 = vector.shape_cast %25 : vector<1x1x128xf32> to vector<1x128xf32>
    %27 = vector.broadcast %26 : vector<1x128xf32> to vector<32x128xf32>
    %28 = arith.addf %18, %27 : vector<32x128xf32>
    %c0_29 = arith.constant 0 : index
    %c0_30 = arith.constant 0 : index
    %c0_31 = arith.constant 0 : index
    %29 = vector.load %arg14[%c0_29, %c0_30, %c0_31] : memref<2x32x128xf32, #tpu.memory_space<vmem>>, vector<1x32x128xf32>
    %30 = vector.shape_cast %29 : vector<1x32x128xf32> to vector<32x128xf32>
    %31 = vector.shape_cast %28 : vector<32x128xf32> to vector<1x32x128xf32>
    tpu.vector_store %arg14[%c0_29, %c0_30, %c0_31], %31 {strides = array<i32>} : memref<2x32x128xf32, #tpu.memory_space<vmem>>, vector<1x32x128xf32>,
    %c1_32 = arith.constant 1 : index
    %c0_33 = arith.constant 0 : index
    %c0_34 = arith.constant 0 : index
    %32 = vector.load %arg7[%c1_32, %c0_33, %c0_34] : memref<2x1x128xf32, #tpu.memory_space<vmem>>, vector<1x1x128xf32>
    %33 = vector.shape_cast %32 : vector<1x1x128xf32> to vector<1x128xf32>
    %34 = vector.broadcast %33 : vector<1x128xf32> to vector<32x128xf32>
    %35 = arith.addf %24, %34 : vector<32x128xf32>
    %c1_35 = arith.constant 1 : index
    %c0_36 = arith.constant 0 : index
    %c0_37 = arith.constant 0 : index
    %36 = vector.load %arg14[%c1_35, %c0_36, %c0_37] : memref<2x32x128xf32, #tpu.memory_space<vmem>>, vector<1x32x128xf32>
    %37 = vector.shape_cast %36 : vector<1x32x128xf32> to vector<32x128xf32>
    %38 = vector.shape_cast %35 : vector<32x128xf32> to vector<1x32x128xf32>
    tpu.vector_store %arg14[%c1_35, %c0_36, %c0_37], %38 {strides = array<i32>} : memref<2x32x128xf32, #tpu.memory_space<vmem>>, vector<1x32x128xf32>,
    %c0_38 = arith.constant 0 : index
    %c0_39 = arith.constant 0 : index
    %c0_40 = arith.constant 0 : index
    %39 = vector.load %arg6[%c0_38, %c0_39, %c0_40] : memref<2x32x128xbf16, #tpu.memory_space<vmem>>, vector<2x32x128xbf16>
    %c0_41 = arith.constant 0 : index
    %c0_42 = arith.constant 0 : index
    %c0_43 = arith.constant 0 : index
    %40 = vector.load %arg12[%c0_41, %c0_42, %c0_43] : memref<2x8x32xf32, #tpu.memory_space<vmem>>, vector<2x8x32xf32>
    %c0_44 = arith.constant 0 : index
    %c0_45 = arith.constant 0 : index
    %c0_46 = arith.constant 0 : index
    %41 = vector.load %arg13[%c0_44, %c0_45, %c0_46] : memref<2x8x32xf32, #tpu.memory_space<vmem>>, vector<2x8x32xf32>
    %c0_i32_47 = arith.constant 0 : i32
    %c8_i32 = arith.constant 8 : i32
    %42 = arith.muli %c0_i32_47, %c8_i32 : i32
    %43 = tpu.assume_multiple %42, 8 : i32
    %c3_i32 = arith.constant 3 : i32
    %44 = arith.subi %c3_i32, %c0_i32_47 : i32
    %c8_i32_48 = arith.constant 8 : i32
    %45 = arith.muli %44, %c8_i32_48 : i32
    %46 = tpu.assume_multiple %45, 8 : i32
    %c0_49 = arith.constant 0 : index
    %47 = arith.index_cast %43 : i32 to index
    %c0_50 = arith.constant 0 : index
    %48 = vector.load %arg14[%c0_49, %47, %c0_50] : memref<2x32x128xf32, #tpu.memory_space<vmem>>, vector<1x8x128xf32>
    %49 = vector.shape_cast %48 : vector<1x8x128xf32> to vector<8x128xf32>
    %50 = vector.extract_strided_slice %40 {offsets = [0, 0, 0], sizes = [1, 8, 32], strides = [1, 1, 1]} : vector<2x8x32xf32> to vector<1x8x32xf32>
    %51 = vector.shape_cast %50 : vector<1x8x32xf32> to vector<8x32xf32>
    %52 = arith.truncf %51 : vector<8x32xf32> to vector<8x32xbf16>
    %53 = vector.extract_strided_slice %39 {offsets = [0, 0, 0], sizes = [1, 32, 128], strides = [1, 1, 1]} : vector<2x32x128xbf16> to vector<1x32x128xbf16>
    %54 = vector.shape_cast %53 : vector<1x32x128xbf16> to vector<32x128xbf16>
    %cst_51 = arith.constant dense<0.000000e+00> : vector<8x128xf32>
    %55 = tpu.matmul %52, %54, %cst_51 {dimension_numbers = #tpu.dot_dimension_numbers<[1], [0], [0], [1], [0, 0, 1, 1], [], []>} : vector<8x32xbf16>, vector<32x128xbf16>, vector<8x128xf32> -> vector<8x128xf32>
    %56 = arith.addf %49, %55 : vector<8x128xf32>
    %c1_52 = arith.constant 1 : index
    %57 = arith.index_cast %46 : i32 to index
    %c0_53 = arith.constant 0 : index
    %58 = vector.load %arg14[%c1_52, %57, %c0_53] : memref<2x32x128xf32, #tpu.memory_space<vmem>>, vector<1x8x128xf32>
    %59 = vector.shape_cast %58 : vector<1x8x128xf32> to vector<8x128xf32>
    %60 = vector.extract_strided_slice %40 {offsets = [1, 0, 0], sizes = [1, 8, 32], strides = [1, 1, 1]} : vector<2x8x32xf32> to vector<1x8x32xf32>
    %61 = vector.shape_cast %60 : vector<1x8x32xf32> to vector<8x32xf32>
    %62 = arith.truncf %61 : vector<8x32xf32> to vector<8x32xbf16>
    %63 = vector.extract_strided_slice %39 {offsets = [1, 0, 0], sizes = [1, 32, 128], strides = [1, 1, 1]} : vector<2x32x128xbf16> to vector<1x32x128xbf16>
    %64 = vector.shape_cast %63 : vector<1x32x128xbf16> to vector<32x128xbf16>
    %cst_54 = arith.constant dense<0.000000e+00> : vector<8x128xf32>
    %65 = tpu.matmul %62, %64, %cst_54 {dimension_numbers = #tpu.dot_dimension_numbers<[1], [0], [0], [1], [0, 0, 1, 1], [], []>} : vector<8x32xbf16>, vector<32x128xbf16>, vector<8x128xf32> -> vector<8x128xf32>
    %66 = arith.addf %59, %65 : vector<8x128xf32>
    %67 = vector.shape_cast %56 : vector<8x128xf32> to vector<1x8x128xf32>
    %68 = vector.shape_cast %66 : vector<8x128xf32> to vector<1x8x128xf32>
    %69 = tpu.concatenate %67, %68 in 0 : vector<1x8x128xf32>, vector<1x8x128xf32> -> vector<2x8x128xf32>
    %70 = vector.extract_strided_slice %69 {offsets = [0, 0, 0], sizes = [2, 8, 96], strides = [1, 1, 1]} : vector<2x8x128xf32> to vector<2x8x96xf32>
    %71 = arith.negf %70 : vector<2x8x96xf32>
    %72 = math.exp %71 : vector<2x8x96xf32>
    %cst_55 = arith.constant 1.000000e+00 : f32
    %73 = vector.broadcast %cst_55 : f32 to vector<2x8x96xf32>
    %74 = arith.addf %73, %72 : vector<2x8x96xf32>
    %75 = arith.divf %73, %74 : vector<2x8x96xf32>
    %76 = vector.extract_strided_slice %69 {offsets = [0, 0, 96], sizes = [2, 8, 32], strides = [1, 1, 1]} : vector<2x8x128xf32> to vector<2x8x32xf32>
    %77 = math.tanh %76 : vector<2x8x32xf32>
    %78 = vector.extract_strided_slice %75 {offsets = [0, 0, 32], sizes = [2, 8, 32], strides = [1, 1, 1]} : vector<2x8x96xf32> to vector<2x8x32xf32>
    %79 = arith.mulf %78, %41 : vector<2x8x32xf32>
    %80 = vector.extract_strided_slice %75 {offsets = [0, 0, 0], sizes = [2, 8, 32], strides = [1, 1, 1]} : vector<2x8x96xf32> to vector<2x8x32xf32>
    %81 = arith.mulf %80, %77 : vector<2x8x32xf32>
    %82 = arith.addf %79, %81 : vector<2x8x32xf32>
    %83 = vector.extract_strided_slice %75 {offsets = [0, 0, 64], sizes = [2, 8, 32], strides = [1, 1, 1]} : vector<2x8x96xf32> to vector<2x8x32xf32>
    %84 = math.tanh %82 : vector<2x8x32xf32>
    %85 = arith.mulf %83, %84 : vector<2x8x32xf32>
    %86 = vector.extract_strided_slice %85 {offsets = [0, 0, 0], sizes = [1, 8, 32], strides = [1, 1, 1]} : vector<2x8x32xf32> to vector<1x8x32xf32>
    %87 = vector.shape_cast %86 : vector<1x8x32xf32> to vector<8x32xf32>
    %88 = arith.index_cast %43 : i32 to index
    %c0_56 = arith.constant 0 : index
    %89 = vector.load %arg10[%88, %c0_56] : memref<32x32xf32, #tpu.memory_space<vmem>>, vector<8x32xf32>
    tpu.vector_store %arg10[%88, %c0_56], %87 {strides = array<i32>} : memref<32x32xf32, #tpu.memory_space<vmem>>, vector<8x32xf32>,
    %90 = vector.extract_strided_slice %85 {offsets = [1, 0, 0], sizes = [1, 8, 32], strides = [1, 1, 1]} : vector<2x8x32xf32> to vector<1x8x32xf32>
    %91 = vector.shape_cast %90 : vector<1x8x32xf32> to vector<8x32xf32>
    %92 = arith.index_cast %46 : i32 to index
    %c0_57 = arith.constant 0 : index
    %93 = vector.load %arg11[%92, %c0_57] : memref<32x32xf32, #tpu.memory_space<vmem>>, vector<8x32xf32>
    tpu.vector_store %arg11[%92, %c0_57], %91 {strides = array<i32>} : memref<32x32xf32, #tpu.memory_space<vmem>>, vector<8x32xf32>,
    %c1_i32 = arith.constant 1 : i32
    %c8_i32_58 = arith.constant 8 : i32
    %94 = arith.muli %c1_i32, %c8_i32_58 : i32
    %95 = tpu.assume_multiple %94, 8 : i32
    %c3_i32_59 = arith.constant 3 : i32
    %96 = arith.subi %c3_i32_59, %c1_i32 : i32
    %c8_i32_60 = arith.constant 8 : i32
    %97 = arith.muli %96, %c8_i32_60 : i32
    %98 = tpu.assume_multiple %97, 8 : i32
    %c0_61 = arith.constant 0 : index
    %99 = arith.index_cast %95 : i32 to index
    %c0_62 = arith.constant 0 : index
    %100 = vector.load %arg14[%c0_61, %99, %c0_62] : memref<2x32x128xf32, #tpu.memory_space<vmem>>, vector<1x8x128xf32>
    %101 = vector.shape_cast %100 : vector<1x8x128xf32> to vector<8x128xf32>
    %102 = vector.extract_strided_slice %85 {offsets = [0, 0, 0], sizes = [1, 8, 32], strides = [1, 1, 1]} : vector<2x8x32xf32> to vector<1x8x32xf32>
    %103 = vector.shape_cast %102 : vector<1x8x32xf32> to vector<8x32xf32>
    %104 = arith.truncf %103 : vector<8x32xf32> to vector<8x32xbf16>
    %105 = vector.extract_strided_slice %39 {offsets = [0, 0, 0], sizes = [1, 32, 128], strides = [1, 1, 1]} : vector<2x32x128xbf16> to vector<1x32x128xbf16>
    %106 = vector.shape_cast %105 : vector<1x32x128xbf16> to vector<32x128xbf16>
    %cst_63 = arith.constant dense<0.000000e+00> : vector<8x128xf32>
    %107 = tpu.matmul %104, %106, %cst_63 {dimension_numbers = #tpu.dot_dimension_numbers<[1], [0], [0], [1], [0, 0, 1, 1], [], []>} : vector<8x32xbf16>, vector<32x128xbf16>, vector<8x128xf32> -> vector<8x128xf32>
    %108 = arith.addf %101, %107 : vector<8x128xf32>
    %c1_64 = arith.constant 1 : index
    %109 = arith.index_cast %98 : i32 to index
    %c0_65 = arith.constant 0 : index
    %110 = vector.load %arg14[%c1_64, %109, %c0_65] : memref<2x32x128xf32, #tpu.memory_space<vmem>>, vector<1x8x128xf32>
    %111 = vector.shape_cast %110 : vector<1x8x128xf32> to vector<8x128xf32>
    %112 = vector.extract_strided_slice %85 {offsets = [1, 0, 0], sizes = [1, 8, 32], strides = [1, 1, 1]} : vector<2x8x32xf32> to vector<1x8x32xf32>
    %113 = vector.shape_cast %112 : vector<1x8x32xf32> to vector<8x32xf32>
    %114 = arith.truncf %113 : vector<8x32xf32> to vector<8x32xbf16>
    %115 = vector.extract_strided_slice %39 {offsets = [1, 0, 0], sizes = [1, 32, 128], strides = [1, 1, 1]} : vector<2x32x128xbf16> to vector<1x32x128xbf16>
    %116 = vector.shape_cast %115 : vector<1x32x128xbf16> to vector<32x128xbf16>
    %cst_66 = arith.constant dense<0.000000e+00> : vector<8x128xf32>
    %117 = tpu.matmul %114, %116, %cst_66 {dimension_numbers = #tpu.dot_dimension_numbers<[1], [0], [0], [1], [0, 0, 1, 1], [], []>} : vector<8x32xbf16>, vector<32x128xbf16>, vector<8x128xf32> -> vector<8x128xf32>
    %118 = arith.addf %111, %117 : vector<8x128xf32>
    %119 = vector.shape_cast %108 : vector<8x128xf32> to vector<1x8x128xf32>
    %120 = vector.shape_cast %118 : vector<8x128xf32> to vector<1x8x128xf32>
    %121 = tpu.concatenate %119, %120 in 0 : vector<1x8x128xf32>, vector<1x8x128xf32> -> vector<2x8x128xf32>
    %122 = vector.extract_strided_slice %121 {offsets = [0, 0, 0], sizes = [2, 8, 96], strides = [1, 1, 1]} : vector<2x8x128xf32> to vector<2x8x96xf32>
    %123 = arith.negf %122 : vector<2x8x96xf32>
    %124 = math.exp %123 : vector<2x8x96xf32>
    %cst_67 = arith.constant 1.000000e+00 : f32
    %125 = vector.broadcast %cst_67 : f32 to vector<2x8x96xf32>
    %126 = arith.addf %125, %124 : vector<2x8x96xf32>
    %127 = arith.divf %125, %126 : vector<2x8x96xf32>
    %128 = vector.extract_strided_slice %121 {offsets = [0, 0, 96], sizes = [2, 8, 32], strides = [1, 1, 1]} : vector<2x8x128xf32> to vector<2x8x32xf32>
    %129 = math.tanh %128 : vector<2x8x32xf32>
    %130 = vector.extract_strided_slice %127 {offsets = [0, 0, 32], sizes = [2, 8, 32], strides = [1, 1, 1]} : vector<2x8x96xf32> to vector<2x8x32xf32>
    %131 = arith.mulf %130, %82 : vector<2x8x32xf32>
    %132 = vector.extract_strided_slice %127 {offsets = [0, 0, 0], sizes = [2, 8, 32], strides = [1, 1, 1]} : vector<2x8x96xf32> to vector<2x8x32xf32>
    %133 = arith.mulf %132, %129 : vector<2x8x32xf32>
    %134 = arith.addf %131, %133 : vector<2x8x32xf32>
    %135 = vector.extract_strided_slice %127 {offsets = [0, 0, 64], sizes = [2, 8, 32], strides = [1, 1, 1]} : vector<2x8x96xf32> to vector<2x8x32xf32>
    %136 = math.tanh %134 : vector<2x8x32xf32>
    %137 = arith.mulf %135, %136 : vector<2x8x32xf32>
    %138 = vector.extract_strided_slice %137 {offsets = [0, 0, 0], sizes = [1, 8, 32], strides = [1, 1, 1]} : vector<2x8x32xf32> to vector<1x8x32xf32>
    %139 = vector.shape_cast %138 : vector<1x8x32xf32> to vector<8x32xf32>
    %140 = arith.index_cast %95 : i32 to index
    %c0_68 = arith.constant 0 : index
    %141 = vector.load %arg10[%140, %c0_68] : memref<32x32xf32, #tpu.memory_space<vmem>>, vector<8x32xf32>
    tpu.vector_store %arg10[%140, %c0_68], %139 {strides = array<i32>} : memref<32x32xf32, #tpu.memory_space<vmem>>, vector<8x32xf32>,
    %142 = vector.extract_strided_slice %137 {offsets = [1, 0, 0], sizes = [1, 8, 32], strides = [1, 1, 1]} : vector<2x8x32xf32> to vector<1x8x32xf32>
    %143 = vector.shape_cast %142 : vector<1x8x32xf32> to vector<8x32xf32>
    %144 = arith.index_cast %98 : i32 to index
    %c0_69 = arith.constant 0 : index
    %145 = vector.load %arg11[%144, %c0_69] : memref<32x32xf32, #tpu.memory_space<vmem>>, vector<8x32xf32>
    tpu.vector_store %arg11[%144, %c0_69], %143 {strides = array<i32>} : memref<32x32xf32, #tpu.memory_space<vmem>>, vector<8x32xf32>,
    %c2_i32 = arith.constant 2 : i32
    %c8_i32_70 = arith.constant 8 : i32
    %146 = arith.muli %c2_i32, %c8_i32_70 : i32
    %147 = tpu.assume_multiple %146, 8 : i32
    %c3_i32_71 = arith.constant 3 : i32
    %148 = arith.subi %c3_i32_71, %c2_i32 : i32
    %c8_i32_72 = arith.constant 8 : i32
    %149 = arith.muli %148, %c8_i32_72 : i32
    %150 = tpu.assume_multiple %149, 8 : i32
    %c0_73 = arith.constant 0 : index
    %151 = arith.index_cast %147 : i32 to index
    %c0_74 = arith.constant 0 : index
    %152 = vector.load %arg14[%c0_73, %151, %c0_74] : memref<2x32x128xf32, #tpu.memory_space<vmem>>, vector<1x8x128xf32>
    %153 = vector.shape_cast %152 : vector<1x8x128xf32> to vector<8x128xf32>
    %154 = vector.extract_strided_slice %137 {offsets = [0, 0, 0], sizes = [1, 8, 32], strides = [1, 1, 1]} : vector<2x8x32xf32> to vector<1x8x32xf32>
    %155 = vector.shape_cast %154 : vector<1x8x32xf32> to vector<8x32xf32>
    %156 = arith.truncf %155 : vector<8x32xf32> to vector<8x32xbf16>
    %157 = vector.extract_strided_slice %39 {offsets = [0, 0, 0], sizes = [1, 32, 128], strides = [1, 1, 1]} : vector<2x32x128xbf16> to vector<1x32x128xbf16>
    %158 = vector.shape_cast %157 : vector<1x32x128xbf16> to vector<32x128xbf16>
    %cst_75 = arith.constant dense<0.000000e+00> : vector<8x128xf32>
    %159 = tpu.matmul %156, %158, %cst_75 {dimension_numbers = #tpu.dot_dimension_numbers<[1], [0], [0], [1], [0, 0, 1, 1], [], []>} : vector<8x32xbf16>, vector<32x128xbf16>, vector<8x128xf32> -> vector<8x128xf32>
    %160 = arith.addf %153, %159 : vector<8x128xf32>
    %c1_76 = arith.constant 1 : index
    %161 = arith.index_cast %150 : i32 to index
    %c0_77 = arith.constant 0 : index
    %162 = vector.load %arg14[%c1_76, %161, %c0_77] : memref<2x32x128xf32, #tpu.memory_space<vmem>>, vector<1x8x128xf32>
    %163 = vector.shape_cast %162 : vector<1x8x128xf32> to vector<8x128xf32>
    %164 = vector.extract_strided_slice %137 {offsets = [1, 0, 0], sizes = [1, 8, 32], strides = [1, 1, 1]} : vector<2x8x32xf32> to vector<1x8x32xf32>
    %165 = vector.shape_cast %164 : vector<1x8x32xf32> to vector<8x32xf32>
    %166 = arith.truncf %165 : vector<8x32xf32> to vector<8x32xbf16>
    %167 = vector.extract_strided_slice %39 {offsets = [1, 0, 0], sizes = [1, 32, 128], strides = [1, 1, 1]} : vector<2x32x128xbf16> to vector<1x32x128xbf16>
    %168 = vector.shape_cast %167 : vector<1x32x128xbf16> to vector<32x128xbf16>
    %cst_78 = arith.constant dense<0.000000e+00> : vector<8x128xf32>
    %169 = tpu.matmul %166, %168, %cst_78 {dimension_numbers = #tpu.dot_dimension_numbers<[1], [0], [0], [1], [0, 0, 1, 1], [], []>} : vector<8x32xbf16>, vector<32x128xbf16>, vector<8x128xf32> -> vector<8x128xf32>
    %170 = arith.addf %163, %169 : vector<8x128xf32>
    %171 = vector.shape_cast %160 : vector<8x128xf32> to vector<1x8x128xf32>
    %172 = vector.shape_cast %170 : vector<8x128xf32> to vector<1x8x128xf32>
    %173 = tpu.concatenate %171, %172 in 0 : vector<1x8x128xf32>, vector<1x8x128xf32> -> vector<2x8x128xf32>
    %174 = vector.extract_strided_slice %173 {offsets = [0, 0, 0], sizes = [2, 8, 96], strides = [1, 1, 1]} : vector<2x8x128xf32> to vector<2x8x96xf32>
    %175 = arith.negf %174 : vector<2x8x96xf32>
    %176 = math.exp %175 : vector<2x8x96xf32>
    %cst_79 = arith.constant 1.000000e+00 : f32
    %177 = vector.broadcast %cst_79 : f32 to vector<2x8x96xf32>
    %178 = arith.addf %177, %176 : vector<2x8x96xf32>
    %179 = arith.divf %177, %178 : vector<2x8x96xf32>
    %180 = vector.extract_strided_slice %173 {offsets = [0, 0, 96], sizes = [2, 8, 32], strides = [1, 1, 1]} : vector<2x8x128xf32> to vector<2x8x32xf32>
    %181 = math.tanh %180 : vector<2x8x32xf32>
    %182 = vector.extract_strided_slice %179 {offsets = [0, 0, 32], sizes = [2, 8, 32], strides = [1, 1, 1]} : vector<2x8x96xf32> to vector<2x8x32xf32>
    %183 = arith.mulf %182, %134 : vector<2x8x32xf32>
    %184 = vector.extract_strided_slice %179 {offsets = [0, 0, 0], sizes = [2, 8, 32], strides = [1, 1, 1]} : vector<2x8x96xf32> to vector<2x8x32xf32>
    %185 = arith.mulf %184, %181 : vector<2x8x32xf32>
    %186 = arith.addf %183, %185 : vector<2x8x32xf32>
    %187 = vector.extract_strided_slice %179 {offsets = [0, 0, 64], sizes = [2, 8, 32], strides = [1, 1, 1]} : vector<2x8x96xf32> to vector<2x8x32xf32>
    %188 = math.tanh %186 : vector<2x8x32xf32>
    %189 = arith.mulf %187, %188 : vector<2x8x32xf32>
    %190 = vector.extract_strided_slice %189 {offsets = [0, 0, 0], sizes = [1, 8, 32], strides = [1, 1, 1]} : vector<2x8x32xf32> to vector<1x8x32xf32>
    %191 = vector.shape_cast %190 : vector<1x8x32xf32> to vector<8x32xf32>
    %192 = arith.index_cast %147 : i32 to index
    %c0_80 = arith.constant 0 : index
    %193 = vector.load %arg10[%192, %c0_80] : memref<32x32xf32, #tpu.memory_space<vmem>>, vector<8x32xf32>
    tpu.vector_store %arg10[%192, %c0_80], %191 {strides = array<i32>} : memref<32x32xf32, #tpu.memory_space<vmem>>, vector<8x32xf32>,
    %194 = vector.extract_strided_slice %189 {offsets = [1, 0, 0], sizes = [1, 8, 32], strides = [1, 1, 1]} : vector<2x8x32xf32> to vector<1x8x32xf32>
    %195 = vector.shape_cast %194 : vector<1x8x32xf32> to vector<8x32xf32>
    %196 = arith.index_cast %150 : i32 to index
    %c0_81 = arith.constant 0 : index
    %197 = vector.load %arg11[%196, %c0_81] : memref<32x32xf32, #tpu.memory_space<vmem>>, vector<8x32xf32>
    tpu.vector_store %arg11[%196, %c0_81], %195 {strides = array<i32>} : memref<32x32xf32, #tpu.memory_space<vmem>>, vector<8x32xf32>,
    %c3_i32_82 = arith.constant 3 : i32
    %c8_i32_83 = arith.constant 8 : i32
    %198 = arith.muli %c3_i32_82, %c8_i32_83 : i32
    %199 = tpu.assume_multiple %198, 8 : i32
    %c3_i32_84 = arith.constant 3 : i32
    %200 = arith.subi %c3_i32_84, %c3_i32_82 : i32
    %c8_i32_85 = arith.constant 8 : i32
    %201 = arith.muli %200, %c8_i32_85 : i32
    %202 = tpu.assume_multiple %201, 8 : i32
    %c0_86 = arith.constant 0 : index
    %203 = arith.index_cast %199 : i32 to index
    %c0_87 = arith.constant 0 : index
    %204 = vector.load %arg14[%c0_86, %203, %c0_87] : memref<2x32x128xf32, #tpu.memory_space<vmem>>, vector<1x8x128xf32>
    %205 = vector.shape_cast %204 : vector<1x8x128xf32> to vector<8x128xf32>
    %206 = vector.extract_strided_slice %189 {offsets = [0, 0, 0], sizes = [1, 8, 32], strides = [1, 1, 1]} : vector<2x8x32xf32> to vector<1x8x32xf32>
    %207 = vector.shape_cast %206 : vector<1x8x32xf32> to vector<8x32xf32>
    %208 = arith.truncf %207 : vector<8x32xf32> to vector<8x32xbf16>
    %209 = vector.extract_strided_slice %39 {offsets = [0, 0, 0], sizes = [1, 32, 128], strides = [1, 1, 1]} : vector<2x32x128xbf16> to vector<1x32x128xbf16>
    %210 = vector.shape_cast %209 : vector<1x32x128xbf16> to vector<32x128xbf16>
    %cst_88 = arith.constant dense<0.000000e+00> : vector<8x128xf32>
    %211 = tpu.matmul %208, %210, %cst_88 {dimension_numbers = #tpu.dot_dimension_numbers<[1], [0], [0], [1], [0, 0, 1, 1], [], []>} : vector<8x32xbf16>, vector<32x128xbf16>, vector<8x128xf32> -> vector<8x128xf32>
    %212 = arith.addf %205, %211 : vector<8x128xf32>
    %c1_89 = arith.constant 1 : index
    %213 = arith.index_cast %202 : i32 to index
    %c0_90 = arith.constant 0 : index
    %214 = vector.load %arg14[%c1_89, %213, %c0_90] : memref<2x32x128xf32, #tpu.memory_space<vmem>>, vector<1x8x128xf32>
    %215 = vector.shape_cast %214 : vector<1x8x128xf32> to vector<8x128xf32>
    %216 = vector.extract_strided_slice %189 {offsets = [1, 0, 0], sizes = [1, 8, 32], strides = [1, 1, 1]} : vector<2x8x32xf32> to vector<1x8x32xf32>
    %217 = vector.shape_cast %216 : vector<1x8x32xf32> to vector<8x32xf32>
    %218 = arith.truncf %217 : vector<8x32xf32> to vector<8x32xbf16>
    %219 = vector.extract_strided_slice %39 {offsets = [1, 0, 0], sizes = [1, 32, 128], strides = [1, 1, 1]} : vector<2x32x128xbf16> to vector<1x32x128xbf16>
    %220 = vector.shape_cast %219 : vector<1x32x128xbf16> to vector<32x128xbf16>
    %cst_91 = arith.constant dense<0.000000e+00> : vector<8x128xf32>
    %221 = tpu.matmul %218, %220, %cst_91 {dimension_numbers = #tpu.dot_dimension_numbers<[1], [0], [0], [1], [0, 0, 1, 1], [], []>} : vector<8x32xbf16>, vector<32x128xbf16>, vector<8x128xf32> -> vector<8x128xf32>
    %222 = arith.addf %215, %221 : vector<8x128xf32>
    %223 = vector.shape_cast %212 : vector<8x128xf32> to vector<1x8x128xf32>
    %224 = vector.shape_cast %222 : vector<8x128xf32> to vector<1x8x128xf32>
    %225 = tpu.concatenate %223, %224 in 0 : vector<1x8x128xf32>, vector<1x8x128xf32> -> vector<2x8x128xf32>
    %226 = vector.extract_strided_slice %225 {offsets = [0, 0, 0], sizes = [2, 8, 96], strides = [1, 1, 1]} : vector<2x8x128xf32> to vector<2x8x96xf32>
    %227 = arith.negf %226 : vector<2x8x96xf32>
    %228 = math.exp %227 : vector<2x8x96xf32>
    %cst_92 = arith.constant 1.000000e+00 : f32
    %229 = vector.broadcast %cst_92 : f32 to vector<2x8x96xf32>
    %230 = arith.addf %229, %228 : vector<2x8x96xf32>
    %231 = arith.divf %229, %230 : vector<2x8x96xf32>
    %232 = vector.extract_strided_slice %225 {offsets = [0, 0, 96], sizes = [2, 8, 32], strides = [1, 1, 1]} : vector<2x8x128xf32> to vector<2x8x32xf32>
    %233 = math.tanh %232 : vector<2x8x32xf32>
    %234 = vector.extract_strided_slice %231 {offsets = [0, 0, 32], sizes = [2, 8, 32], strides = [1, 1, 1]} : vector<2x8x96xf32> to vector<2x8x32xf32>
    %235 = arith.mulf %234, %186 : vector<2x8x32xf32>
    %236 = vector.extract_strided_slice %231 {offsets = [0, 0, 0], sizes = [2, 8, 32], strides = [1, 1, 1]} : vector<2x8x96xf32> to vector<2x8x32xf32>
    %237 = arith.mulf %236, %233 : vector<2x8x32xf32>
    %238 = arith.addf %235, %237 : vector<2x8x32xf32>
    %239 = vector.extract_strided_slice %231 {offsets = [0, 0, 64], sizes = [2, 8, 32], strides = [1, 1, 1]} : vector<2x8x96xf32> to vector<2x8x32xf32>
    %240 = math.tanh %238 : vector<2x8x32xf32>
    %241 = arith.mulf %239, %240 : vector<2x8x32xf32>
    %242 = vector.extract_strided_slice %241 {offsets = [0, 0, 0], sizes = [1, 8, 32], strides = [1, 1, 1]} : vector<2x8x32xf32> to vector<1x8x32xf32>
    %243 = vector.shape_cast %242 : vector<1x8x32xf32> to vector<8x32xf32>
    %244 = arith.index_cast %199 : i32 to index
    %c0_93 = arith.constant 0 : index
    %245 = vector.load %arg10[%244, %c0_93] : memref<32x32xf32, #tpu.memory_space<vmem>>, vector<8x32xf32>
    tpu.vector_store %arg10[%244, %c0_93], %243 {strides = array<i32>} : memref<32x32xf32, #tpu.memory_space<vmem>>, vector<8x32xf32>,
    %246 = vector.extract_strided_slice %241 {offsets = [1, 0, 0], sizes = [1, 8, 32], strides = [1, 1, 1]} : vector<2x8x32xf32> to vector<1x8x32xf32>
    %247 = vector.shape_cast %246 : vector<1x8x32xf32> to vector<8x32xf32>
    %248 = arith.index_cast %202 : i32 to index
    %c0_94 = arith.constant 0 : index
    %249 = vector.load %arg11[%248, %c0_94] : memref<32x32xf32, #tpu.memory_space<vmem>>, vector<8x32xf32>
    tpu.vector_store %arg11[%248, %c0_94], %247 {strides = array<i32>} : memref<32x32xf32, #tpu.memory_space<vmem>>, vector<8x32xf32>,
    %c4_i32 = arith.constant 4 : i32
    %c0_95 = arith.constant 0 : index
    %c0_96 = arith.constant 0 : index
    %c0_97 = arith.constant 0 : index
    %250 = vector.load %arg12[%c0_95, %c0_96, %c0_97] : memref<2x8x32xf32, #tpu.memory_space<vmem>>, vector<2x8x32xf32>
    tpu.vector_store %arg12[%c0_95, %c0_96, %c0_97], %241 {strides = array<i32>} : memref<2x8x32xf32, #tpu.memory_space<vmem>>, vector<2x8x32xf32>,
    %c0_98 = arith.constant 0 : index
    %c0_99 = arith.constant 0 : index
    %c0_100 = arith.constant 0 : index
    %251 = vector.load %arg13[%c0_98, %c0_99, %c0_100] : memref<2x8x32xf32, #tpu.memory_space<vmem>>, vector<2x8x32xf32>
    tpu.vector_store %arg13[%c0_98, %c0_99, %c0_100], %238 {strides = array<i32>} : memref<2x8x32xf32, #tpu.memory_space<vmem>>, vector<2x8x32xf32>,
    return
  }
  func.func @transform_0(%arg0: i32) -> (i32, i32) {
    %c0_i32 = arith.constant 0 : i32
    %c0_i32_0 = arith.constant 0 : i32
    return %arg0, %c0_i32 : i32, i32
  }
  func.func @transform_1(%arg0: i32) -> (i32, i32) {
    %c0_i32 = arith.constant 0 : i32
    %c0_i32_0 = arith.constant 0 : i32
    return %arg0, %c0_i32 : i32, i32
  }
  func.func @transform_2(%arg0: i32) -> (i32, i32) {
    %c1_i32 = arith.constant 1 : i32
    %0 = arith.subi %c1_i32, %arg0 : i32
    %c0_i32 = arith.constant 0 : i32
    %c0_i32_0 = arith.constant 0 : i32
    return %0, %c0_i32 : i32, i32
  }
  func.func @transform_3(%arg0: i32) -> (i32, i32) {
    %c1_i32 = arith.constant 1 : i32
    %0 = arith.subi %c1_i32, %arg0 : i32
    %c0_i32 = arith.constant 0 : i32
    %c0_i32_0 = arith.constant 0 : i32
    return %0, %c0_i32 : i32, i32
  }
  func.func @transform_4(%arg0: i32) -> (i32, i32, i32, i32) {
    %c0_i32 = arith.constant 0 : i32
    %c0_i32_0 = arith.constant 0 : i32
    %c0_i32_1 = arith.constant 0 : i32
    %c0_i32_2 = arith.constant 0 : i32
    %c0_i32_3 = arith.constant 0 : i32
    return %c0_i32, %c0_i32_0, %c0_i32_1, %c0_i32_2 : i32, i32, i32, i32
  }
  func.func @transform_5(%arg0: i32) -> (i32, i32, i32) {
    %c0_i32 = arith.constant 0 : i32
    %c0_i32_0 = arith.constant 0 : i32
    %c0_i32_1 = arith.constant 0 : i32
    %c0_i32_2 = arith.constant 0 : i32
    return %c0_i32, %c0_i32_0, %c0_i32_1 : i32, i32, i32
  }
  func.func @transform_6(%arg0: i32) -> (i32, i32, i32) {
    %c0_i32 = arith.constant 0 : i32
    %c0_i32_0 = arith.constant 0 : i32
    %c0_i32_1 = arith.constant 0 : i32
    %c0_i32_2 = arith.constant 0 : i32
    return %c0_i32, %c0_i32_0, %c0_i32_1 : i32, i32, i32
  }
  func.func @transform_7(%arg0: i32) -> (i32, i32, i32) {
    %c0_i32 = arith.constant 0 : i32
    %c0_i32_0 = arith.constant 0 : i32
    %c0_i32_1 = arith.constant 0 : i32
    %c0_i32_2 = arith.constant 0 : i32
    return %c0_i32, %c0_i32_0, %c0_i32_1 : i32, i32, i32
  }
  func.func @transform_8(%arg0: i32) -> (i32, i32, i32) {
    %c0_i32 = arith.constant 0 : i32
    %c0_i32_0 = arith.constant 0 : i32
    %c0_i32_1 = arith.constant 0 : i32
    %c0_i32_2 = arith.constant 0 : i32
    return %c0_i32, %c0_i32_0, %c0_i32_1 : i32, i32, i32
  }
  func.func @transform_9(%arg0: i32) -> (i32, i32) {
    %c0_i32 = arith.constant 0 : i32
    %c0_i32_0 = arith.constant 0 : i32
    return %arg0, %c0_i32 : i32, i32
  }
  func.func @transform_10(%arg0: i32) -> (i32, i32) {
    %c1_i32 = arith.constant 1 : i32
    %0 = arith.subi %c1_i32, %arg0 : i32
    %c0_i32 = arith.constant 0 : i32
    %c0_i32_0 = arith.constant 0 : i32
    return %0, %c0_i32 : i32, i32
  }
  func.func @transform_11(%arg0: i32) -> (i32, i32, i32) {
    %c0_i32 = arith.constant 0 : i32
    %c0_i32_0 = arith.constant 0 : i32
    %c0_i32_1 = arith.constant 0 : i32
    %c0_i32_2 = arith.constant 0 : i32
    return %c0_i32, %c0_i32_0, %c0_i32_1 : i32, i32, i32
  }
  func.func @transform_12(%arg0: i32) -> (i32, i32, i32) {
    %c0_i32 = arith.constant 0 : i32
    %c0_i32_0 = arith.constant 0 : i32
    %c0_i32_1 = arith.constant 0 : i32
    %c0_i32_2 = arith.constant 0 : i32
    return %c0_i32, %c0_i32_0, %c0_i32_1 : i32, i32, i32
  }
}

module attributes {stable_mosaic.version = 11 : i64} {
  func.func @kernel(%arg0: i32, %arg1: memref<32x32xf32, #tpu.memory_space<vmem>>, %arg2: memref<32x32xf32, #tpu.memory_space<vmem>>, %arg3: memref<32x32xf32, #tpu.memory_space<vmem>>, %arg4: memref<32x32xf32, #tpu.memory_space<vmem>>, %arg5: memref<2x2x32x128xbf16, #tpu.memory_space<vmem>>, %arg6: memref<2x32x128xbf16, #tpu.memory_space<vmem>>, %arg7: memref<2x1x128xf32, #tpu.memory_space<vmem>>, %arg8: memref<2x8x32xf32, #tpu.memory_space<vmem>>, %arg9: memref<2x8x32xf32, #tpu.memory_space<vmem>>, %arg10: memref<32x32xf32, #tpu.memory_space<vmem>>, %arg11: memref<32x32xf32, #tpu.memory_space<vmem>>, %arg12: memref<2x8x32xf32, #tpu.memory_space<vmem>>, %arg13: memref<2x8x32xf32, #tpu.memory_space<vmem>>, %arg14: memref<2x32x128xf32, #tpu.memory_space<vmem>>) attributes {dimension_semantics = [#tpu.dimension_semantics<arbitrary>], iteration_bounds = array<i64: 2>, scalar_prefetch = 0 : i64, scratch_operands = 1 : i64, tpu.core_type = #tpu.core_type<tc>, window_params = [{transform_indices = @transform_0, window_bounds = array<i64: 32, 32>}, {transform_indices = @transform_1, window_bounds = array<i64: 32, 32>}, {transform_indices = @transform_2, window_bounds = array<i64: 32, 32>}, {transform_indices = @transform_3, window_bounds = array<i64: 32, 32>}, {pipeline_mode = #tpu.pipeline_mode<synchronous>, transform_indices = @transform_4, window_bounds = array<i64: 2, 2, 32, 128>}, {pipeline_mode = #tpu.pipeline_mode<synchronous>, transform_indices = @transform_5, window_bounds = array<i64: 2, 32, 128>}, {pipeline_mode = #tpu.pipeline_mode<synchronous>, transform_indices = @transform_6, window_bounds = array<i64: 2, 1, 128>}, {pipeline_mode = #tpu.pipeline_mode<synchronous>, transform_indices = @transform_7, window_bounds = array<i64: 2, 8, 32>}, {pipeline_mode = #tpu.pipeline_mode<synchronous>, transform_indices = @transform_8, window_bounds = array<i64: 2, 8, 32>}, {transform_indices = @transform_9, window_bounds = array<i64: 32, 32>}, {transform_indices = @transform_10, window_bounds = array<i64: 32, 32>}, {pipeline_mode = #tpu.pipeline_mode<synchronous>, transform_indices = @transform_11, window_bounds = array<i64: 2, 8, 32>}, {pipeline_mode = #tpu.pipeline_mode<synchronous>, transform_indices = @transform_12, window_bounds = array<i64: 2, 8, 32>}]} {
    %c0_i32 = arith.constant 0 : i32
    %0 = arith.cmpi eq, %arg0, %c0_i32 : i32
    %1 = arith.extui %0 : i1 to i32
    %c0_i32_0 = arith.constant 0 : i32
    %2 = arith.cmpi ne, %1, %c0_i32_0 : i32
    scf.if %2 {
      %c0_101 = arith.constant 0 : index
      %c0_102 = arith.constant 0 : index
      %c0_103 = arith.constant 0 : index
      %252 = vector.load %arg8[%c0_101, %c0_102, %c0_103] : memref<2x8x32xf32, #tpu.memory_space<vmem>>, vector<2x8x32xf32>
      %c0_104 = arith.constant 0 : index
      %c0_105 = arith.constant 0 : index
      %c0_106 = arith.constant 0 : index
      %253 = vector.load %arg12[%c0_104, %c0_105, %c0_106] : memref<2x8x32xf32, #tpu.memory_space<vmem>>, vector<2x8x32xf32>
      tpu.vector_store %arg12[%c0_104, %c0_105, %c0_106], %252 {strides = array<i32>} : memref<2x8x32xf32, #tpu.memory_space<vmem>>, vector<2x8x32xf32>,
      %c0_107 = arith.constant 0 : index
      %c0_108 = arith.constant 0 : index
      %c0_109 = arith.constant 0 : index
      %254 = vector.load %arg9[%c0_107, %c0_108, %c0_109] : memref<2x8x32xf32, #tpu.memory_space<vmem>>, vector<2x8x32xf32>
      %c0_110 = arith.constant 0 : index
      %c0_111 = arith.constant 0 : index
      %c0_112 = arith.constant 0 : index
      %255 = vector.load %arg13[%c0_110, %c0_111, %c0_112] : memref<2x8x32xf32, #tpu.memory_space<vmem>>, vector<2x8x32xf32>
      tpu.vector_store %arg13[%c0_110, %c0_111, %c0_112], %254 {strides = array<i32>} : memref<2x8x32xf32, #tpu.memory_space<vmem>>, vector<2x8x32xf32>,
    } else {
    }
    %c0 = arith.constant 0 : index
    %c0_1 = arith.constant 0 : index
    %3 = vector.load %arg1[%c0, %c0_1] : memref<32x32xf32, #tpu.memory_space<vmem>>, vector<32x32xf32>
    %4 = arith.truncf %3 : vector<32x32xf32> to vector<32x32xbf16>
    %c0_2 = arith.constant 0 : index
    %c0_3 = arith.constant 0 : index
    %c0_4 = arith.constant 0 : index
    %c0_5 = arith.constant 0 : index
    %5 = vector.load %arg5[%c0_2, %c0_3, %c0_4, %c0_5] : memref<2x2x32x128xbf16, #tpu.memory_space<vmem>>, vector<1x1x32x128xbf16>
    %6 = vector.shape_cast %5 : vector<1x1x32x128xbf16> to vector<32x128xbf16>
    %cst = arith.constant dense<0.000000e+00> : vector<32x128xf32>
    %7 = tpu.matmul %4, %6, %cst {dimension_numbers = #tpu.dot_dimension_numbers<[1], [0], [0], [1], [0, 0, 1, 1], [], []>} : vector<32x32xbf16>, vector<32x128xbf16>, vector<32x128xf32> -> vector<32x128xf32>
    %c0_6 = arith.constant 0 : index
    %c0_7 = arith.constant 0 : index
    %8 = vector.load %arg3[%c0_6, %c0_7] : memref<32x32xf32, #tpu.memory_space<vmem>>, vector<32x32xf32>
    %9 = arith.truncf %8 : vector<32x32xf32> to vector<32x32xbf16>
    %c1 = arith.constant 1 : index
    %c0_8 = arith.constant 0 : index
    %c0_9 = arith.constant 0 : index
    %c0_10 = arith.constant 0 : index
    %10 = vector.load %arg5[%c1, %c0_8, %c0_9, %c0_10] : memref<2x2x32x128xbf16, #tpu.memory_space<vmem>>, vector<1x1x32x128xbf16>
    %11 = vector.shape_cast %10 : vector<1x1x32x128xbf16> to vector<32x128xbf16>
    %cst_11 = arith.constant dense<0.000000e+00> : vector<32x128xf32>
    %12 = tpu.matmul %9, %11, %cst_11 {dimension_numbers = #tpu.dot_dimension_numbers<[1], [0], [0], [1], [0, 0, 1, 1], [], []>} : vector<32x32xbf16>, vector<32x128xbf16>, vector<32x128xf32> -> vector<32x128xf32>
    %c0_12 = arith.constant 0 : index
    %c0_13 = arith.constant 0 : index
    %13 = vector.load %arg2[%c0_12, %c0_13] : memref<32x32xf32, #tpu.memory_space<vmem>>, vector<32x32xf32>
    %14 = arith.truncf %13 : vector<32x32xf32> to vector<32x32xbf16>
    %c0_14 = arith.constant 0 : index
    %c1_15 = arith.constant 1 : index
    %c0_16 = arith.constant 0 : index
    %c0_17 = arith.constant 0 : index
    %15 = vector.load %arg5[%c0_14, %c1_15, %c0_16, %c0_17] : memref<2x2x32x128xbf16, #tpu.memory_space<vmem>>, vector<1x1x32x128xbf16>
    %16 = vector.shape_cast %15 : vector<1x1x32x128xbf16> to vector<32x128xbf16>
    %cst_18 = arith.constant dense<0.000000e+00> : vector<32x128xf32>
    %17 = tpu.matmul %14, %16, %cst_18 {dimension_numbers = #tpu.dot_dimension_numbers<[1], [0], [0], [1], [0, 0, 1, 1], [], []>} : vector<32x32xbf16>, vector<32x128xbf16>, vector<32x128xf32> -> vector<32x128xf32>
    %18 = arith.addf %7, %17 : vector<32x128xf32>
    %c0_19 = arith.constant 0 : index
    %c0_20 = arith.constant 0 : index
    %19 = vector.load %arg4[%c0_19, %c0_20] : memref<32x32xf32, #tpu.memory_space<vmem>>, vector<32x32xf32>
    %20 = arith.truncf %19 : vector<32x32xf32> to vector<32x32xbf16>
    %c1_21 = arith.constant 1 : index
    %c1_22 = arith.constant 1 : index
    %c0_23 = arith.constant 0 : index
    %c0_24 = arith.constant 0 : index
    %21 = vector.load %arg5[%c1_21, %c1_22, %c0_23, %c0_24] : memref<2x2x32x128xbf16, #tpu.memory_space<vmem>>, vector<1x1x32x128xbf16>
    %22 = vector.shape_cast %21 : vector<1x1x32x128xbf16> to vector<32x128xbf16>
    %cst_25 = arith.constant dense<0.000000e+00> : vector<32x128xf32>
    %23 = tpu.matmul %20, %22, %cst_25 {dimension_numbers = #tpu.dot_dimension_numbers<[1], [0], [0], [1], [0, 0, 1, 1], [], []>} : vector<32x32xbf16>, vector<32x128xbf16>, vector<32x128xf32> -> vector<32x128xf32>
    %24 = arith.addf %12, %23 : vector<32x128xf32>
    %c0_26 = arith.constant 0 : index
    %c0_27 = arith.constant 0 : index
    %c0_28 = arith.constant 0 : index
    %25 = vector.load %arg7[%c0_26, %c0_27, %c0_28] : memref<2x1x128xf32, #tpu.memory_space<vmem>>, vector<1x1x128xf32>
    %26 = vector.shape_cast %25 : vector<1x1x128xf32> to vector<1x128xf32>
    %27 = vector.broadcast %26 : vector<1x128xf32> to vector<32x128xf32>
    %28 = arith.addf %18, %27 : vector<32x128xf32>
    %c0_29 = arith.constant 0 : index
    %c0_30 = arith.constant 0 : index
    %c0_31 = arith.constant 0 : index
    %29 = vector.load %arg14[%c0_29, %c0_30, %c0_31] : memref<2x32x128xf32, #tpu.memory_space<vmem>>, vector<1x32x128xf32>
    %30 = vector.shape_cast %29 : vector<1x32x128xf32> to vector<32x128xf32>
    %31 = vector.shape_cast %28 : vector<32x128xf32> to vector<1x32x128xf32>
    tpu.vector_store %arg14[%c0_29, %c0_30, %c0_31], %31 {strides = array<i32>} : memref<2x32x128xf32, #tpu.memory_space<vmem>>, vector<1x32x128xf32>,
    %c1_32 = arith.constant 1 : index
    %c0_33 = arith.constant 0 : index
    %c0_34 = arith.constant 0 : index
    %32 = vector.load %arg7[%c1_32, %c0_33, %c0_34] : memref<2x1x128xf32, #tpu.memory_space<vmem>>, vector<1x1x128xf32>
    %33 = vector.shape_cast %32 : vector<1x1x128xf32> to vector<1x128xf32>
    %34 = vector.broadcast %33 : vector<1x128xf32> to vector<32x128xf32>
    %35 = arith.addf %24, %34 : vector<32x128xf32>
    %c1_35 = arith.constant 1 : index
    %c0_36 = arith.constant 0 : index
    %c0_37 = arith.constant 0 : index
    %36 = vector.load %arg14[%c1_35, %c0_36, %c0_37] : memref<2x32x128xf32, #tpu.memory_space<vmem>>, vector<1x32x128xf32>
    %37 = vector.shape_cast %36 : vector<1x32x128xf32> to vector<32x128xf32>
    %38 = vector.shape_cast %35 : vector<32x128xf32> to vector<1x32x128xf32>
    tpu.vector_store %arg14[%c1_35, %c0_36, %c0_37], %38 {strides = array<i32>} : memref<2x32x128xf32, #tpu.memory_space<vmem>>, vector<1x32x128xf32>,
    %c0_38 = arith.constant 0 : index
    %c0_39 = arith.constant 0 : index
    %c0_40 = arith.constant 0 : index
    %39 = vector.load %arg6[%c0_38, %c0_39, %c0_40] : memref<2x32x128xbf16, #tpu.memory_space<vmem>>, vector<2x32x128xbf16>
    %c0_41 = arith.constant 0 : index
    %c0_42 = arith.constant 0 : index
    %c0_43 = arith.constant 0 : index
    %40 = vector.load %arg12[%c0_41, %c0_42, %c0_43] : memref<2x8x32xf32, #tpu.memory_space<vmem>>, vector<2x8x32xf32>
    %c0_44 = arith.constant 0 : index
    %c0_45 = arith.constant 0 : index
    %c0_46 = arith.constant 0 : index
    %41 = vector.load %arg13[%c0_44, %c0_45, %c0_46] : memref<2x8x32xf32, #tpu.memory_space<vmem>>, vector<2x8x32xf32>
    %c0_i32_47 = arith.constant 0 : i32
    %c8_i32 = arith.constant 8 : i32
    %42 = arith.muli %c0_i32_47, %c8_i32 : i32
    %43 = tpu.assume_multiple %42, 8 : i32
    %c3_i32 = arith.constant 3 : i32
    %44 = arith.subi %c3_i32, %c0_i32_47 : i32
    %c8_i32_48 = arith.constant 8 : i32
    %45 = arith.muli %44, %c8_i32_48 : i32
    %46 = tpu.assume_multiple %45, 8 : i32
    %c0_49 = arith.constant 0 : index
    %47 = arith.index_cast %43 : i32 to index
    %c0_50 = arith.constant 0 : index
    %48 = vector.load %arg14[%c0_49, %47, %c0_50] : memref<2x32x128xf32, #tpu.memory_space<vmem>>, vector<1x8x128xf32>
    %49 = vector.shape_cast %48 : vector<1x8x128xf32> to vector<8x128xf32>
    %50 = vector.extract_strided_slice %40 {offsets = [0, 0, 0], sizes = [1, 8, 32], strides = [1, 1, 1]} : vector<2x8x32xf32> to vector<1x8x32xf32>
    %51 = vector.shape_cast %50 : vector<1x8x32xf32> to vector<8x32xf32>
    %52 = arith.truncf %51 : vector<8x32xf32> to vector<8x32xbf16>
    %53 = vector.extract_strided_slice %39 {offsets = [0, 0, 0], sizes = [1, 32, 128], strides = [1, 1, 1]} : vector<2x32x128xbf16> to vector<1x32x128xbf16>
    %54 = vector.shape_cast %53 : vector<1x32x128xbf16> to vector<32x128xbf16>
    %cst_51 = arith.constant dense<0.000000e+00> : vector<8x128xf32>
    %55 = tpu.matmul %52, %54, %cst_51 {dimension_numbers = #tpu.dot_dimension_numbers<[1], [0], [0], [1], [0, 0, 1, 1], [], []>} : vector<8x32xbf16>, vector<32x128xbf16>, vector<8x128xf32> -> vector<8x128xf32>
    %56 = arith.addf %49, %55 : vector<8x128xf32>
    %c1_52 = arith.constant 1 : index
    %57 = arith.index_cast %46 : i32 to index
    %c0_53 = arith.constant 0 : index
    %58 = vector.load %arg14[%c1_52, %57, %c0_53] : memref<2x32x128xf32, #tpu.memory_space<vmem>>, vector<1x8x128xf32>
    %59 = vector.shape_cast %58 : vector<1x8x128xf32> to vector<8x128xf32>
    %60 = vector.extract_strided_slice %40 {offsets = [1, 0, 0], sizes = [1, 8, 32], strides = [1, 1, 1]} : vector<2x8x32xf32> to vector<1x8x32xf32>
    %61 = vector.shape_cast %60 : vector<1x8x32xf32> to vector<8x32xf32>
    %62 = arith.truncf %61 : vector<8x32xf32> to vector<8x32xbf16>
    %63 = vector.extract_strided_slice %39 {offsets = [1, 0, 0], sizes = [1, 32, 128], strides = [1, 1, 1]} : vector<2x32x128xbf16> to vector<1x32x128xbf16>
    %64 = vector.shape_cast %63 : vector<1x32x128xbf16> to vector<32x128xbf16>
    %cst_54 = arith.constant dense<0.000000e+00> : vector<8x128xf32>
    %65 = tpu.matmul %62, %64, %cst_54 {dimension_numbers = #tpu.dot_dimension_numbers<[1], [0], [0], [1], [0, 0, 1, 1], [], []>} : vector<8x32xbf16>, vector<32x128xbf16>, vector<8x128xf32> -> vector<8x128xf32>
    %66 = arith.addf %59, %65 : vector<8x128xf32>
    %67 = vector.shape_cast %56 : vector<8x128xf32> to vector<1x8x128xf32>
    %68 = vector.shape_cast %66 : vector<8x128xf32> to vector<1x8x128xf32>
    %69 = tpu.concatenate %67, %68 in 0 : vector<1x8x128xf32>, vector<1x8x128xf32> -> vector<2x8x128xf32>
    %70 = vector.extract_strided_slice %69 {offsets = [0, 0, 0], sizes = [2, 8, 96], strides = [1, 1, 1]} : vector<2x8x128xf32> to vector<2x8x96xf32>
    %71 = arith.negf %70 : vector<2x8x96xf32>
    %72 = math.exp %71 : vector<2x8x96xf32>
    %cst_55 = arith.constant 1.000000e+00 : f32
    %73 = vector.broadcast %cst_55 : f32 to vector<2x8x96xf32>
    %74 = arith.addf %73, %72 : vector<2x8x96xf32>
    %75 = arith.divf %73, %74 : vector<2x8x96xf32>
    %76 = vector.extract_strided_slice %69 {offsets = [0, 0, 96], sizes = [2, 8, 32], strides = [1, 1, 1]} : vector<2x8x128xf32> to vector<2x8x32xf32>
    %77 = math.tanh %76 : vector<2x8x32xf32>
    %78 = vector.extract_strided_slice %75 {offsets = [0, 0, 32], sizes = [2, 8, 32], strides = [1, 1, 1]} : vector<2x8x96xf32> to vector<2x8x32xf32>
    %79 = arith.mulf %78, %41 : vector<2x8x32xf32>
    %80 = vector.extract_strided_slice %75 {offsets = [0, 0, 0], sizes = [2, 8, 32], strides = [1, 1, 1]} : vector<2x8x96xf32> to vector<2x8x32xf32>
    %81 = arith.mulf %80, %77 : vector<2x8x32xf32>
    %82 = arith.addf %79, %81 : vector<2x8x32xf32>
    %83 = vector.extract_strided_slice %75 {offsets = [0, 0, 64], sizes = [2, 8, 32], strides = [1, 1, 1]} : vector<2x8x96xf32> to vector<2x8x32xf32>
    %84 = math.tanh %82 : vector<2x8x32xf32>
    %85 = arith.mulf %83, %84 : vector<2x8x32xf32>
    %86 = vector.extract_strided_slice %85 {offsets = [0, 0, 0], sizes = [1, 8, 32], strides = [1, 1, 1]} : vector<2x8x32xf32> to vector<1x8x32xf32>
    %87 = vector.shape_cast %86 : vector<1x8x32xf32> to vector<8x32xf32>
    %88 = arith.index_cast %43 : i32 to index
    %c0_56 = arith.constant 0 : index
    %89 = vector.load %arg10[%88, %c0_56] : memref<32x32xf32, #tpu.memory_space<vmem>>, vector<8x32xf32>
    tpu.vector_store %arg10[%88, %c0_56], %87 {strides = array<i32>} : memref<32x32xf32, #tpu.memory_space<vmem>>, vector<8x32xf32>,
    %90 = vector.extract_strided_slice %85 {offsets = [1, 0, 0], sizes = [1, 8, 32], strides = [1, 1, 1]} : vector<2x8x32xf32> to vector<1x8x32xf32>
    %91 = vector.shape_cast %90 : vector<1x8x32xf32> to vector<8x32xf32>
    %92 = arith.index_cast %46 : i32 to index
    %c0_57 = arith.constant 0 : index
    %93 = vector.load %arg11[%92, %c0_57] : memref<32x32xf32, #tpu.memory_space<vmem>>, vector<8x32xf32>
    tpu.vector_store %arg11[%92, %c0_57], %91 {strides = array<i32>} : memref<32x32xf32, #tpu.memory_space<vmem>>, vector<8x32xf32>,
    %c1_i32 = arith.constant 1 : i32
    %c8_i32_58 = arith.constant 8 : i32
    %94 = arith.muli %c1_i32, %c8_i32_58 : i32
    %95 = tpu.assume_multiple %94, 8 : i32
    %c3_i32_59 = arith.constant 3 : i32
    %96 = arith.subi %c3_i32_59, %c1_i32 : i32
    %c8_i32_60 = arith.constant 8 : i32
    %97 = arith.muli %96, %c8_i32_60 : i32
    %98 = tpu.assume_multiple %97, 8 : i32
    %c0_61 = arith.constant 0 : index
    %99 = arith.index_cast %95 : i32 to index
    %c0_62 = arith.constant 0 : index
    %100 = vector.load %arg14[%c0_61, %99, %c0_62] : memref<2x32x128xf32, #tpu.memory_space<vmem>>, vector<1x8x128xf32>
    %101 = vector.shape_cast %100 : vector<1x8x128xf32> to vector<8x128xf32>
    %102 = vector.extract_strided_slice %85 {offsets = [0, 0, 0], sizes = [1, 8, 32], strides = [1, 1, 1]} : vector<2x8x32xf32> to vector<1x8x32xf32>
    %103 = vector.shape_cast %102 : vector<1x8x32xf32> to vector<8x32xf32>
    %104 = arith.truncf %103 : vector<8x32xf32> to vector<8x32xbf16>
    %105 = vector.extract_strided_slice %39 {offsets = [0, 0, 0], sizes = [1, 32, 128], strides = [1, 1, 1]} : vector<2x32x128xbf16> to vector<1x32x128xbf16>
    %106 = vector.shape_cast %105 : vector<1x32x128xbf16> to vector<32x128xbf16>
    %cst_63 = arith.constant dense<0.000000e+00> : vector<8x128xf32>
    %107 = tpu.matmul %104, %106, %cst_63 {dimension_numbers = #tpu.dot_dimension_numbers<[1], [0], [0], [1], [0, 0, 1, 1], [], []>} : vector<8x32xbf16>, vector<32x128xbf16>, vector<8x128xf32> -> vector<8x128xf32>
    %108 = arith.addf %101, %107 : vector<8x128xf32>
    %c1_64 = arith.constant 1 : index
    %109 = arith.index_cast %98 : i32 to index
    %c0_65 = arith.constant 0 : index
    %110 = vector.load %arg14[%c1_64, %109, %c0_65] : memref<2x32x128xf32, #tpu.memory_space<vmem>>, vector<1x8x128xf32>
    %111 = vector.shape_cast %110 : vector<1x8x128xf32> to vector<8x128xf32>
    %112 = vector.extract_strided_slice %85 {offsets = [1, 0, 0], sizes = [1, 8, 32], strides = [1, 1, 1]} : vector<2x8x32xf32> to vector<1x8x32xf32>
    %113 = vector.shape_cast %112 : vector<1x8x32xf32> to vector<8x32xf32>
    %114 = arith.truncf %113 : vector<8x32xf32> to vector<8x32xbf16>
    %115 = vector.extract_strided_slice %39 {offsets = [1, 0, 0], sizes = [1, 32, 128], strides = [1, 1, 1]} : vector<2x32x128xbf16> to vector<1x32x128xbf16>
    %116 = vector.shape_cast %115 : vector<1x32x128xbf16> to vector<32x128xbf16>
    %cst_66 = arith.constant dense<0.000000e+00> : vector<8x128xf32>
    %117 = tpu.matmul %114, %116, %cst_66 {dimension_numbers = #tpu.dot_dimension_numbers<[1], [0], [0], [1], [0, 0, 1, 1], [], []>} : vector<8x32xbf16>, vector<32x128xbf16>, vector<8x128xf32> -> vector<8x128xf32>
    %118 = arith.addf %111, %117 : vector<8x128xf32>
    %119 = vector.shape_cast %108 : vector<8x128xf32> to vector<1x8x128xf32>
    %120 = vector.shape_cast %118 : vector<8x128xf32> to vector<1x8x128xf32>
    %121 = tpu.concatenate %119, %120 in 0 : vector<1x8x128xf32>, vector<1x8x128xf32> -> vector<2x8x128xf32>
    %122 = vector.extract_strided_slice %121 {offsets = [0, 0, 0], sizes = [2, 8, 96], strides = [1, 1, 1]} : vector<2x8x128xf32> to vector<2x8x96xf32>
    %123 = arith.negf %122 : vector<2x8x96xf32>
    %124 = math.exp %123 : vector<2x8x96xf32>
    %cst_67 = arith.constant 1.000000e+00 : f32
    %125 = vector.broadcast %cst_67 : f32 to vector<2x8x96xf32>
    %126 = arith.addf %125, %124 : vector<2x8x96xf32>
    %127 = arith.divf %125, %126 : vector<2x8x96xf32>
    %128 = vector.extract_strided_slice %121 {offsets = [0, 0, 96], sizes = [2, 8, 32], strides = [1, 1, 1]} : vector<2x8x128xf32> to vector<2x8x32xf32>
    %129 = math.tanh %128 : vector<2x8x32xf32>
    %130 = vector.extract_strided_slice %127 {offsets = [0, 0, 32], sizes = [2, 8, 32], strides = [1, 1, 1]} : vector<2x8x96xf32> to vector<2x8x32xf32>
    %131 = arith.mulf %130, %82 : vector<2x8x32xf32>
    %132 = vector.extract_strided_slice %127 {offsets = [0, 0, 0], sizes = [2, 8, 32], strides = [1, 1, 1]} : vector<2x8x96xf32> to vector<2x8x32xf32>
    %133 = arith.mulf %132, %129 : vector<2x8x32xf32>
    %134 = arith.addf %131, %133 : vector<2x8x32xf32>
    %135 = vector.extract_strided_slice %127 {offsets = [0, 0, 64], sizes = [2, 8, 32], strides = [1, 1, 1]} : vector<2x8x96xf32> to vector<2x8x32xf32>
    %136 = math.tanh %134 : vector<2x8x32xf32>
    %137 = arith.mulf %135, %136 : vector<2x8x32xf32>
    %138 = vector.extract_strided_slice %137 {offsets = [0, 0, 0], sizes = [1, 8, 32], strides = [1, 1, 1]} : vector<2x8x32xf32> to vector<1x8x32xf32>
    %139 = vector.shape_cast %138 : vector<1x8x32xf32> to vector<8x32xf32>
    %140 = arith.index_cast %95 : i32 to index
    %c0_68 = arith.constant 0 : index
    %141 = vector.load %arg10[%140, %c0_68] : memref<32x32xf32, #tpu.memory_space<vmem>>, vector<8x32xf32>
    tpu.vector_store %arg10[%140, %c0_68], %139 {strides = array<i32>} : memref<32x32xf32, #tpu.memory_space<vmem>>, vector<8x32xf32>,
    %142 = vector.extract_strided_slice %137 {offsets = [1, 0, 0], sizes = [1, 8, 32], strides = [1, 1, 1]} : vector<2x8x32xf32> to vector<1x8x32xf32>
    %143 = vector.shape_cast %142 : vector<1x8x32xf32> to vector<8x32xf32>
    %144 = arith.index_cast %98 : i32 to index
    %c0_69 = arith.constant 0 : index
    %145 = vector.load %arg11[%144, %c0_69] : memref<32x32xf32, #tpu.memory_space<vmem>>, vector<8x32xf32>
    tpu.vector_store %arg11[%144, %c0_69], %143 {strides = array<i32>} : memref<32x32xf32, #tpu.memory_space<vmem>>, vector<8x32xf32>,
    %c2_i32 = arith.constant 2 : i32
    %c8_i32_70 = arith.constant 8 : i32
    %146 = arith.muli %c2_i32, %c8_i32_70 : i32
    %147 = tpu.assume_multiple %146, 8 : i32
    %c3_i32_71 = arith.constant 3 : i32
    %148 = arith.subi %c3_i32_71, %c2_i32 : i32
    %c8_i32_72 = arith.constant 8 : i32
    %149 = arith.muli %148, %c8_i32_72 : i32
    %150 = tpu.assume_multiple %149, 8 : i32
    %c0_73 = arith.constant 0 : index
    %151 = arith.index_cast %147 : i32 to index
    %c0_74 = arith.constant 0 : index
    %152 = vector.load %arg14[%c0_73, %151, %c0_74] : memref<2x32x128xf32, #tpu.memory_space<vmem>>, vector<1x8x128xf32>
    %153 = vector.shape_cast %152 : vector<1x8x128xf32> to vector<8x128xf32>
    %154 = vector.extract_strided_slice %137 {offsets = [0, 0, 0], sizes = [1, 8, 32], strides = [1, 1, 1]} : vector<2x8x32xf32> to vector<1x8x32xf32>
    %155 = vector.shape_cast %154 : vector<1x8x32xf32> to vector<8x32xf32>
    %156 = arith.truncf %155 : vector<8x32xf32> to vector<8x32xbf16>
    %157 = vector.extract_strided_slice %39 {offsets = [0, 0, 0], sizes = [1, 32, 128], strides = [1, 1, 1]} : vector<2x32x128xbf16> to vector<1x32x128xbf16>
    %158 = vector.shape_cast %157 : vector<1x32x128xbf16> to vector<32x128xbf16>
    %cst_75 = arith.constant dense<0.000000e+00> : vector<8x128xf32>
    %159 = tpu.matmul %156, %158, %cst_75 {dimension_numbers = #tpu.dot_dimension_numbers<[1], [0], [0], [1], [0, 0, 1, 1], [], []>} : vector<8x32xbf16>, vector<32x128xbf16>, vector<8x128xf32> -> vector<8x128xf32>
    %160 = arith.addf %153, %159 : vector<8x128xf32>
    %c1_76 = arith.constant 1 : index
    %161 = arith.index_cast %150 : i32 to index
    %c0_77 = arith.constant 0 : index
    %162 = vector.load %arg14[%c1_76, %161, %c0_77] : memref<2x32x128xf32, #tpu.memory_space<vmem>>, vector<1x8x128xf32>
    %163 = vector.shape_cast %162 : vector<1x8x128xf32> to vector<8x128xf32>
    %164 = vector.extract_strided_slice %137 {offsets = [1, 0, 0], sizes = [1, 8, 32], strides = [1, 1, 1]} : vector<2x8x32xf32> to vector<1x8x32xf32>
    %165 = vector.shape_cast %164 : vector<1x8x32xf32> to vector<8x32xf32>
    %166 = arith.truncf %165 : vector<8x32xf32> to vector<8x32xbf16>
    %167 = vector.extract_strided_slice %39 {offsets = [1, 0, 0], sizes = [1, 32, 128], strides = [1, 1, 1]} : vector<2x32x128xbf16> to vector<1x32x128xbf16>
    %168 = vector.shape_cast %167 : vector<1x32x128xbf16> to vector<32x128xbf16>
    %cst_78 = arith.constant dense<0.000000e+00> : vector<8x128xf32>
    %169 = tpu.matmul %166, %168, %cst_78 {dimension_numbers = #tpu.dot_dimension_numbers<[1], [0], [0], [1], [0, 0, 1, 1], [], []>} : vector<8x32xbf16>, vector<32x128xbf16>, vector<8x128xf32> -> vector<8x128xf32>
    %170 = arith.addf %163, %169 : vector<8x128xf32>
    %171 = vector.shape_cast %160 : vector<8x128xf32> to vector<1x8x128xf32>
    %172 = vector.shape_cast %170 : vector<8x128xf32> to vector<1x8x128xf32>
    %173 = tpu.concatenate %171, %172 in 0 : vector<1x8x128xf32>, vector<1x8x128xf32> -> vector<2x8x128xf32>
    %174 = vector.extract_strided_slice %173 {offsets = [0, 0, 0], sizes = [2, 8, 96], strides = [1, 1, 1]} : vector<2x8x128xf32> to vector<2x8x96xf32>
    %175 = arith.negf %174 : vector<2x8x96xf32>
    %176 = math.exp %175 : vector<2x8x96xf32>
    %cst_79 = arith.constant 1.000000e+00 : f32
    %177 = vector.broadcast %cst_79 : f32 to vector<2x8x96xf32>
    %178 = arith.addf %177, %176 : vector<2x8x96xf32>
    %179 = arith.divf %177, %178 : vector<2x8x96xf32>
    %180 = vector.extract_strided_slice %173 {offsets = [0, 0, 96], sizes = [2, 8, 32], strides = [1, 1, 1]} : vector<2x8x128xf32> to vector<2x8x32xf32>
    %181 = math.tanh %180 : vector<2x8x32xf32>
    %182 = vector.extract_strided_slice %179 {offsets = [0, 0, 32], sizes = [2, 8, 32], strides = [1, 1, 1]} : vector<2x8x96xf32> to vector<2x8x32xf32>
    %183 = arith.mulf %182, %134 : vector<2x8x32xf32>
    %184 = vector.extract_strided_slice %179 {offsets = [0, 0, 0], sizes = [2, 8, 32], strides = [1, 1, 1]} : vector<2x8x96xf32> to vector<2x8x32xf32>
    %185 = arith.mulf %184, %181 : vector<2x8x32xf32>
    %186 = arith.addf %183, %185 : vector<2x8x32xf32>
    %187 = vector.extract_strided_slice %179 {offsets = [0, 0, 64], sizes = [2, 8, 32], strides = [1, 1, 1]} : vector<2x8x96xf32> to vector<2x8x32xf32>
    %188 = math.tanh %186 : vector<2x8x32xf32>
    %189 = arith.mulf %187, %188 : vector<2x8x32xf32>
    %190 = vector.extract_strided_slice %189 {offsets = [0, 0, 0], sizes = [1, 8, 32], strides = [1, 1, 1]} : vector<2x8x32xf32> to vector<1x8x32xf32>
    %191 = vector.shape_cast %190 : vector<1x8x32xf32> to vector<8x32xf32>
    %192 = arith.index_cast %147 : i32 to index
    %c0_80 = arith.constant 0 : index
    %193 = vector.load %arg10[%192, %c0_80] : memref<32x32xf32, #tpu.memory_space<vmem>>, vector<8x32xf32>
    tpu.vector_store %arg10[%192, %c0_80], %191 {strides = array<i32>} : memref<32x32xf32, #tpu.memory_space<vmem>>, vector<8x32xf32>,
    %194 = vector.extract_strided_slice %189 {offsets = [1, 0, 0], sizes = [1, 8, 32], strides = [1, 1, 1]} : vector<2x8x32xf32> to vector<1x8x32xf32>
    %195 = vector.shape_cast %194 : vector<1x8x32xf32> to vector<8x32xf32>
    %196 = arith.index_cast %150 : i32 to index
    %c0_81 = arith.constant 0 : index
    %197 = vector.load %arg11[%196, %c0_81] : memref<32x32xf32, #tpu.memory_space<vmem>>, vector<8x32xf32>
    tpu.vector_store %arg11[%196, %c0_81], %195 {strides = array<i32>} : memref<32x32xf32, #tpu.memory_space<vmem>>, vector<8x32xf32>,
    %c3_i32_82 = arith.constant 3 : i32
    %c8_i32_83 = arith.constant 8 : i32
    %198 = arith.muli %c3_i32_82, %c8_i32_83 : i32
    %199 = tpu.assume_multiple %198, 8 : i32
    %c3_i32_84 = arith.constant 3 : i32
    %200 = arith.subi %c3_i32_84, %c3_i32_82 : i32
    %c8_i32_85 = arith.constant 8 : i32
    %201 = arith.muli %200, %c8_i32_85 : i32
    %202 = tpu.assume_multiple %201, 8 : i32
    %c0_86 = arith.constant 0 : index
    %203 = arith.index_cast %199 : i32 to index
    %c0_87 = arith.constant 0 : index
    %204 = vector.load %arg14[%c0_86, %203, %c0_87] : memref<2x32x128xf32, #tpu.memory_space<vmem>>, vector<1x8x128xf32>
    %205 = vector.shape_cast %204 : vector<1x8x128xf32> to vector<8x128xf32>
    %206 = vector.extract_strided_slice %189 {offsets = [0, 0, 0], sizes = [1, 8, 32], strides = [1, 1, 1]} : vector<2x8x32xf32> to vector<1x8x32xf32>
    %207 = vector.shape_cast %206 : vector<1x8x32xf32> to vector<8x32xf32>
    %208 = arith.truncf %207 : vector<8x32xf32> to vector<8x32xbf16>
    %209 = vector.extract_strided_slice %39 {offsets = [0, 0, 0], sizes = [1, 32, 128], strides = [1, 1, 1]} : vector<2x32x128xbf16> to vector<1x32x128xbf16>
    %210 = vector.shape_cast %209 : vector<1x32x128xbf16> to vector<32x128xbf16>
    %cst_88 = arith.constant dense<0.000000e+00> : vector<8x128xf32>
    %211 = tpu.matmul %208, %210, %cst_88 {dimension_numbers = #tpu.dot_dimension_numbers<[1], [0], [0], [1], [0, 0, 1, 1], [], []>} : vector<8x32xbf16>, vector<32x128xbf16>, vector<8x128xf32> -> vector<8x128xf32>
    %212 = arith.addf %205, %211 : vector<8x128xf32>
    %c1_89 = arith.constant 1 : index
    %213 = arith.index_cast %202 : i32 to index
    %c0_90 = arith.constant 0 : index
    %214 = vector.load %arg14[%c1_89, %213, %c0_90] : memref<2x32x128xf32, #tpu.memory_space<vmem>>, vector<1x8x128xf32>
    %215 = vector.shape_cast %214 : vector<1x8x128xf32> to vector<8x128xf32>
    %216 = vector.extract_strided_slice %189 {offsets = [1, 0, 0], sizes = [1, 8, 32], strides = [1, 1, 1]} : vector<2x8x32xf32> to vector<1x8x32xf32>
    %217 = vector.shape_cast %216 : vector<1x8x32xf32> to vector<8x32xf32>
    %218 = arith.truncf %217 : vector<8x32xf32> to vector<8x32xbf16>
    %219 = vector.extract_strided_slice %39 {offsets = [1, 0, 0], sizes = [1, 32, 128], strides = [1, 1, 1]} : vector<2x32x128xbf16> to vector<1x32x128xbf16>
    %220 = vector.shape_cast %219 : vector<1x32x128xbf16> to vector<32x128xbf16>
    %cst_91 = arith.constant dense<0.000000e+00> : vector<8x128xf32>
    %221 = tpu.matmul %218, %220, %cst_91 {dimension_numbers = #tpu.dot_dimension_numbers<[1], [0], [0], [1], [0, 0, 1, 1], [], []>} : vector<8x32xbf16>, vector<32x128xbf16>, vector<8x128xf32> -> vector<8x128xf32>
    %222 = arith.addf %215, %221 : vector<8x128xf32>
    %223 = vector.shape_cast %212 : vector<8x128xf32> to vector<1x8x128xf32>
    %224 = vector.shape_cast %222 : vector<8x128xf32> to vector<1x8x128xf32>
    %225 = tpu.concatenate %223, %224 in 0 : vector<1x8x128xf32>, vector<1x8x128xf32> -> vector<2x8x128xf32>
    %226 = vector.extract_strided_slice %225 {offsets = [0, 0, 0], sizes = [2, 8, 96], strides = [1, 1, 1]} : vector<2x8x128xf32> to vector<2x8x96xf32>
    %227 = arith.negf %226 : vector<2x8x96xf32>
    %228 = math.exp %227 : vector<2x8x96xf32>
    %cst_92 = arith.constant 1.000000e+00 : f32
    %229 = vector.broadcast %cst_92 : f32 to vector<2x8x96xf32>
    %230 = arith.addf %229, %228 : vector<2x8x96xf32>
    %231 = arith.divf %229, %230 : vector<2x8x96xf32>
    %232 = vector.extract_strided_slice %225 {offsets = [0, 0, 96], sizes = [2, 8, 32], strides = [1, 1, 1]} : vector<2x8x128xf32> to vector<2x8x32xf32>
    %233 = math.tanh %232 : vector<2x8x32xf32>
    %234 = vector.extract_strided_slice %231 {offsets = [0, 0, 32], sizes = [2, 8, 32], strides = [1, 1, 1]} : vector<2x8x96xf32> to vector<2x8x32xf32>
    %235 = arith.mulf %234, %186 : vector<2x8x32xf32>
    %236 = vector.extract_strided_slice %231 {offsets = [0, 0, 0], sizes = [2, 8, 32], strides = [1, 1, 1]} : vector<2x8x96xf32> to vector<2x8x32xf32>
    %237 = arith.mulf %236, %233 : vector<2x8x32xf32>
    %238 = arith.addf %235, %237 : vector<2x8x32xf32>
    %239 = vector.extract_strided_slice %231 {offsets = [0, 0, 64], sizes = [2, 8, 32], strides = [1, 1, 1]} : vector<2x8x96xf32> to vector<2x8x32xf32>
    %240 = math.tanh %238 : vector<2x8x32xf32>
    %241 = arith.mulf %239, %240 : vector<2x8x32xf32>
    %242 = vector.extract_strided_slice %241 {offsets = [0, 0, 0], sizes = [1, 8, 32], strides = [1, 1, 1]} : vector<2x8x32xf32> to vector<1x8x32xf32>
    %243 = vector.shape_cast %242 : vector<1x8x32xf32> to vector<8x32xf32>
    %244 = arith.index_cast %199 : i32 to index
    %c0_93 = arith.constant 0 : index
    %245 = vector.load %arg10[%244, %c0_93] : memref<32x32xf32, #tpu.memory_space<vmem>>, vector<8x32xf32>
    tpu.vector_store %arg10[%244, %c0_93], %243 {strides = array<i32>} : memref<32x32xf32, #tpu.memory_space<vmem>>, vector<8x32xf32>,
    %246 = vector.extract_strided_slice %241 {offsets = [1, 0, 0], sizes = [1, 8, 32], strides = [1, 1, 1]} : vector<2x8x32xf32> to vector<1x8x32xf32>
    %247 = vector.shape_cast %246 : vector<1x8x32xf32> to vector<8x32xf32>
    %248 = arith.index_cast %202 : i32 to index
    %c0_94 = arith.constant 0 : index
    %249 = vector.load %arg11[%248, %c0_94] : memref<32x32xf32, #tpu.memory_space<vmem>>, vector<8x32xf32>
    tpu.vector_store %arg11[%248, %c0_94], %247 {strides = array<i32>} : memref<32x32xf32, #tpu.memory_space<vmem>>, vector<8x32xf32>,
    %c4_i32 = arith.constant 4 : i32
    %c0_95 = arith.constant 0 : index
    %c0_96 = arith.constant 0 : index
    %c0_97 = arith.constant 0 : index
    %250 = vector.load %arg12[%c0_95, %c0_96, %c0_97] : memref<2x8x32xf32, #tpu.memory_space<vmem>>, vector<2x8x32xf32>
    tpu.vector_store %arg12[%c0_95, %c0_96, %c0_97], %241 {strides = array<i32>} : memref<2x8x32xf32, #tpu.memory_space<vmem>>, vector<2x8x32xf32>,
    %c0_98 = arith.constant 0 : index
    %c0_99 = arith.constant 0 : index
    %c0_100 = arith.constant 0 : index
    %251 = vector.load %arg13[%c0_98, %c0_99, %c0_100] : memref<2x8x32xf32, #tpu.memory_space<vmem>>, vector<2x8x32xf32>
    tpu.vector_store %arg13[%c0_98, %c0_99, %c0_100], %238 {strides = array<i32>} : memref<2x8x32xf32, #tpu.memory_space<vmem>>, vector<2x8x32xf32>,
    return
  }
  func.func @transform_0(%arg0: i32) -> (i32, i32) {
    %c0_i32 = arith.constant 0 : i32
    %c0_i32_0 = arith.constant 0 : i32
    return %arg0, %c0_i32 : i32, i32
  }
  func.func @transform_1(%arg0: i32) -> (i32, i32) {
    %c0_i32 = arith.constant 0 : i32
    %c0_i32_0 = arith.constant 0 : i32
    return %arg0, %c0_i32 : i32, i32
  }
  func.func @transform_2(%arg0: i32) -> (i32, i32) {
    %c1_i32 = arith.constant 1 : i32
    %0 = arith.subi %c1_i32, %arg0 : i32
    %c0_i32 = arith.constant 0 : i32
    %c0_i32_0 = arith.constant 0 : i32
    return %0, %c0_i32 : i32, i32
  }
  func.func @transform_3(%arg0: i32) -> (i32, i32) {
    %c1_i32 = arith.constant 1 : i32
    %0 = arith.subi %c1_i32, %arg0 : i32
    %c0_i32 = arith.constant 0 : i32
    %c0_i32_0 = arith.constant 0 : i32
    return %0, %c0_i32 : i32, i32
  }
  func.func @transform_4(%arg0: i32) -> (i32, i32, i32, i32) {
    %c0_i32 = arith.constant 0 : i32
    %c0_i32_0 = arith.constant 0 : i32
    %c0_i32_1 = arith.constant 0 : i32
    %c0_i32_2 = arith.constant 0 : i32
    %c0_i32_3 = arith.constant 0 : i32
    return %c0_i32, %c0_i32_0, %c0_i32_1, %c0_i32_2 : i32, i32, i32, i32
  }
  func.func @transform_5(%arg0: i32) -> (i32, i32, i32) {
    %c0_i32 = arith.constant 0 : i32
    %c0_i32_0 = arith.constant 0 : i32
    %c0_i32_1 = arith.constant 0 : i32
    %c0_i32_2 = arith.constant 0 : i32
    return %c0_i32, %c0_i32_0, %c0_i32_1 : i32, i32, i32
  }
  func.func @transform_6(%arg0: i32) -> (i32, i32, i32) {
    %c0_i32 = arith.constant 0 : i32
    %c0_i32_0 = arith.constant 0 : i32
    %c0_i32_1 = arith.constant 0 : i32
    %c0_i32_2 = arith.constant 0 : i32
    return %c0_i32, %c0_i32_0, %c0_i32_1 : i32, i32, i32
  }
  func.func @transform_7(%arg0: i32) -> (i32, i32, i32) {
    %c0_i32 = arith.constant 0 : i32
    %c0_i32_0 = arith.constant 0 : i32
    %c0_i32_1 = arith.constant 0 : i32
    %c0_i32_2 = arith.constant 0 : i32
    return %c0_i32, %c0_i32_0, %c0_i32_1 : i32, i32, i32
  }
  func.func @transform_8(%arg0: i32) -> (i32, i32, i32) {
    %c0_i32 = arith.constant 0 : i32
    %c0_i32_0 = arith.constant 0 : i32
    %c0_i32_1 = arith.constant 0 : i32
    %c0_i32_2 = arith.constant 0 : i32
    return %c0_i32, %c0_i32_0, %c0_i32_1 : i32, i32, i32
  }
  func.func @transform_9(%arg0: i32) -> (i32, i32) {
    %c0_i32 = arith.constant 0 : i32
    %c0_i32_0 = arith.constant 0 : i32
    return %arg0, %c0_i32 : i32, i32
  }
  func.func @transform_10(%arg0: i32) -> (i32, i32) {
    %c1_i32 = arith.constant 1 : i32
    %0 = arith.subi %c1_i32, %arg0 : i32
    %c0_i32 = arith.constant 0 : i32
    %c0_i32_0 = arith.constant 0 : i32
    return %0, %c0_i32 : i32, i32
  }
  func.func @transform_11(%arg0: i32) -> (i32, i32, i32) {
    %c0_i32 = arith.constant 0 : i32
    %c0_i32_0 = arith.constant 0 : i32
    %c0_i32_1 = arith.constant 0 : i32
    %c0_i32_2 = arith.constant 0 : i32
    return %c0_i32, %c0_i32_0, %c0_i32_1 : i32, i32, i32
  }
  func.func @transform_12(%arg0: i32) -> (i32, i32, i32) {
    %c0_i32 = arith.constant 0 : i32
    %c0_i32_0 = arith.constant 0 : i32
    %c0_i32_1 = arith.constant 0 : i32
    %c0_i32_2 = arith.constant 0 : i32
    return %c0_i32, %c0_i32_0, %c0_i32_1 : i32, i32, i32
  }
}

module attributes {stable_mosaic.version = 11 : i64} {
  func.func @linear_kernel(%arg0: i32, %arg1: memref<64x32xf32, #tpu.memory_space<vmem>>, %arg2: memref<64x32xf32, #tpu.memory_space<vmem>>, %arg3: memref<2x32x128xbf16, #tpu.memory_space<vmem>>, %arg4: memref<1x128xf32, #tpu.memory_space<vmem>>, %arg5: memref<64x128xf32, #tpu.memory_space<vmem>>) attributes {dimension_semantics = [#tpu.dimension_semantics<parallel>], iteration_bounds = array<i64: 1>, scalar_prefetch = 0 : i64, scratch_operands = 0 : i64, tpu.core_type = #tpu.core_type<tc>, window_params = [{transform_indices = @transform_0, window_bounds = array<i64: 64, 32>}, {transform_indices = @transform_1, window_bounds = array<i64: 64, 32>}, {pipeline_mode = #tpu.pipeline_mode<synchronous>, transform_indices = @transform_2, window_bounds = array<i64: 2, 32, 128>}, {pipeline_mode = #tpu.pipeline_mode<synchronous>, transform_indices = @transform_3, window_bounds = array<i64: 1, 128>}, {transform_indices = @transform_4, window_bounds = array<i64: 64, 128>}]} {
    %c0 = arith.constant 0 : index
    %c0_0 = arith.constant 0 : index
    %0 = vector.load %arg1[%c0, %c0_0] : memref<64x32xf32, #tpu.memory_space<vmem>>, vector<64x32xf32>
    %1 = arith.truncf %0 : vector<64x32xf32> to vector<64x32xbf16>
    %c0_1 = arith.constant 0 : index
    %c0_2 = arith.constant 0 : index
    %c0_3 = arith.constant 0 : index
    %2 = vector.load %arg3[%c0_1, %c0_2, %c0_3] : memref<2x32x128xbf16, #tpu.memory_space<vmem>>, vector<1x32x128xbf16>
    %3 = vector.shape_cast %2 : vector<1x32x128xbf16> to vector<32x128xbf16>
    %cst = arith.constant dense<0.000000e+00> : vector<64x128xf32>
    %4 = tpu.matmul %1, %3, %cst {dimension_numbers = #tpu.dot_dimension_numbers<[1], [0], [0], [1], [0, 0, 1, 1], [], []>} : vector<64x32xbf16>, vector<32x128xbf16>, vector<64x128xf32> -> vector<64x128xf32>
    %c0_4 = arith.constant 0 : index
    %c0_5 = arith.constant 0 : index
    %5 = vector.load %arg2[%c0_4, %c0_5] : memref<64x32xf32, #tpu.memory_space<vmem>>, vector<64x32xf32>
    %6 = arith.truncf %5 : vector<64x32xf32> to vector<64x32xbf16>
    %c1 = arith.constant 1 : index
    %c0_6 = arith.constant 0 : index
    %c0_7 = arith.constant 0 : index
    %7 = vector.load %arg3[%c1, %c0_6, %c0_7] : memref<2x32x128xbf16, #tpu.memory_space<vmem>>, vector<1x32x128xbf16>
    %8 = vector.shape_cast %7 : vector<1x32x128xbf16> to vector<32x128xbf16>
    %cst_8 = arith.constant dense<0.000000e+00> : vector<64x128xf32>
    %9 = tpu.matmul %6, %8, %cst_8 {dimension_numbers = #tpu.dot_dimension_numbers<[1], [0], [0], [1], [0, 0, 1, 1], [], []>} : vector<64x32xbf16>, vector<32x128xbf16>, vector<64x128xf32> -> vector<64x128xf32>
    %10 = arith.addf %4, %9 : vector<64x128xf32>
    %c0_9 = arith.constant 0 : index
    %c0_10 = arith.constant 0 : index
    %11 = vector.load %arg4[%c0_9, %c0_10] : memref<1x128xf32, #tpu.memory_space<vmem>>, vector<1x128xf32>
    %12 = vector.broadcast %11 : vector<1x128xf32> to vector<64x128xf32>
    %13 = arith.addf %10, %12 : vector<64x128xf32>
    %c0_11 = arith.constant 0 : index
    %c0_12 = arith.constant 0 : index
    %14 = vector.load %arg5[%c0_11, %c0_12] : memref<64x128xf32, #tpu.memory_space<vmem>>, vector<64x128xf32>
    tpu.vector_store %arg5[%c0_11, %c0_12], %13 {strides = array<i32>} : memref<64x128xf32, #tpu.memory_space<vmem>>, vector<64x128xf32>,
    return
  }
  func.func @transform_0(%arg0: i32) -> (i32, i32) {
    %c0_i32 = arith.constant 0 : i32
    %c0_i32_0 = arith.constant 0 : i32
    return %arg0, %c0_i32 : i32, i32
  }
  func.func @transform_1(%arg0: i32) -> (i32, i32) {
    %c0_i32 = arith.constant 0 : i32
    %c0_i32_0 = arith.constant 0 : i32
    return %arg0, %c0_i32 : i32, i32
  }
  func.func @transform_2(%arg0: i32) -> (i32, i32, i32) {
    %c0_i32 = arith.constant 0 : i32
    %c0_i32_0 = arith.constant 0 : i32
    %c0_i32_1 = arith.constant 0 : i32
    %c0_i32_2 = arith.constant 0 : i32
    return %c0_i32, %c0_i32_0, %c0_i32_1 : i32, i32, i32
  }
  func.func @transform_3(%arg0: i32) -> (i32, i32) {
    %c0_i32 = arith.constant 0 : i32
    %c0_i32_0 = arith.constant 0 : i32
    %c0_i32_1 = arith.constant 0 : i32
    return %c0_i32, %c0_i32_0 : i32, i32
  }
  func.func @transform_4(%arg0: i32) -> (i32, i32) {
    %c0_i32 = arith.constant 0 : i32
    %c0_i32_0 = arith.constant 0 : i32
    return %arg0, %c0_i32 : i32, i32
  }
}

</mosaic_0001>

<llo_original>
// kernel: model_forward.6
$region0: #{model_forward.6}
  #allocation0 [shape = 'u32[]', space=smem, size = 0x4, offset = 0x4, fixed_abs, tag = 'smem constant byte address 0x4 - core index']
  #allocation1 [shape = 'u32[144,128]{1,0:T(1,128)}', space=vmem, size = 0x12000, scoped, tag = 'internal scratch']
  %s0 = inlined_call_operand.vmem [shape: f32[8,2,16], index: 0, kind: input, shape index: {}]
  %s1 = inlined_call_operand.vmem [shape: f32[8,1,1], index: 1, kind: input, shape index: {}]
  %s2 = inlined_call_operand.vmem [shape: f32[8,1,1], index: 2, kind: input, shape index: {}]
  %s3 = inlined_call_operand.vmem [shape: f32[8,2,16], index: 3, kind: output, shape index: {}]
  %s4 = sld [smem:[#allocation0]]
  $region45: #{model_forward.6} parent=0
    _
  %s6 = ssub.s32 1, %s4
  %s7 = scalar_select 0, %s6, %s4
  loop: start=0, step=1, limit=4
  $region2: #{model_forward.6} parent=0 // loop_pre_header
    _
  $region3: #{model_forward.6} parent=0 // loop_header
    %s9 = sphi 0, %s13
    %p10 = scmp.ge.s32.totalorder %s9, 4
    %s19 = sphi 0, %s21
    %s22 = sphi 0, %s19
    %s23 = sphi 0, %s22
    %s39 = sphi 0, %s23
    %s45 = sphi 0, %s47
    %s48 = sphi 0, %s45
    %s49 = sphi 0, %s48
    %s65 = sphi 0, %s49
    %s71 = sphi 0, %s73
    %s74 = sphi 0, %s71
    %s75 = sphi 0, %s74
    %s91 = sphi 0, %s75
    %s97 = sphi 0, %s99
    %s100 = sphi 0, %s97
    %s101 = sphi 0, %s100
    %s117 = sphi 0, %s101
  $region4: #{model_forward.6} parent=0 // loop_header_branch
    %12 = sbr.rel (%p10) target = $region8
  $region5: #{model_forward.6} parent=0 // loop_body
    %s14 = ssub.s32 %s9, 1
    %s15 = ssub.s32 %s9, 2
    %s16 = sadd.s32 %s9, 1
    %s17 = ssub.s32 %s9, %s16
    %p18 = scmp.eq.s32.totalorder %s17, 0
    %s20 = sadd.s32 %s19, 1
    %s21 = scalar_select %p18, %s19, %s20
    %p24 = pneg %p18
    %p25 = scmp.eq.s32.totalorder %s9, 1
    %p26 = por %p24, %p25
    %p27 = scmp.ne.s32.totalorder %s19, %s22
    %p28 = scmp.eq.s32.totalorder %s9, 0
    %p29 = por %p27, %p28
    %p30 = scmp.ne.s32.totalorder %s19, %s22
    %p31 = scmp.eq.s32.totalorder %s14, 1
    %p32 = por %p30, %p31
    %p33 = scmp.ne.s32.totalorder %s22, %s23
    %p34 = scmp.eq.s32.totalorder %s14, 0
    %p35 = por %p33, %p34
    %p36 = scmp.ne.s32.totalorder %s22, %s23
    %p37 = scmp.eq.s32.totalorder %s15, 1
    %p38 = por %p36, %p37
    %p40 = scmp.ne.s32.totalorder %s23, %s39
    %p41 = scmp.eq.s32.totalorder %s15, 0
    %p42 = por %p40, %p41
    %s43 = ssub.s32 %s9, %s16
    %p44 = scmp.eq.s32.totalorder %s43, 0
    %s46 = sadd.s32 %s45, 1
    %s47 = scalar_select %p44, %s45, %s46
    %p50 = pneg %p44
    %p51 = scmp.eq.s32.totalorder %s9, 1
    %p52 = por %p50, %p51
    %p53 = scmp.ne.s32.totalorder %s45, %s48
    %p54 = scmp.eq.s32.totalorder %s9, 0
    %p55 = por %p53, %p54
    %p56 = scmp.ne.s32.totalorder %s45, %s48
    %p57 = scmp.eq.s32.totalorder %s14, 1
    %p58 = por %p56, %p57
    %p59 = scmp.ne.s32.totalorder %s48, %s49
    %p60 = scmp.eq.s32.totalorder %s14, 0
    %p61 = por %p59, %p60
    %p62 = scmp.ne.s32.totalorder %s48, %s49
    %p63 = scmp.eq.s32.totalorder %s15, 1
    %p64 = por %p62, %p63
    %p66 = scmp.ne.s32.totalorder %s49, %s65
    %p67 = scmp.eq.s32.totalorder %s15, 0
    %p68 = por %p66, %p67
    %s69 = ssub.s32 %s9, %s16
    %p70 = scmp.eq.s32.totalorder %s69, 0
    %s72 = sadd.s32 %s71, 1
    %s73 = scalar_select %p70, %s71, %s72
    %p76 = pneg %p70
    %p77 = scmp.eq.s32.totalorder %s9, 1
    %p78 = por %p76, %p77
    %p79 = scmp.ne.s32.totalorder %s71, %s74
    %p80 = scmp.eq.s32.totalorder %s9, 0
    %p81 = por %p79, %p80
    %p82 = scmp.ne.s32.totalorder %s71, %s74
    %p83 = scmp.eq.s32.totalorder %s14, 1
    %p84 = por %p82, %p83
    %p85 = scmp.ne.s32.totalorder %s74, %s75
    %p86 = scmp.eq.s32.totalorder %s14, 0
    %p87 = por %p85, %p86
    %p88 = scmp.ne.s32.totalorder %s74, %s75
    %p89 = scmp.eq.s32.totalorder %s15, 1
    %p90 = por %p88, %p89
    %p92 = scmp.ne.s32.totalorder %s75, %s91
    %p93 = scmp.eq.s32.totalorder %s15, 0
    %p94 = por %p92, %p93
    %s95 = ssub.s32 %s9, %s16
    %p96 = scmp.eq.s32.totalorder %s95, 0
    %s98 = sadd.s32 %s97, 1
    %s99 = scalar_select %p96, %s97, %s98
    %p102 = pneg %p96
    %p103 = scmp.eq.s32.totalorder %s9, 1
    %p104 = por %p102, %p103
    %p105 = scmp.ne.s32.totalorder %s97, %s100
    %p106 = scmp.eq.s32.totalorder %s9, 0
    %p107 = por %p105, %p106
    %p108 = scmp.ne.s32.totalorder %s97, %s100
    %p109 = scmp.eq.s32.totalorder %s14, 1
    %p110 = por %p108, %p109
    %p111 = scmp.ne.s32.totalorder %s100, %s101
    %p112 = scmp.eq.s32.totalorder %s14, 0
    %p113 = por %p111, %p112
    %p114 = scmp.ne.s32.totalorder %s100, %s101
    %p115 = scmp.eq.s32.totalorder %s15, 1
    %p116 = por %p114, %p115
    %p118 = scmp.ne.s32.totalorder %s101, %s117
    %p119 = scmp.eq.s32.totalorder %s15, 0
    %p120 = por %p118, %p119
    %p121 = scmp.le.s32.totalorder 1, %s9
    %p122 = scmp.lt.s32.totalorder %s9, 3
    %p123 = pnand %p121, %p122
    %p124 = pneg %p123
    // Predicated region
    $region9: #{model_forward.6} parent=5 // pred_check
      _
    $region10: #{model_forward.6} parent=5 // pred_check_branch
      %126 = sbr.rel (%p123) target = $region12
    $region11: #{model_forward.6} parent=5 // pred_region
      %s127 = ssub.s32 %s9, 1
    $region12: #{model_forward.6} parent=5 // pred_fallthru
      _
    %p128 = scmp.lt.s32.totalorder %s9, 2
    // Predicated region
    $region13: #{model_forward.6} parent=5 // pred_check
      %p129 = pneg %p128
    $region14: #{model_forward.6} parent=5 // pred_check_branch
      %131 = sbr.rel (%p129) target = $region16
    $region15: #{model_forward.6} parent=5 // pred_region
      // Predicated region
      $region17: #{model_forward.6} parent=15 // pred_check
        %p132 = pneg %p29
      $region18: #{model_forward.6} parent=15 // pred_check_branch
        %134 = sbr.rel (%p132) target = $region20
      $region19: #{model_forward.6} parent=15 // pred_region
        %s135 = smul.u32 4, %s9
        %p136 = scmp.lt.s32.totalorder %s135, 7
        %s137 = scalar_select %p136, %s135, 7
        %s138 = smul.addr %s137, 2
        %s139 = scalar_lea.vmem %s0, %s138
        %s140 = smul.u32 4, %s9
      $region20: #{model_forward.6} parent=15 // pred_fallthru
        _
      // Predicated region
      $region21: #{model_forward.6} parent=15 // pred_check
        %p141 = pneg %p55
      $region22: #{model_forward.6} parent=15 // pred_check_branch
        %143 = sbr.rel (%p141) target = $region24
      $region23: #{model_forward.6} parent=15 // pred_region
        %s144 = smul.u32 4, %s9
        %p145 = scmp.lt.s32.totalorder %s144, 7
        %s146 = scalar_select %p145, %s144, 7
        %s147 = scalar_lea.vmem %s1, %s146
        %s148 = smul.u32 4, %s9
      $region24: #{model_forward.6} parent=15 // pred_fallthru
        _
      // Predicated region
      $region25: #{model_forward.6} parent=15 // pred_check
        %p149 = pneg %p81
      $region26: #{model_forward.6} parent=15 // pred_check_branch
        %151 = sbr.rel (%p149) target = $region28
      $region27: #{model_forward.6} parent=15 // pred_region
        %s152 = smul.u32 4, %s9
        %p153 = scmp.lt.s32.totalorder %s152, 7
        %s154 = scalar_select %p153, %s152, 7
        %s155 = scalar_lea.vmem %s2, %s154
        %s156 = smul.u32 4, %s9
      $region28: #{model_forward.6} parent=15 // pred_fallthru
        _
    $region16: #{model_forward.6} parent=5 // pred_fallthru
      _
    %p157 = scmp.le.s32.totalorder 1, %s9
    %p158 = scmp.lt.s32.totalorder %s9, 3
    %p159 = pnand %p157, %p158
    %p160 = pneg %p159
    // Predicated region
    $region29: #{model_forward.6} parent=5 // pred_check
      _
    $region30: #{model_forward.6} parent=5 // pred_check_branch
      %162 = sbr.rel (%p159) target = $region32
    $region31: #{model_forward.6} parent=5 // pred_region
      %s163 = ssub.s32 %s9, 1
      %s164 = smul.u32 4, %s14
      %p165 = scmp.lt.s32.totalorder %s164, 7
      %s166 = scalar_select %p165, %s164, 7
      %s167 = smul.addr %s166, 2
      %s168 = scalar_lea.vmem %s0, %s167
      %p169 = pneg %p35
      %p170 = pneg %p32
      %s171 = smul.u32 4, %s14
      %p172 = scmp.lt.s32.totalorder %s171, 7
      %s173 = scalar_select %p172, %s171, 7
      %s174 = scalar_lea.vmem %s1, %s173
      %p175 = pneg %p61
      %p176 = pneg %p58
      %s177 = smul.u32 4, %s14
      %p178 = scmp.lt.s32.totalorder %s177, 7
      %s179 = scalar_select %p178, %s177, 7
      %s180 = scalar_lea.vmem %s2, %s179
      %p181 = pneg %p87
      %p182 = pneg %p84
      %p183 = pneg %p113
      %p184 = pneg %p110
      %s185 = smul.u32 4, %s14
      %p186 = scmp.lt.s32.totalorder %s185, 7
      %s187 = scalar_select %p186, %s185, 7
      %s188 = smul.addr %s187, 2
      %s189 = scalar_lea.vmem %s3, %s188
      %s190 = smul.u32 4, %s14
      %p191 = scmp.lt.s32.totalorder %s190, 7
      %s192 = scalar_select %p191, %s190, 7
      %s193 = smul.addr %s192, 2
      %s194 = scalar_lea.vmem %s0, %s193
      %s195 = smul.u32 4, %s14
      %s196 = smul.u32 4, %s14
      %p197 = scmp.lt.s32.totalorder %s196, 7
      %s198 = scalar_select %p197, %s196, 7
      %s199 = scalar_lea.vmem %s1, %s198
      %s200 = smul.u32 4, %s14
      %s201 = smul.u32 4, %s14
      %p202 = scmp.lt.s32.totalorder %s201, 7
      %s203 = scalar_select %p202, %s201, 7
      %s204 = scalar_lea.vmem %s2, %s203
      %s205 = smul.u32 4, %s14
      %s206 = smul.u32 4, %s14
      %p207 = scmp.lt.s32.totalorder %s206, 7
      %s208 = scalar_select %p207, %s206, 7
      %s209 = smul.addr %s208, 2
      %s210 = scalar_lea.vmem %s3, %s209
      %s211 = smul.u32 4, %s14
      %v212 = vld [vmem:[%s194] sm:$0x3]
      %v213 = vld [vmem:[%s194 + $0x2] sm:$0x3]
      %v214 = vld [vmem:[%s194 + $0x4] sm:$0x3]
      %v215 = vld [vmem:[%s194 + $0x6] sm:$0x3]
      %vm216 = vcmask 123904
      %v217 = vsel %vm216, %v212, 0.0
      %218 = vadd.xlane.f32.xlu0 %v217
      %v219 = vpop.xlane.xlu0 %218
      %v220 = vsel %vm216, %v213, 0.0
      %221 = vadd.xlane.f32.xlu0 %v220
      %v222 = vpop.xlane.xlu0 %221
      %v223 = vsel %vm216, %v214, 0.0
      %224 = vadd.xlane.f32.xlu0 %v223
      %v225 = vpop.xlane.xlu0 %224
      %v226 = vsel %vm216, %v215, 0.0
      %227 = vadd.xlane.f32.xlu0 %v226
      %v228 = vpop.xlane.xlu0 %227
      %vm229 = vcmask 1041408
      %v230 = vsel %vm229, %v219, 0.0
      %v231 = vrot.slane %v230, 4
      %v232 = vadd.f32 %v230, %v231
      %v233 = vrot.slane %v232, 2
      %v234 = vadd.f32 %v232, %v233
      %v235 = vrot.slane %v234, 1
      %v236 = vadd.f32 %v234, %v235
      %v237 = vsel %vm229, %v222, 0.0
      %v238 = vrot.slane %v237, 4
      %v239 = vadd.f32 %v237, %v238
      %v240 = vrot.slane %v239, 2
      %v241 = vadd.f32 %v239, %v240
      %v242 = vrot.slane %v241, 1
      %v243 = vadd.f32 %v241, %v242
      %v244 = vsel %vm229, %v225, 0.0
      %v245 = vrot.slane %v244, 4
      %v246 = vadd.f32 %v244, %v245
      %v247 = vrot.slane %v246, 2
      %v248 = vadd.f32 %v246, %v247
      %v249 = vrot.slane %v248, 1
      %v250 = vadd.f32 %v248, %v249
      %v251 = vsel %vm229, %v228, 0.0
      %v252 = vrot.slane %v251, 4
      %v253 = vadd.f32 %v251, %v252
      %v254 = vrot.slane %v253, 2
      %v255 = vadd.f32 %v253, %v254
      %v256 = vrot.slane %v255, 1
      %v257 = vadd.f32 %v255, %v256
      %v258 = vrcp.pop 32.0
      %v259 = vmul.f32 %v236, %v258
      %v260 = vmul.f32 %v243, %v258
      %v261 = vmul.f32 %v250, %v258
      %v262 = vmul.f32 %v257, %v258
      %v263 = vsub.f32 %v212, %v259
      %v264 = vsub.f32 %v213, %v260
      %v265 = vsub.f32 %v214, %v261
      %v266 = vsub.f32 %v215, %v262
      %v267 = vmul.f32 %v263, %v263
      %v268 = vmul.f32 %v264, %v264
      %v269 = vmul.f32 %v265, %v265
      %v270 = vmul.f32 %v266, %v266
      %v271 = vsel %vm216, %v267, 0.0
      %272 = vadd.xlane.f32.xlu0 %v271
      %v273 = vpop.xlane.xlu0 %272
      %v274 = vsel %vm216, %v268, 0.0
      %275 = vadd.xlane.f32.xlu0 %v274
      %v276 = vpop.xlane.xlu0 %275
      %v277 = vsel %vm216, %v269, 0.0
      %278 = vadd.xlane.f32.xlu0 %v277
      %v279 = vpop.xlane.xlu0 %278
      %v280 = vsel %vm216, %v270, 0.0
      %281 = vadd.xlane.f32.xlu0 %v280
      %v282 = vpop.xlane.xlu0 %281
      %v283 = vsel %vm229, %v273, 0.0
      %v284 = vrot.slane %v283, 4
      %v285 = vadd.f32 %v283, %v284
      %v286 = vrot.slane %v285, 2
      %v287 = vadd.f32 %v285, %v286
      %v288 = vrot.slane %v287, 1
      %v289 = vadd.f32 %v287, %v288
      %v290 = vsel %vm229, %v276, 0.0
      %v291 = vrot.slane %v290, 4
      %v292 = vadd.f32 %v290, %v291
      %v293 = vrot.slane %v292, 2
      %v294 = vadd.f32 %v292, %v293
      %v295 = vrot.slane %v294, 1
      %v296 = vadd.f32 %v294, %v295
      %v297 = vsel %vm229, %v279, 0.0
      %v298 = vrot.slane %v297, 4
      %v299 = vadd.f32 %v297, %v298
      %v300 = vrot.slane %v299, 2
      %v301 = vadd.f32 %v299, %v300
      %v302 = vrot.slane %v301, 1
      %v303 = vadd.f32 %v301, %v302
      %v304 = vsel %vm229, %v282, 0.0
      %v305 = vrot.slane %v304, 4
      %v306 = vadd.f32 %v304, %v305
      %v307 = vrot.slane %v306, 2
      %v308 = vadd.f32 %v306, %v307
      %v309 = vrot.slane %v308, 1
      %v310 = vadd.f32 %v308, %v309
      %v311 = vmul.f32 %v289, %v258
      %v312 = vmul.f32 %v296, %v258
      %v313 = vmul.f32 %v303, %v258
      %v314 = vmul.f32 %v310, %v258
      %v315 = vadd.f32 %v311, 1e-05
      %v316 = vadd.f32 %v312, 1e-05
      %v317 = vadd.f32 %v313, 1e-05
      %v318 = vadd.f32 %v314, 1e-05
      %v319 = vrsqrt.pop %v315
      %v320 = vrsqrt.pop %v316
      %v321 = vrsqrt.pop %v317
      %v322 = vrsqrt.pop %v318
      %v323 = vmul.f32 %v263, %v319
      %v324 = vmul.f32 %v264, %v320
      %v325 = vmul.f32 %v265, %v321
      %v326 = vmul.f32 %v266, %v322
      %v327 = vld [vmem:[%s199] sm:$0x1]
      %v328 = vld [vmem:[%s199 + $0x1] sm:$0x1]
      %v329 = vld [vmem:[%s199 + $0x2] sm:$0x1]
      %v330 = vld [vmem:[%s199 + $0x3] sm:$0x1]
      %v335 = vlaneseq
      %v336 = vshrl.u32 %v335, 7
      %v337 = vsub.s32 0, %v336
      %v338 = vrot.slane %v327, %v337
      %v339 = vlaneseq
      %v340 = vshrl.u32 %v339, 7
      %v341 = vsub.s32 0, %v340
      %v342 = vrot.slane %v328, %v341
      %v343 = vlaneseq
      %v344 = vshrl.u32 %v343, 7
      %v345 = vsub.s32 0, %v344
      %v346 = vrot.slane %v329, %v345
      %v347 = vlaneseq
      %v348 = vshrl.u32 %v347, 7
      %v349 = vsub.s32 0, %v348
      %v350 = vrot.slane %v330, %v349
      %351 = vset.pattern.permute.xlu0 0
      %352 = vperm.xlu0 %351, %v338
      %v353 = vpop.permute.xlu0 %352
      %355 = vset.pattern.permute.xlu0 0
      %356 = vperm.xlu0 %355, %v342
      %v357 = vpop.permute.xlu0 %356
      %359 = vset.pattern.permute.xlu0 0
      %360 = vperm.xlu0 %359, %v346
      %v361 = vpop.permute.xlu0 %360
      %363 = vset.pattern.permute.xlu0 0
      %364 = vperm.xlu0 %363, %v350
      %v365 = vpop.permute.xlu0 %364
      %v367 = vmul.f32 %v323, %v353
      %v368 = vmul.f32 %v324, %v357
      %v369 = vmul.f32 %v325, %v361
      %v370 = vmul.f32 %v326, %v365
      %v371 = vld [vmem:[%s204] sm:$0x1]
      %v372 = vld [vmem:[%s204 + $0x1] sm:$0x1]
      %v373 = vld [vmem:[%s204 + $0x2] sm:$0x1]
      %v374 = vld [vmem:[%s204 + $0x3] sm:$0x1]
      %v379 = vlaneseq
      %v380 = vshrl.u32 %v379, 7
      %v381 = vsub.s32 0, %v380
      %v382 = vrot.slane %v371, %v381
      %v383 = vlaneseq
      %v384 = vshrl.u32 %v383, 7
      %v385 = vsub.s32 0, %v384
      %v386 = vrot.slane %v372, %v385
      %v387 = vlaneseq
      %v388 = vshrl.u32 %v387, 7
      %v389 = vsub.s32 0, %v388
      %v390 = vrot.slane %v373, %v389
      %v391 = vlaneseq
      %v392 = vshrl.u32 %v391, 7
      %v393 = vsub.s32 0, %v392
      %v394 = vrot.slane %v374, %v393
      %395 = vset.pattern.permute.xlu0 0
      %396 = vperm.xlu0 %395, %v382
      %v397 = vpop.permute.xlu0 %396
      %399 = vset.pattern.permute.xlu0 0
      %400 = vperm.xlu0 %399, %v386
      %v401 = vpop.permute.xlu0 %400
      %403 = vset.pattern.permute.xlu0 0
      %404 = vperm.xlu0 %403, %v390
      %v405 = vpop.permute.xlu0 %404
      %407 = vset.pattern.permute.xlu0 0
      %408 = vperm.xlu0 %407, %v394
      %v409 = vpop.permute.xlu0 %408
      %v411 = vadd.f32 %v367, %v397
      %v412 = vadd.f32 %v368, %v401
      %v413 = vadd.f32 %v369, %v405
      %v414 = vadd.f32 %v370, %v409
      %415 = vst.msk [vmem:[%s210] sm:$0x3] %vm216, %v411
      %416 = vst.msk [vmem:[%s210 + $0x2] sm:$0x3] %vm216, %v412
      %417 = vst.msk [vmem:[%s210 + $0x4] sm:$0x3] %vm216, %v413
      %418 = vst.msk [vmem:[%s210 + $0x6] sm:$0x3] %vm216, %v414
      %s419 = smul.u32 4, %s14
      %p420 = scmp.lt.s32.totalorder %s419, 7
      %s421 = scalar_select %p420, %s419, 7
      %s422 = smul.addr %s421, 2
      %s423 = scalar_lea.vmem %s3, %s422
      // Predicated region
      $region33: #{model_forward.6} parent=31 // pred_check
        %p424 = pneg %p110
      $region34: #{model_forward.6} parent=31 // pred_check_branch
        %426 = sbr.rel (%p424) target = $region36
      $region35: #{model_forward.6} parent=31 // pred_region
        %s427 = smul.u32 4, %s14
      $region36: #{model_forward.6} parent=31 // pred_fallthru
        _
    $region32: #{model_forward.6} parent=5 // pred_fallthru
      _
    %p428 = scmp.le.s32.totalorder 2, %s9
    // Predicated region
    $region37: #{model_forward.6} parent=5 // pred_check
      %p429 = pneg %p428
    $region38: #{model_forward.6} parent=5 // pred_check_branch
      %431 = sbr.rel (%p429) target = $region40
    $region39: #{model_forward.6} parent=5 // pred_region
      %s432 = ssub.s32 %s9, 2
      // Predicated region
      $region41: #{model_forward.6} parent=39 // pred_check
        %p433 = pneg %p116
      $region42: #{model_forward.6} parent=39 // pred_check_branch
        %435 = sbr.rel (%p433) target = $region44
      $region43: #{model_forward.6} parent=39 // pred_region
        %s436 = smul.u32 4, %s15
        %p437 = scmp.lt.s32.totalorder %s436, 7
        %s438 = scalar_select %p437, %s436, 7
        %s439 = smul.addr %s438, 2
        %s440 = scalar_lea.vmem %s3, %s439
      $region44: #{model_forward.6} parent=39 // pred_fallthru
        _
    $region40: #{model_forward.6} parent=5 // pred_fallthru
      _
  $region6: #{model_forward.6} parent=0 // loop_footer
    %s13 = sadd.s32 1, %s9
  $region7: #{model_forward.6} parent=0 // loop_footer_branch
    %8 = sbr.rel target = $region3
  $region8: #{model_forward.6} parent=0 // loop_exit
    _

// kernel: model_forward.11
$region0: #{model_forward.11}
  #allocation0 [shape = 'u32[]', space=smem, size = 0x4, offset = 0x4, fixed_abs, tag = 'smem constant byte address 0x4 - core index']
  #allocation1 [shape = 'u32[144,128]{1,0:T(1,128)}', space=vmem, size = 0x12000, scoped, tag = 'internal scratch']
  %s0 = inlined_call_operand.vmem [shape: f32[64,32], index: 0, kind: input, shape index: {}]
  %s1 = inlined_call_operand.vmem [shape: f32[64,32], index: 1, kind: input, shape index: {}]
  %s2 = inlined_call_operand.vmem [shape: bf16[2,32,128], index: 2, kind: input, shape index: {}]
  %s3 = inlined_call_operand.vmem [shape: f32[1,128], index: 3, kind: input, shape index: {}]
  %s4 = inlined_call_operand.vmem [shape: f32[64,128], index: 4, kind: output, shape index: {}]
  %s5 = sld [smem:[#allocation0]]
  $region26: #{model_forward.11} parent=0
    _
  %s7 = ssub.s32 1, %s5
  %s8 = scalar_select 0, %s7, %s5
  // Predicated region
  $region2: #{model_forward.11} parent=0 // pred_check
    _
  $region3: #{model_forward.11} parent=0 // pred_check_branch
    %10 = sbr.rel (0) target = $region5
  $region4: #{model_forward.11} parent=0 // pred_region
    _
  $region5: #{model_forward.11} parent=0 // pred_fallthru
    _
  // Predicated region
  $region6: #{model_forward.11} parent=0 // pred_check
    _
  $region7: #{model_forward.11} parent=0 // pred_check_branch
    %12 = sbr.rel (0) target = $region9
  $region8: #{model_forward.11} parent=0 // pred_region
    _
  $region9: #{model_forward.11} parent=0 // pred_fallthru
    _
  // Predicated region
  $region10: #{model_forward.11} parent=0 // pred_check
    _
  $region11: #{model_forward.11} parent=0 // pred_check_branch
    %14 = sbr.rel (0) target = $region13
  $region12: #{model_forward.11} parent=0 // pred_region
    _
  $region13: #{model_forward.11} parent=0 // pred_fallthru
    _
  // Predicated region
  $region14: #{model_forward.11} parent=0 // pred_check
    _
  $region15: #{model_forward.11} parent=0 // pred_check_branch
    %16 = sbr.rel (0) target = $region17
  $region16: #{model_forward.11} parent=0 // pred_region
    _
  $region17: #{model_forward.11} parent=0 // pred_fallthru
    _
  %v18 = vld [vmem:[%s0] sm:$0xff]
  %v19 = vld [vmem:[%s0 + $0x8] sm:$0xff]
  %v20 = vld [vmem:[%s0 + $0x10] sm:$0xff]
  %v21 = vld [vmem:[%s0 + $0x18] sm:$0xff]
  %v22 = vld [vmem:[%s0 + $0x20] sm:$0xff]
  %v23 = vld [vmem:[%s0 + $0x28] sm:$0xff]
  %v24 = vld [vmem:[%s0 + $0x30] sm:$0xff]
  %v25 = vld [vmem:[%s0 + $0x38] sm:$0xff]
  %v26 = vpack.c.bf16 %v19, %v18
  %v27 = vpack.c.bf16 %v21, %v20
  %v28 = vpack.c.bf16 %v23, %v22
  %v29 = vpack.c.bf16 %v25, %v24
  %v30 = vld [vmem:[%s2] sm:$0xf]
  %v31 = vld [vmem:[%s2 + $0x4] sm:$0xf]
  %v32 = vld [vmem:[%s2 + $0x8] sm:$0xf]
  %v33 = vld [vmem:[%s2 + $0xc] sm:$0xf]
  %v34 = vld [vmem:[%s1] sm:$0xff]
  %v35 = vld [vmem:[%s1 + $0x8] sm:$0xff]
  %v36 = vld [vmem:[%s1 + $0x10] sm:$0xff]
  %v37 = vld [vmem:[%s1 + $0x18] sm:$0xff]
  %v38 = vld [vmem:[%s1 + $0x20] sm:$0xff]
  %v39 = vld [vmem:[%s1 + $0x28] sm:$0xff]
  %v40 = vld [vmem:[%s1 + $0x30] sm:$0xff]
  %v41 = vld [vmem:[%s1 + $0x38] sm:$0xff]
  %v42 = vpack.c.bf16 %v35, %v34
  %v43 = vpack.c.bf16 %v37, %v36
  %v44 = vpack.c.bf16 %v39, %v38
  %v45 = vpack.c.bf16 %v41, %v40
  %s46 = scalar_lea.vmem %s2, 16
  %v47 = vld [vmem:[%s46] sm:$0xf]
  %v48 = vld [vmem:[%s46 + $0x4] sm:$0xf]
  %v49 = vld [vmem:[%s46 + $0x8] sm:$0xf]
  %v50 = vld [vmem:[%s46 + $0xc] sm:$0xf]
  %v55 = vunpack.c.l.b16 %v47
  %v56 = vunpack.c.l.b16 %v48
  %v57 = vunpack.c.l.b16 %v49
  %v58 = vunpack.c.l.b16 %v50
  %v59 = vpack.c.b16 %v56, %v55
  %v60 = vpack.c.b16 %v58, %v57
  %vm63 = vcmask 261120
  %v65 = vsel %vm63, %v42, 0
  %v68 = vsel %vm63, %v43, 0
  %v71 = vsel %vm63, %v44, 0
  %v74 = vsel %vm63, %v45, 0
  %76 = vmatprep.subr.bf16.mxu0 0
  %77 = vmatpush1.bf16.msra.mxu0 %v59
  %78 = vmatprep.subr.bf16.mxu0 0
  %79 = vmatpush1.bf16.msra.mxu0 %v60
  %80 = vmatprep.subr.bf16.mxu0 0
  %81 = vmatpush1.bf16.msra.mxu0 0
  %82 = vmatprep.subr.bf16.mxu0 0
  %83 = vmatpush1.bf16.msra.mxu0 0
  %84 = vmatprep.subr.bf16.mxu0 0
  %85 = vmatpush1.bf16.msra.mxu0 0
  %86 = vmatprep.subr.bf16.mxu0 0
  %87 = vmatpush1.bf16.msra.mxu0 0
  %88 = vmatprep.subr.bf16.mxu0 0
  %89 = vmatpush1.bf16.msra.mxu0 0
  %90 = vmatprep.subr.bf16.mxu0 0
  %91 = vmatpush1.bf16.msra.mxu0 0
  %92 = vmatprep.subr.bf16.mxu0 0
  %93 = vmatpush1.bf16.msra.mxu0 0
  %94 = vmatprep.subr.bf16.mxu0 0
  %95 = vmatpush1.bf16.msra.mxu0 0
  %96 = vmatprep.subr.bf16.mxu0 0
  %97 = vmatpush1.bf16.msra.mxu0 0
  %98 = vmatprep.subr.bf16.mxu0 0
  %99 = vmatpush1.bf16.msra.mxu0 0
  %100 = vmatprep.subr.bf16.mxu0 0
  %101 = vmatpush1.bf16.msra.mxu0 0
  %102 = vmatprep.subr.bf16.mxu0 0
  %103 = vmatpush1.bf16.msra.mxu0 0
  %104 = vmatprep.subr.bf16.mxu0 0
  %105 = vmatpush1.bf16.msra.mxu0 0
  %106 = vmatprep.subr.bf16.mxu0 0
  %107 = vmatpush1.bf16.msra.mxu0 0
  %108 = vmatprep.mubr.bf16.mxu0 0
  %109 = vmatmul.mubr.bf16.gmra.mrb[0].mxu0 %v65
  %v110 = vpop.f32.mrb[0].mxu0
  %v111 = vadd.f32 0.0, %v110
  %v112 = vpop.f32.mrb[0].mxu0
  %v113 = vpop.f32.mrb[0].mxu0
  %v114 = vadd.f32 0.0, %v113
  %v115 = vpop.f32.mrb[0].mxu0
  %116 = vmatprep.mubr.bf16.mxu0 0
  %117 = vmatmul.mubr.bf16.gmra.mrb[0].mxu0 %v68
  %v118 = vpop.f32.mrb[0].mxu0
  %v119 = vadd.f32 0.0, %v118
  %v120 = vpop.f32.mrb[0].mxu0
  %v121 = vpop.f32.mrb[0].mxu0
  %v122 = vadd.f32 0.0, %v121
  %v123 = vpop.f32.mrb[0].mxu0
  %124 = vmatprep.mubr.bf16.mxu0 0
  %125 = vmatmul.mubr.bf16.gmra.mrb[0].mxu0 %v71
  %v126 = vpop.f32.mrb[0].mxu0
  %v127 = vadd.f32 0.0, %v126
  %v128 = vpop.f32.mrb[0].mxu0
  %v129 = vpop.f32.mrb[0].mxu0
  %v130 = vadd.f32 0.0, %v129
  %v131 = vpop.f32.mrb[0].mxu0
  %132 = vmatprep.mubr.bf16.mxu0 0
  %133 = vmatmul.mubr.bf16.gmra.mrb[0].mxu0 %v74
  %v134 = vpop.f32.mrb[0].mxu0
  %v135 = vadd.f32 0.0, %v134
  %v136 = vpop.f32.mrb[0].mxu0
  %v137 = vpop.f32.mrb[0].mxu0
  %v138 = vadd.f32 0.0, %v137
  %v139 = vpop.f32.mrb[0].mxu0
  %140 = vdwg.mxu0
  %v145 = vunpack.c.l.b16 %v30
  %v146 = vunpack.c.l.b16 %v31
  %v147 = vunpack.c.l.b16 %v32
  %v148 = vunpack.c.l.b16 %v33
  %v149 = vpack.c.b16 %v146, %v145
  %v150 = vpack.c.b16 %v148, %v147
  %v154 = vsel %vm63, %v26, 0
  %v157 = vsel %vm63, %v27, 0
  %v160 = vsel %vm63, %v28, 0
  %v163 = vsel %vm63, %v29, 0
  %165 = vmatprep.subr.bf16.mxu0 0
  %166 = vmatpush1.bf16.msra.mxu0 %v149
  %167 = vmatprep.subr.bf16.mxu0 0
  %168 = vmatpush1.bf16.msra.mxu0 %v150
  %169 = vmatprep.subr.bf16.mxu0 0
  %170 = vmatpush1.bf16.msra.mxu0 0
  %171 = vmatprep.subr.bf16.mxu0 0
  %172 = vmatpush1.bf16.msra.mxu0 0
  %173 = vmatprep.subr.bf16.mxu0 0
  %174 = vmatpush1.bf16.msra.mxu0 0
  %175 = vmatprep.subr.bf16.mxu0 0
  %176 = vmatpush1.bf16.msra.mxu0 0
  %177 = vmatprep.subr.bf16.mxu0 0
  %178 = vmatpush1.bf16.msra.mxu0 0
  %179 = vmatprep.subr.bf16.mxu0 0
  %180 = vmatpush1.bf16.msra.mxu0 0
  %181 = vmatprep.subr.bf16.mxu0 0
  %182 = vmatpush1.bf16.msra.mxu0 0
  %183 = vmatprep.subr.bf16.mxu0 0
  %184 = vmatpush1.bf16.msra.mxu0 0
  %185 = vmatprep.subr.bf16.mxu0 0
  %186 = vmatpush1.bf16.msra.mxu0 0
  %187 = vmatprep.subr.bf16.mxu0 0
  %188 = vmatpush1.bf16.msra.mxu0 0
  %189 = vmatprep.subr.bf16.mxu0 0
  %190 = vmatpush1.bf16.msra.mxu0 0
  %191 = vmatprep.subr.bf16.mxu0 0
  %192 = vmatpush1.bf16.msra.mxu0 0
  %193 = vmatprep.subr.bf16.mxu0 0
  %194 = vmatpush1.bf16.msra.mxu0 0
  %195 = vmatprep.subr.bf16.mxu0 0
  %196 = vmatpush1.bf16.msra.mxu0 0
  %197 = vmatprep.mubr.bf16.mxu0 0
  %198 = vmatmul.mubr.bf16.gmra.mrb[0].mxu0 %v154
  %v199 = vpop.f32.mrb[0].mxu0
  %v200 = vadd.f32 %v111, %v199
  %v201 = vpop.f32.mrb[0].mxu0
  %v202 = vpop.f32.mrb[0].mxu0
  %v203 = vadd.f32 %v114, %v202
  %v204 = vpop.f32.mrb[0].mxu0
  %205 = vmatprep.mubr.bf16.mxu0 0
  %206 = vmatmul.mubr.bf16.gmra.mrb[0].mxu0 %v157
  %v207 = vpop.f32.mrb[0].mxu0
  %v208 = vadd.f32 %v119, %v207
  %v209 = vpop.f32.mrb[0].mxu0
  %v210 = vpop.f32.mrb[0].mxu0
  %v211 = vadd.f32 %v122, %v210
  %v212 = vpop.f32.mrb[0].mxu0
  %213 = vmatprep.mubr.bf16.mxu0 0
  %214 = vmatmul.mubr.bf16.gmra.mrb[0].mxu0 %v160
  %v215 = vpop.f32.mrb[0].mxu0
  %v216 = vadd.f32 %v127, %v215
  %v217 = vpop.f32.mrb[0].mxu0
  %v218 = vpop.f32.mrb[0].mxu0
  %v219 = vadd.f32 %v130, %v218
  %v220 = vpop.f32.mrb[0].mxu0
  %221 = vmatprep.mubr.bf16.mxu0 0
  %222 = vmatmul.mubr.bf16.gmra.mrb[0].mxu0 %v163
  %v223 = vpop.f32.mrb[0].mxu0
  %v224 = vadd.f32 %v135, %v223
  %v225 = vpop.f32.mrb[0].mxu0
  %v226 = vpop.f32.mrb[0].mxu0
  %v227 = vadd.f32 %v138, %v226
  %v228 = vpop.f32.mrb[0].mxu0
  %229 = vdwg.mxu0
  %v230 = vld [vmem:[%s3] sm:$0x1]
  %v232 = vlaneseq
  %v233 = vshrl.u32 %v232, 7
  %v234 = vsub.s32 0, %v233
  %v235 = vrot.slane %v230, %v234
  %v237 = vadd.f32 %v200, %v235
  %v238 = vadd.f32 %v203, %v235
  %v239 = vadd.f32 %v208, %v235
  %v240 = vadd.f32 %v211, %v235
  %v241 = vadd.f32 %v216, %v235
  %v242 = vadd.f32 %v219, %v235
  %v243 = vadd.f32 %v224, %v235
  %v244 = vadd.f32 %v227, %v235
  %245 = vst [vmem:[%s4] sm:$0xff] %v237
  %246 = vst [vmem:[%s4 + $0x8] sm:$0xff] %v238
  %247 = vst [vmem:[%s4 + $0x10] sm:$0xff] %v239
  %248 = vst [vmem:[%s4 + $0x18] sm:$0xff] %v240
  %249 = vst [vmem:[%s4 + $0x20] sm:$0xff] %v241
  %250 = vst [vmem:[%s4 + $0x28] sm:$0xff] %v242
  %251 = vst [vmem:[%s4 + $0x30] sm:$0xff] %v243
  %252 = vst [vmem:[%s4 + $0x38] sm:$0xff] %v244
  // Predicated region
  $region18: #{model_forward.11} parent=0 // pred_check
    _
  $region19: #{model_forward.11} parent=0 // pred_check_branch
    %254 = sbr.rel (0) target = $region21
  $region20: #{model_forward.11} parent=0 // pred_region
    _
  $region21: #{model_forward.11} parent=0 // pred_fallthru
    _
  // Predicated region
  $region22: #{model_forward.11} parent=0 // pred_check
    _
  $region23: #{model_forward.11} parent=0 // pred_check_branch
    %256 = sbr.rel (0) target = $region25
  $region24: #{model_forward.11} parent=0 // pred_region
    _
  $region25: #{model_forward.11} parent=0 // pred_fallthru
    _

// kernel: model_forward.7
$region0: #{model_forward.7}
  #allocation0 [shape = 'u32[]', space=smem, size = 0x4, offset = 0x4, fixed_abs, tag = 'smem constant byte address 0x4 - core index']
  #allocation1 [shape = 'u32[144,128]{1,0:T(1,128)}', space=vmem, size = 0x12000, scoped, tag = 'internal scratch']
  #allocation2 [shape = 'f32[2,32,128]{2,1,0:T(8,128)}', space=vmem, size = 0x8000, scoped, tag = 'scratch operand']
  %s0 = inlined_call_operand.vmem [shape: f32[64,16], index: 0, kind: input, shape index: {}, may-alias: {0,1}]
  %s1 = inlined_call_operand.vmem [shape: f32[64,16], index: 1, kind: input, shape index: {}, may-alias: {0,1}]
  %s2 = inlined_call_operand.vmem [shape: bf16[2,1,16,128], index: 2, kind: input, shape index: {}]
  %s3 = inlined_call_operand.vmem [shape: bf16[2,32,128], index: 3, kind: input, shape index: {}]
  %s4 = inlined_call_operand.vmem [shape: f32[2,1,128], index: 4, kind: input, shape index: {}]
  %s5 = inlined_call_operand.vmem [shape: f32[2,8,32], index: 5, kind: input, shape index: {}]
  %s6 = inlined_call_operand.vmem [shape: f32[2,8,32], index: 6, kind: input, shape index: {}]
  %s7 = inlined_call_operand.vmem [shape: f32[64,32], index: 7, kind: output, shape index: {0}]
  %s8 = inlined_call_operand.vmem [shape: f32[64,32], index: 8, kind: output, shape index: {1}]
  %s9 = inlined_call_operand.vmem [shape: f32[2,8,32], index: 9, kind: output, shape index: {2}]
  %s10 = inlined_call_operand.vmem [shape: f32[2,8,32], index: 10, kind: output, shape index: {3}]
  %11 = xla_tuple %s7, %s8, %s9, %s10
  %s12 = sld [smem:[#allocation0]]
  $region89: #{model_forward.7} parent=0
    _
  %s14 = ssub.s32 1, %s12
  %s15 = scalar_select 0, %s14, %s12
  loop: start=0, step=1, limit=4
  $region2: #{model_forward.7} parent=0 // loop_pre_header
    _
  $region3: #{model_forward.7} parent=0 // loop_header
    %s17 = sphi 0, %s21
    %p18 = scmp.ge.s32.totalorder %s17, 4
    %s27 = sphi 0, %s29
    %s30 = sphi 0, %s27
    %s31 = sphi 0, %s30
    %s47 = sphi 0, %s31
    %s55 = sphi 0, %s57
    %s58 = sphi 0, %s55
    %s59 = sphi 0, %s58
    %s75 = sphi 0, %s59
    %s79 = sphi 0, %s79
    %s81 = sphi 0, %s79
    %s82 = sphi 0, %s81
    %s96 = sphi 0, %s82
    %s100 = sphi 0, %s100
    %s102 = sphi 0, %s100
    %s103 = sphi 0, %s102
    %s117 = sphi 0, %s103
    %s121 = sphi 0, %s121
    %s123 = sphi 0, %s121
    %s124 = sphi 0, %s123
    %s138 = sphi 0, %s124
    %s142 = sphi 0, %s142
    %s144 = sphi 0, %s142
    %s145 = sphi 0, %s144
    %s159 = sphi 0, %s145
    %s163 = sphi 0, %s163
    %s165 = sphi 0, %s163
    %s166 = sphi 0, %s165
    %s180 = sphi 0, %s166
    %s186 = sphi 0, %s188
    %s189 = sphi 0, %s186
    %s190 = sphi 0, %s189
    %s206 = sphi 0, %s190
    %s214 = sphi 0, %s216
    %s217 = sphi 0, %s214
    %s218 = sphi 0, %s217
    %s234 = sphi 0, %s218
    %s238 = sphi 0, %s238
    %s240 = sphi 0, %s238
    %s241 = sphi 0, %s240
    %s255 = sphi 0, %s241
    %s259 = sphi 0, %s259
    %s261 = sphi 0, %s259
    %s262 = sphi 0, %s261
    %s276 = sphi 0, %s262
  $region4: #{model_forward.7} parent=0 // loop_header_branch
    %20 = sbr.rel (%p18) target = $region8
  $region5: #{model_forward.7} parent=0 // loop_body
    %s22 = ssub.s32 %s17, 1
    %s23 = ssub.s32 %s17, 2
    %s24 = sadd.s32 %s17, 1
    %s25 = ssub.s32 %s17, %s24
    %p26 = scmp.eq.s32.totalorder %s25, 0
    %s28 = sadd.s32 %s27, 1
    %s29 = scalar_select %p26, %s27, %s28
    %p32 = pneg %p26
    %p33 = scmp.eq.s32.totalorder %s17, 1
    %p34 = por %p32, %p33
    %p35 = scmp.ne.s32.totalorder %s27, %s30
    %p36 = scmp.eq.s32.totalorder %s17, 0
    %p37 = por %p35, %p36
    %p38 = scmp.ne.s32.totalorder %s27, %s30
    %p39 = scmp.eq.s32.totalorder %s22, 1
    %p40 = por %p38, %p39
    %p41 = scmp.ne.s32.totalorder %s30, %s31
    %p42 = scmp.eq.s32.totalorder %s22, 0
    %p43 = por %p41, %p42
    %p44 = scmp.ne.s32.totalorder %s30, %s31
    %p45 = scmp.eq.s32.totalorder %s23, 1
    %p46 = por %p44, %p45
    %p48 = scmp.ne.s32.totalorder %s31, %s47
    %p49 = scmp.eq.s32.totalorder %s23, 0
    %p50 = por %p48, %p49
    %s51 = ssub.s32 1, %s17
    %s52 = ssub.s32 1, %s24
    %s53 = ssub.s32 %s51, %s52
    %p54 = scmp.eq.s32.totalorder %s53, 0
    %s56 = sadd.s32 %s55, 1
    %s57 = scalar_select %p54, %s55, %s56
    %p60 = pneg %p54
    %p61 = scmp.eq.s32.totalorder %s17, 1
    %p62 = por %p60, %p61
    %p63 = scmp.ne.s32.totalorder %s55, %s58
    %p64 = scmp.eq.s32.totalorder %s17, 0
    %p65 = por %p63, %p64
    %p66 = scmp.ne.s32.totalorder %s55, %s58
    %p67 = scmp.eq.s32.totalorder %s22, 1
    %p68 = por %p66, %p67
    %p69 = scmp.ne.s32.totalorder %s58, %s59
    %p70 = scmp.eq.s32.totalorder %s22, 0
    %p71 = por %p69, %p70
    %p72 = scmp.ne.s32.totalorder %s58, %s59
    %p73 = scmp.eq.s32.totalorder %s23, 1
    %p74 = por %p72, %p73
    %p76 = scmp.ne.s32.totalorder %s59, %s75
    %p77 = scmp.eq.s32.totalorder %s23, 0
    %p78 = por %p76, %p77
    %s80 = sadd.s32 %s79, 1
    %p83 = scmp.eq.s32.totalorder %s17, 1
    %p84 = scmp.ne.s32.totalorder %s79, %s81
    %p85 = scmp.eq.s32.totalorder %s17, 0
    %p86 = por %p84, %p85
    %p87 = scmp.ne.s32.totalorder %s79, %s81
    %p88 = scmp.eq.s32.totalorder %s22, 1
    %p89 = por %p87, %p88
    %p90 = scmp.ne.s32.totalorder %s81, %s82
    %p91 = scmp.eq.s32.totalorder %s22, 0
    %p92 = por %p90, %p91
    %p93 = scmp.ne.s32.totalorder %s81, %s82
    %p94 = scmp.eq.s32.totalorder %s23, 1
    %p95 = por %p93, %p94
    %p97 = scmp.ne.s32.totalorder %s82, %s96
    %p98 = scmp.eq.s32.totalorder %s23, 0
    %p99 = por %p97, %p98
    %s101 = sadd.s32 %s100, 1
    %p104 = scmp.eq.s32.totalorder %s17, 1
    %p105 = scmp.ne.s32.totalorder %s100, %s102
    %p106 = scmp.eq.s32.totalorder %s17, 0
    %p107 = por %p105, %p106
    %p108 = scmp.ne.s32.totalorder %s100, %s102
    %p109 = scmp.eq.s32.totalorder %s22, 1
    %p110 = por %p108, %p109
    %p111 = scmp.ne.s32.totalorder %s102, %s103
    %p112 = scmp.eq.s32.totalorder %s22, 0
    %p113 = por %p111, %p112
    %p114 = scmp.ne.s32.totalorder %s102, %s103
    %p115 = scmp.eq.s32.totalorder %s23, 1
    %p116 = por %p114, %p115
    %p118 = scmp.ne.s32.totalorder %s103, %s117
    %p119 = scmp.eq.s32.totalorder %s23, 0
    %p120 = por %p118, %p119
    %s122 = sadd.s32 %s121, 1
    %p125 = scmp.eq.s32.totalorder %s17, 1
    %p126 = scmp.ne.s32.totalorder %s121, %s123
    %p127 = scmp.eq.s32.totalorder %s17, 0
    %p128 = por %p126, %p127
    %p129 = scmp.ne.s32.totalorder %s121, %s123
    %p130 = scmp.eq.s32.totalorder %s22, 1
    %p131 = por %p129, %p130
    %p132 = scmp.ne.s32.totalorder %s123, %s124
    %p133 = scmp.eq.s32.totalorder %s22, 0
    %p134 = por %p132, %p133
    %p135 = scmp.ne.s32.totalorder %s123, %s124
    %p136 = scmp.eq.s32.totalorder %s23, 1
    %p137 = por %p135, %p136
    %p139 = scmp.ne.s32.totalorder %s124, %s138
    %p140 = scmp.eq.s32.totalorder %s23, 0
    %p141 = por %p139, %p140
    %s143 = sadd.s32 %s142, 1
    %p146 = scmp.eq.s32.totalorder %s17, 1
    %p147 = scmp.ne.s32.totalorder %s142, %s144
    %p148 = scmp.eq.s32.totalorder %s17, 0
    %p149 = por %p147, %p148
    %p150 = scmp.ne.s32.totalorder %s142, %s144
    %p151 = scmp.eq.s32.totalorder %s22, 1
    %p152 = por %p150, %p151
    %p153 = scmp.ne.s32.totalorder %s144, %s145
    %p154 = scmp.eq.s32.totalorder %s22, 0
    %p155 = por %p153, %p154
    %p156 = scmp.ne.s32.totalorder %s144, %s145
    %p157 = scmp.eq.s32.totalorder %s23, 1
    %p158 = por %p156, %p157
    %p160 = scmp.ne.s32.totalorder %s145, %s159
    %p161 = scmp.eq.s32.totalorder %s23, 0
    %p162 = por %p160, %p161
    %s164 = sadd.s32 %s163, 1
    %p167 = scmp.eq.s32.totalorder %s17, 1
    %p168 = scmp.ne.s32.totalorder %s163, %s165
    %p169 = scmp.eq.s32.totalorder %s17, 0
    %p170 = por %p168, %p169
    %p171 = scmp.ne.s32.totalorder %s163, %s165
    %p172 = scmp.eq.s32.totalorder %s22, 1
    %p173 = por %p171, %p172
    %p174 = scmp.ne.s32.totalorder %s165, %s166
    %p175 = scmp.eq.s32.totalorder %s22, 0
    %p176 = por %p174, %p175
    %p177 = scmp.ne.s32.totalorder %s165, %s166
    %p178 = scmp.eq.s32.totalorder %s23, 1
    %p179 = por %p177, %p178
    %p181 = scmp.ne.s32.totalorder %s166, %s180
    %p182 = scmp.eq.s32.totalorder %s23, 0
    %p183 = por %p181, %p182
    %s184 = ssub.s32 %s17, %s24
    %p185 = scmp.eq.s32.totalorder %s184, 0
    %s187 = sadd.s32 %s186, 1
    %s188 = scalar_select %p185, %s186, %s187
    %p191 = pneg %p185
    %p192 = scmp.eq.s32.totalorder %s17, 1
    %p193 = por %p191, %p192
    %p194 = scmp.ne.s32.totalorder %s186, %s189
    %p195 = scmp.eq.s32.totalorder %s17, 0
    %p196 = por %p194, %p195
    %p197 = scmp.ne.s32.totalorder %s186, %s189
    %p198 = scmp.eq.s32.totalorder %s22, 1
    %p199 = por %p197, %p198
    %p200 = scmp.ne.s32.totalorder %s189, %s190
    %p201 = scmp.eq.s32.totalorder %s22, 0
    %p202 = por %p200, %p201
    %p203 = scmp.ne.s32.totalorder %s189, %s190
    %p204 = scmp.eq.s32.totalorder %s23, 1
    %p205 = por %p203, %p204
    %p207 = scmp.ne.s32.totalorder %s190, %s206
    %p208 = scmp.eq.s32.totalorder %s23, 0
    %p209 = por %p207, %p208
    %s210 = ssub.s32 1, %s17
    %s211 = ssub.s32 1, %s24
    %s212 = ssub.s32 %s210, %s211
    %p213 = scmp.eq.s32.totalorder %s212, 0
    %s215 = sadd.s32 %s214, 1
    %s216 = scalar_select %p213, %s214, %s215
    %p219 = pneg %p213
    %p220 = scmp.eq.s32.totalorder %s17, 1
    %p221 = por %p219, %p220
    %p222 = scmp.ne.s32.totalorder %s214, %s217
    %p223 = scmp.eq.s32.totalorder %s17, 0
    %p224 = por %p222, %p223
    %p225 = scmp.ne.s32.totalorder %s214, %s217
    %p226 = scmp.eq.s32.totalorder %s22, 1
    %p227 = por %p225, %p226
    %p228 = scmp.ne.s32.totalorder %s217, %s218
    %p229 = scmp.eq.s32.totalorder %s22, 0
    %p230 = por %p228, %p229
    %p231 = scmp.ne.s32.totalorder %s217, %s218
    %p232 = scmp.eq.s32.totalorder %s23, 1
    %p233 = por %p231, %p232
    %p235 = scmp.ne.s32.totalorder %s218, %s234
    %p236 = scmp.eq.s32.totalorder %s23, 0
    %p237 = por %p235, %p236
    %s239 = sadd.s32 %s238, 1
    %p242 = scmp.eq.s32.totalorder %s17, 1
    %p243 = scmp.ne.s32.totalorder %s238, %s240
    %p244 = scmp.eq.s32.totalorder %s17, 0
    %p245 = por %p243, %p244
    %p246 = scmp.ne.s32.totalorder %s238, %s240
    %p247 = scmp.eq.s32.totalorder %s22, 1
    %p248 = por %p246, %p247
    %p249 = scmp.ne.s32.totalorder %s240, %s241
    %p250 = scmp.eq.s32.totalorder %s22, 0
    %p251 = por %p249, %p250
    %p252 = scmp.ne.s32.totalorder %s240, %s241
    %p253 = scmp.eq.s32.totalorder %s23, 1
    %p254 = por %p252, %p253
    %p256 = scmp.ne.s32.totalorder %s241, %s255
    %p257 = scmp.eq.s32.totalorder %s23, 0
    %p258 = por %p256, %p257
    %s260 = sadd.s32 %s259, 1
    %p263 = scmp.eq.s32.totalorder %s17, 1
    %p264 = scmp.ne.s32.totalorder %s259, %s261
    %p265 = scmp.eq.s32.totalorder %s17, 0
    %p266 = por %p264, %p265
    %p267 = scmp.ne.s32.totalorder %s259, %s261
    %p268 = scmp.eq.s32.totalorder %s22, 1
    %p269 = por %p267, %p268
    %p270 = scmp.ne.s32.totalorder %s261, %s262
    %p271 = scmp.eq.s32.totalorder %s22, 0
    %p272 = por %p270, %p271
    %p273 = scmp.ne.s32.totalorder %s261, %s262
    %p274 = scmp.eq.s32.totalorder %s23, 1
    %p275 = por %p273, %p274
    %p277 = scmp.ne.s32.totalorder %s262, %s276
    %p278 = scmp.eq.s32.totalorder %s23, 0
    %p279 = por %p277, %p278
    %p280 = scmp.le.s32.totalorder 1, %s17
    %p281 = scmp.lt.s32.totalorder %s17, 3
    %p282 = pnand %p280, %p281
    %p283 = pneg %p282
    // Predicated region
    $region9: #{model_forward.7} parent=5 // pred_check
      _
    $region10: #{model_forward.7} parent=5 // pred_check_branch
      %285 = sbr.rel (%p282) target = $region12
    $region11: #{model_forward.7} parent=5 // pred_region
      %s286 = ssub.s32 %s17, 1
      // Predicated region
      $region13: #{model_forward.7} parent=11 // pred_check
        %p287 = pneg %p92
      $region14: #{model_forward.7} parent=11 // pred_check_branch
        %289 = sbr.rel (%p287) target = $region16
      $region15: #{model_forward.7} parent=11 // pred_region
        _
      $region16: #{model_forward.7} parent=11 // pred_fallthru
        _
      // Predicated region
      $region17: #{model_forward.7} parent=11 // pred_check
        %p290 = pneg %p113
      $region18: #{model_forward.7} parent=11 // pred_check_branch
        %292 = sbr.rel (%p290) target = $region20
      $region19: #{model_forward.7} parent=11 // pred_region
        _
      $region20: #{model_forward.7} parent=11 // pred_fallthru
        _
      // Predicated region
      $region21: #{model_forward.7} parent=11 // pred_check
        %p293 = pneg %p134
      $region22: #{model_forward.7} parent=11 // pred_check_branch
        %295 = sbr.rel (%p293) target = $region24
      $region23: #{model_forward.7} parent=11 // pred_region
        _
      $region24: #{model_forward.7} parent=11 // pred_fallthru
        _
      // Predicated region
      $region25: #{model_forward.7} parent=11 // pred_check
        %p296 = pneg %p155
      $region26: #{model_forward.7} parent=11 // pred_check_branch
        %298 = sbr.rel (%p296) target = $region28
      $region27: #{model_forward.7} parent=11 // pred_region
        _
      $region28: #{model_forward.7} parent=11 // pred_fallthru
        _
      // Predicated region
      $region29: #{model_forward.7} parent=11 // pred_check
        %p299 = pneg %p176
      $region30: #{model_forward.7} parent=11 // pred_check_branch
        %301 = sbr.rel (%p299) target = $region32
      $region31: #{model_forward.7} parent=11 // pred_region
        _
      $region32: #{model_forward.7} parent=11 // pred_fallthru
        _
    $region12: #{model_forward.7} parent=5 // pred_fallthru
      _
    %p302 = scmp.lt.s32.totalorder %s17, 2
    // Predicated region
    $region33: #{model_forward.7} parent=5 // pred_check
      %p303 = pneg %p302
    $region34: #{model_forward.7} parent=5 // pred_check_branch
      %305 = sbr.rel (%p303) target = $region36
    $region35: #{model_forward.7} parent=5 // pred_region
      // Predicated region
      $region37: #{model_forward.7} parent=35 // pred_check
        %p306 = pneg %p37
      $region38: #{model_forward.7} parent=35 // pred_check_branch
        %308 = sbr.rel (%p306) target = $region40
      $region39: #{model_forward.7} parent=35 // pred_region
        %s309 = smul.u32 4, %s17
        %p310 = scmp.lt.s32.totalorder %s309, 7
        %s311 = scalar_select %p310, %s309, 7
        %s312 = smul.addr %s311, 8
        %s313 = scalar_lea.vmem %s0, %s312
        %s314 = smul.u32 4, %s17
      $region40: #{model_forward.7} parent=35 // pred_fallthru
        _
      // Predicated region
      $region41: #{model_forward.7} parent=35 // pred_check
        %p315 = pneg %p65
      $region42: #{model_forward.7} parent=35 // pred_check_branch
        %317 = sbr.rel (%p315) target = $region44
      $region43: #{model_forward.7} parent=35 // pred_region
        %s318 = ssub.s32 1, %s17
        %s319 = smul.u32 4, %s318
        %p320 = scmp.lt.s32.totalorder %s319, 7
        %s321 = scalar_select %p320, %s319, 7
        %s322 = smul.addr %s321, 8
        %s323 = scalar_lea.vmem %s1, %s322
        %s324 = ssub.s32 1, %s17
        %s325 = smul.u32 4, %s324
      $region44: #{model_forward.7} parent=35 // pred_fallthru
        _
    $region36: #{model_forward.7} parent=5 // pred_fallthru
      _
    %p326 = scmp.le.s32.totalorder 1, %s17
    %p327 = scmp.lt.s32.totalorder %s17, 3
    %p328 = pnand %p326, %p327
    %p329 = pneg %p328
    // Predicated region
    $region45: #{model_forward.7} parent=5 // pred_check
      _
    $region46: #{model_forward.7} parent=5 // pred_check_branch
      %331 = sbr.rel (%p328) target = $region48
    $region47: #{model_forward.7} parent=5 // pred_region
      %s332 = ssub.s32 %s17, 1
      %s333 = smul.u32 4, %s22
      %p334 = scmp.lt.s32.totalorder %s333, 7
      %s335 = scalar_select %p334, %s333, 7
      %s336 = smul.addr %s335, 8
      %s337 = scalar_lea.vmem %s0, %s336
      %p338 = pneg %p43
      %p339 = pneg %p40
      %s340 = ssub.s32 1, %s22
      %s341 = smul.u32 4, %s340
      %p342 = scmp.lt.s32.totalorder %s341, 7
      %s343 = scalar_select %p342, %s341, 7
      %s344 = smul.addr %s343, 8
      %s345 = scalar_lea.vmem %s1, %s344
      %p346 = pneg %p71
      %p347 = pneg %p68
      %p348 = pneg %p92
      %p349 = pneg %p89
      %p350 = pneg %p113
      %p351 = pneg %p110
      %p352 = pneg %p134
      %p353 = pneg %p131
      %p354 = pneg %p155
      %p355 = pneg %p152
      %p356 = pneg %p176
      %p357 = pneg %p173
      %p358 = pneg %p202
      %p359 = pneg %p199
      %s360 = smul.u32 4, %s22
      %p361 = scmp.lt.s32.totalorder %s360, 7
      %s362 = scalar_select %p361, %s360, 7
      %s363 = smul.addr %s362, 8
      %s364 = scalar_lea.vmem %s7, %s363
      %p365 = pneg %p230
      %p366 = pneg %p227
      %s367 = ssub.s32 1, %s22
      %s368 = smul.u32 4, %s367
      %p369 = scmp.lt.s32.totalorder %s368, 7
      %s370 = scalar_select %p369, %s368, 7
      %s371 = smul.addr %s370, 8
      %s372 = scalar_lea.vmem %s8, %s371
      %p373 = pneg %p251
      %p374 = pneg %p248
      %p375 = pneg %p272
      %p376 = pneg %p269
      %s377 = smul.u32 4, %s22
      %p378 = scmp.lt.s32.totalorder %s377, 7
      %s379 = scalar_select %p378, %s377, 7
      %s380 = smul.addr %s379, 8
      %s381 = scalar_lea.vmem %s0, %s380
      %s382 = smul.u32 4, %s22
      %s383 = ssub.s32 1, %s22
      %s384 = smul.u32 4, %s383
      %p385 = scmp.lt.s32.totalorder %s384, 7
      %s386 = scalar_select %p385, %s384, 7
      %s387 = smul.addr %s386, 8
      %s388 = scalar_lea.vmem %s1, %s387
      %s389 = ssub.s32 1, %s22
      %s390 = smul.u32 4, %s389
      %s391 = smul.u32 4, %s22
      %p392 = scmp.lt.s32.totalorder %s391, 7
      %s393 = scalar_select %p392, %s391, 7
      %s394 = smul.addr %s393, 8
      %s395 = scalar_lea.vmem %s7, %s394
      %s396 = smul.u32 4, %s22
      %s397 = ssub.s32 1, %s22
      %s398 = smul.u32 4, %s397
      %p399 = scmp.lt.s32.totalorder %s398, 7
      %s400 = scalar_select %p399, %s398, 7
      %s401 = smul.addr %s400, 8
      %s402 = scalar_lea.vmem %s8, %s401
      %s403 = ssub.s32 1, %s22
      %s404 = smul.u32 4, %s403
      %p406 = scmp.eq.s32.totalorder %s22, 0
      // Predicated region
      $region49: #{model_forward.7} parent=47 // pred_check
        %p407 = pneg %p406
      $region50: #{model_forward.7} parent=47 // pred_check_branch
        %409 = sbr.rel (%p407) target = $region52
      $region51: #{model_forward.7} parent=47 // pred_region
        %v410 = vld [vmem:[%s5] sm:$0xff]
        %v411 = vld [vmem:[%s5 + $0x8] sm:$0xff]
        %vm412 = vcmask 261120
        %413 = vst.msk [vmem:[%s9] sm:$0xff] %vm412, %v410
        %414 = vst.msk [vmem:[%s9 + $0x8] sm:$0xff] %vm412, %v411
        %v415 = vld [vmem:[%s6] sm:$0xff]
        %v416 = vld [vmem:[%s6 + $0x8] sm:$0xff]
        %417 = vst.msk [vmem:[%s10] sm:$0xff] %vm412, %v415
        %418 = vst.msk [vmem:[%s10 + $0x8] sm:$0xff] %vm412, %v416
      $region52: #{model_forward.7} parent=47 // pred_fallthru
        _
      %v419 = vld [vmem:[%s381] sm:$0xff]
      %v420 = vld [vmem:[%s381 + $0x8] sm:$0xff]
      %v421 = vld [vmem:[%s381 + $0x10] sm:$0xff]
      %v422 = vld [vmem:[%s381 + $0x18] sm:$0xff]
      %v423 = vpack.c.bf16 %v420, %v419
      %v424 = vpack.c.bf16 %v422, %v421
      %v425 = vld [vmem:[%s2] sm:$0xf]
      %v426 = vld [vmem:[%s2 + $0x4] sm:$0xf]
      %v427 = vld [vmem:[%s388] sm:$0xff]
      %v428 = vld [vmem:[%s388 + $0x8] sm:$0xff]
      %v429 = vld [vmem:[%s388 + $0x10] sm:$0xff]
      %v430 = vld [vmem:[%s388 + $0x18] sm:$0xff]
      %v431 = vpack.c.bf16 %v428, %v427
      %v432 = vpack.c.bf16 %v430, %v429
      %s433 = scalar_lea.vmem %s2, 8
      %v434 = vld [vmem:[%s433] sm:$0xf]
      %v435 = vld [vmem:[%s433 + $0x4] sm:$0xf]
      %v436 = vld [vmem:[%s4] sm:$0x1]
      %v438 = vlaneseq
      %v439 = vshrl.u32 %v438, 7
      %v440 = vsub.s32 0, %v439
      %v441 = vrot.slane %v436, %v440
      %v445 = vunpack.c.l.b16 %v425
      %v446 = vunpack.c.l.b16 %v426
      %v447 = vpack.c.b16 %v446, %v445
      %vm449 = vcmask 130048
      %v451 = vsel %vm449, %v423, 0
      %v454 = vsel %vm449, %v424, 0
      %456 = vmatprep.subr.bf16.mxu0 0
      %457 = vmatpush1.bf16.msra.mxu0 %v447
      %458 = vmatprep.subr.bf16.mxu0 0
      %459 = vmatpush1.bf16.msra.mxu0 0
      %460 = vmatprep.subr.bf16.mxu0 0
      %461 = vmatpush1.bf16.msra.mxu0 0
      %462 = vmatprep.subr.bf16.mxu0 0
      %463 = vmatpush1.bf16.msra.mxu0 0
      %464 = vmatprep.subr.bf16.mxu0 0
      %465 = vmatpush1.bf16.msra.mxu0 0
      %466 = vmatprep.subr.bf16.mxu0 0
      %467 = vmatpush1.bf16.msra.mxu0 0
      %468 = vmatprep.subr.bf16.mxu0 0
      %469 = vmatpush1.bf16.msra.mxu0 0
      %470 = vmatprep.subr.bf16.mxu0 0
      %471 = vmatpush1.bf16.msra.mxu0 0
      %472 = vmatprep.subr.bf16.mxu0 0
      %473 = vmatpush1.bf16.msra.mxu0 0
      %474 = vmatprep.subr.bf16.mxu0 0
      %475 = vmatpush1.bf16.msra.mxu0 0
      %476 = vmatprep.subr.bf16.mxu0 0
      %477 = vmatpush1.bf16.msra.mxu0 0
      %478 = vmatprep.subr.bf16.mxu0 0
      %479 = vmatpush1.bf16.msra.mxu0 0
      %480 = vmatprep.subr.bf16.mxu0 0
      %481 = vmatpush1.bf16.msra.mxu0 0
      %482 = vmatprep.subr.bf16.mxu0 0
      %483 = vmatpush1.bf16.msra.mxu0 0
      %484 = vmatprep.subr.bf16.mxu0 0
      %485 = vmatpush1.bf16.msra.mxu0 0
      %486 = vmatprep.subr.bf16.mxu0 0
      %487 = vmatpush1.bf16.msra.mxu0 0
      %488 = vmatprep.mubr.bf16.mxu0 0
      %489 = vmatmul.mubr.bf16.gmra.mrb[0].mxu0 %v451
      %v490 = vpop.f32.mrb[0].mxu0
      %v491 = vadd.f32 %v441, %v490
      %v492 = vpop.f32.mrb[0].mxu0
      %v493 = vpop.f32.mrb[0].mxu0
      %v494 = vadd.f32 %v441, %v493
      %v495 = vpop.f32.mrb[0].mxu0
      %496 = vmatprep.mubr.bf16.mxu0 0
      %497 = vmatmul.mubr.bf16.gmra.mrb[0].mxu0 %v454
      %v498 = vpop.f32.mrb[0].mxu0
      %v499 = vadd.f32 %v441, %v498
      %v500 = vpop.f32.mrb[0].mxu0
      %v501 = vpop.f32.mrb[0].mxu0
      %v502 = vadd.f32 %v441, %v501
      %v503 = vpop.f32.mrb[0].mxu0
      %504 = vdwg.mxu0
      %505 = vst [vmem:[#allocation2] sm:$0xff] %v491
      %506 = vst [vmem:[#allocation2 + $0x8] sm:$0xff] %v494
      %507 = vst [vmem:[#allocation2 + $0x10] sm:$0xff] %v499
      %508 = vst [vmem:[#allocation2 + $0x18] sm:$0xff] %v502
      %s509 = scalar_lea.vmem %s4, 1
      %v510 = vld [vmem:[%s509] sm:$0x1]
      %v512 = vlaneseq
      %v513 = vshrl.u32 %v512, 7
      %v514 = vsub.s32 0, %v513
      %v515 = vrot.slane %v510, %v514
      %v519 = vunpack.c.l.b16 %v434
      %v520 = vunpack.c.l.b16 %v435
      %v521 = vpack.c.b16 %v520, %v519
      %v524 = vsel %vm449, %v431, 0
      %v527 = vsel %vm449, %v432, 0
      %529 = vmatprep.subr.bf16.mxu0 0
      %530 = vmatpush1.bf16.msra.mxu0 %v521
      %531 = vmatprep.subr.bf16.mxu0 0
      %532 = vmatpush1.bf16.msra.mxu0 0
      %533 = vmatprep.subr.bf16.mxu0 0
      %534 = vmatpush1.bf16.msra.mxu0 0
      %535 = vmatprep.subr.bf16.mxu0 0
      %536 = vmatpush1.bf16.msra.mxu0 0
      %537 = vmatprep.subr.bf16.mxu0 0
      %538 = vmatpush1.bf16.msra.mxu0 0
      %539 = vmatprep.subr.bf16.mxu0 0
      %540 = vmatpush1.bf16.msra.mxu0 0
      %541 = vmatprep.subr.bf16.mxu0 0
      %542 = vmatpush1.bf16.msra.mxu0 0
      %543 = vmatprep.subr.bf16.mxu0 0
      %544 = vmatpush1.bf16.msra.mxu0 0
      %545 = vmatprep.subr.bf16.mxu0 0
      %546 = vmatpush1.bf16.msra.mxu0 0
      %547 = vmatprep.subr.bf16.mxu0 0
      %548 = vmatpush1.bf16.msra.mxu0 0
      %549 = vmatprep.subr.bf16.mxu0 0
      %550 = vmatpush1.bf16.msra.mxu0 0
      %551 = vmatprep.subr.bf16.mxu0 0
      %552 = vmatpush1.bf16.msra.mxu0 0
      %553 = vmatprep.subr.bf16.mxu0 0
      %554 = vmatpush1.bf16.msra.mxu0 0
      %555 = vmatprep.subr.bf16.mxu0 0
      %556 = vmatpush1.bf16.msra.mxu0 0
      %557 = vmatprep.subr.bf16.mxu0 0
      %558 = vmatpush1.bf16.msra.mxu0 0
      %559 = vmatprep.subr.bf16.mxu0 0
      %560 = vmatpush1.bf16.msra.mxu0 0
      %561 = vmatprep.mubr.bf16.mxu0 0
      %562 = vmatmul.mubr.bf16.gmra.mrb[0].mxu0 %v524
      %v563 = vpop.f32.mrb[0].mxu0
      %v564 = vadd.f32 %v515, %v563
      %v565 = vpop.f32.mrb[0].mxu0
      %v566 = vpop.f32.mrb[0].mxu0
      %v567 = vadd.f32 %v515, %v566
      %v568 = vpop.f32.mrb[0].mxu0
      %569 = vmatprep.mubr.bf16.mxu0 0
      %570 = vmatmul.mubr.bf16.gmra.mrb[0].mxu0 %v527
      %v571 = vpop.f32.mrb[0].mxu0
      %v572 = vadd.f32 %v515, %v571
      %v573 = vpop.f32.mrb[0].mxu0
      %v574 = vpop.f32.mrb[0].mxu0
      %v575 = vadd.f32 %v515, %v574
      %v576 = vpop.f32.mrb[0].mxu0
      %577 = vdwg.mxu0
      %s578 = scalar_lea.vmem [#allocation2], 32
      %579 = vst [vmem:[%s578] sm:$0xff] %v564
      %580 = vst [vmem:[%s578 + $0x8] sm:$0xff] %v567
      %581 = vst [vmem:[%s578 + $0x10] sm:$0xff] %v572
      %582 = vst [vmem:[%s578 + $0x18] sm:$0xff] %v575
      %v583 = vld [vmem:[%s3] sm:$0xf]
      %v584 = vld [vmem:[%s3 + $0x4] sm:$0xf]
      %v585 = vld [vmem:[%s3 + $0x8] sm:$0xf]
      %v586 = vld [vmem:[%s3 + $0xc] sm:$0xf]
      %v587 = vld [vmem:[%s3 + $0x10] sm:$0xf]
      %v588 = vld [vmem:[%s3 + $0x14] sm:$0xf]
      %v589 = vld [vmem:[%s3 + $0x18] sm:$0xf]
      %v590 = vld [vmem:[%s3 + $0x1c] sm:$0xf]
      %v591 = vld [vmem:[%s9] sm:$0xff]
      %v592 = vld [vmem:[%s9 + $0x8] sm:$0xff]
      %v593 = vld [vmem:[%s10] sm:$0xff]
      %v594 = vld [vmem:[%s10 + $0x8] sm:$0xff]
      %v595 = vld [vmem:[#allocation2] sm:$0xff]
      %v596 = vpack.c.bf16 %v591, %v591
      %v601 = vunpack.c.l.b16 %v583
      %v602 = vunpack.c.l.b16 %v584
      %v603 = vunpack.c.l.b16 %v585
      %v604 = vunpack.c.l.b16 %v586
      %v605 = vpack.c.b16 %v602, %v601
      %v606 = vpack.c.b16 %v604, %v603
      %vm609 = vcmask 261120
      %v611 = vsel %vm609, %v596, 0
      %613 = vmatprep.subr.bf16.mxu0 0
      %614 = vmatpush1.bf16.msra.mxu0 %v605
      %615 = vmatprep.subr.bf16.mxu0 0
      %616 = vmatpush1.bf16.msra.mxu0 %v606
      %617 = vmatprep.subr.bf16.mxu0 0
      %618 = vmatpush1.bf16.msra.mxu0 0
      %619 = vmatprep.subr.bf16.mxu0 0
      %620 = vmatpush1.bf16.msra.mxu0 0
      %621 = vmatprep.subr.bf16.mxu0 0
      %622 = vmatpush1.bf16.msra.mxu0 0
      %623 = vmatprep.subr.bf16.mxu0 0
      %624 = vmatpush1.bf16.msra.mxu0 0
      %625 = vmatprep.subr.bf16.mxu0 0
      %626 = vmatpush1.bf16.msra.mxu0 0
      %627 = vmatprep.subr.bf16.mxu0 0
      %628 = vmatpush1.bf16.msra.mxu0 0
      %629 = vmatprep.subr.bf16.mxu0 0
      %630 = vmatpush1.bf16.msra.mxu0 0
      %631 = vmatprep.subr.bf16.mxu0 0
      %632 = vmatpush1.bf16.msra.mxu0 0
      %633 = vmatprep.subr.bf16.mxu0 0
      %634 = vmatpush1.bf16.msra.mxu0 0
      %635 = vmatprep.subr.bf16.mxu0 0
      %636 = vmatpush1.bf16.msra.mxu0 0
      %637 = vmatprep.subr.bf16.mxu0 0
      %638 = vmatpush1.bf16.msra.mxu0 0
      %639 = vmatprep.subr.bf16.mxu0 0
      %640 = vmatpush1.bf16.msra.mxu0 0
      %641 = vmatprep.subr.bf16.mxu0 0
      %642 = vmatpush1.bf16.msra.mxu0 0
      %643 = vmatprep.subr.bf16.mxu0 0
      %644 = vmatpush1.bf16.msra.mxu0 0
      %645 = vmatprep.mubr.bf16.mxu0 0
      %646 = vmatmul.mubr.bf16.gmra.mrb[0].mxu0 %v611
      %v647 = vpop.f32.mrb[0].mxu0
      %v648 = vadd.f32 0.0, %v647
      %v649 = vpop.f32.mrb[0].mxu0
      %v650 = vpop.f32.mrb[0].mxu0
      %v651 = vpop.f32.mrb[0].mxu0
      %652 = vdwg.mxu0
      %v653 = vadd.f32 %v595, %v648
      %s654 = sadd.s32 24, 32
      %s655 = scalar_lea.vmem [#allocation2], %s654
      %v656 = vld [vmem:[%s655] sm:$0xff]
      %v657 = vpack.c.bf16 %v592, %v592
      %v662 = vunpack.c.l.b16 %v587
      %v663 = vunpack.c.l.b16 %v588
      %v664 = vunpack.c.l.b16 %v589
      %v665 = vunpack.c.l.b16 %v590
      %v666 = vpack.c.b16 %v663, %v662
      %v667 = vpack.c.b16 %v665, %v664
      %v671 = vsel %vm609, %v657, 0
      %673 = vmatprep.subr.bf16.mxu0 0
      %674 = vmatpush1.bf16.msra.mxu0 %v666
      %675 = vmatprep.subr.bf16.mxu0 0
      %676 = vmatpush1.bf16.msra.mxu0 %v667
      %677 = vmatprep.subr.bf16.mxu0 0
      %678 = vmatpush1.bf16.msra.mxu0 0
      %679 = vmatprep.subr.bf16.mxu0 0
      %680 = vmatpush1.bf16.msra.mxu0 0
      %681 = vmatprep.subr.bf16.mxu0 0
      %682 = vmatpush1.bf16.msra.mxu0 0
      %683 = vmatprep.subr.bf16.mxu0 0
      %684 = vmatpush1.bf16.msra.mxu0 0
      %685 = vmatprep.subr.bf16.mxu0 0
      %686 = vmatpush1.bf16.msra.mxu0 0
      %687 = vmatprep.subr.bf16.mxu0 0
      %688 = vmatpush1.bf16.msra.mxu0 0
      %689 = vmatprep.subr.bf16.mxu0 0
      %690 = vmatpush1.bf16.msra.mxu0 0
      %691 = vmatprep.subr.bf16.mxu0 0
      %692 = vmatpush1.bf16.msra.mxu0 0
      %693 = vmatprep.subr.bf16.mxu0 0
      %694 = vmatpush1.bf16.msra.mxu0 0
      %695 = vmatprep.subr.bf16.mxu0 0
      %696 = vmatpush1.bf16.msra.mxu0 0
      %697 = vmatprep.subr.bf16.mxu0 0
      %698 = vmatpush1.bf16.msra.mxu0 0
      %699 = vmatprep.subr.bf16.mxu0 0
      %700 = vmatpush1.bf16.msra.mxu0 0
      %701 = vmatprep.subr.bf16.mxu0 0
      %702 = vmatpush1.bf16.msra.mxu0 0
      %703 = vmatprep.subr.bf16.mxu0 0
      %704 = vmatpush1.bf16.msra.mxu0 0
      %705 = vmatprep.mubr.bf16.mxu0 0
      %706 = vmatmul.mubr.bf16.gmra.mrb[0].mxu0 %v671
      %v707 = vpop.f32.mrb[0].mxu0
      %v708 = vadd.f32 0.0, %v707
      %v709 = vpop.f32.mrb[0].mxu0
      %v710 = vpop.f32.mrb[0].mxu0
      %v711 = vpop.f32.mrb[0].mxu0
      %712 = vdwg.mxu0
      %v713 = vadd.f32 %v656, %v708
      %v714 = vxor.u32 %v653, 2147483648
      %v715 = vxor.u32 %v713, 2147483648
      %v716 = vmul.f32 %v714, 1.442695
      %v717 = vpow.pop %v716
      %v718 = vmul.f32 %v715, 1.442695
      %v719 = vpow.pop %v718
      %v720 = vadd.f32 %v717, 1.0
      %v721 = vadd.f32 %v719, 1.0
      %v722 = vrcp.pop %v720
      %v723 = vmul.f32 1.0, %v722
      %v724 = vrcp.pop %v721
      %v725 = vmul.f32 1.0, %v724
      %v726 = vtanh.pop %v653
      %v727 = vtanh.pop %v713
      %730 = vrot.lane.b32.xlu0 %v593, 32
      %v731 = vpop.permute.xlu0 %730
      %732 = vrot.lane.b32.xlu0 %v594, 32
      %v733 = vpop.permute.xlu0 %732
      %v736 = vmul.f32 %v723, %v731
      %v737 = vmul.f32 %v725, %v733
      %740 = vrot.lane.b32.xlu0 %v726, 32
      %v741 = vpop.permute.xlu0 %740
      %742 = vrot.lane.b32.xlu0 %v727, 32
      %v743 = vpop.permute.xlu0 %742
      %v746 = vmul.f32 %v723, %v741
      %v747 = vmul.f32 %v725, %v743
      %750 = vrot.lane.b32.xlu0 %v746, 32
      %v751 = vpop.permute.xlu0 %750
      %752 = vrot.lane.b32.xlu0 %v747, 32
      %v753 = vpop.permute.xlu0 %752
      %v756 = vadd.f32 %v736, %v751
      %v757 = vadd.f32 %v737, %v753
      %v758 = vtanh.pop %v756
      %v759 = vtanh.pop %v757
      %762 = vrot.lane.b32.xlu0 %v758, 32
      %v763 = vpop.permute.xlu0 %762
      %764 = vrot.lane.b32.xlu0 %v759, 32
      %v765 = vpop.permute.xlu0 %764
      %v768 = vmul.f32 %v723, %v763
      %v769 = vmul.f32 %v725, %v765
      %771 = vrot.lane.b32.xlu0 %v768, 64
      %v772 = vpop.permute.xlu0 %771
      %774 = vst.msk [vmem:[%s395] sm:$0xff] %vm609, %v772
      %776 = vrot.lane.b32.xlu0 %v769, 64
      %v777 = vpop.permute.xlu0 %776
      %s779 = scalar_lea.vmem %s402, 24
      %780 = vst.msk [vmem:[%s779] sm:$0xff] %vm609, %v777
      %s781 = scalar_lea.vmem [#allocation2], 8
      %v782 = vld [vmem:[%s781] sm:$0xff]
      %v783 = vpack.c.bf16 %v768, %v768
      %785 = vrot.lane.b32.xlu0 %v783, 64
      %v786 = vpop.permute.xlu0 %785
      %v788 = vsel %vm609, %v786, 0
      %790 = vmatprep.subr.bf16.mxu0 0
      %791 = vmatpush1.bf16.msra.mxu0 %v605
      %792 = vmatprep.subr.bf16.mxu0 0
      %793 = vmatpush1.bf16.msra.mxu0 %v606
      %794 = vmatprep.subr.bf16.mxu0 0
      %795 = vmatpush1.bf16.msra.mxu0 0
      %796 = vmatprep.subr.bf16.mxu0 0
      %797 = vmatpush1.bf16.msra.mxu0 0
      %798 = vmatprep.subr.bf16.mxu0 0
      %799 = vmatpush1.bf16.msra.mxu0 0
      %800 = vmatprep.subr.bf16.mxu0 0
      %801 = vmatpush1.bf16.msra.mxu0 0
      %802 = vmatprep.subr.bf16.mxu0 0
      %803 = vmatpush1.bf16.msra.mxu0 0
      %804 = vmatprep.subr.bf16.mxu0 0
      %805 = vmatpush1.bf16.msra.mxu0 0
      %806 = vmatprep.subr.bf16.mxu0 0
      %807 = vmatpush1.bf16.msra.mxu0 0
      %808 = vmatprep.subr.bf16.mxu0 0
      %809 = vmatpush1.bf16.msra.mxu0 0
      %810 = vmatprep.subr.bf16.mxu0 0
      %811 = vmatpush1.bf16.msra.mxu0 0
      %812 = vmatprep.subr.bf16.mxu0 0
      %813 = vmatpush1.bf16.msra.mxu0 0
      %814 = vmatprep.subr.bf16.mxu0 0
      %815 = vmatpush1.bf16.msra.mxu0 0
      %816 = vmatprep.subr.bf16.mxu0 0
      %817 = vmatpush1.bf16.msra.mxu0 0
      %818 = vmatprep.subr.bf16.mxu0 0
      %819 = vmatpush1.bf16.msra.mxu0 0
      %820 = vmatprep.subr.bf16.mxu0 0
      %821 = vmatpush1.bf16.msra.mxu0 0
      %822 = vmatprep.mubr.bf16.mxu0 0
      %823 = vmatmul.mubr.bf16.gmra.mrb[0].mxu0 %v788
      %v824 = vpop.f32.mrb[0].mxu0
      %v825 = vadd.f32 0.0, %v824
      %v826 = vpop.f32.mrb[0].mxu0
      %v827 = vpop.f32.mrb[0].mxu0
      %v828 = vpop.f32.mrb[0].mxu0
      %829 = vdwg.mxu0
      %v830 = vadd.f32 %v782, %v825
      %s831 = sadd.s32 16, 32
      %s832 = scalar_lea.vmem [#allocation2], %s831
      %v833 = vld [vmem:[%s832] sm:$0xff]
      %v834 = vpack.c.bf16 %v769, %v769
      %836 = vrot.lane.b32.xlu0 %v834, 64
      %v837 = vpop.permute.xlu0 %836
      %v839 = vsel %vm609, %v837, 0
      %841 = vmatprep.subr.bf16.mxu0 0
      %842 = vmatpush1.bf16.msra.mxu0 %v666
      %843 = vmatprep.subr.bf16.mxu0 0
      %844 = vmatpush1.bf16.msra.mxu0 %v667
      %845 = vmatprep.subr.bf16.mxu0 0
      %846 = vmatpush1.bf16.msra.mxu0 0
      %847 = vmatprep.subr.bf16.mxu0 0
      %848 = vmatpush1.bf16.msra.mxu0 0
      %849 = vmatprep.subr.bf16.mxu0 0
      %850 = vmatpush1.bf16.msra.mxu0 0
      %851 = vmatprep.subr.bf16.mxu0 0
      %852 = vmatpush1.bf16.msra.mxu0 0
      %853 = vmatprep.subr.bf16.mxu0 0
      %854 = vmatpush1.bf16.msra.mxu0 0
      %855 = vmatprep.subr.bf16.mxu0 0
      %856 = vmatpush1.bf16.msra.mxu0 0
      %857 = vmatprep.subr.bf16.mxu0 0
      %858 = vmatpush1.bf16.msra.mxu0 0
      %859 = vmatprep.subr.bf16.mxu0 0
      %860 = vmatpush1.bf16.msra.mxu0 0
      %861 = vmatprep.subr.bf16.mxu0 0
      %862 = vmatpush1.bf16.msra.mxu0 0
      %863 = vmatprep.subr.bf16.mxu0 0
      %864 = vmatpush1.bf16.msra.mxu0 0
      %865 = vmatprep.subr.bf16.mxu0 0
      %866 = vmatpush1.bf16.msra.mxu0 0
      %867 = vmatprep.subr.bf16.mxu0 0
      %868 = vmatpush1.bf16.msra.mxu0 0
      %869 = vmatprep.subr.bf16.mxu0 0
      %870 = vmatpush1.bf16.msra.mxu0 0
      %871 = vmatprep.subr.bf16.mxu0 0
      %872 = vmatpush1.bf16.msra.mxu0 0
      %873 = vmatprep.mubr.bf16.mxu0 0
      %874 = vmatmul.mubr.bf16.gmra.mrb[0].mxu0 %v839
      %v875 = vpop.f32.mrb[0].mxu0
      %v876 = vadd.f32 0.0, %v875
      %v877 = vpop.f32.mrb[0].mxu0
      %v878 = vpop.f32.mrb[0].mxu0
      %v879 = vpop.f32.mrb[0].mxu0
      %880 = vdwg.mxu0
      %v881 = vadd.f32 %v833, %v876
      %v882 = vxor.u32 %v830, 2147483648
      %v883 = vxor.u32 %v881, 2147483648
      %v884 = vmul.f32 %v882, 1.442695
      %v885 = vpow.pop %v884
      %v886 = vmul.f32 %v883, 1.442695
      %v887 = vpow.pop %v886
      %v888 = vadd.f32 %v885, 1.0
      %v889 = vadd.f32 %v887, 1.0
      %v890 = vrcp.pop %v888
      %v891 = vmul.f32 1.0, %v890
      %v892 = vrcp.pop %v889
      %v893 = vmul.f32 1.0, %v892
      %v894 = vtanh.pop %v830
      %v895 = vtanh.pop %v881
      %v896 = vmul.f32 %v891, %v756
      %v897 = vmul.f32 %v893, %v757
      %900 = vrot.lane.b32.xlu0 %v894, 32
      %v901 = vpop.permute.xlu0 %900
      %902 = vrot.lane.b32.xlu0 %v895, 32
      %v903 = vpop.permute.xlu0 %902
      %v906 = vmul.f32 %v891, %v901
      %v907 = vmul.f32 %v893, %v903
      %910 = vrot.lane.b32.xlu0 %v906, 32
      %v911 = vpop.permute.xlu0 %910
      %912 = vrot.lane.b32.xlu0 %v907, 32
      %v913 = vpop.permute.xlu0 %912
      %v916 = vadd.f32 %v896, %v911
      %v917 = vadd.f32 %v897, %v913
      %v918 = vtanh.pop %v916
      %v919 = vtanh.pop %v917
      %922 = vrot.lane.b32.xlu0 %v918, 32
      %v923 = vpop.permute.xlu0 %922
      %924 = vrot.lane.b32.xlu0 %v919, 32
      %v925 = vpop.permute.xlu0 %924
      %v928 = vmul.f32 %v891, %v923
      %v929 = vmul.f32 %v893, %v925
      %931 = vrot.lane.b32.xlu0 %v928, 64
      %v932 = vpop.permute.xlu0 %931
      %s934 = scalar_lea.vmem %s395, 8
      %935 = vst.msk [vmem:[%s934] sm:$0xff] %vm609, %v932
      %937 = vrot.lane.b32.xlu0 %v929, 64
      %v938 = vpop.permute.xlu0 %937
      %s940 = scalar_lea.vmem %s402, 16
      %941 = vst.msk [vmem:[%s940] sm:$0xff] %vm609, %v938
      %s942 = scalar_lea.vmem [#allocation2], 16
      %v943 = vld [vmem:[%s942] sm:$0xff]
      %v944 = vpack.c.bf16 %v928, %v928
      %946 = vrot.lane.b32.xlu0 %v944, 64
      %v947 = vpop.permute.xlu0 %946
      %v949 = vsel %vm609, %v947, 0
      %951 = vmatprep.subr.bf16.mxu0 0
      %952 = vmatpush1.bf16.msra.mxu0 %v605
      %953 = vmatprep.subr.bf16.mxu0 0
      %954 = vmatpush1.bf16.msra.mxu0 %v606
      %955 = vmatprep.subr.bf16.mxu0 0
      %956 = vmatpush1.bf16.msra.mxu0 0
      %957 = vmatprep.subr.bf16.mxu0 0
      %958 = vmatpush1.bf16.msra.mxu0 0
      %959 = vmatprep.subr.bf16.mxu0 0
      %960 = vmatpush1.bf16.msra.mxu0 0
      %961 = vmatprep.subr.bf16.mxu0 0
      %962 = vmatpush1.bf16.msra.mxu0 0
      %963 = vmatprep.subr.bf16.mxu0 0
      %964 = vmatpush1.bf16.msra.mxu0 0
      %965 = vmatprep.subr.bf16.mxu0 0
      %966 = vmatpush1.bf16.msra.mxu0 0
      %967 = vmatprep.subr.bf16.mxu0 0
      %968 = vmatpush1.bf16.msra.mxu0 0
      %969 = vmatprep.subr.bf16.mxu0 0
      %970 = vmatpush1.bf16.msra.mxu0 0
      %971 = vmatprep.subr.bf16.mxu0 0
      %972 = vmatpush1.bf16.msra.mxu0 0
      %973 = vmatprep.subr.bf16.mxu0 0
      %974 = vmatpush1.bf16.msra.mxu0 0
      %975 = vmatprep.subr.bf16.mxu0 0
      %976 = vmatpush1.bf16.msra.mxu0 0
      %977 = vmatprep.subr.bf16.mxu0 0
      %978 = vmatpush1.bf16.msra.mxu0 0
      %979 = vmatprep.subr.bf16.mxu0 0
      %980 = vmatpush1.bf16.msra.mxu0 0
      %981 = vmatprep.subr.bf16.mxu0 0
      %982 = vmatpush1.bf16.msra.mxu0 0
      %983 = vmatprep.mubr.bf16.mxu0 0
      %984 = vmatmul.mubr.bf16.gmra.mrb[0].mxu0 %v949
      %v985 = vpop.f32.mrb[0].mxu0
      %v986 = vadd.f32 0.0, %v985
      %v987 = vpop.f32.mrb[0].mxu0
      %v988 = vpop.f32.mrb[0].mxu0
      %v989 = vpop.f32.mrb[0].mxu0
      %990 = vdwg.mxu0
      %v991 = vadd.f32 %v943, %v986
      %s992 = sadd.s32 8, 32
      %s993 = scalar_lea.vmem [#allocation2], %s992
      %v994 = vld [vmem:[%s993] sm:$0xff]
      %v995 = vpack.c.bf16 %v929, %v929
      %997 = vrot.lane.b32.xlu0 %v995, 64
      %v998 = vpop.permute.xlu0 %997
      %v1000 = vsel %vm609, %v998, 0
      %1002 = vmatprep.subr.bf16.mxu0 0
      %1003 = vmatpush1.bf16.msra.mxu0 %v666
      %1004 = vmatprep.subr.bf16.mxu0 0
      %1005 = vmatpush1.bf16.msra.mxu0 %v667
      %1006 = vmatprep.subr.bf16.mxu0 0
      %1007 = vmatpush1.bf16.msra.mxu0 0
      %1008 = vmatprep.subr.bf16.mxu0 0
      %1009 = vmatpush1.bf16.msra.mxu0 0
      %1010 = vmatprep.subr.bf16.mxu0 0
      %1011 = vmatpush1.bf16.msra.mxu0 0
      %1012 = vmatprep.subr.bf16.mxu0 0
      %1013 = vmatpush1.bf16.msra.mxu0 0
      %1014 = vmatprep.subr.bf16.mxu0 0
      %1015 = vmatpush1.bf16.msra.mxu0 0
      %1016 = vmatprep.subr.bf16.mxu0 0
      %1017 = vmatpush1.bf16.msra.mxu0 0
      %1018 = vmatprep.subr.bf16.mxu0 0
      %1019 = vmatpush1.bf16.msra.mxu0 0
      %1020 = vmatprep.subr.bf16.mxu0 0
      %1021 = vmatpush1.bf16.msra.mxu0 0
      %1022 = vmatprep.subr.bf16.mxu0 0
      %1023 = vmatpush1.bf16.msra.mxu0 0
      %1024 = vmatprep.subr.bf16.mxu0 0
      %1025 = vmatpush1.bf16.msra.mxu0 0
      %1026 = vmatprep.subr.bf16.mxu0 0
      %1027 = vmatpush1.bf16.msra.mxu0 0
      %1028 = vmatprep.subr.bf16.mxu0 0
      %1029 = vmatpush1.bf16.msra.mxu0 0
      %1030 = vmatprep.subr.bf16.mxu0 0
      %1031 = vmatpush1.bf16.msra.mxu0 0
      %1032 = vmatprep.subr.bf16.mxu0 0
      %1033 = vmatpush1.bf16.msra.mxu0 0
      %1034 = vmatprep.mubr.bf16.mxu0 0
      %1035 = vmatmul.mubr.bf16.gmra.mrb[0].mxu0 %v1000
      %v1036 = vpop.f32.mrb[0].mxu0
      %v1037 = vadd.f32 0.0, %v1036
      %v1038 = vpop.f32.mrb[0].mxu0
      %v1039 = vpop.f32.mrb[0].mxu0
      %v1040 = vpop.f32.mrb[0].mxu0
      %1041 = vdwg.mxu0
      %v1042 = vadd.f32 %v994, %v1037
      %v1043 = vxor.u32 %v991, 2147483648
      %v1044 = vxor.u32 %v1042, 2147483648
      %v1045 = vmul.f32 %v1043, 1.442695
      %v1046 = vpow.pop %v1045
      %v1047 = vmul.f32 %v1044, 1.442695
      %v1048 = vpow.pop %v1047
      %v1049 = vadd.f32 %v1046, 1.0
      %v1050 = vadd.f32 %v1048, 1.0
      %v1051 = vrcp.pop %v1049
      %v1052 = vmul.f32 1.0, %v1051
      %v1053 = vrcp.pop %v1050
      %v1054 = vmul.f32 1.0, %v1053
      %v1055 = vtanh.pop %v991
      %v1056 = vtanh.pop %v1042
      %v1057 = vmul.f32 %v1052, %v916
      %v1058 = vmul.f32 %v1054, %v917
      %1061 = vrot.lane.b32.xlu0 %v1055, 32
      %v1062 = vpop.permute.xlu0 %1061
      %1063 = vrot.lane.b32.xlu0 %v1056, 32
      %v1064 = vpop.permute.xlu0 %1063
      %v1067 = vmul.f32 %v1052, %v1062
      %v1068 = vmul.f32 %v1054, %v1064
      %1071 = vrot.lane.b32.xlu0 %v1067, 32
      %v1072 = vpop.permute.xlu0 %1071
      %1073 = vrot.lane.b32.xlu0 %v1068, 32
      %v1074 = vpop.permute.xlu0 %1073
      %v1077 = vadd.f32 %v1057, %v1072
      %v1078 = vadd.f32 %v1058, %v1074
      %v1079 = vtanh.pop %v1077
      %v1080 = vtanh.pop %v1078
      %1083 = vrot.lane.b32.xlu0 %v1079, 32
      %v1084 = vpop.permute.xlu0 %1083
      %1085 = vrot.lane.b32.xlu0 %v1080, 32
      %v1086 = vpop.permute.xlu0 %1085
      %v1089 = vmul.f32 %v1052, %v1084
      %v1090 = vmul.f32 %v1054, %v1086
      %1092 = vrot.lane.b32.xlu0 %v1089, 64
      %v1093 = vpop.permute.xlu0 %1092
      %s1095 = scalar_lea.vmem %s395, 16
      %1096 = vst.msk [vmem:[%s1095] sm:$0xff] %vm609, %v1093
      %1098 = vrot.lane.b32.xlu0 %v1090, 64
      %v1099 = vpop.permute.xlu0 %1098
      %s1101 = scalar_lea.vmem %s402, 8
      %1102 = vst.msk [vmem:[%s1101] sm:$0xff] %vm609, %v1099
      %s1103 = scalar_lea.vmem [#allocation2], 24
      %v1104 = vld [vmem:[%s1103] sm:$0xff]
      %v1105 = vpack.c.bf16 %v1089, %v1089
      %1107 = vrot.lane.b32.xlu0 %v1105, 64
      %v1108 = vpop.permute.xlu0 %1107
      %v1110 = vsel %vm609, %v1108, 0
      %1112 = vmatprep.subr.bf16.mxu0 0
      %1113 = vmatpush1.bf16.msra.mxu0 %v605
      %1114 = vmatprep.subr.bf16.mxu0 0
      %1115 = vmatpush1.bf16.msra.mxu0 %v606
      %1116 = vmatprep.subr.bf16.mxu0 0
      %1117 = vmatpush1.bf16.msra.mxu0 0
      %1118 = vmatprep.subr.bf16.mxu0 0
      %1119 = vmatpush1.bf16.msra.mxu0 0
      %1120 = vmatprep.subr.bf16.mxu0 0
      %1121 = vmatpush1.bf16.msra.mxu0 0
      %1122 = vmatprep.subr.bf16.mxu0 0
      %1123 = vmatpush1.bf16.msra.mxu0 0
      %1124 = vmatprep.subr.bf16.mxu0 0
      %1125 = vmatpush1.bf16.msra.mxu0 0
      %1126 = vmatprep.subr.bf16.mxu0 0
      %1127 = vmatpush1.bf16.msra.mxu0 0
      %1128 = vmatprep.subr.bf16.mxu0 0
      %1129 = vmatpush1.bf16.msra.mxu0 0
      %1130 = vmatprep.subr.bf16.mxu0 0
      %1131 = vmatpush1.bf16.msra.mxu0 0
      %1132 = vmatprep.subr.bf16.mxu0 0
      %1133 = vmatpush1.bf16.msra.mxu0 0
      %1134 = vmatprep.subr.bf16.mxu0 0
      %1135 = vmatpush1.bf16.msra.mxu0 0
      %1136 = vmatprep.subr.bf16.mxu0 0
      %1137 = vmatpush1.bf16.msra.mxu0 0
      %1138 = vmatprep.subr.bf16.mxu0 0
      %1139 = vmatpush1.bf16.msra.mxu0 0
      %1140 = vmatprep.subr.bf16.mxu0 0
      %1141 = vmatpush1.bf16.msra.mxu0 0
      %1142 = vmatprep.subr.bf16.mxu0 0
      %1143 = vmatpush1.bf16.msra.mxu0 0
      %1144 = vmatprep.mubr.bf16.mxu0 0
      %1145 = vmatmul.mubr.bf16.gmra.mrb[0].mxu0 %v1110
      %v1146 = vpop.f32.mrb[0].mxu0
      %v1147 = vadd.f32 0.0, %v1146
      %v1148 = vpop.f32.mrb[0].mxu0
      %v1149 = vpop.f32.mrb[0].mxu0
      %v1150 = vpop.f32.mrb[0].mxu0
      %1151 = vdwg.mxu0
      %v1152 = vadd.f32 %v1104, %v1147
      %s1153 = sadd.s32 0, 32
      %s1154 = scalar_lea.vmem [#allocation2], %s1153
      %v1155 = vld [vmem:[%s1154] sm:$0xff]
      %v1156 = vpack.c.bf16 %v1090, %v1090
      %1158 = vrot.lane.b32.xlu0 %v1156, 64
      %v1159 = vpop.permute.xlu0 %1158
      %v1161 = vsel %vm609, %v1159, 0
      %1163 = vmatprep.subr.bf16.mxu0 0
      %1164 = vmatpush1.bf16.msra.mxu0 %v666
      %1165 = vmatprep.subr.bf16.mxu0 0
      %1166 = vmatpush1.bf16.msra.mxu0 %v667
      %1167 = vmatprep.subr.bf16.mxu0 0
      %1168 = vmatpush1.bf16.msra.mxu0 0
      %1169 = vmatprep.subr.bf16.mxu0 0
      %1170 = vmatpush1.bf16.msra.mxu0 0
      %1171 = vmatprep.subr.bf16.mxu0 0
      %1172 = vmatpush1.bf16.msra.mxu0 0
      %1173 = vmatprep.subr.bf16.mxu0 0
      %1174 = vmatpush1.bf16.msra.mxu0 0
      %1175 = vmatprep.subr.bf16.mxu0 0
      %1176 = vmatpush1.bf16.msra.mxu0 0
      %1177 = vmatprep.subr.bf16.mxu0 0
      %1178 = vmatpush1.bf16.msra.mxu0 0
      %1179 = vmatprep.subr.bf16.mxu0 0
      %1180 = vmatpush1.bf16.msra.mxu0 0
      %1181 = vmatprep.subr.bf16.mxu0 0
      %1182 = vmatpush1.bf16.msra.mxu0 0
      %1183 = vmatprep.subr.bf16.mxu0 0
      %1184 = vmatpush1.bf16.msra.mxu0 0
      %1185 = vmatprep.subr.bf16.mxu0 0
      %1186 = vmatpush1.bf16.msra.mxu0 0
      %1187 = vmatprep.subr.bf16.mxu0 0
      %1188 = vmatpush1.bf16.msra.mxu0 0
      %1189 = vmatprep.subr.bf16.mxu0 0
      %1190 = vmatpush1.bf16.msra.mxu0 0
      %1191 = vmatprep.subr.bf16.mxu0 0
      %1192 = vmatpush1.bf16.msra.mxu0 0
      %1193 = vmatprep.subr.bf16.mxu0 0
      %1194 = vmatpush1.bf16.msra.mxu0 0
      %1195 = vmatprep.mubr.bf16.mxu0 0
      %1196 = vmatmul.mubr.bf16.gmra.mrb[0].mxu0 %v1161
      %v1197 = vpop.f32.mrb[0].mxu0
      %v1198 = vadd.f32 0.0, %v1197
      %v1199 = vpop.f32.mrb[0].mxu0
      %v1200 = vpop.f32.mrb[0].mxu0
      %v1201 = vpop.f32.mrb[0].mxu0
      %1202 = vdwg.mxu0
      %v1203 = vadd.f32 %v1155, %v1198
      %v1204 = vxor.u32 %v1152, 2147483648
      %v1205 = vxor.u32 %v1203, 2147483648
      %v1206 = vmul.f32 %v1204, 1.442695
      %v1207 = vpow.pop %v1206
      %v1208 = vmul.f32 %v1205, 1.442695
      %v1209 = vpow.pop %v1208
      %v1210 = vadd.f32 %v1207, 1.0
      %v1211 = vadd.f32 %v1209, 1.0
      %v1212 = vrcp.pop %v1210
      %v1213 = vmul.f32 1.0, %v1212
      %v1214 = vrcp.pop %v1211
      %v1215 = vmul.f32 1.0, %v1214
      %v1216 = vtanh.pop %v1152
      %v1217 = vtanh.pop %v1203
      %v1218 = vmul.f32 %v1213, %v1077
      %v1219 = vmul.f32 %v1215, %v1078
      %1222 = vrot.lane.b32.xlu0 %v1216, 32
      %v1223 = vpop.permute.xlu0 %1222
      %1224 = vrot.lane.b32.xlu0 %v1217, 32
      %v1225 = vpop.permute.xlu0 %1224
      %v1228 = vmul.f32 %v1213, %v1223
      %v1229 = vmul.f32 %v1215, %v1225
      %1232 = vrot.lane.b32.xlu0 %v1228, 32
      %v1233 = vpop.permute.xlu0 %1232
      %1234 = vrot.lane.b32.xlu0 %v1229, 32
      %v1235 = vpop.permute.xlu0 %1234
      %v1238 = vadd.f32 %v1218, %v1233
      %v1239 = vadd.f32 %v1219, %v1235
      %v1240 = vtanh.pop %v1238
      %v1241 = vtanh.pop %v1239
      %1244 = vrot.lane.b32.xlu0 %v1240, 32
      %v1245 = vpop.permute.xlu0 %1244
      %1246 = vrot.lane.b32.xlu0 %v1241, 32
      %v1247 = vpop.permute.xlu0 %1246
      %v1250 = vmul.f32 %v1213, %v1245
      %v1251 = vmul.f32 %v1215, %v1247
      %1253 = vrot.lane.b32.xlu0 %v1250, 64
      %v1254 = vpop.permute.xlu0 %1253
      %s1256 = scalar_lea.vmem %s395, 24
      %1257 = vst.msk [vmem:[%s1256] sm:$0xff] %vm609, %v1254
      %1259 = vrot.lane.b32.xlu0 %v1251, 64
      %v1260 = vpop.permute.xlu0 %1259
      %1262 = vst.msk [vmem:[%s402] sm:$0xff] %vm609, %v1260
      %1263 = vst.msk [vmem:[%s9] sm:$0xff] %vm609, %v1254
      %1264 = vst.msk [vmem:[%s9 + $0x8] sm:$0xff] %vm609, %v1260
      %1267 = vrot.lane.b32.xlu0 %v1238, 96
      %v1268 = vpop.permute.xlu0 %1267
      %1269 = vrot.lane.b32.xlu0 %v1239, 96
      %v1270 = vpop.permute.xlu0 %1269
      %1273 = vst.msk [vmem:[%s10] sm:$0xff] %vm609, %v1268
      %1274 = vst.msk [vmem:[%s10 + $0x8] sm:$0xff] %vm609, %v1270
      %s1275 = smul.u32 4, %s22
      %p1276 = scmp.lt.s32.totalorder %s1275, 7
      %s1277 = scalar_select %p1276, %s1275, 7
      %s1278 = smul.addr %s1277, 8
      %s1279 = scalar_lea.vmem %s7, %s1278
      %s1280 = ssub.s32 1, %s22
      %s1281 = smul.u32 4, %s1280
      %p1282 = scmp.lt.s32.totalorder %s1281, 7
      %s1283 = scalar_select %p1282, %s1281, 7
      %s1284 = smul.addr %s1283, 8
      %s1285 = scalar_lea.vmem %s8, %s1284
      // Predicated region
      $region53: #{model_forward.7} parent=47 // pred_check
        %p1286 = pneg %p199
      $region54: #{model_forward.7} parent=47 // pred_check_branch
        %1288 = sbr.rel (%p1286) target = $region56
      $region55: #{model_forward.7} parent=47 // pred_region
        %s1289 = smul.u32 4, %s22
      $region56: #{model_forward.7} parent=47 // pred_fallthru
        _
      // Predicated region
      $region57: #{model_forward.7} parent=47 // pred_check
        %p1290 = pneg %p227
      $region58: #{model_forward.7} parent=47 // pred_check_branch
        %1292 = sbr.rel (%p1290) target = $region60
      $region59: #{model_forward.7} parent=47 // pred_region
        %s1293 = ssub.s32 1, %s22
        %s1294 = smul.u32 4, %s1293
      $region60: #{model_forward.7} parent=47 // pred_fallthru
        _
      // Predicated region
      $region61: #{model_forward.7} parent=47 // pred_check
        %p1295 = pneg %p248
      $region62: #{model_forward.7} parent=47 // pred_check_branch
        %1297 = sbr.rel (%p1295) target = $region64
      $region63: #{model_forward.7} parent=47 // pred_region
        _
      $region64: #{model_forward.7} parent=47 // pred_fallthru
        _
      // Predicated region
      $region65: #{model_forward.7} parent=47 // pred_check
        %p1298 = pneg %p269
      $region66: #{model_forward.7} parent=47 // pred_check_branch
        %1300 = sbr.rel (%p1298) target = $region68
      $region67: #{model_forward.7} parent=47 // pred_region
        _
      $region68: #{model_forward.7} parent=47 // pred_fallthru
        _
      // Predicated region
      $region69: #{model_forward.7} parent=47 // pred_check
        %p1301 = pneg %p248
      $region70: #{model_forward.7} parent=47 // pred_check_branch
        %1303 = sbr.rel (%p1301) target = $region72
      $region71: #{model_forward.7} parent=47 // pred_region
        _
      $region72: #{model_forward.7} parent=47 // pred_fallthru
        _
      // Predicated region
      $region73: #{model_forward.7} parent=47 // pred_check
        %p1304 = pneg %p269
      $region74: #{model_forward.7} parent=47 // pred_check_branch
        %1306 = sbr.rel (%p1304) target = $region76
      $region75: #{model_forward.7} parent=47 // pred_region
        _
      $region76: #{model_forward.7} parent=47 // pred_fallthru
        _
    $region48: #{model_forward.7} parent=5 // pred_fallthru
      _
    %p1307 = scmp.le.s32.totalorder 2, %s17
    // Predicated region
    $region77: #{model_forward.7} parent=5 // pred_check
      %p1308 = pneg %p1307
    $region78: #{model_forward.7} parent=5 // pred_check_branch
      %1310 = sbr.rel (%p1308) target = $region80
    $region79: #{model_forward.7} parent=5 // pred_region
      %s1311 = ssub.s32 %s17, 2
      // Predicated region
      $region81: #{model_forward.7} parent=79 // pred_check
        %p1312 = pneg %p205
      $region82: #{model_forward.7} parent=79 // pred_check_branch
        %1314 = sbr.rel (%p1312) target = $region84
      $region83: #{model_forward.7} parent=79 // pred_region
        %s1315 = smul.u32 4, %s23
        %p1316 = scmp.lt.s32.totalorder %s1315, 7
        %s1317 = scalar_select %p1316, %s1315, 7
        %s1318 = smul.addr %s1317, 8
        %s1319 = scalar_lea.vmem %s7, %s1318
      $region84: #{model_forward.7} parent=79 // pred_fallthru
        _
      // Predicated region
      $region85: #{model_forward.7} parent=79 // pred_check
        %p1320 = pneg %p233
      $region86: #{model_forward.7} parent=79 // pred_check_branch
        %1322 = sbr.rel (%p1320) target = $region88
      $region87: #{model_forward.7} parent=79 // pred_region
        %s1323 = ssub.s32 1, %s23
        %s1324 = smul.u32 4, %s1323
        %p1325 = scmp.lt.s32.totalorder %s1324, 7
        %s1326 = scalar_select %p1325, %s1324, 7
        %s1327 = smul.addr %s1326, 8
        %s1328 = scalar_lea.vmem %s8, %s1327
      $region88: #{model_forward.7} parent=79 // pred_fallthru
        _
    $region80: #{model_forward.7} parent=5 // pred_fallthru
      _
  $region6: #{model_forward.7} parent=0 // loop_footer
    %s21 = sadd.s32 1, %s17
  $region7: #{model_forward.7} parent=0 // loop_footer_branch
    %16 = sbr.rel target = $region3
  $region8: #{model_forward.7} parent=0 // loop_exit
    _

// kernel: model_forward.8
$region0: #{model_forward.8}
  #allocation0 [shape = 'u32[]', space=smem, size = 0x4, offset = 0x4, fixed_abs, tag = 'smem constant byte address 0x4 - core index']
  #allocation1 [shape = 'u32[144,128]{1,0:T(1,128)}', space=vmem, size = 0x12000, scoped, tag = 'internal scratch']
  #allocation2 [shape = 'f32[2,32,128]{2,1,0:T(8,128)}', space=vmem, size = 0x8000, scoped, tag = 'scratch operand']
  %s0 = inlined_call_operand.vmem [shape: f32[64,32], index: 0, kind: input, shape index: {}, may-alias: {0,2}]
  %s1 = inlined_call_operand.vmem [shape: f32[64,32], index: 1, kind: input, shape index: {}, may-alias: {1,3}]
  %s2 = inlined_call_operand.vmem [shape: f32[64,32], index: 2, kind: input, shape index: {}, may-alias: {0,2}]
  %s3 = inlined_call_operand.vmem [shape: f32[64,32], index: 3, kind: input, shape index: {}, may-alias: {1,3}]
  %s4 = inlined_call_operand.vmem [shape: bf16[2,2,32,128], index: 4, kind: input, shape index: {}]
  %s5 = inlined_call_operand.vmem [shape: bf16[2,32,128], index: 5, kind: input, shape index: {}]
  %s6 = inlined_call_operand.vmem [shape: f32[2,1,128], index: 6, kind: input, shape index: {}]
  %s7 = inlined_call_operand.vmem [shape: f32[2,8,32], index: 7, kind: input, shape index: {}]
  %s8 = inlined_call_operand.vmem [shape: f32[2,8,32], index: 8, kind: input, shape index: {}]
  %s9 = inlined_call_operand.vmem [shape: f32[64,32], index: 9, kind: output, shape index: {0}]
  %s10 = inlined_call_operand.vmem [shape: f32[64,32], index: 10, kind: output, shape index: {1}]
  %s11 = inlined_call_operand.vmem [shape: f32[2,8,32], index: 11, kind: output, shape index: {2}]
  %s12 = inlined_call_operand.vmem [shape: f32[2,8,32], index: 12, kind: output, shape index: {3}]
  %13 = xla_tuple %s9, %s10, %s11, %s12
  %s14 = sld [smem:[#allocation0]]
  $region97: #{model_forward.8} parent=0
    _
  %s16 = ssub.s32 1, %s14
  %s17 = scalar_select 0, %s16, %s14
  loop: start=0, step=1, limit=4
  $region2: #{model_forward.8} parent=0 // loop_pre_header
    _
  $region3: #{model_forward.8} parent=0 // loop_header
    %s19 = sphi 0, %s23
    %p20 = scmp.ge.s32.totalorder %s19, 4
    %s29 = sphi 0, %s31
    %s32 = sphi 0, %s29
    %s33 = sphi 0, %s32
    %s49 = sphi 0, %s33
    %s55 = sphi 0, %s57
    %s58 = sphi 0, %s55
    %s59 = sphi 0, %s58
    %s75 = sphi 0, %s59
    %s83 = sphi 0, %s85
    %s86 = sphi 0, %s83
    %s87 = sphi 0, %s86
    %s103 = sphi 0, %s87
    %s111 = sphi 0, %s113
    %s114 = sphi 0, %s111
    %s115 = sphi 0, %s114
    %s131 = sphi 0, %s115
    %s135 = sphi 0, %s135
    %s137 = sphi 0, %s135
    %s138 = sphi 0, %s137
    %s152 = sphi 0, %s138
    %s156 = sphi 0, %s156
    %s158 = sphi 0, %s156
    %s159 = sphi 0, %s158
    %s173 = sphi 0, %s159
    %s177 = sphi 0, %s177
    %s179 = sphi 0, %s177
    %s180 = sphi 0, %s179
    %s194 = sphi 0, %s180
    %s198 = sphi 0, %s198
    %s200 = sphi 0, %s198
    %s201 = sphi 0, %s200
    %s215 = sphi 0, %s201
    %s219 = sphi 0, %s219
    %s221 = sphi 0, %s219
    %s222 = sphi 0, %s221
    %s236 = sphi 0, %s222
    %s242 = sphi 0, %s244
    %s245 = sphi 0, %s242
    %s246 = sphi 0, %s245
    %s262 = sphi 0, %s246
    %s270 = sphi 0, %s272
    %s273 = sphi 0, %s270
    %s274 = sphi 0, %s273
    %s290 = sphi 0, %s274
    %s294 = sphi 0, %s294
    %s296 = sphi 0, %s294
    %s297 = sphi 0, %s296
    %s311 = sphi 0, %s297
    %s315 = sphi 0, %s315
    %s317 = sphi 0, %s315
    %s318 = sphi 0, %s317
    %s332 = sphi 0, %s318
  $region4: #{model_forward.8} parent=0 // loop_header_branch
    %22 = sbr.rel (%p20) target = $region8
  $region5: #{model_forward.8} parent=0 // loop_body
    %s24 = ssub.s32 %s19, 1
    %s25 = ssub.s32 %s19, 2
    %s26 = sadd.s32 %s19, 1
    %s27 = ssub.s32 %s19, %s26
    %p28 = scmp.eq.s32.totalorder %s27, 0
    %s30 = sadd.s32 %s29, 1
    %s31 = scalar_select %p28, %s29, %s30
    %p34 = pneg %p28
    %p35 = scmp.eq.s32.totalorder %s19, 1
    %p36 = por %p34, %p35
    %p37 = scmp.ne.s32.totalorder %s29, %s32
    %p38 = scmp.eq.s32.totalorder %s19, 0
    %p39 = por %p37, %p38
    %p40 = scmp.ne.s32.totalorder %s29, %s32
    %p41 = scmp.eq.s32.totalorder %s24, 1
    %p42 = por %p40, %p41
    %p43 = scmp.ne.s32.totalorder %s32, %s33
    %p44 = scmp.eq.s32.totalorder %s24, 0
    %p45 = por %p43, %p44
    %p46 = scmp.ne.s32.totalorder %s32, %s33
    %p47 = scmp.eq.s32.totalorder %s25, 1
    %p48 = por %p46, %p47
    %p50 = scmp.ne.s32.totalorder %s33, %s49
    %p51 = scmp.eq.s32.totalorder %s25, 0
    %p52 = por %p50, %p51
    %s53 = ssub.s32 %s19, %s26
    %p54 = scmp.eq.s32.totalorder %s53, 0
    %s56 = sadd.s32 %s55, 1
    %s57 = scalar_select %p54, %s55, %s56
    %p60 = pneg %p54
    %p61 = scmp.eq.s32.totalorder %s19, 1
    %p62 = por %p60, %p61
    %p63 = scmp.ne.s32.totalorder %s55, %s58
    %p64 = scmp.eq.s32.totalorder %s19, 0
    %p65 = por %p63, %p64
    %p66 = scmp.ne.s32.totalorder %s55, %s58
    %p67 = scmp.eq.s32.totalorder %s24, 1
    %p68 = por %p66, %p67
    %p69 = scmp.ne.s32.totalorder %s58, %s59
    %p70 = scmp.eq.s32.totalorder %s24, 0
    %p71 = por %p69, %p70
    %p72 = scmp.ne.s32.totalorder %s58, %s59
    %p73 = scmp.eq.s32.totalorder %s25, 1
    %p74 = por %p72, %p73
    %p76 = scmp.ne.s32.totalorder %s59, %s75
    %p77 = scmp.eq.s32.totalorder %s25, 0
    %p78 = por %p76, %p77
    %s79 = ssub.s32 1, %s19
    %s80 = ssub.s32 1, %s26
    %s81 = ssub.s32 %s79, %s80
    %p82 = scmp.eq.s32.totalorder %s81, 0
    %s84 = sadd.s32 %s83, 1
    %s85 = scalar_select %p82, %s83, %s84
    %p88 = pneg %p82
    %p89 = scmp.eq.s32.totalorder %s19, 1
    %p90 = por %p88, %p89
    %p91 = scmp.ne.s32.totalorder %s83, %s86
    %p92 = scmp.eq.s32.totalorder %s19, 0
    %p93 = por %p91, %p92
    %p94 = scmp.ne.s32.totalorder %s83, %s86
    %p95 = scmp.eq.s32.totalorder %s24, 1
    %p96 = por %p94, %p95
    %p97 = scmp.ne.s32.totalorder %s86, %s87
    %p98 = scmp.eq.s32.totalorder %s24, 0
    %p99 = por %p97, %p98
    %p100 = scmp.ne.s32.totalorder %s86, %s87
    %p101 = scmp.eq.s32.totalorder %s25, 1
    %p102 = por %p100, %p101
    %p104 = scmp.ne.s32.totalorder %s87, %s103
    %p105 = scmp.eq.s32.totalorder %s25, 0
    %p106 = por %p104, %p105
    %s107 = ssub.s32 1, %s19
    %s108 = ssub.s32 1, %s26
    %s109 = ssub.s32 %s107, %s108
    %p110 = scmp.eq.s32.totalorder %s109, 0
    %s112 = sadd.s32 %s111, 1
    %s113 = scalar_select %p110, %s111, %s112
    %p116 = pneg %p110
    %p117 = scmp.eq.s32.totalorder %s19, 1
    %p118 = por %p116, %p117
    %p119 = scmp.ne.s32.totalorder %s111, %s114
    %p120 = scmp.eq.s32.totalorder %s19, 0
    %p121 = por %p119, %p120
    %p122 = scmp.ne.s32.totalorder %s111, %s114
    %p123 = scmp.eq.s32.totalorder %s24, 1
    %p124 = por %p122, %p123
    %p125 = scmp.ne.s32.totalorder %s114, %s115
    %p126 = scmp.eq.s32.totalorder %s24, 0
    %p127 = por %p125, %p126
    %p128 = scmp.ne.s32.totalorder %s114, %s115
    %p129 = scmp.eq.s32.totalorder %s25, 1
    %p130 = por %p128, %p129
    %p132 = scmp.ne.s32.totalorder %s115, %s131
    %p133 = scmp.eq.s32.totalorder %s25, 0
    %p134 = por %p132, %p133
    %s136 = sadd.s32 %s135, 1
    %p139 = scmp.eq.s32.totalorder %s19, 1
    %p140 = scmp.ne.s32.totalorder %s135, %s137
    %p141 = scmp.eq.s32.totalorder %s19, 0
    %p142 = por %p140, %p141
    %p143 = scmp.ne.s32.totalorder %s135, %s137
    %p144 = scmp.eq.s32.totalorder %s24, 1
    %p145 = por %p143, %p144
    %p146 = scmp.ne.s32.totalorder %s137, %s138
    %p147 = scmp.eq.s32.totalorder %s24, 0
    %p148 = por %p146, %p147
    %p149 = scmp.ne.s32.totalorder %s137, %s138
    %p150 = scmp.eq.s32.totalorder %s25, 1
    %p151 = por %p149, %p150
    %p153 = scmp.ne.s32.totalorder %s138, %s152
    %p154 = scmp.eq.s32.totalorder %s25, 0
    %p155 = por %p153, %p154
    %s157 = sadd.s32 %s156, 1
    %p160 = scmp.eq.s32.totalorder %s19, 1
    %p161 = scmp.ne.s32.totalorder %s156, %s158
    %p162 = scmp.eq.s32.totalorder %s19, 0
    %p163 = por %p161, %p162
    %p164 = scmp.ne.s32.totalorder %s156, %s158
    %p165 = scmp.eq.s32.totalorder %s24, 1
    %p166 = por %p164, %p165
    %p167 = scmp.ne.s32.totalorder %s158, %s159
    %p168 = scmp.eq.s32.totalorder %s24, 0
    %p169 = por %p167, %p168
    %p170 = scmp.ne.s32.totalorder %s158, %s159
    %p171 = scmp.eq.s32.totalorder %s25, 1
    %p172 = por %p170, %p171
    %p174 = scmp.ne.s32.totalorder %s159, %s173
    %p175 = scmp.eq.s32.totalorder %s25, 0
    %p176 = por %p174, %p175
    %s178 = sadd.s32 %s177, 1
    %p181 = scmp.eq.s32.totalorder %s19, 1
    %p182 = scmp.ne.s32.totalorder %s177, %s179
    %p183 = scmp.eq.s32.totalorder %s19, 0
    %p184 = por %p182, %p183
    %p185 = scmp.ne.s32.totalorder %s177, %s179
    %p186 = scmp.eq.s32.totalorder %s24, 1
    %p187 = por %p185, %p186
    %p188 = scmp.ne.s32.totalorder %s179, %s180
    %p189 = scmp.eq.s32.totalorder %s24, 0
    %p190 = por %p188, %p189
    %p191 = scmp.ne.s32.totalorder %s179, %s180
    %p192 = scmp.eq.s32.totalorder %s25, 1
    %p193 = por %p191, %p192
    %p195 = scmp.ne.s32.totalorder %s180, %s194
    %p196 = scmp.eq.s32.totalorder %s25, 0
    %p197 = por %p195, %p196
    %s199 = sadd.s32 %s198, 1
    %p202 = scmp.eq.s32.totalorder %s19, 1
    %p203 = scmp.ne.s32.totalorder %s198, %s200
    %p204 = scmp.eq.s32.totalorder %s19, 0
    %p205 = por %p203, %p204
    %p206 = scmp.ne.s32.totalorder %s198, %s200
    %p207 = scmp.eq.s32.totalorder %s24, 1
    %p208 = por %p206, %p207
    %p209 = scmp.ne.s32.totalorder %s200, %s201
    %p210 = scmp.eq.s32.totalorder %s24, 0
    %p211 = por %p209, %p210
    %p212 = scmp.ne.s32.totalorder %s200, %s201
    %p213 = scmp.eq.s32.totalorder %s25, 1
    %p214 = por %p212, %p213
    %p216 = scmp.ne.s32.totalorder %s201, %s215
    %p217 = scmp.eq.s32.totalorder %s25, 0
    %p218 = por %p216, %p217
    %s220 = sadd.s32 %s219, 1
    %p223 = scmp.eq.s32.totalorder %s19, 1
    %p224 = scmp.ne.s32.totalorder %s219, %s221
    %p225 = scmp.eq.s32.totalorder %s19, 0
    %p226 = por %p224, %p225
    %p227 = scmp.ne.s32.totalorder %s219, %s221
    %p228 = scmp.eq.s32.totalorder %s24, 1
    %p229 = por %p227, %p228
    %p230 = scmp.ne.s32.totalorder %s221, %s222
    %p231 = scmp.eq.s32.totalorder %s24, 0
    %p232 = por %p230, %p231
    %p233 = scmp.ne.s32.totalorder %s221, %s222
    %p234 = scmp.eq.s32.totalorder %s25, 1
    %p235 = por %p233, %p234
    %p237 = scmp.ne.s32.totalorder %s222, %s236
    %p238 = scmp.eq.s32.totalorder %s25, 0
    %p239 = por %p237, %p238
    %s240 = ssub.s32 %s19, %s26
    %p241 = scmp.eq.s32.totalorder %s240, 0
    %s243 = sadd.s32 %s242, 1
    %s244 = scalar_select %p241, %s242, %s243
    %p247 = pneg %p241
    %p248 = scmp.eq.s32.totalorder %s19, 1
    %p249 = por %p247, %p248
    %p250 = scmp.ne.s32.totalorder %s242, %s245
    %p251 = scmp.eq.s32.totalorder %s19, 0
    %p252 = por %p250, %p251
    %p253 = scmp.ne.s32.totalorder %s242, %s245
    %p254 = scmp.eq.s32.totalorder %s24, 1
    %p255 = por %p253, %p254
    %p256 = scmp.ne.s32.totalorder %s245, %s246
    %p257 = scmp.eq.s32.totalorder %s24, 0
    %p258 = por %p256, %p257
    %p259 = scmp.ne.s32.totalorder %s245, %s246
    %p260 = scmp.eq.s32.totalorder %s25, 1
    %p261 = por %p259, %p260
    %p263 = scmp.ne.s32.totalorder %s246, %s262
    %p264 = scmp.eq.s32.totalorder %s25, 0
    %p265 = por %p263, %p264
    %s266 = ssub.s32 1, %s19
    %s267 = ssub.s32 1, %s26
    %s268 = ssub.s32 %s266, %s267
    %p269 = scmp.eq.s32.totalorder %s268, 0
    %s271 = sadd.s32 %s270, 1
    %s272 = scalar_select %p269, %s270, %s271
    %p275 = pneg %p269
    %p276 = scmp.eq.s32.totalorder %s19, 1
    %p277 = por %p275, %p276
    %p278 = scmp.ne.s32.totalorder %s270, %s273
    %p279 = scmp.eq.s32.totalorder %s19, 0
    %p280 = por %p278, %p279
    %p281 = scmp.ne.s32.totalorder %s270, %s273
    %p282 = scmp.eq.s32.totalorder %s24, 1
    %p283 = por %p281, %p282
    %p284 = scmp.ne.s32.totalorder %s273, %s274
    %p285 = scmp.eq.s32.totalorder %s24, 0
    %p286 = por %p284, %p285
    %p287 = scmp.ne.s32.totalorder %s273, %s274
    %p288 = scmp.eq.s32.totalorder %s25, 1
    %p289 = por %p287, %p288
    %p291 = scmp.ne.s32.totalorder %s274, %s290
    %p292 = scmp.eq.s32.totalorder %s25, 0
    %p293 = por %p291, %p292
    %s295 = sadd.s32 %s294, 1
    %p298 = scmp.eq.s32.totalorder %s19, 1
    %p299 = scmp.ne.s32.totalorder %s294, %s296
    %p300 = scmp.eq.s32.totalorder %s19, 0
    %p301 = por %p299, %p300
    %p302 = scmp.ne.s32.totalorder %s294, %s296
    %p303 = scmp.eq.s32.totalorder %s24, 1
    %p304 = por %p302, %p303
    %p305 = scmp.ne.s32.totalorder %s296, %s297
    %p306 = scmp.eq.s32.totalorder %s24, 0
    %p307 = por %p305, %p306
    %p308 = scmp.ne.s32.totalorder %s296, %s297
    %p309 = scmp.eq.s32.totalorder %s25, 1
    %p310 = por %p308, %p309
    %p312 = scmp.ne.s32.totalorder %s297, %s311
    %p313 = scmp.eq.s32.totalorder %s25, 0
    %p314 = por %p312, %p313
    %s316 = sadd.s32 %s315, 1
    %p319 = scmp.eq.s32.totalorder %s19, 1
    %p320 = scmp.ne.s32.totalorder %s315, %s317
    %p321 = scmp.eq.s32.totalorder %s19, 0
    %p322 = por %p320, %p321
    %p323 = scmp.ne.s32.totalorder %s315, %s317
    %p324 = scmp.eq.s32.totalorder %s24, 1
    %p325 = por %p323, %p324
    %p326 = scmp.ne.s32.totalorder %s317, %s318
    %p327 = scmp.eq.s32.totalorder %s24, 0
    %p328 = por %p326, %p327
    %p329 = scmp.ne.s32.totalorder %s317, %s318
    %p330 = scmp.eq.s32.totalorder %s25, 1
    %p331 = por %p329, %p330
    %p333 = scmp.ne.s32.totalorder %s318, %s332
    %p334 = scmp.eq.s32.totalorder %s25, 0
    %p335 = por %p333, %p334
    %p336 = scmp.le.s32.totalorder 1, %s19
    %p337 = scmp.lt.s32.totalorder %s19, 3
    %p338 = pnand %p336, %p337
    %p339 = pneg %p338
    // Predicated region
    $region9: #{model_forward.8} parent=5 // pred_check
      _
    $region10: #{model_forward.8} parent=5 // pred_check_branch
      %341 = sbr.rel (%p338) target = $region12
    $region11: #{model_forward.8} parent=5 // pred_region
      %s342 = ssub.s32 %s19, 1
      // Predicated region
      $region13: #{model_forward.8} parent=11 // pred_check
        %p343 = pneg %p148
      $region14: #{model_forward.8} parent=11 // pred_check_branch
        %345 = sbr.rel (%p343) target = $region16
      $region15: #{model_forward.8} parent=11 // pred_region
        _
      $region16: #{model_forward.8} parent=11 // pred_fallthru
        _
      // Predicated region
      $region17: #{model_forward.8} parent=11 // pred_check
        %p346 = pneg %p169
      $region18: #{model_forward.8} parent=11 // pred_check_branch
        %348 = sbr.rel (%p346) target = $region20
      $region19: #{model_forward.8} parent=11 // pred_region
        _
      $region20: #{model_forward.8} parent=11 // pred_fallthru
        _
      // Predicated region
      $region21: #{model_forward.8} parent=11 // pred_check
        %p349 = pneg %p190
      $region22: #{model_forward.8} parent=11 // pred_check_branch
        %351 = sbr.rel (%p349) target = $region24
      $region23: #{model_forward.8} parent=11 // pred_region
        _
      $region24: #{model_forward.8} parent=11 // pred_fallthru
        _
      // Predicated region
      $region25: #{model_forward.8} parent=11 // pred_check
        %p352 = pneg %p211
      $region26: #{model_forward.8} parent=11 // pred_check_branch
        %354 = sbr.rel (%p352) target = $region28
      $region27: #{model_forward.8} parent=11 // pred_region
        _
      $region28: #{model_forward.8} parent=11 // pred_fallthru
        _
      // Predicated region
      $region29: #{model_forward.8} parent=11 // pred_check
        %p355 = pneg %p232
      $region30: #{model_forward.8} parent=11 // pred_check_branch
        %357 = sbr.rel (%p355) target = $region32
      $region31: #{model_forward.8} parent=11 // pred_region
        _
      $region32: #{model_forward.8} parent=11 // pred_fallthru
        _
    $region12: #{model_forward.8} parent=5 // pred_fallthru
      _
    %p358 = scmp.lt.s32.totalorder %s19, 2
    // Predicated region
    $region33: #{model_forward.8} parent=5 // pred_check
      %p359 = pneg %p358
    $region34: #{model_forward.8} parent=5 // pred_check_branch
      %361 = sbr.rel (%p359) target = $region36
    $region35: #{model_forward.8} parent=5 // pred_region
      // Predicated region
      $region37: #{model_forward.8} parent=35 // pred_check
        %p362 = pneg %p39
      $region38: #{model_forward.8} parent=35 // pred_check_branch
        %364 = sbr.rel (%p362) target = $region40
      $region39: #{model_forward.8} parent=35 // pred_region
        %s365 = smul.u32 4, %s19
        %p366 = scmp.lt.s32.totalorder %s365, 7
        %s367 = scalar_select %p366, %s365, 7
        %s368 = smul.addr %s367, 8
        %s369 = scalar_lea.vmem %s0, %s368
        %s370 = smul.u32 4, %s19
      $region40: #{model_forward.8} parent=35 // pred_fallthru
        _
      // Predicated region
      $region41: #{model_forward.8} parent=35 // pred_check
        %p371 = pneg %p65
      $region42: #{model_forward.8} parent=35 // pred_check_branch
        %373 = sbr.rel (%p371) target = $region44
      $region43: #{model_forward.8} parent=35 // pred_region
        %s374 = smul.u32 4, %s19
        %p375 = scmp.lt.s32.totalorder %s374, 7
        %s376 = scalar_select %p375, %s374, 7
        %s377 = smul.addr %s376, 8
        %s378 = scalar_lea.vmem %s1, %s377
        %s379 = smul.u32 4, %s19
      $region44: #{model_forward.8} parent=35 // pred_fallthru
        _
      // Predicated region
      $region45: #{model_forward.8} parent=35 // pred_check
        %p380 = pneg %p93
      $region46: #{model_forward.8} parent=35 // pred_check_branch
        %382 = sbr.rel (%p380) target = $region48
      $region47: #{model_forward.8} parent=35 // pred_region
        %s383 = ssub.s32 1, %s19
        %s384 = smul.u32 4, %s383
        %p385 = scmp.lt.s32.totalorder %s384, 7
        %s386 = scalar_select %p385, %s384, 7
        %s387 = smul.addr %s386, 8
        %s388 = scalar_lea.vmem %s2, %s387
        %s389 = ssub.s32 1, %s19
        %s390 = smul.u32 4, %s389
      $region48: #{model_forward.8} parent=35 // pred_fallthru
        _
      // Predicated region
      $region49: #{model_forward.8} parent=35 // pred_check
        %p391 = pneg %p121
      $region50: #{model_forward.8} parent=35 // pred_check_branch
        %393 = sbr.rel (%p391) target = $region52
      $region51: #{model_forward.8} parent=35 // pred_region
        %s394 = ssub.s32 1, %s19
        %s395 = smul.u32 4, %s394
        %p396 = scmp.lt.s32.totalorder %s395, 7
        %s397 = scalar_select %p396, %s395, 7
        %s398 = smul.addr %s397, 8
        %s399 = scalar_lea.vmem %s3, %s398
        %s400 = ssub.s32 1, %s19
        %s401 = smul.u32 4, %s400
      $region52: #{model_forward.8} parent=35 // pred_fallthru
        _
    $region36: #{model_forward.8} parent=5 // pred_fallthru
      _
    %p402 = scmp.le.s32.totalorder 1, %s19
    %p403 = scmp.lt.s32.totalorder %s19, 3
    %p404 = pnand %p402, %p403
    %p405 = pneg %p404
    // Predicated region
    $region53: #{model_forward.8} parent=5 // pred_check
      _
    $region54: #{model_forward.8} parent=5 // pred_check_branch
      %407 = sbr.rel (%p404) target = $region56
    $region55: #{model_forward.8} parent=5 // pred_region
      %s408 = ssub.s32 %s19, 1
      %s409 = smul.u32 4, %s24
      %p410 = scmp.lt.s32.totalorder %s409, 7
      %s411 = scalar_select %p410, %s409, 7
      %s412 = smul.addr %s411, 8
      %s413 = scalar_lea.vmem %s0, %s412
      %p414 = pneg %p45
      %p415 = pneg %p42
      %s416 = smul.u32 4, %s24
      %p417 = scmp.lt.s32.totalorder %s416, 7
      %s418 = scalar_select %p417, %s416, 7
      %s419 = smul.addr %s418, 8
      %s420 = scalar_lea.vmem %s1, %s419
      %p421 = pneg %p71
      %p422 = pneg %p68
      %s423 = ssub.s32 1, %s24
      %s424 = smul.u32 4, %s423
      %p425 = scmp.lt.s32.totalorder %s424, 7
      %s426 = scalar_select %p425, %s424, 7
      %s427 = smul.addr %s426, 8
      %s428 = scalar_lea.vmem %s2, %s427
      %p429 = pneg %p99
      %p430 = pneg %p96
      %s431 = ssub.s32 1, %s24
      %s432 = smul.u32 4, %s431
      %p433 = scmp.lt.s32.totalorder %s432, 7
      %s434 = scalar_select %p433, %s432, 7
      %s435 = smul.addr %s434, 8
      %s436 = scalar_lea.vmem %s3, %s435
      %p437 = pneg %p127
      %p438 = pneg %p124
      %p439 = pneg %p148
      %p440 = pneg %p145
      %p441 = pneg %p169
      %p442 = pneg %p166
      %p443 = pneg %p190
      %p444 = pneg %p187
      %p445 = pneg %p211
      %p446 = pneg %p208
      %p447 = pneg %p232
      %p448 = pneg %p229
      %p449 = pneg %p258
      %p450 = pneg %p255
      %s451 = smul.u32 4, %s24
      %p452 = scmp.lt.s32.totalorder %s451, 7
      %s453 = scalar_select %p452, %s451, 7
      %s454 = smul.addr %s453, 8
      %s455 = scalar_lea.vmem %s9, %s454
      %p456 = pneg %p286
      %p457 = pneg %p283
      %s458 = ssub.s32 1, %s24
      %s459 = smul.u32 4, %s458
      %p460 = scmp.lt.s32.totalorder %s459, 7
      %s461 = scalar_select %p460, %s459, 7
      %s462 = smul.addr %s461, 8
      %s463 = scalar_lea.vmem %s10, %s462
      %p464 = pneg %p307
      %p465 = pneg %p304
      %p466 = pneg %p328
      %p467 = pneg %p325
      %s468 = smul.u32 4, %s24
      %p469 = scmp.lt.s32.totalorder %s468, 7
      %s470 = scalar_select %p469, %s468, 7
      %s471 = smul.addr %s470, 8
      %s472 = scalar_lea.vmem %s0, %s471
      %s473 = smul.u32 4, %s24
      %s474 = smul.u32 4, %s24
      %p475 = scmp.lt.s32.totalorder %s474, 7
      %s476 = scalar_select %p475, %s474, 7
      %s477 = smul.addr %s476, 8
      %s478 = scalar_lea.vmem %s1, %s477
      %s479 = smul.u32 4, %s24
      %s480 = ssub.s32 1, %s24
      %s481 = smul.u32 4, %s480
      %p482 = scmp.lt.s32.totalorder %s481, 7
      %s483 = scalar_select %p482, %s481, 7
      %s484 = smul.addr %s483, 8
      %s485 = scalar_lea.vmem %s2, %s484
      %s486 = ssub.s32 1, %s24
      %s487 = smul.u32 4, %s486
      %s488 = ssub.s32 1, %s24
      %s489 = smul.u32 4, %s488
      %p490 = scmp.lt.s32.totalorder %s489, 7
      %s491 = scalar_select %p490, %s489, 7
      %s492 = smul.addr %s491, 8
      %s493 = scalar_lea.vmem %s3, %s492
      %s494 = ssub.s32 1, %s24
      %s495 = smul.u32 4, %s494
      %s496 = smul.u32 4, %s24
      %p497 = scmp.lt.s32.totalorder %s496, 7
      %s498 = scalar_select %p497, %s496, 7
      %s499 = smul.addr %s498, 8
      %s500 = scalar_lea.vmem %s9, %s499
      %s501 = smul.u32 4, %s24
      %s502 = ssub.s32 1, %s24
      %s503 = smul.u32 4, %s502
      %p504 = scmp.lt.s32.totalorder %s503, 7
      %s505 = scalar_select %p504, %s503, 7
      %s506 = smul.addr %s505, 8
      %s507 = scalar_lea.vmem %s10, %s506
      %s508 = ssub.s32 1, %s24
      %s509 = smul.u32 4, %s508
      %p511 = scmp.eq.s32.totalorder %s24, 0
      // Predicated region
      $region57: #{model_forward.8} parent=55 // pred_check
        %p512 = pneg %p511
      $region58: #{model_forward.8} parent=55 // pred_check_branch
        %514 = sbr.rel (%p512) target = $region60
      $region59: #{model_forward.8} parent=55 // pred_region
        %v515 = vld [vmem:[%s7] sm:$0xff]
        %v516 = vld [vmem:[%s7 + $0x8] sm:$0xff]
        %vm517 = vcmask 261120
        %518 = vst.msk [vmem:[%s11] sm:$0xff] %vm517, %v515
        %519 = vst.msk [vmem:[%s11 + $0x8] sm:$0xff] %vm517, %v516
        %v520 = vld [vmem:[%s8] sm:$0xff]
        %v521 = vld [vmem:[%s8 + $0x8] sm:$0xff]
        %522 = vst.msk [vmem:[%s12] sm:$0xff] %vm517, %v520
        %523 = vst.msk [vmem:[%s12 + $0x8] sm:$0xff] %vm517, %v521
      $region60: #{model_forward.8} parent=55 // pred_fallthru
        _
      %v524 = vld [vmem:[%s472] sm:$0xff]
      %v525 = vld [vmem:[%s472 + $0x8] sm:$0xff]
      %v526 = vld [vmem:[%s472 + $0x10] sm:$0xff]
      %v527 = vld [vmem:[%s472 + $0x18] sm:$0xff]
      %v528 = vpack.c.bf16 %v525, %v524
      %v529 = vpack.c.bf16 %v527, %v526
      %v530 = vld [vmem:[%s4] sm:$0xf]
      %v531 = vld [vmem:[%s4 + $0x4] sm:$0xf]
      %v532 = vld [vmem:[%s4 + $0x8] sm:$0xf]
      %v533 = vld [vmem:[%s4 + $0xc] sm:$0xf]
      %v534 = vld [vmem:[%s485] sm:$0xff]
      %v535 = vld [vmem:[%s485 + $0x8] sm:$0xff]
      %v536 = vld [vmem:[%s485 + $0x10] sm:$0xff]
      %v537 = vld [vmem:[%s485 + $0x18] sm:$0xff]
      %v538 = vpack.c.bf16 %v535, %v534
      %v539 = vpack.c.bf16 %v537, %v536
      %s540 = scalar_lea.vmem %s4, 32
      %v541 = vld [vmem:[%s540] sm:$0xf]
      %v542 = vld [vmem:[%s540 + $0x4] sm:$0xf]
      %v543 = vld [vmem:[%s540 + $0x8] sm:$0xf]
      %v544 = vld [vmem:[%s540 + $0xc] sm:$0xf]
      %v545 = vld [vmem:[%s478] sm:$0xff]
      %v546 = vld [vmem:[%s478 + $0x8] sm:$0xff]
      %v547 = vld [vmem:[%s478 + $0x10] sm:$0xff]
      %v548 = vld [vmem:[%s478 + $0x18] sm:$0xff]
      %v549 = vpack.c.bf16 %v546, %v545
      %v550 = vpack.c.bf16 %v548, %v547
      %s551 = scalar_lea.vmem %s4, 16
      %v552 = vld [vmem:[%s551] sm:$0xf]
      %v553 = vld [vmem:[%s551 + $0x4] sm:$0xf]
      %v554 = vld [vmem:[%s551 + $0x8] sm:$0xf]
      %v555 = vld [vmem:[%s551 + $0xc] sm:$0xf]
      %v560 = vunpack.c.l.b16 %v552
      %v561 = vunpack.c.l.b16 %v553
      %v562 = vunpack.c.l.b16 %v554
      %v563 = vunpack.c.l.b16 %v555
      %v564 = vpack.c.b16 %v561, %v560
      %v565 = vpack.c.b16 %v563, %v562
      %vm568 = vcmask 261120
      %v570 = vsel %vm568, %v549, 0
      %v573 = vsel %vm568, %v550, 0
      %575 = vmatprep.subr.bf16.mxu0 0
      %576 = vmatpush1.bf16.msra.mxu0 %v564
      %577 = vmatprep.subr.bf16.mxu0 0
      %578 = vmatpush1.bf16.msra.mxu0 %v565
      %579 = vmatprep.subr.bf16.mxu0 0
      %580 = vmatpush1.bf16.msra.mxu0 0
      %581 = vmatprep.subr.bf16.mxu0 0
      %582 = vmatpush1.bf16.msra.mxu0 0
      %583 = vmatprep.subr.bf16.mxu0 0
      %584 = vmatpush1.bf16.msra.mxu0 0
      %585 = vmatprep.subr.bf16.mxu0 0
      %586 = vmatpush1.bf16.msra.mxu0 0
      %587 = vmatprep.subr.bf16.mxu0 0
      %588 = vmatpush1.bf16.msra.mxu0 0
      %589 = vmatprep.subr.bf16.mxu0 0
      %590 = vmatpush1.bf16.msra.mxu0 0
      %591 = vmatprep.subr.bf16.mxu0 0
      %592 = vmatpush1.bf16.msra.mxu0 0
      %593 = vmatprep.subr.bf16.mxu0 0
      %594 = vmatpush1.bf16.msra.mxu0 0
      %595 = vmatprep.subr.bf16.mxu0 0
      %596 = vmatpush1.bf16.msra.mxu0 0
      %597 = vmatprep.subr.bf16.mxu0 0
      %598 = vmatpush1.bf16.msra.mxu0 0
      %599 = vmatprep.subr.bf16.mxu0 0
      %600 = vmatpush1.bf16.msra.mxu0 0
      %601 = vmatprep.subr.bf16.mxu0 0
      %602 = vmatpush1.bf16.msra.mxu0 0
      %603 = vmatprep.subr.bf16.mxu0 0
      %604 = vmatpush1.bf16.msra.mxu0 0
      %605 = vmatprep.subr.bf16.mxu0 0
      %606 = vmatpush1.bf16.msra.mxu0 0
      %607 = vmatprep.mubr.bf16.mxu0 0
      %608 = vmatmul.mubr.bf16.gmra.mrb[0].mxu0 %v570
      %v609 = vpop.f32.mrb[0].mxu0
      %v610 = vadd.f32 0.0, %v609
      %v611 = vpop.f32.mrb[0].mxu0
      %v612 = vpop.f32.mrb[0].mxu0
      %v613 = vadd.f32 0.0, %v612
      %v614 = vpop.f32.mrb[0].mxu0
      %615 = vmatprep.mubr.bf16.mxu0 0
      %616 = vmatmul.mubr.bf16.gmra.mrb[0].mxu0 %v573
      %v617 = vpop.f32.mrb[0].mxu0
      %v618 = vadd.f32 0.0, %v617
      %v619 = vpop.f32.mrb[0].mxu0
      %v620 = vpop.f32.mrb[0].mxu0
      %v621 = vadd.f32 0.0, %v620
      %v622 = vpop.f32.mrb[0].mxu0
      %623 = vdwg.mxu0
      %v628 = vunpack.c.l.b16 %v530
      %v629 = vunpack.c.l.b16 %v531
      %v630 = vunpack.c.l.b16 %v532
      %v631 = vunpack.c.l.b16 %v533
      %v632 = vpack.c.b16 %v629, %v628
      %v633 = vpack.c.b16 %v631, %v630
      %v637 = vsel %vm568, %v528, 0
      %v640 = vsel %vm568, %v529, 0
      %642 = vmatprep.subr.bf16.mxu0 0
      %643 = vmatpush1.bf16.msra.mxu0 %v632
      %644 = vmatprep.subr.bf16.mxu0 0
      %645 = vmatpush1.bf16.msra.mxu0 %v633
      %646 = vmatprep.subr.bf16.mxu0 0
      %647 = vmatpush1.bf16.msra.mxu0 0
      %648 = vmatprep.subr.bf16.mxu0 0
      %649 = vmatpush1.bf16.msra.mxu0 0
      %650 = vmatprep.subr.bf16.mxu0 0
      %651 = vmatpush1.bf16.msra.mxu0 0
      %652 = vmatprep.subr.bf16.mxu0 0
      %653 = vmatpush1.bf16.msra.mxu0 0
      %654 = vmatprep.subr.bf16.mxu0 0
      %655 = vmatpush1.bf16.msra.mxu0 0
      %656 = vmatprep.subr.bf16.mxu0 0
      %657 = vmatpush1.bf16.msra.mxu0 0
      %658 = vmatprep.subr.bf16.mxu0 0
      %659 = vmatpush1.bf16.msra.mxu0 0
      %660 = vmatprep.subr.bf16.mxu0 0
      %661 = vmatpush1.bf16.msra.mxu0 0
      %662 = vmatprep.subr.bf16.mxu0 0
      %663 = vmatpush1.bf16.msra.mxu0 0
      %664 = vmatprep.subr.bf16.mxu0 0
      %665 = vmatpush1.bf16.msra.mxu0 0
      %666 = vmatprep.subr.bf16.mxu0 0
      %667 = vmatpush1.bf16.msra.mxu0 0
      %668 = vmatprep.subr.bf16.mxu0 0
      %669 = vmatpush1.bf16.msra.mxu0 0
      %670 = vmatprep.subr.bf16.mxu0 0
      %671 = vmatpush1.bf16.msra.mxu0 0
      %672 = vmatprep.subr.bf16.mxu0 0
      %673 = vmatpush1.bf16.msra.mxu0 0
      %674 = vmatprep.mubr.bf16.mxu0 0
      %675 = vmatmul.mubr.bf16.gmra.mrb[0].mxu0 %v637
      %v676 = vpop.f32.mrb[0].mxu0
      %v677 = vadd.f32 %v610, %v676
      %v678 = vpop.f32.mrb[0].mxu0
      %v679 = vpop.f32.mrb[0].mxu0
      %v680 = vadd.f32 %v613, %v679
      %v681 = vpop.f32.mrb[0].mxu0
      %682 = vmatprep.mubr.bf16.mxu0 0
      %683 = vmatmul.mubr.bf16.gmra.mrb[0].mxu0 %v640
      %v684 = vpop.f32.mrb[0].mxu0
      %v685 = vadd.f32 %v618, %v684
      %v686 = vpop.f32.mrb[0].mxu0
      %v687 = vpop.f32.mrb[0].mxu0
      %v688 = vadd.f32 %v621, %v687
      %v689 = vpop.f32.mrb[0].mxu0
      %690 = vdwg.mxu0
      %v691 = vld [vmem:[%s493] sm:$0xff]
      %v692 = vld [vmem:[%s493 + $0x8] sm:$0xff]
      %v693 = vld [vmem:[%s493 + $0x10] sm:$0xff]
      %v694 = vld [vmem:[%s493 + $0x18] sm:$0xff]
      %v695 = vpack.c.bf16 %v692, %v691
      %v696 = vpack.c.bf16 %v694, %v693
      %s697 = scalar_lea.vmem %s4, 48
      %v698 = vld [vmem:[%s697] sm:$0xf]
      %v699 = vld [vmem:[%s697 + $0x4] sm:$0xf]
      %v700 = vld [vmem:[%s697 + $0x8] sm:$0xf]
      %v701 = vld [vmem:[%s697 + $0xc] sm:$0xf]
      %v706 = vunpack.c.l.b16 %v698
      %v707 = vunpack.c.l.b16 %v699
      %v708 = vunpack.c.l.b16 %v700
      %v709 = vunpack.c.l.b16 %v701
      %v710 = vpack.c.b16 %v707, %v706
      %v711 = vpack.c.b16 %v709, %v708
      %v715 = vsel %vm568, %v695, 0
      %v718 = vsel %vm568, %v696, 0
      %720 = vmatprep.subr.bf16.mxu0 0
      %721 = vmatpush1.bf16.msra.mxu0 %v710
      %722 = vmatprep.subr.bf16.mxu0 0
      %723 = vmatpush1.bf16.msra.mxu0 %v711
      %724 = vmatprep.subr.bf16.mxu0 0
      %725 = vmatpush1.bf16.msra.mxu0 0
      %726 = vmatprep.subr.bf16.mxu0 0
      %727 = vmatpush1.bf16.msra.mxu0 0
      %728 = vmatprep.subr.bf16.mxu0 0
      %729 = vmatpush1.bf16.msra.mxu0 0
      %730 = vmatprep.subr.bf16.mxu0 0
      %731 = vmatpush1.bf16.msra.mxu0 0
      %732 = vmatprep.subr.bf16.mxu0 0
      %733 = vmatpush1.bf16.msra.mxu0 0
      %734 = vmatprep.subr.bf16.mxu0 0
      %735 = vmatpush1.bf16.msra.mxu0 0
      %736 = vmatprep.subr.bf16.mxu0 0
      %737 = vmatpush1.bf16.msra.mxu0 0
      %738 = vmatprep.subr.bf16.mxu0 0
      %739 = vmatpush1.bf16.msra.mxu0 0
      %740 = vmatprep.subr.bf16.mxu0 0
      %741 = vmatpush1.bf16.msra.mxu0 0
      %742 = vmatprep.subr.bf16.mxu0 0
      %743 = vmatpush1.bf16.msra.mxu0 0
      %744 = vmatprep.subr.bf16.mxu0 0
      %745 = vmatpush1.bf16.msra.mxu0 0
      %746 = vmatprep.subr.bf16.mxu0 0
      %747 = vmatpush1.bf16.msra.mxu0 0
      %748 = vmatprep.subr.bf16.mxu0 0
      %749 = vmatpush1.bf16.msra.mxu0 0
      %750 = vmatprep.subr.bf16.mxu0 0
      %751 = vmatpush1.bf16.msra.mxu0 0
      %752 = vmatprep.mubr.bf16.mxu0 0
      %753 = vmatmul.mubr.bf16.gmra.mrb[0].mxu0 %v715
      %v754 = vpop.f32.mrb[0].mxu0
      %v755 = vadd.f32 0.0, %v754
      %v756 = vpop.f32.mrb[0].mxu0
      %v757 = vpop.f32.mrb[0].mxu0
      %v758 = vadd.f32 0.0, %v757
      %v759 = vpop.f32.mrb[0].mxu0
      %760 = vmatprep.mubr.bf16.mxu0 0
      %761 = vmatmul.mubr.bf16.gmra.mrb[0].mxu0 %v718
      %v762 = vpop.f32.mrb[0].mxu0
      %v763 = vadd.f32 0.0, %v762
      %v764 = vpop.f32.mrb[0].mxu0
      %v765 = vpop.f32.mrb[0].mxu0
      %v766 = vadd.f32 0.0, %v765
      %v767 = vpop.f32.mrb[0].mxu0
      %768 = vdwg.mxu0
      %v773 = vunpack.c.l.b16 %v541
      %v774 = vunpack.c.l.b16 %v542
      %v775 = vunpack.c.l.b16 %v543
      %v776 = vunpack.c.l.b16 %v544
      %v777 = vpack.c.b16 %v774, %v773
      %v778 = vpack.c.b16 %v776, %v775
      %v782 = vsel %vm568, %v538, 0
      %v785 = vsel %vm568, %v539, 0
      %787 = vmatprep.subr.bf16.mxu0 0
      %788 = vmatpush1.bf16.msra.mxu0 %v777
      %789 = vmatprep.subr.bf16.mxu0 0
      %790 = vmatpush1.bf16.msra.mxu0 %v778
      %791 = vmatprep.subr.bf16.mxu0 0
      %792 = vmatpush1.bf16.msra.mxu0 0
      %793 = vmatprep.subr.bf16.mxu0 0
      %794 = vmatpush1.bf16.msra.mxu0 0
      %795 = vmatprep.subr.bf16.mxu0 0
      %796 = vmatpush1.bf16.msra.mxu0 0
      %797 = vmatprep.subr.bf16.mxu0 0
      %798 = vmatpush1.bf16.msra.mxu0 0
      %799 = vmatprep.subr.bf16.mxu0 0
      %800 = vmatpush1.bf16.msra.mxu0 0
      %801 = vmatprep.subr.bf16.mxu0 0
      %802 = vmatpush1.bf16.msra.mxu0 0
      %803 = vmatprep.subr.bf16.mxu0 0
      %804 = vmatpush1.bf16.msra.mxu0 0
      %805 = vmatprep.subr.bf16.mxu0 0
      %806 = vmatpush1.bf16.msra.mxu0 0
      %807 = vmatprep.subr.bf16.mxu0 0
      %808 = vmatpush1.bf16.msra.mxu0 0
      %809 = vmatprep.subr.bf16.mxu0 0
      %810 = vmatpush1.bf16.msra.mxu0 0
      %811 = vmatprep.subr.bf16.mxu0 0
      %812 = vmatpush1.bf16.msra.mxu0 0
      %813 = vmatprep.subr.bf16.mxu0 0
      %814 = vmatpush1.bf16.msra.mxu0 0
      %815 = vmatprep.subr.bf16.mxu0 0
      %816 = vmatpush1.bf16.msra.mxu0 0
      %817 = vmatprep.subr.bf16.mxu0 0
      %818 = vmatpush1.bf16.msra.mxu0 0
      %819 = vmatprep.mubr.bf16.mxu0 0
      %820 = vmatmul.mubr.bf16.gmra.mrb[0].mxu0 %v782
      %v821 = vpop.f32.mrb[0].mxu0
      %v822 = vadd.f32 %v755, %v821
      %v823 = vpop.f32.mrb[0].mxu0
      %v824 = vpop.f32.mrb[0].mxu0
      %v825 = vadd.f32 %v758, %v824
      %v826 = vpop.f32.mrb[0].mxu0
      %827 = vmatprep.mubr.bf16.mxu0 0
      %828 = vmatmul.mubr.bf16.gmra.mrb[0].mxu0 %v785
      %v829 = vpop.f32.mrb[0].mxu0
      %v830 = vadd.f32 %v763, %v829
      %v831 = vpop.f32.mrb[0].mxu0
      %v832 = vpop.f32.mrb[0].mxu0
      %v833 = vadd.f32 %v766, %v832
      %v834 = vpop.f32.mrb[0].mxu0
      %835 = vdwg.mxu0
      %v836 = vld [vmem:[%s6] sm:$0x1]
      %v838 = vlaneseq
      %v839 = vshrl.u32 %v838, 7
      %v840 = vsub.s32 0, %v839
      %v841 = vrot.slane %v836, %v840
      %v843 = vadd.f32 %v677, %v841
      %v844 = vadd.f32 %v680, %v841
      %v845 = vadd.f32 %v685, %v841
      %v846 = vadd.f32 %v688, %v841
      %847 = vst [vmem:[#allocation2] sm:$0xff] %v843
      %848 = vst [vmem:[#allocation2 + $0x8] sm:$0xff] %v844
      %849 = vst [vmem:[#allocation2 + $0x10] sm:$0xff] %v845
      %850 = vst [vmem:[#allocation2 + $0x18] sm:$0xff] %v846
      %s851 = scalar_lea.vmem %s6, 1
      %v852 = vld [vmem:[%s851] sm:$0x1]
      %v854 = vlaneseq
      %v855 = vshrl.u32 %v854, 7
      %v856 = vsub.s32 0, %v855
      %v857 = vrot.slane %v852, %v856
      %v859 = vadd.f32 %v822, %v857
      %v860 = vadd.f32 %v825, %v857
      %v861 = vadd.f32 %v830, %v857
      %v862 = vadd.f32 %v833, %v857
      %s863 = scalar_lea.vmem [#allocation2], 32
      %864 = vst [vmem:[%s863] sm:$0xff] %v859
      %865 = vst [vmem:[%s863 + $0x8] sm:$0xff] %v860
      %866 = vst [vmem:[%s863 + $0x10] sm:$0xff] %v861
      %867 = vst [vmem:[%s863 + $0x18] sm:$0xff] %v862
      %v868 = vld [vmem:[%s5] sm:$0xf]
      %v869 = vld [vmem:[%s5 + $0x4] sm:$0xf]
      %v870 = vld [vmem:[%s5 + $0x8] sm:$0xf]
      %v871 = vld [vmem:[%s5 + $0xc] sm:$0xf]
      %v872 = vld [vmem:[%s5 + $0x10] sm:$0xf]
      %v873 = vld [vmem:[%s5 + $0x14] sm:$0xf]
      %v874 = vld [vmem:[%s5 + $0x18] sm:$0xf]
      %v875 = vld [vmem:[%s5 + $0x1c] sm:$0xf]
      %v876 = vld [vmem:[%s11] sm:$0xff]
      %v877 = vld [vmem:[%s11 + $0x8] sm:$0xff]
      %v878 = vld [vmem:[%s12] sm:$0xff]
      %v879 = vld [vmem:[%s12 + $0x8] sm:$0xff]
      %v880 = vld [vmem:[#allocation2] sm:$0xff]
      %v881 = vpack.c.bf16 %v876, %v876
      %v886 = vunpack.c.l.b16 %v868
      %v887 = vunpack.c.l.b16 %v869
      %v888 = vunpack.c.l.b16 %v870
      %v889 = vunpack.c.l.b16 %v871
      %v890 = vpack.c.b16 %v887, %v886
      %v891 = vpack.c.b16 %v889, %v888
      %v895 = vsel %vm568, %v881, 0
      %897 = vmatprep.subr.bf16.mxu0 0
      %898 = vmatpush1.bf16.msra.mxu0 %v890
      %899 = vmatprep.subr.bf16.mxu0 0
      %900 = vmatpush1.bf16.msra.mxu0 %v891
      %901 = vmatprep.subr.bf16.mxu0 0
      %902 = vmatpush1.bf16.msra.mxu0 0
      %903 = vmatprep.subr.bf16.mxu0 0
      %904 = vmatpush1.bf16.msra.mxu0 0
      %905 = vmatprep.subr.bf16.mxu0 0
      %906 = vmatpush1.bf16.msra.mxu0 0
      %907 = vmatprep.subr.bf16.mxu0 0
      %908 = vmatpush1.bf16.msra.mxu0 0
      %909 = vmatprep.subr.bf16.mxu0 0
      %910 = vmatpush1.bf16.msra.mxu0 0
      %911 = vmatprep.subr.bf16.mxu0 0
      %912 = vmatpush1.bf16.msra.mxu0 0
      %913 = vmatprep.subr.bf16.mxu0 0
      %914 = vmatpush1.bf16.msra.mxu0 0
      %915 = vmatprep.subr.bf16.mxu0 0
      %916 = vmatpush1.bf16.msra.mxu0 0
      %917 = vmatprep.subr.bf16.mxu0 0
      %918 = vmatpush1.bf16.msra.mxu0 0
      %919 = vmatprep.subr.bf16.mxu0 0
      %920 = vmatpush1.bf16.msra.mxu0 0
      %921 = vmatprep.subr.bf16.mxu0 0
      %922 = vmatpush1.bf16.msra.mxu0 0
      %923 = vmatprep.subr.bf16.mxu0 0
      %924 = vmatpush1.bf16.msra.mxu0 0
      %925 = vmatprep.subr.bf16.mxu0 0
      %926 = vmatpush1.bf16.msra.mxu0 0
      %927 = vmatprep.subr.bf16.mxu0 0
      %928 = vmatpush1.bf16.msra.mxu0 0
      %929 = vmatprep.mubr.bf16.mxu0 0
      %930 = vmatmul.mubr.bf16.gmra.mrb[0].mxu0 %v895
      %v931 = vpop.f32.mrb[0].mxu0
      %v932 = vadd.f32 0.0, %v931
      %v933 = vpop.f32.mrb[0].mxu0
      %v934 = vpop.f32.mrb[0].mxu0
      %v935 = vpop.f32.mrb[0].mxu0
      %936 = vdwg.mxu0
      %v937 = vadd.f32 %v880, %v932
      %s938 = sadd.s32 24, 32
      %s939 = scalar_lea.vmem [#allocation2], %s938
      %v940 = vld [vmem:[%s939] sm:$0xff]
      %v941 = vpack.c.bf16 %v877, %v877
      %v946 = vunpack.c.l.b16 %v872
      %v947 = vunpack.c.l.b16 %v873
      %v948 = vunpack.c.l.b16 %v874
      %v949 = vunpack.c.l.b16 %v875
      %v950 = vpack.c.b16 %v947, %v946
      %v951 = vpack.c.b16 %v949, %v948
      %v955 = vsel %vm568, %v941, 0
      %957 = vmatprep.subr.bf16.mxu0 0
      %958 = vmatpush1.bf16.msra.mxu0 %v950
      %959 = vmatprep.subr.bf16.mxu0 0
      %960 = vmatpush1.bf16.msra.mxu0 %v951
      %961 = vmatprep.subr.bf16.mxu0 0
      %962 = vmatpush1.bf16.msra.mxu0 0
      %963 = vmatprep.subr.bf16.mxu0 0
      %964 = vmatpush1.bf16.msra.mxu0 0
      %965 = vmatprep.subr.bf16.mxu0 0
      %966 = vmatpush1.bf16.msra.mxu0 0
      %967 = vmatprep.subr.bf16.mxu0 0
      %968 = vmatpush1.bf16.msra.mxu0 0
      %969 = vmatprep.subr.bf16.mxu0 0
      %970 = vmatpush1.bf16.msra.mxu0 0
      %971 = vmatprep.subr.bf16.mxu0 0
      %972 = vmatpush1.bf16.msra.mxu0 0
      %973 = vmatprep.subr.bf16.mxu0 0
      %974 = vmatpush1.bf16.msra.mxu0 0
      %975 = vmatprep.subr.bf16.mxu0 0
      %976 = vmatpush1.bf16.msra.mxu0 0
      %977 = vmatprep.subr.bf16.mxu0 0
      %978 = vmatpush1.bf16.msra.mxu0 0
      %979 = vmatprep.subr.bf16.mxu0 0
      %980 = vmatpush1.bf16.msra.mxu0 0
      %981 = vmatprep.subr.bf16.mxu0 0
      %982 = vmatpush1.bf16.msra.mxu0 0
      %983 = vmatprep.subr.bf16.mxu0 0
      %984 = vmatpush1.bf16.msra.mxu0 0
      %985 = vmatprep.subr.bf16.mxu0 0
      %986 = vmatpush1.bf16.msra.mxu0 0
      %987 = vmatprep.subr.bf16.mxu0 0
      %988 = vmatpush1.bf16.msra.mxu0 0
      %989 = vmatprep.mubr.bf16.mxu0 0
      %990 = vmatmul.mubr.bf16.gmra.mrb[0].mxu0 %v955
      %v991 = vpop.f32.mrb[0].mxu0
      %v992 = vadd.f32 0.0, %v991
      %v993 = vpop.f32.mrb[0].mxu0
      %v994 = vpop.f32.mrb[0].mxu0
      %v995 = vpop.f32.mrb[0].mxu0
      %996 = vdwg.mxu0
      %v997 = vadd.f32 %v940, %v992
      %v998 = vxor.u32 %v937, 2147483648
      %v999 = vxor.u32 %v997, 2147483648
      %v1000 = vmul.f32 %v998, 1.442695
      %v1001 = vpow.pop %v1000
      %v1002 = vmul.f32 %v999, 1.442695
      %v1003 = vpow.pop %v1002
      %v1004 = vadd.f32 %v1001, 1.0
      %v1005 = vadd.f32 %v1003, 1.0
      %v1006 = vrcp.pop %v1004
      %v1007 = vmul.f32 1.0, %v1006
      %v1008 = vrcp.pop %v1005
      %v1009 = vmul.f32 1.0, %v1008
      %v1010 = vtanh.pop %v937
      %v1011 = vtanh.pop %v997
      %1014 = vrot.lane.b32.xlu0 %v878, 32
      %v1015 = vpop.permute.xlu0 %1014
      %1016 = vrot.lane.b32.xlu0 %v879, 32
      %v1017 = vpop.permute.xlu0 %1016
      %v1020 = vmul.f32 %v1007, %v1015
      %v1021 = vmul.f32 %v1009, %v1017
      %1024 = vrot.lane.b32.xlu0 %v1010, 32
      %v1025 = vpop.permute.xlu0 %1024
      %1026 = vrot.lane.b32.xlu0 %v1011, 32
      %v1027 = vpop.permute.xlu0 %1026
      %v1030 = vmul.f32 %v1007, %v1025
      %v1031 = vmul.f32 %v1009, %v1027
      %1034 = vrot.lane.b32.xlu0 %v1030, 32
      %v1035 = vpop.permute.xlu0 %1034
      %1036 = vrot.lane.b32.xlu0 %v1031, 32
      %v1037 = vpop.permute.xlu0 %1036
      %v1040 = vadd.f32 %v1020, %v1035
      %v1041 = vadd.f32 %v1021, %v1037
      %v1042 = vtanh.pop %v1040
      %v1043 = vtanh.pop %v1041
      %1046 = vrot.lane.b32.xlu0 %v1042, 32
      %v1047 = vpop.permute.xlu0 %1046
      %1048 = vrot.lane.b32.xlu0 %v1043, 32
      %v1049 = vpop.permute.xlu0 %1048
      %v1052 = vmul.f32 %v1007, %v1047
      %v1053 = vmul.f32 %v1009, %v1049
      %1055 = vrot.lane.b32.xlu0 %v1052, 64
      %v1056 = vpop.permute.xlu0 %1055
      %1058 = vst.msk [vmem:[%s500] sm:$0xff] %vm568, %v1056
      %1060 = vrot.lane.b32.xlu0 %v1053, 64
      %v1061 = vpop.permute.xlu0 %1060
      %s1063 = scalar_lea.vmem %s507, 24
      %1064 = vst.msk [vmem:[%s1063] sm:$0xff] %vm568, %v1061
      %s1065 = scalar_lea.vmem [#allocation2], 8
      %v1066 = vld [vmem:[%s1065] sm:$0xff]
      %v1067 = vpack.c.bf16 %v1052, %v1052
      %1069 = vrot.lane.b32.xlu0 %v1067, 64
      %v1070 = vpop.permute.xlu0 %1069
      %v1072 = vsel %vm568, %v1070, 0
      %1074 = vmatprep.subr.bf16.mxu0 0
      %1075 = vmatpush1.bf16.msra.mxu0 %v890
      %1076 = vmatprep.subr.bf16.mxu0 0
      %1077 = vmatpush1.bf16.msra.mxu0 %v891
      %1078 = vmatprep.subr.bf16.mxu0 0
      %1079 = vmatpush1.bf16.msra.mxu0 0
      %1080 = vmatprep.subr.bf16.mxu0 0
      %1081 = vmatpush1.bf16.msra.mxu0 0
      %1082 = vmatprep.subr.bf16.mxu0 0
      %1083 = vmatpush1.bf16.msra.mxu0 0
      %1084 = vmatprep.subr.bf16.mxu0 0
      %1085 = vmatpush1.bf16.msra.mxu0 0
      %1086 = vmatprep.subr.bf16.mxu0 0
      %1087 = vmatpush1.bf16.msra.mxu0 0
      %1088 = vmatprep.subr.bf16.mxu0 0
      %1089 = vmatpush1.bf16.msra.mxu0 0
      %1090 = vmatprep.subr.bf16.mxu0 0
      %1091 = vmatpush1.bf16.msra.mxu0 0
      %1092 = vmatprep.subr.bf16.mxu0 0
      %1093 = vmatpush1.bf16.msra.mxu0 0
      %1094 = vmatprep.subr.bf16.mxu0 0
      %1095 = vmatpush1.bf16.msra.mxu0 0
      %1096 = vmatprep.subr.bf16.mxu0 0
      %1097 = vmatpush1.bf16.msra.mxu0 0
      %1098 = vmatprep.subr.bf16.mxu0 0
      %1099 = vmatpush1.bf16.msra.mxu0 0
      %1100 = vmatprep.subr.bf16.mxu0 0
      %1101 = vmatpush1.bf16.msra.mxu0 0
      %1102 = vmatprep.subr.bf16.mxu0 0
      %1103 = vmatpush1.bf16.msra.mxu0 0
      %1104 = vmatprep.subr.bf16.mxu0 0
      %1105 = vmatpush1.bf16.msra.mxu0 0
      %1106 = vmatprep.mubr.bf16.mxu0 0
      %1107 = vmatmul.mubr.bf16.gmra.mrb[0].mxu0 %v1072
      %v1108 = vpop.f32.mrb[0].mxu0
      %v1109 = vadd.f32 0.0, %v1108
      %v1110 = vpop.f32.mrb[0].mxu0
      %v1111 = vpop.f32.mrb[0].mxu0
      %v1112 = vpop.f32.mrb[0].mxu0
      %1113 = vdwg.mxu0
      %v1114 = vadd.f32 %v1066, %v1109
      %s1115 = sadd.s32 16, 32
      %s1116 = scalar_lea.vmem [#allocation2], %s1115
      %v1117 = vld [vmem:[%s1116] sm:$0xff]
      %v1118 = vpack.c.bf16 %v1053, %v1053
      %1120 = vrot.lane.b32.xlu0 %v1118, 64
      %v1121 = vpop.permute.xlu0 %1120
      %v1123 = vsel %vm568, %v1121, 0
      %1125 = vmatprep.subr.bf16.mxu0 0
      %1126 = vmatpush1.bf16.msra.mxu0 %v950
      %1127 = vmatprep.subr.bf16.mxu0 0
      %1128 = vmatpush1.bf16.msra.mxu0 %v951
      %1129 = vmatprep.subr.bf16.mxu0 0
      %1130 = vmatpush1.bf16.msra.mxu0 0
      %1131 = vmatprep.subr.bf16.mxu0 0
      %1132 = vmatpush1.bf16.msra.mxu0 0
      %1133 = vmatprep.subr.bf16.mxu0 0
      %1134 = vmatpush1.bf16.msra.mxu0 0
      %1135 = vmatprep.subr.bf16.mxu0 0
      %1136 = vmatpush1.bf16.msra.mxu0 0
      %1137 = vmatprep.subr.bf16.mxu0 0
      %1138 = vmatpush1.bf16.msra.mxu0 0
      %1139 = vmatprep.subr.bf16.mxu0 0
      %1140 = vmatpush1.bf16.msra.mxu0 0
      %1141 = vmatprep.subr.bf16.mxu0 0
      %1142 = vmatpush1.bf16.msra.mxu0 0
      %1143 = vmatprep.subr.bf16.mxu0 0
      %1144 = vmatpush1.bf16.msra.mxu0 0
      %1145 = vmatprep.subr.bf16.mxu0 0
      %1146 = vmatpush1.bf16.msra.mxu0 0
      %1147 = vmatprep.subr.bf16.mxu0 0
      %1148 = vmatpush1.bf16.msra.mxu0 0
      %1149 = vmatprep.subr.bf16.mxu0 0
      %1150 = vmatpush1.bf16.msra.mxu0 0
      %1151 = vmatprep.subr.bf16.mxu0 0
      %1152 = vmatpush1.bf16.msra.mxu0 0
      %1153 = vmatprep.subr.bf16.mxu0 0
      %1154 = vmatpush1.bf16.msra.mxu0 0
      %1155 = vmatprep.subr.bf16.mxu0 0
      %1156 = vmatpush1.bf16.msra.mxu0 0
      %1157 = vmatprep.mubr.bf16.mxu0 0
      %1158 = vmatmul.mubr.bf16.gmra.mrb[0].mxu0 %v1123
      %v1159 = vpop.f32.mrb[0].mxu0
      %v1160 = vadd.f32 0.0, %v1159
      %v1161 = vpop.f32.mrb[0].mxu0
      %v1162 = vpop.f32.mrb[0].mxu0
      %v1163 = vpop.f32.mrb[0].mxu0
      %1164 = vdwg.mxu0
      %v1165 = vadd.f32 %v1117, %v1160
      %v1166 = vxor.u32 %v1114, 2147483648
      %v1167 = vxor.u32 %v1165, 2147483648
      %v1168 = vmul.f32 %v1166, 1.442695
      %v1169 = vpow.pop %v1168
      %v1170 = vmul.f32 %v1167, 1.442695
      %v1171 = vpow.pop %v1170
      %v1172 = vadd.f32 %v1169, 1.0
      %v1173 = vadd.f32 %v1171, 1.0
      %v1174 = vrcp.pop %v1172
      %v1175 = vmul.f32 1.0, %v1174
      %v1176 = vrcp.pop %v1173
      %v1177 = vmul.f32 1.0, %v1176
      %v1178 = vtanh.pop %v1114
      %v1179 = vtanh.pop %v1165
      %v1180 = vmul.f32 %v1175, %v1040
      %v1181 = vmul.f32 %v1177, %v1041
      %1184 = vrot.lane.b32.xlu0 %v1178, 32
      %v1185 = vpop.permute.xlu0 %1184
      %1186 = vrot.lane.b32.xlu0 %v1179, 32
      %v1187 = vpop.permute.xlu0 %1186
      %v1190 = vmul.f32 %v1175, %v1185
      %v1191 = vmul.f32 %v1177, %v1187
      %1194 = vrot.lane.b32.xlu0 %v1190, 32
      %v1195 = vpop.permute.xlu0 %1194
      %1196 = vrot.lane.b32.xlu0 %v1191, 32
      %v1197 = vpop.permute.xlu0 %1196
      %v1200 = vadd.f32 %v1180, %v1195
      %v1201 = vadd.f32 %v1181, %v1197
      %v1202 = vtanh.pop %v1200
      %v1203 = vtanh.pop %v1201
      %1206 = vrot.lane.b32.xlu0 %v1202, 32
      %v1207 = vpop.permute.xlu0 %1206
      %1208 = vrot.lane.b32.xlu0 %v1203, 32
      %v1209 = vpop.permute.xlu0 %1208
      %v1212 = vmul.f32 %v1175, %v1207
      %v1213 = vmul.f32 %v1177, %v1209
      %1215 = vrot.lane.b32.xlu0 %v1212, 64
      %v1216 = vpop.permute.xlu0 %1215
      %s1218 = scalar_lea.vmem %s500, 8
      %1219 = vst.msk [vmem:[%s1218] sm:$0xff] %vm568, %v1216
      %1221 = vrot.lane.b32.xlu0 %v1213, 64
      %v1222 = vpop.permute.xlu0 %1221
      %s1224 = scalar_lea.vmem %s507, 16
      %1225 = vst.msk [vmem:[%s1224] sm:$0xff] %vm568, %v1222
      %s1226 = scalar_lea.vmem [#allocation2], 16
      %v1227 = vld [vmem:[%s1226] sm:$0xff]
      %v1228 = vpack.c.bf16 %v1212, %v1212
      %1230 = vrot.lane.b32.xlu0 %v1228, 64
      %v1231 = vpop.permute.xlu0 %1230
      %v1233 = vsel %vm568, %v1231, 0
      %1235 = vmatprep.subr.bf16.mxu0 0
      %1236 = vmatpush1.bf16.msra.mxu0 %v890
      %1237 = vmatprep.subr.bf16.mxu0 0
      %1238 = vmatpush1.bf16.msra.mxu0 %v891
      %1239 = vmatprep.subr.bf16.mxu0 0
      %1240 = vmatpush1.bf16.msra.mxu0 0
      %1241 = vmatprep.subr.bf16.mxu0 0
      %1242 = vmatpush1.bf16.msra.mxu0 0
      %1243 = vmatprep.subr.bf16.mxu0 0
      %1244 = vmatpush1.bf16.msra.mxu0 0
      %1245 = vmatprep.subr.bf16.mxu0 0
      %1246 = vmatpush1.bf16.msra.mxu0 0
      %1247 = vmatprep.subr.bf16.mxu0 0
      %1248 = vmatpush1.bf16.msra.mxu0 0
      %1249 = vmatprep.subr.bf16.mxu0 0
      %1250 = vmatpush1.bf16.msra.mxu0 0
      %1251 = vmatprep.subr.bf16.mxu0 0
      %1252 = vmatpush1.bf16.msra.mxu0 0
      %1253 = vmatprep.subr.bf16.mxu0 0
      %1254 = vmatpush1.bf16.msra.mxu0 0
      %1255 = vmatprep.subr.bf16.mxu0 0
      %1256 = vmatpush1.bf16.msra.mxu0 0
      %1257 = vmatprep.subr.bf16.mxu0 0
      %1258 = vmatpush1.bf16.msra.mxu0 0
      %1259 = vmatprep.subr.bf16.mxu0 0
      %1260 = vmatpush1.bf16.msra.mxu0 0
      %1261 = vmatprep.subr.bf16.mxu0 0
      %1262 = vmatpush1.bf16.msra.mxu0 0
      %1263 = vmatprep.subr.bf16.mxu0 0
      %1264 = vmatpush1.bf16.msra.mxu0 0
      %1265 = vmatprep.subr.bf16.mxu0 0
      %1266 = vmatpush1.bf16.msra.mxu0 0
      %1267 = vmatprep.mubr.bf16.mxu0 0
      %1268 = vmatmul.mubr.bf16.gmra.mrb[0].mxu0 %v1233
      %v1269 = vpop.f32.mrb[0].mxu0
      %v1270 = vadd.f32 0.0, %v1269
      %v1271 = vpop.f32.mrb[0].mxu0
      %v1272 = vpop.f32.mrb[0].mxu0
      %v1273 = vpop.f32.mrb[0].mxu0
      %1274 = vdwg.mxu0
      %v1275 = vadd.f32 %v1227, %v1270
      %s1276 = sadd.s32 8, 32
      %s1277 = scalar_lea.vmem [#allocation2], %s1276
      %v1278 = vld [vmem:[%s1277] sm:$0xff]
      %v1279 = vpack.c.bf16 %v1213, %v1213
      %1281 = vrot.lane.b32.xlu0 %v1279, 64
      %v1282 = vpop.permute.xlu0 %1281
      %v1284 = vsel %vm568, %v1282, 0
      %1286 = vmatprep.subr.bf16.mxu0 0
      %1287 = vmatpush1.bf16.msra.mxu0 %v950
      %1288 = vmatprep.subr.bf16.mxu0 0
      %1289 = vmatpush1.bf16.msra.mxu0 %v951
      %1290 = vmatprep.subr.bf16.mxu0 0
      %1291 = vmatpush1.bf16.msra.mxu0 0
      %1292 = vmatprep.subr.bf16.mxu0 0
      %1293 = vmatpush1.bf16.msra.mxu0 0
      %1294 = vmatprep.subr.bf16.mxu0 0
      %1295 = vmatpush1.bf16.msra.mxu0 0
      %1296 = vmatprep.subr.bf16.mxu0 0
      %1297 = vmatpush1.bf16.msra.mxu0 0
      %1298 = vmatprep.subr.bf16.mxu0 0
      %1299 = vmatpush1.bf16.msra.mxu0 0
      %1300 = vmatprep.subr.bf16.mxu0 0
      %1301 = vmatpush1.bf16.msra.mxu0 0
      %1302 = vmatprep.subr.bf16.mxu0 0
      %1303 = vmatpush1.bf16.msra.mxu0 0
      %1304 = vmatprep.subr.bf16.mxu0 0
      %1305 = vmatpush1.bf16.msra.mxu0 0
      %1306 = vmatprep.subr.bf16.mxu0 0
      %1307 = vmatpush1.bf16.msra.mxu0 0
      %1308 = vmatprep.subr.bf16.mxu0 0
      %1309 = vmatpush1.bf16.msra.mxu0 0
      %1310 = vmatprep.subr.bf16.mxu0 0
      %1311 = vmatpush1.bf16.msra.mxu0 0
      %1312 = vmatprep.subr.bf16.mxu0 0
      %1313 = vmatpush1.bf16.msra.mxu0 0
      %1314 = vmatprep.subr.bf16.mxu0 0
      %1315 = vmatpush1.bf16.msra.mxu0 0
      %1316 = vmatprep.subr.bf16.mxu0 0
      %1317 = vmatpush1.bf16.msra.mxu0 0
      %1318 = vmatprep.mubr.bf16.mxu0 0
      %1319 = vmatmul.mubr.bf16.gmra.mrb[0].mxu0 %v1284
      %v1320 = vpop.f32.mrb[0].mxu0
      %v1321 = vadd.f32 0.0, %v1320
      %v1322 = vpop.f32.mrb[0].mxu0
      %v1323 = vpop.f32.mrb[0].mxu0
      %v1324 = vpop.f32.mrb[0].mxu0
      %1325 = vdwg.mxu0
      %v1326 = vadd.f32 %v1278, %v1321
      %v1327 = vxor.u32 %v1275, 2147483648
      %v1328 = vxor.u32 %v1326, 2147483648
      %v1329 = vmul.f32 %v1327, 1.442695
      %v1330 = vpow.pop %v1329
      %v1331 = vmul.f32 %v1328, 1.442695
      %v1332 = vpow.pop %v1331
      %v1333 = vadd.f32 %v1330, 1.0
      %v1334 = vadd.f32 %v1332, 1.0
      %v1335 = vrcp.pop %v1333
      %v1336 = vmul.f32 1.0, %v1335
      %v1337 = vrcp.pop %v1334
      %v1338 = vmul.f32 1.0, %v1337
      %v1339 = vtanh.pop %v1275
      %v1340 = vtanh.pop %v1326
      %v1341 = vmul.f32 %v1336, %v1200
      %v1342 = vmul.f32 %v1338, %v1201
      %1345 = vrot.lane.b32.xlu0 %v1339, 32
      %v1346 = vpop.permute.xlu0 %1345
      %1347 = vrot.lane.b32.xlu0 %v1340, 32
      %v1348 = vpop.permute.xlu0 %1347
      %v1351 = vmul.f32 %v1336, %v1346
      %v1352 = vmul.f32 %v1338, %v1348
      %1355 = vrot.lane.b32.xlu0 %v1351, 32
      %v1356 = vpop.permute.xlu0 %1355
      %1357 = vrot.lane.b32.xlu0 %v1352, 32
      %v1358 = vpop.permute.xlu0 %1357
      %v1361 = vadd.f32 %v1341, %v1356
      %v1362 = vadd.f32 %v1342, %v1358
      %v1363 = vtanh.pop %v1361
      %v1364 = vtanh.pop %v1362
      %1367 = vrot.lane.b32.xlu0 %v1363, 32
      %v1368 = vpop.permute.xlu0 %1367
      %1369 = vrot.lane.b32.xlu0 %v1364, 32
      %v1370 = vpop.permute.xlu0 %1369
      %v1373 = vmul.f32 %v1336, %v1368
      %v1374 = vmul.f32 %v1338, %v1370
      %1376 = vrot.lane.b32.xlu0 %v1373, 64
      %v1377 = vpop.permute.xlu0 %1376
      %s1379 = scalar_lea.vmem %s500, 16
      %1380 = vst.msk [vmem:[%s1379] sm:$0xff] %vm568, %v1377
      %1382 = vrot.lane.b32.xlu0 %v1374, 64
      %v1383 = vpop.permute.xlu0 %1382
      %s1385 = scalar_lea.vmem %s507, 8
      %1386 = vst.msk [vmem:[%s1385] sm:$0xff] %vm568, %v1383
      %s1387 = scalar_lea.vmem [#allocation2], 24
      %v1388 = vld [vmem:[%s1387] sm:$0xff]
      %v1389 = vpack.c.bf16 %v1373, %v1373
      %1391 = vrot.lane.b32.xlu0 %v1389, 64
      %v1392 = vpop.permute.xlu0 %1391
      %v1394 = vsel %vm568, %v1392, 0
      %1396 = vmatprep.subr.bf16.mxu0 0
      %1397 = vmatpush1.bf16.msra.mxu0 %v890
      %1398 = vmatprep.subr.bf16.mxu0 0
      %1399 = vmatpush1.bf16.msra.mxu0 %v891
      %1400 = vmatprep.subr.bf16.mxu0 0
      %1401 = vmatpush1.bf16.msra.mxu0 0
      %1402 = vmatprep.subr.bf16.mxu0 0
      %1403 = vmatpush1.bf16.msra.mxu0 0
      %1404 = vmatprep.subr.bf16.mxu0 0
      %1405 = vmatpush1.bf16.msra.mxu0 0
      %1406 = vmatprep.subr.bf16.mxu0 0
      %1407 = vmatpush1.bf16.msra.mxu0 0
      %1408 = vmatprep.subr.bf16.mxu0 0
      %1409 = vmatpush1.bf16.msra.mxu0 0
      %1410 = vmatprep.subr.bf16.mxu0 0
      %1411 = vmatpush1.bf16.msra.mxu0 0
      %1412 = vmatprep.subr.bf16.mxu0 0
      %1413 = vmatpush1.bf16.msra.mxu0 0
      %1414 = vmatprep.subr.bf16.mxu0 0
      %1415 = vmatpush1.bf16.msra.mxu0 0
      %1416 = vmatprep.subr.bf16.mxu0 0
      %1417 = vmatpush1.bf16.msra.mxu0 0
      %1418 = vmatprep.subr.bf16.mxu0 0
      %1419 = vmatpush1.bf16.msra.mxu0 0
      %1420 = vmatprep.subr.bf16.mxu0 0
      %1421 = vmatpush1.bf16.msra.mxu0 0
      %1422 = vmatprep.subr.bf16.mxu0 0
      %1423 = vmatpush1.bf16.msra.mxu0 0
      %1424 = vmatprep.subr.bf16.mxu0 0
      %1425 = vmatpush1.bf16.msra.mxu0 0
      %1426 = vmatprep.subr.bf16.mxu0 0
      %1427 = vmatpush1.bf16.msra.mxu0 0
      %1428 = vmatprep.mubr.bf16.mxu0 0
      %1429 = vmatmul.mubr.bf16.gmra.mrb[0].mxu0 %v1394
      %v1430 = vpop.f32.mrb[0].mxu0
      %v1431 = vadd.f32 0.0, %v1430
      %v1432 = vpop.f32.mrb[0].mxu0
      %v1433 = vpop.f32.mrb[0].mxu0
      %v1434 = vpop.f32.mrb[0].mxu0
      %1435 = vdwg.mxu0
      %v1436 = vadd.f32 %v1388, %v1431
      %s1437 = sadd.s32 0, 32
      %s1438 = scalar_lea.vmem [#allocation2], %s1437
      %v1439 = vld [vmem:[%s1438] sm:$0xff]
      %v1440 = vpack.c.bf16 %v1374, %v1374
      %1442 = vrot.lane.b32.xlu0 %v1440, 64
      %v1443 = vpop.permute.xlu0 %1442
      %v1445 = vsel %vm568, %v1443, 0
      %1447 = vmatprep.subr.bf16.mxu0 0
      %1448 = vmatpush1.bf16.msra.mxu0 %v950
      %1449 = vmatprep.subr.bf16.mxu0 0
      %1450 = vmatpush1.bf16.msra.mxu0 %v951
      %1451 = vmatprep.subr.bf16.mxu0 0
      %1452 = vmatpush1.bf16.msra.mxu0 0
      %1453 = vmatprep.subr.bf16.mxu0 0
      %1454 = vmatpush1.bf16.msra.mxu0 0
      %1455 = vmatprep.subr.bf16.mxu0 0
      %1456 = vmatpush1.bf16.msra.mxu0 0
      %1457 = vmatprep.subr.bf16.mxu0 0
      %1458 = vmatpush1.bf16.msra.mxu0 0
      %1459 = vmatprep.subr.bf16.mxu0 0
      %1460 = vmatpush1.bf16.msra.mxu0 0
      %1461 = vmatprep.subr.bf16.mxu0 0
      %1462 = vmatpush1.bf16.msra.mxu0 0
      %1463 = vmatprep.subr.bf16.mxu0 0
      %1464 = vmatpush1.bf16.msra.mxu0 0
      %1465 = vmatprep.subr.bf16.mxu0 0
      %1466 = vmatpush1.bf16.msra.mxu0 0
      %1467 = vmatprep.subr.bf16.mxu0 0
      %1468 = vmatpush1.bf16.msra.mxu0 0
      %1469 = vmatprep.subr.bf16.mxu0 0
      %1470 = vmatpush1.bf16.msra.mxu0 0
      %1471 = vmatprep.subr.bf16.mxu0 0
      %1472 = vmatpush1.bf16.msra.mxu0 0
      %1473 = vmatprep.subr.bf16.mxu0 0
      %1474 = vmatpush1.bf16.msra.mxu0 0
      %1475 = vmatprep.subr.bf16.mxu0 0
      %1476 = vmatpush1.bf16.msra.mxu0 0
      %1477 = vmatprep.subr.bf16.mxu0 0
      %1478 = vmatpush1.bf16.msra.mxu0 0
      %1479 = vmatprep.mubr.bf16.mxu0 0
      %1480 = vmatmul.mubr.bf16.gmra.mrb[0].mxu0 %v1445
      %v1481 = vpop.f32.mrb[0].mxu0
      %v1482 = vadd.f32 0.0, %v1481
      %v1483 = vpop.f32.mrb[0].mxu0
      %v1484 = vpop.f32.mrb[0].mxu0
      %v1485 = vpop.f32.mrb[0].mxu0
      %1486 = vdwg.mxu0
      %v1487 = vadd.f32 %v1439, %v1482
      %v1488 = vxor.u32 %v1436, 2147483648
      %v1489 = vxor.u32 %v1487, 2147483648
      %v1490 = vmul.f32 %v1488, 1.442695
      %v1491 = vpow.pop %v1490
      %v1492 = vmul.f32 %v1489, 1.442695
      %v1493 = vpow.pop %v1492
      %v1494 = vadd.f32 %v1491, 1.0
      %v1495 = vadd.f32 %v1493, 1.0
      %v1496 = vrcp.pop %v1494
      %v1497 = vmul.f32 1.0, %v1496
      %v1498 = vrcp.pop %v1495
      %v1499 = vmul.f32 1.0, %v1498
      %v1500 = vtanh.pop %v1436
      %v1501 = vtanh.pop %v1487
      %v1502 = vmul.f32 %v1497, %v1361
      %v1503 = vmul.f32 %v1499, %v1362
      %1506 = vrot.lane.b32.xlu0 %v1500, 32
      %v1507 = vpop.permute.xlu0 %1506
      %1508 = vrot.lane.b32.xlu0 %v1501, 32
      %v1509 = vpop.permute.xlu0 %1508
      %v1512 = vmul.f32 %v1497, %v1507
      %v1513 = vmul.f32 %v1499, %v1509
      %1516 = vrot.lane.b32.xlu0 %v1512, 32
      %v1517 = vpop.permute.xlu0 %1516
      %1518 = vrot.lane.b32.xlu0 %v1513, 32
      %v1519 = vpop.permute.xlu0 %1518
      %v1522 = vadd.f32 %v1502, %v1517
      %v1523 = vadd.f32 %v1503, %v1519
      %v1524 = vtanh.pop %v1522
      %v1525 = vtanh.pop %v1523
      %1528 = vrot.lane.b32.xlu0 %v1524, 32
      %v1529 = vpop.permute.xlu0 %1528
      %1530 = vrot.lane.b32.xlu0 %v1525, 32
      %v1531 = vpop.permute.xlu0 %1530
      %v1534 = vmul.f32 %v1497, %v1529
      %v1535 = vmul.f32 %v1499, %v1531
      %1537 = vrot.lane.b32.xlu0 %v1534, 64
      %v1538 = vpop.permute.xlu0 %1537
      %s1540 = scalar_lea.vmem %s500, 24
      %1541 = vst.msk [vmem:[%s1540] sm:$0xff] %vm568, %v1538
      %1543 = vrot.lane.b32.xlu0 %v1535, 64
      %v1544 = vpop.permute.xlu0 %1543
      %1546 = vst.msk [vmem:[%s507] sm:$0xff] %vm568, %v1544
      %1547 = vst.msk [vmem:[%s11] sm:$0xff] %vm568, %v1538
      %1548 = vst.msk [vmem:[%s11 + $0x8] sm:$0xff] %vm568, %v1544
      %1551 = vrot.lane.b32.xlu0 %v1522, 96
      %v1552 = vpop.permute.xlu0 %1551
      %1553 = vrot.lane.b32.xlu0 %v1523, 96
      %v1554 = vpop.permute.xlu0 %1553
      %1557 = vst.msk [vmem:[%s12] sm:$0xff] %vm568, %v1552
      %1558 = vst.msk [vmem:[%s12 + $0x8] sm:$0xff] %vm568, %v1554
      %s1559 = smul.u32 4, %s24
      %p1560 = scmp.lt.s32.totalorder %s1559, 7
      %s1561 = scalar_select %p1560, %s1559, 7
      %s1562 = smul.addr %s1561, 8
      %s1563 = scalar_lea.vmem %s9, %s1562
      %s1564 = ssub.s32 1, %s24
      %s1565 = smul.u32 4, %s1564
      %p1566 = scmp.lt.s32.totalorder %s1565, 7
      %s1567 = scalar_select %p1566, %s1565, 7
      %s1568 = smul.addr %s1567, 8
      %s1569 = scalar_lea.vmem %s10, %s1568
      // Predicated region
      $region61: #{model_forward.8} parent=55 // pred_check
        %p1570 = pneg %p255
      $region62: #{model_forward.8} parent=55 // pred_check_branch
        %1572 = sbr.rel (%p1570) target = $region64
      $region63: #{model_forward.8} parent=55 // pred_region
        %s1573 = smul.u32 4, %s24
      $region64: #{model_forward.8} parent=55 // pred_fallthru
        _
      // Predicated region
      $region65: #{model_forward.8} parent=55 // pred_check
        %p1574 = pneg %p283
      $region66: #{model_forward.8} parent=55 // pred_check_branch
        %1576 = sbr.rel (%p1574) target = $region68
      $region67: #{model_forward.8} parent=55 // pred_region
        %s1577 = ssub.s32 1, %s24
        %s1578 = smul.u32 4, %s1577
      $region68: #{model_forward.8} parent=55 // pred_fallthru
        _
      // Predicated region
      $region69: #{model_forward.8} parent=55 // pred_check
        %p1579 = pneg %p304
      $region70: #{model_forward.8} parent=55 // pred_check_branch
        %1581 = sbr.rel (%p1579) target = $region72
      $region71: #{model_forward.8} parent=55 // pred_region
        _
      $region72: #{model_forward.8} parent=55 // pred_fallthru
        _
      // Predicated region
      $region73: #{model_forward.8} parent=55 // pred_check
        %p1582 = pneg %p325
      $region74: #{model_forward.8} parent=55 // pred_check_branch
        %1584 = sbr.rel (%p1582) target = $region76
      $region75: #{model_forward.8} parent=55 // pred_region
        _
      $region76: #{model_forward.8} parent=55 // pred_fallthru
        _
      // Predicated region
      $region77: #{model_forward.8} parent=55 // pred_check
        %p1585 = pneg %p304
      $region78: #{model_forward.8} parent=55 // pred_check_branch
        %1587 = sbr.rel (%p1585) target = $region80
      $region79: #{model_forward.8} parent=55 // pred_region
        _
      $region80: #{model_forward.8} parent=55 // pred_fallthru
        _
      // Predicated region
      $region81: #{model_forward.8} parent=55 // pred_check
        %p1588 = pneg %p325
      $region82: #{model_forward.8} parent=55 // pred_check_branch
        %1590 = sbr.rel (%p1588) target = $region84
      $region83: #{model_forward.8} parent=55 // pred_region
        _
      $region84: #{model_forward.8} parent=55 // pred_fallthru
        _
    $region56: #{model_forward.8} parent=5 // pred_fallthru
      _
    %p1591 = scmp.le.s32.totalorder 2, %s19
    // Predicated region
    $region85: #{model_forward.8} parent=5 // pred_check
      %p1592 = pneg %p1591
    $region86: #{model_forward.8} parent=5 // pred_check_branch
      %1594 = sbr.rel (%p1592) target = $region88
    $region87: #{model_forward.8} parent=5 // pred_region
      %s1595 = ssub.s32 %s19, 2
      // Predicated region
      $region89: #{model_forward.8} parent=87 // pred_check
        %p1596 = pneg %p261
      $region90: #{model_forward.8} parent=87 // pred_check_branch
        %1598 = sbr.rel (%p1596) target = $region92
      $region91: #{model_forward.8} parent=87 // pred_region
        %s1599 = smul.u32 4, %s25
        %p1600 = scmp.lt.s32.totalorder %s1599, 7
        %s1601 = scalar_select %p1600, %s1599, 7
        %s1602 = smul.addr %s1601, 8
        %s1603 = scalar_lea.vmem %s9, %s1602
      $region92: #{model_forward.8} parent=87 // pred_fallthru
        _
      // Predicated region
      $region93: #{model_forward.8} parent=87 // pred_check
        %p1604 = pneg %p289
      $region94: #{model_forward.8} parent=87 // pred_check_branch
        %1606 = sbr.rel (%p1604) target = $region96
      $region95: #{model_forward.8} parent=87 // pred_region
        %s1607 = ssub.s32 1, %s25
        %s1608 = smul.u32 4, %s1607
        %p1609 = scmp.lt.s32.totalorder %s1608, 7
        %s1610 = scalar_select %p1609, %s1608, 7
        %s1611 = smul.addr %s1610, 8
        %s1612 = scalar_lea.vmem %s10, %s1611
      $region96: #{model_forward.8} parent=87 // pred_fallthru
        _
    $region88: #{model_forward.8} parent=5 // pred_fallthru
      _
  $region6: #{model_forward.8} parent=0 // loop_footer
    %s23 = sadd.s32 1, %s19
  $region7: #{model_forward.8} parent=0 // loop_footer_branch
    %18 = sbr.rel target = $region3
  $region8: #{model_forward.8} parent=0 // loop_exit
    _

// kernel: model_forward.10
$region0: #{model_forward.10}
  #allocation0 [shape = 'u32[]', space=smem, size = 0x4, offset = 0x4, fixed_abs, tag = 'smem constant byte address 0x4 - core index']
  #allocation1 [shape = 'u32[144,128]{1,0:T(1,128)}', space=vmem, size = 0x12000, scoped, tag = 'internal scratch']
  #allocation2 [shape = 'f32[2,32,128]{2,1,0:T(8,128)}', space=vmem, size = 0x8000, scoped, tag = 'scratch operand']
  %s0 = inlined_call_operand.vmem [shape: f32[64,32], index: 0, kind: input, shape index: {}, may-alias: {0,2}]
  %s1 = inlined_call_operand.vmem [shape: f32[64,32], index: 1, kind: input, shape index: {}, may-alias: {1,3}]
  %s2 = inlined_call_operand.vmem [shape: f32[64,32], index: 2, kind: input, shape index: {}, may-alias: {0,2}]
  %s3 = inlined_call_operand.vmem [shape: f32[64,32], index: 3, kind: input, shape index: {}, may-alias: {1,3}]
  %s4 = inlined_call_operand.vmem [shape: bf16[2,2,32,128], index: 4, kind: input, shape index: {}]
  %s5 = inlined_call_operand.vmem [shape: bf16[2,32,128], index: 5, kind: input, shape index: {}]
  %s6 = inlined_call_operand.vmem [shape: f32[2,1,128], index: 6, kind: input, shape index: {}]
  %s7 = inlined_call_operand.vmem [shape: f32[2,8,32], index: 7, kind: input, shape index: {}]
  %s8 = inlined_call_operand.vmem [shape: f32[2,8,32], index: 8, kind: input, shape index: {}]
  %s9 = inlined_call_operand.vmem [shape: f32[64,32], index: 9, kind: output, shape index: {0}]
  %s10 = inlined_call_operand.vmem [shape: f32[64,32], index: 10, kind: output, shape index: {1}]
  %s11 = inlined_call_operand.hbm [shape: f32[2,8,32], index: 11, kind: output, shape index: {2}]
  %s12 = inlined_call_operand.hbm [shape: f32[2,8,32], index: 12, kind: output, shape index: {3}]
  %13 = xla_tuple %s9, %s10, %s11, %s12
  %s14 = sld [smem:[#allocation0]]
  $region97: #{model_forward.10} parent=0
    _
  %s16 = ssub.s32 1, %s14
  %s17 = scalar_select 0, %s16, %s14
  $region1: #{model_forward.10} parent=0
    #allocation3 [shape = 'u8[8192]{0}', space=vmem, size = 0x2000, scoped, tag = 'output window, operand 2, single buffered']
    #allocation4 [shape = 's32[2]{0}', space=sflag, size = 0x8, scoped, tag = 'scoped memory for model_forward.10']
    #allocation5 [shape = 'u8[8192]{0}', space=vmem, size = 0x2000, scoped, tag = 'output window, operand 3, single buffered']
    #allocation6 [shape = 's32[1]{0}', space=sflag, size = 0x4, scoped, tag = 'scoped memory for model_forward.10']
    %18 = vsyncpa [#allocation4], 0
    %19 = vsyncpa [#allocation6], 0
    loop: start=0, step=1, limit=4
    $region2: #{model_forward.10} parent=1 // loop_pre_header
      _
    $region3: #{model_forward.10} parent=1 // loop_header
      %s21 = sphi 0, %s25
      %p22 = scmp.ge.s32.totalorder %s21, 4
      %s31 = sphi 0, %s33
      %s34 = sphi 0, %s31
      %s35 = sphi 0, %s34
      %s51 = sphi 0, %s35
      %s57 = sphi 0, %s59
      %s60 = sphi 0, %s57
      %s61 = sphi 0, %s60
      %s77 = sphi 0, %s61
      %s85 = sphi 0, %s87
      %s88 = sphi 0, %s85
      %s89 = sphi 0, %s88
      %s105 = sphi 0, %s89
      %s113 = sphi 0, %s115
      %s116 = sphi 0, %s113
      %s117 = sphi 0, %s116
      %s133 = sphi 0, %s117
      %s137 = sphi 0, %s137
      %s139 = sphi 0, %s137
      %s140 = sphi 0, %s139
      %s154 = sphi 0, %s140
      %s158 = sphi 0, %s158
      %s160 = sphi 0, %s158
      %s161 = sphi 0, %s160
      %s175 = sphi 0, %s161
      %s179 = sphi 0, %s179
      %s181 = sphi 0, %s179
      %s182 = sphi 0, %s181
      %s196 = sphi 0, %s182
      %s200 = sphi 0, %s200
      %s202 = sphi 0, %s200
      %s203 = sphi 0, %s202
      %s217 = sphi 0, %s203
      %s221 = sphi 0, %s221
      %s223 = sphi 0, %s221
      %s224 = sphi 0, %s223
      %s238 = sphi 0, %s224
      %s244 = sphi 0, %s246
      %s247 = sphi 0, %s244
      %s248 = sphi 0, %s247
      %s264 = sphi 0, %s248
      %s272 = sphi 0, %s274
      %s275 = sphi 0, %s272
      %s276 = sphi 0, %s275
      %s292 = sphi 0, %s276
      %s296 = sphi 0, %s296
      %s298 = sphi 0, %s296
      %s299 = sphi 0, %s298
      %s313 = sphi 0, %s299
      %s317 = sphi 0, %s317
      %s319 = sphi 0, %s317
      %s320 = sphi 0, %s319
      %s334 = sphi 0, %s320
    $region4: #{model_forward.10} parent=1 // loop_header_branch
      %24 = sbr.rel (%p22) target = $region8
    $region5: #{model_forward.10} parent=1 // loop_body
      %s26 = ssub.s32 %s21, 1
      %s27 = ssub.s32 %s21, 2
      %s28 = sadd.s32 %s21, 1
      %s29 = ssub.s32 %s21, %s28
      %p30 = scmp.eq.s32.totalorder %s29, 0
      %s32 = sadd.s32 %s31, 1
      %s33 = scalar_select %p30, %s31, %s32
      %p36 = pneg %p30
      %p37 = scmp.eq.s32.totalorder %s21, 1
      %p38 = por %p36, %p37
      %p39 = scmp.ne.s32.totalorder %s31, %s34
      %p40 = scmp.eq.s32.totalorder %s21, 0
      %p41 = por %p39, %p40
      %p42 = scmp.ne.s32.totalorder %s31, %s34
      %p43 = scmp.eq.s32.totalorder %s26, 1
      %p44 = por %p42, %p43
      %p45 = scmp.ne.s32.totalorder %s34, %s35
      %p46 = scmp.eq.s32.totalorder %s26, 0
      %p47 = por %p45, %p46
      %p48 = scmp.ne.s32.totalorder %s34, %s35
      %p49 = scmp.eq.s32.totalorder %s27, 1
      %p50 = por %p48, %p49
      %p52 = scmp.ne.s32.totalorder %s35, %s51
      %p53 = scmp.eq.s32.totalorder %s27, 0
      %p54 = por %p52, %p53
      %s55 = ssub.s32 %s21, %s28
      %p56 = scmp.eq.s32.totalorder %s55, 0
      %s58 = sadd.s32 %s57, 1
      %s59 = scalar_select %p56, %s57, %s58
      %p62 = pneg %p56
      %p63 = scmp.eq.s32.totalorder %s21, 1
      %p64 = por %p62, %p63
      %p65 = scmp.ne.s32.totalorder %s57, %s60
      %p66 = scmp.eq.s32.totalorder %s21, 0
      %p67 = por %p65, %p66
      %p68 = scmp.ne.s32.totalorder %s57, %s60
      %p69 = scmp.eq.s32.totalorder %s26, 1
      %p70 = por %p68, %p69
      %p71 = scmp.ne.s32.totalorder %s60, %s61
      %p72 = scmp.eq.s32.totalorder %s26, 0
      %p73 = por %p71, %p72
      %p74 = scmp.ne.s32.totalorder %s60, %s61
      %p75 = scmp.eq.s32.totalorder %s27, 1
      %p76 = por %p74, %p75
      %p78 = scmp.ne.s32.totalorder %s61, %s77
      %p79 = scmp.eq.s32.totalorder %s27, 0
      %p80 = por %p78, %p79
      %s81 = ssub.s32 1, %s21
      %s82 = ssub.s32 1, %s28
      %s83 = ssub.s32 %s81, %s82
      %p84 = scmp.eq.s32.totalorder %s83, 0
      %s86 = sadd.s32 %s85, 1
      %s87 = scalar_select %p84, %s85, %s86
      %p90 = pneg %p84
      %p91 = scmp.eq.s32.totalorder %s21, 1
      %p92 = por %p90, %p91
      %p93 = scmp.ne.s32.totalorder %s85, %s88
      %p94 = scmp.eq.s32.totalorder %s21, 0
      %p95 = por %p93, %p94
      %p96 = scmp.ne.s32.totalorder %s85, %s88
      %p97 = scmp.eq.s32.totalorder %s26, 1
      %p98 = por %p96, %p97
      %p99 = scmp.ne.s32.totalorder %s88, %s89
      %p100 = scmp.eq.s32.totalorder %s26, 0
      %p101 = por %p99, %p100
      %p102 = scmp.ne.s32.totalorder %s88, %s89
      %p103 = scmp.eq.s32.totalorder %s27, 1
      %p104 = por %p102, %p103
      %p106 = scmp.ne.s32.totalorder %s89, %s105
      %p107 = scmp.eq.s32.totalorder %s27, 0
      %p108 = por %p106, %p107
      %s109 = ssub.s32 1, %s21
      %s110 = ssub.s32 1, %s28
      %s111 = ssub.s32 %s109, %s110
      %p112 = scmp.eq.s32.totalorder %s111, 0
      %s114 = sadd.s32 %s113, 1
      %s115 = scalar_select %p112, %s113, %s114
      %p118 = pneg %p112
      %p119 = scmp.eq.s32.totalorder %s21, 1
      %p120 = por %p118, %p119
      %p121 = scmp.ne.s32.totalorder %s113, %s116
      %p122 = scmp.eq.s32.totalorder %s21, 0
      %p123 = por %p121, %p122
      %p124 = scmp.ne.s32.totalorder %s113, %s116
      %p125 = scmp.eq.s32.totalorder %s26, 1
      %p126 = por %p124, %p125
      %p127 = scmp.ne.s32.totalorder %s116, %s117
      %p128 = scmp.eq.s32.totalorder %s26, 0
      %p129 = por %p127, %p128
      %p130 = scmp.ne.s32.totalorder %s116, %s117
      %p131 = scmp.eq.s32.totalorder %s27, 1
      %p132 = por %p130, %p131
      %p134 = scmp.ne.s32.totalorder %s117, %s133
      %p135 = scmp.eq.s32.totalorder %s27, 0
      %p136 = por %p134, %p135
      %s138 = sadd.s32 %s137, 1
      %p141 = scmp.eq.s32.totalorder %s21, 1
      %p142 = scmp.ne.s32.totalorder %s137, %s139
      %p143 = scmp.eq.s32.totalorder %s21, 0
      %p144 = por %p142, %p143
      %p145 = scmp.ne.s32.totalorder %s137, %s139
      %p146 = scmp.eq.s32.totalorder %s26, 1
      %p147 = por %p145, %p146
      %p148 = scmp.ne.s32.totalorder %s139, %s140
      %p149 = scmp.eq.s32.totalorder %s26, 0
      %p150 = por %p148, %p149
      %p151 = scmp.ne.s32.totalorder %s139, %s140
      %p152 = scmp.eq.s32.totalorder %s27, 1
      %p153 = por %p151, %p152
      %p155 = scmp.ne.s32.totalorder %s140, %s154
      %p156 = scmp.eq.s32.totalorder %s27, 0
      %p157 = por %p155, %p156
      %s159 = sadd.s32 %s158, 1
      %p162 = scmp.eq.s32.totalorder %s21, 1
      %p163 = scmp.ne.s32.totalorder %s158, %s160
      %p164 = scmp.eq.s32.totalorder %s21, 0
      %p165 = por %p163, %p164
      %p166 = scmp.ne.s32.totalorder %s158, %s160
      %p167 = scmp.eq.s32.totalorder %s26, 1
      %p168 = por %p166, %p167
      %p169 = scmp.ne.s32.totalorder %s160, %s161
      %p170 = scmp.eq.s32.totalorder %s26, 0
      %p171 = por %p169, %p170
      %p172 = scmp.ne.s32.totalorder %s160, %s161
      %p173 = scmp.eq.s32.totalorder %s27, 1
      %p174 = por %p172, %p173
      %p176 = scmp.ne.s32.totalorder %s161, %s175
      %p177 = scmp.eq.s32.totalorder %s27, 0
      %p178 = por %p176, %p177
      %s180 = sadd.s32 %s179, 1
      %p183 = scmp.eq.s32.totalorder %s21, 1
      %p184 = scmp.ne.s32.totalorder %s179, %s181
      %p185 = scmp.eq.s32.totalorder %s21, 0
      %p186 = por %p184, %p185
      %p187 = scmp.ne.s32.totalorder %s179, %s181
      %p188 = scmp.eq.s32.totalorder %s26, 1
      %p189 = por %p187, %p188
      %p190 = scmp.ne.s32.totalorder %s181, %s182
      %p191 = scmp.eq.s32.totalorder %s26, 0
      %p192 = por %p190, %p191
      %p193 = scmp.ne.s32.totalorder %s181, %s182
      %p194 = scmp.eq.s32.totalorder %s27, 1
      %p195 = por %p193, %p194
      %p197 = scmp.ne.s32.totalorder %s182, %s196
      %p198 = scmp.eq.s32.totalorder %s27, 0
      %p199 = por %p197, %p198
      %s201 = sadd.s32 %s200, 1
      %p204 = scmp.eq.s32.totalorder %s21, 1
      %p205 = scmp.ne.s32.totalorder %s200, %s202
      %p206 = scmp.eq.s32.totalorder %s21, 0
      %p207 = por %p205, %p206
      %p208 = scmp.ne.s32.totalorder %s200, %s202
      %p209 = scmp.eq.s32.totalorder %s26, 1
      %p210 = por %p208, %p209
      %p211 = scmp.ne.s32.totalorder %s202, %s203
      %p212 = scmp.eq.s32.totalorder %s26, 0
      %p213 = por %p211, %p212
      %p214 = scmp.ne.s32.totalorder %s202, %s203
      %p215 = scmp.eq.s32.totalorder %s27, 1
      %p216 = por %p214, %p215
      %p218 = scmp.ne.s32.totalorder %s203, %s217
      %p219 = scmp.eq.s32.totalorder %s27, 0
      %p220 = por %p218, %p219
      %s222 = sadd.s32 %s221, 1
      %p225 = scmp.eq.s32.totalorder %s21, 1
      %p226 = scmp.ne.s32.totalorder %s221, %s223
      %p227 = scmp.eq.s32.totalorder %s21, 0
      %p228 = por %p226, %p227
      %p229 = scmp.ne.s32.totalorder %s221, %s223
      %p230 = scmp.eq.s32.totalorder %s26, 1
      %p231 = por %p229, %p230
      %p232 = scmp.ne.s32.totalorder %s223, %s224
      %p233 = scmp.eq.s32.totalorder %s26, 0
      %p234 = por %p232, %p233
      %p235 = scmp.ne.s32.totalorder %s223, %s224
      %p236 = scmp.eq.s32.totalorder %s27, 1
      %p237 = por %p235, %p236
      %p239 = scmp.ne.s32.totalorder %s224, %s238
      %p240 = scmp.eq.s32.totalorder %s27, 0
      %p241 = por %p239, %p240
      %s242 = ssub.s32 %s21, %s28
      %p243 = scmp.eq.s32.totalorder %s242, 0
      %s245 = sadd.s32 %s244, 1
      %s246 = scalar_select %p243, %s244, %s245
      %p249 = pneg %p243
      %p250 = scmp.eq.s32.totalorder %s21, 1
      %p251 = por %p249, %p250
      %p252 = scmp.ne.s32.totalorder %s244, %s247
      %p253 = scmp.eq.s32.totalorder %s21, 0
      %p254 = por %p252, %p253
      %p255 = scmp.ne.s32.totalorder %s244, %s247
      %p256 = scmp.eq.s32.totalorder %s26, 1
      %p257 = por %p255, %p256
      %p258 = scmp.ne.s32.totalorder %s247, %s248
      %p259 = scmp.eq.s32.totalorder %s26, 0
      %p260 = por %p258, %p259
      %p261 = scmp.ne.s32.totalorder %s247, %s248
      %p262 = scmp.eq.s32.totalorder %s27, 1
      %p263 = por %p261, %p262
      %p265 = scmp.ne.s32.totalorder %s248, %s264
      %p266 = scmp.eq.s32.totalorder %s27, 0
      %p267 = por %p265, %p266
      %s268 = ssub.s32 1, %s21
      %s269 = ssub.s32 1, %s28
      %s270 = ssub.s32 %s268, %s269
      %p271 = scmp.eq.s32.totalorder %s270, 0
      %s273 = sadd.s32 %s272, 1
      %s274 = scalar_select %p271, %s272, %s273
      %p277 = pneg %p271
      %p278 = scmp.eq.s32.totalorder %s21, 1
      %p279 = por %p277, %p278
      %p280 = scmp.ne.s32.totalorder %s272, %s275
      %p281 = scmp.eq.s32.totalorder %s21, 0
      %p282 = por %p280, %p281
      %p283 = scmp.ne.s32.totalorder %s272, %s275
      %p284 = scmp.eq.s32.totalorder %s26, 1
      %p285 = por %p283, %p284
      %p286 = scmp.ne.s32.totalorder %s275, %s276
      %p287 = scmp.eq.s32.totalorder %s26, 0
      %p288 = por %p286, %p287
      %p289 = scmp.ne.s32.totalorder %s275, %s276
      %p290 = scmp.eq.s32.totalorder %s27, 1
      %p291 = por %p289, %p290
      %p293 = scmp.ne.s32.totalorder %s276, %s292
      %p294 = scmp.eq.s32.totalorder %s27, 0
      %p295 = por %p293, %p294
      %s297 = sadd.s32 %s296, 1
      %p300 = scmp.eq.s32.totalorder %s21, 1
      %p301 = scmp.ne.s32.totalorder %s296, %s298
      %p302 = scmp.eq.s32.totalorder %s21, 0
      %p303 = por %p301, %p302
      %p304 = scmp.ne.s32.totalorder %s296, %s298
      %p305 = scmp.eq.s32.totalorder %s26, 1
      %p306 = por %p304, %p305
      %p307 = scmp.ne.s32.totalorder %s298, %s299
      %p308 = scmp.eq.s32.totalorder %s26, 0
      %p309 = por %p307, %p308
      %p310 = scmp.ne.s32.totalorder %s298, %s299
      %p311 = scmp.eq.s32.totalorder %s27, 1
      %p312 = por %p310, %p311
      %p314 = scmp.ne.s32.totalorder %s299, %s313
      %p315 = scmp.eq.s32.totalorder %s27, 0
      %p316 = por %p314, %p315
      %s318 = sadd.s32 %s317, 1
      %p321 = scmp.eq.s32.totalorder %s21, 1
      %p322 = scmp.ne.s32.totalorder %s317, %s319
      %p323 = scmp.eq.s32.totalorder %s21, 0
      %p324 = por %p322, %p323
      %p325 = scmp.ne.s32.totalorder %s317, %s319
      %p326 = scmp.eq.s32.totalorder %s26, 1
      %p327 = por %p325, %p326
      %p328 = scmp.ne.s32.totalorder %s319, %s320
      %p329 = scmp.eq.s32.totalorder %s26, 0
      %p330 = por %p328, %p329
      %p331 = scmp.ne.s32.totalorder %s319, %s320
      %p332 = scmp.eq.s32.totalorder %s27, 1
      %p333 = por %p331, %p332
      %p335 = scmp.ne.s32.totalorder %s320, %s334
      %p336 = scmp.eq.s32.totalorder %s27, 0
      %p337 = por %p335, %p336
      %p338 = scmp.le.s32.totalorder 1, %s21
      %p339 = scmp.lt.s32.totalorder %s21, 3
      %p340 = pnand %p338, %p339
      %p341 = pneg %p340
      // Predicated region
      $region9: #{model_forward.10} parent=5 // pred_check
        _
      $region10: #{model_forward.10} parent=5 // pred_check_branch
        %343 = sbr.rel (%p340) target = $region12
      $region11: #{model_forward.10} parent=5 // pred_region
        %s344 = ssub.s32 %s21, 1
        // Predicated region
        $region13: #{model_forward.10} parent=11 // pred_check
          %p345 = pneg %p150
        $region14: #{model_forward.10} parent=11 // pred_check_branch
          %347 = sbr.rel (%p345) target = $region16
        $region15: #{model_forward.10} parent=11 // pred_region
          _
        $region16: #{model_forward.10} parent=11 // pred_fallthru
          _
        // Predicated region
        $region17: #{model_forward.10} parent=11 // pred_check
          %p348 = pneg %p171
        $region18: #{model_forward.10} parent=11 // pred_check_branch
          %350 = sbr.rel (%p348) target = $region20
        $region19: #{model_forward.10} parent=11 // pred_region
          _
        $region20: #{model_forward.10} parent=11 // pred_fallthru
          _
        // Predicated region
        $region21: #{model_forward.10} parent=11 // pred_check
          %p351 = pneg %p192
        $region22: #{model_forward.10} parent=11 // pred_check_branch
          %353 = sbr.rel (%p351) target = $region24
        $region23: #{model_forward.10} parent=11 // pred_region
          _
        $region24: #{model_forward.10} parent=11 // pred_fallthru
          _
        // Predicated region
        $region25: #{model_forward.10} parent=11 // pred_check
          %p354 = pneg %p213
        $region26: #{model_forward.10} parent=11 // pred_check_branch
          %356 = sbr.rel (%p354) target = $region28
        $region27: #{model_forward.10} parent=11 // pred_region
          _
        $region28: #{model_forward.10} parent=11 // pred_fallthru
          _
        // Predicated region
        $region29: #{model_forward.10} parent=11 // pred_check
          %p357 = pneg %p234
        $region30: #{model_forward.10} parent=11 // pred_check_branch
          %359 = sbr.rel (%p357) target = $region32
        $region31: #{model_forward.10} parent=11 // pred_region
          _
        $region32: #{model_forward.10} parent=11 // pred_fallthru
          _
      $region12: #{model_forward.10} parent=5 // pred_fallthru
        _
      %p360 = scmp.lt.s32.totalorder %s21, 2
      // Predicated region
      $region33: #{model_forward.10} parent=5 // pred_check
        %p361 = pneg %p360
      $region34: #{model_forward.10} parent=5 // pred_check_branch
        %363 = sbr.rel (%p361) target = $region36
      $region35: #{model_forward.10} parent=5 // pred_region
        // Predicated region
        $region37: #{model_forward.10} parent=35 // pred_check
          %p364 = pneg %p41
        $region38: #{model_forward.10} parent=35 // pred_check_branch
          %366 = sbr.rel (%p364) target = $region40
        $region39: #{model_forward.10} parent=35 // pred_region
          %s367 = smul.u32 4, %s21
          %p368 = scmp.lt.s32.totalorder %s367, 7
          %s369 = scalar_select %p368, %s367, 7
          %s370 = smul.addr %s369, 8
          %s371 = scalar_lea.vmem %s0, %s370
          %s372 = smul.u32 4, %s21
        $region40: #{model_forward.10} parent=35 // pred_fallthru
          _
        // Predicated region
        $region41: #{model_forward.10} parent=35 // pred_check
          %p373 = pneg %p67
        $region42: #{model_forward.10} parent=35 // pred_check_branch
          %375 = sbr.rel (%p373) target = $region44
        $region43: #{model_forward.10} parent=35 // pred_region
          %s376 = smul.u32 4, %s21
          %p377 = scmp.lt.s32.totalorder %s376, 7
          %s378 = scalar_select %p377, %s376, 7
          %s379 = smul.addr %s378, 8
          %s380 = scalar_lea.vmem %s1, %s379
          %s381 = smul.u32 4, %s21
        $region44: #{model_forward.10} parent=35 // pred_fallthru
          _
        // Predicated region
        $region45: #{model_forward.10} parent=35 // pred_check
          %p382 = pneg %p95
        $region46: #{model_forward.10} parent=35 // pred_check_branch
          %384 = sbr.rel (%p382) target = $region48
        $region47: #{model_forward.10} parent=35 // pred_region
          %s385 = ssub.s32 1, %s21
          %s386 = smul.u32 4, %s385
          %p387 = scmp.lt.s32.totalorder %s386, 7
          %s388 = scalar_select %p387, %s386, 7
          %s389 = smul.addr %s388, 8
          %s390 = scalar_lea.vmem %s2, %s389
          %s391 = ssub.s32 1, %s21
          %s392 = smul.u32 4, %s391
        $region48: #{model_forward.10} parent=35 // pred_fallthru
          _
        // Predicated region
        $region49: #{model_forward.10} parent=35 // pred_check
          %p393 = pneg %p123
        $region50: #{model_forward.10} parent=35 // pred_check_branch
          %395 = sbr.rel (%p393) target = $region52
        $region51: #{model_forward.10} parent=35 // pred_region
          %s396 = ssub.s32 1, %s21
          %s397 = smul.u32 4, %s396
          %p398 = scmp.lt.s32.totalorder %s397, 7
          %s399 = scalar_select %p398, %s397, 7
          %s400 = smul.addr %s399, 8
          %s401 = scalar_lea.vmem %s3, %s400
          %s402 = ssub.s32 1, %s21
          %s403 = smul.u32 4, %s402
        $region52: #{model_forward.10} parent=35 // pred_fallthru
          _
      $region36: #{model_forward.10} parent=5 // pred_fallthru
        _
      %p404 = scmp.le.s32.totalorder 1, %s21
      %p405 = scmp.lt.s32.totalorder %s21, 3
      %p406 = pnand %p404, %p405
      %p407 = pneg %p406
      // Predicated region
      $region53: #{model_forward.10} parent=5 // pred_check
        _
      $region54: #{model_forward.10} parent=5 // pred_check_branch
        %409 = sbr.rel (%p406) target = $region56
      $region55: #{model_forward.10} parent=5 // pred_region
        %s410 = ssub.s32 %s21, 1
        %s411 = smul.u32 4, %s26
        %p412 = scmp.lt.s32.totalorder %s411, 7
        %s413 = scalar_select %p412, %s411, 7
        %s414 = smul.addr %s413, 8
        %s415 = scalar_lea.vmem %s0, %s414
        %p416 = pneg %p47
        %p417 = pneg %p44
        %s418 = smul.u32 4, %s26
        %p419 = scmp.lt.s32.totalorder %s418, 7
        %s420 = scalar_select %p419, %s418, 7
        %s421 = smul.addr %s420, 8
        %s422 = scalar_lea.vmem %s1, %s421
        %p423 = pneg %p73
        %p424 = pneg %p70
        %s425 = ssub.s32 1, %s26
        %s426 = smul.u32 4, %s425
        %p427 = scmp.lt.s32.totalorder %s426, 7
        %s428 = scalar_select %p427, %s426, 7
        %s429 = smul.addr %s428, 8
        %s430 = scalar_lea.vmem %s2, %s429
        %p431 = pneg %p101
        %p432 = pneg %p98
        %s433 = ssub.s32 1, %s26
        %s434 = smul.u32 4, %s433
        %p435 = scmp.lt.s32.totalorder %s434, 7
        %s436 = scalar_select %p435, %s434, 7
        %s437 = smul.addr %s436, 8
        %s438 = scalar_lea.vmem %s3, %s437
        %p439 = pneg %p129
        %p440 = pneg %p126
        %p441 = pneg %p150
        %p442 = pneg %p147
        %p443 = pneg %p171
        %p444 = pneg %p168
        %p445 = pneg %p192
        %p446 = pneg %p189
        %p447 = pneg %p213
        %p448 = pneg %p210
        %p449 = pneg %p234
        %p450 = pneg %p231
        %p451 = pneg %p260
        %p452 = pneg %p257
        %s453 = smul.u32 4, %s26
        %p454 = scmp.lt.s32.totalorder %s453, 7
        %s455 = scalar_select %p454, %s453, 7
        %s456 = smul.addr %s455, 8
        %s457 = scalar_lea.vmem %s9, %s456
        %p458 = pneg %p288
        %p459 = pneg %p285
        %s460 = ssub.s32 1, %s26
        %s461 = smul.u32 4, %s460
        %p462 = scmp.lt.s32.totalorder %s461, 7
        %s463 = scalar_select %p462, %s461, 7
        %s464 = smul.addr %s463, 8
        %s465 = scalar_lea.vmem %s10, %s464
        %p466 = pneg %p309
        %p467 = pneg %p306
        %p468 = pneg %p330
        %p469 = pneg %p327
        %s470 = smul.u32 4, %s26
        %p471 = scmp.lt.s32.totalorder %s470, 7
        %s472 = scalar_select %p471, %s470, 7
        %s473 = smul.addr %s472, 8
        %s474 = scalar_lea.vmem %s0, %s473
        %s475 = smul.u32 4, %s26
        %s476 = smul.u32 4, %s26
        %p477 = scmp.lt.s32.totalorder %s476, 7
        %s478 = scalar_select %p477, %s476, 7
        %s479 = smul.addr %s478, 8
        %s480 = scalar_lea.vmem %s1, %s479
        %s481 = smul.u32 4, %s26
        %s482 = ssub.s32 1, %s26
        %s483 = smul.u32 4, %s482
        %p484 = scmp.lt.s32.totalorder %s483, 7
        %s485 = scalar_select %p484, %s483, 7
        %s486 = smul.addr %s485, 8
        %s487 = scalar_lea.vmem %s2, %s486
        %s488 = ssub.s32 1, %s26
        %s489 = smul.u32 4, %s488
        %s490 = ssub.s32 1, %s26
        %s491 = smul.u32 4, %s490
        %p492 = scmp.lt.s32.totalorder %s491, 7
        %s493 = scalar_select %p492, %s491, 7
        %s494 = smul.addr %s493, 8
        %s495 = scalar_lea.vmem %s3, %s494
        %s496 = ssub.s32 1, %s26
        %s497 = smul.u32 4, %s496
        %s498 = smul.u32 4, %s26
        %p499 = scmp.lt.s32.totalorder %s498, 7
        %s500 = scalar_select %p499, %s498, 7
        %s501 = smul.addr %s500, 8
        %s502 = scalar_lea.vmem %s9, %s501
        %s503 = smul.u32 4, %s26
        %s504 = ssub.s32 1, %s26
        %s505 = smul.u32 4, %s504
        %p506 = scmp.lt.s32.totalorder %s505, 7
        %s507 = scalar_select %p506, %s505, 7
        %s508 = smul.addr %s507, 8
        %s509 = scalar_lea.vmem %s10, %s508
        %s510 = ssub.s32 1, %s26
        %s511 = smul.u32 4, %s510
        %p513 = scmp.eq.s32.totalorder %s26, 0
        // Predicated region
        $region57: #{model_forward.10} parent=55 // pred_check
          %p514 = pneg %p513
        $region58: #{model_forward.10} parent=55 // pred_check_branch
          %516 = sbr.rel (%p514) target = $region60
        $region59: #{model_forward.10} parent=55 // pred_region
          %v517 = vld [vmem:[%s7] sm:$0xff]
          %v518 = vld [vmem:[%s7 + $0x8] sm:$0xff]
          %vm519 = vcmask 261120
          %520 = vst.msk [vmem:[#allocation3] sm:$0xff] %vm519, %v517
          %521 = vst.msk [vmem:[#allocation3 + $0x8] sm:$0xff] %vm519, %v518
          %v522 = vld [vmem:[%s8] sm:$0xff]
          %v523 = vld [vmem:[%s8 + $0x8] sm:$0xff]
          %524 = vst.msk [vmem:[#allocation5] sm:$0xff] %vm519, %v522
          %525 = vst.msk [vmem:[#allocation5 + $0x8] sm:$0xff] %vm519, %v523
        $region60: #{model_forward.10} parent=55 // pred_fallthru
          _
        %v526 = vld [vmem:[%s474] sm:$0xff]
        %v527 = vld [vmem:[%s474 + $0x8] sm:$0xff]
        %v528 = vld [vmem:[%s474 + $0x10] sm:$0xff]
        %v529 = vld [vmem:[%s474 + $0x18] sm:$0xff]
        %v530 = vpack.c.bf16 %v527, %v526
        %v531 = vpack.c.bf16 %v529, %v528
        %v532 = vld [vmem:[%s4] sm:$0xf]
        %v533 = vld [vmem:[%s4 + $0x4] sm:$0xf]
        %v534 = vld [vmem:[%s4 + $0x8] sm:$0xf]
        %v535 = vld [vmem:[%s4 + $0xc] sm:$0xf]
        %v536 = vld [vmem:[%s487] sm:$0xff]
        %v537 = vld [vmem:[%s487 + $0x8] sm:$0xff]
        %v538 = vld [vmem:[%s487 + $0x10] sm:$0xff]
        %v539 = vld [vmem:[%s487 + $0x18] sm:$0xff]
        %v540 = vpack.c.bf16 %v537, %v536
        %v541 = vpack.c.bf16 %v539, %v538
        %s542 = scalar_lea.vmem %s4, 32
        %v543 = vld [vmem:[%s542] sm:$0xf]
        %v544 = vld [vmem:[%s542 + $0x4] sm:$0xf]
        %v545 = vld [vmem:[%s542 + $0x8] sm:$0xf]
        %v546 = vld [vmem:[%s542 + $0xc] sm:$0xf]
        %v547 = vld [vmem:[%s480] sm:$0xff]
        %v548 = vld [vmem:[%s480 + $0x8] sm:$0xff]
        %v549 = vld [vmem:[%s480 + $0x10] sm:$0xff]
        %v550 = vld [vmem:[%s480 + $0x18] sm:$0xff]
        %v551 = vpack.c.bf16 %v548, %v547
        %v552 = vpack.c.bf16 %v550, %v549
        %s553 = scalar_lea.vmem %s4, 16
        %v554 = vld [vmem:[%s553] sm:$0xf]
        %v555 = vld [vmem:[%s553 + $0x4] sm:$0xf]
        %v556 = vld [vmem:[%s553 + $0x8] sm:$0xf]
        %v557 = vld [vmem:[%s553 + $0xc] sm:$0xf]
        %v562 = vunpack.c.l.b16 %v554
        %v563 = vunpack.c.l.b16 %v555
        %v564 = vunpack.c.l.b16 %v556
        %v565 = vunpack.c.l.b16 %v557
        %v566 = vpack.c.b16 %v563, %v562
        %v567 = vpack.c.b16 %v565, %v564
        %vm570 = vcmask 261120
        %v572 = vsel %vm570, %v551, 0
        %v575 = vsel %vm570, %v552, 0
        %577 = vmatprep.subr.bf16.mxu0 0
        %578 = vmatpush1.bf16.msra.mxu0 %v566
        %579 = vmatprep.subr.bf16.mxu0 0
        %580 = vmatpush1.bf16.msra.mxu0 %v567
        %581 = vmatprep.subr.bf16.mxu0 0
        %582 = vmatpush1.bf16.msra.mxu0 0
        %583 = vmatprep.subr.bf16.mxu0 0
        %584 = vmatpush1.bf16.msra.mxu0 0
        %585 = vmatprep.subr.bf16.mxu0 0
        %586 = vmatpush1.bf16.msra.mxu0 0
        %587 = vmatprep.subr.bf16.mxu0 0
        %588 = vmatpush1.bf16.msra.mxu0 0
        %589 = vmatprep.subr.bf16.mxu0 0
        %590 = vmatpush1.bf16.msra.mxu0 0
        %591 = vmatprep.subr.bf16.mxu0 0
        %592 = vmatpush1.bf16.msra.mxu0 0
        %593 = vmatprep.subr.bf16.mxu0 0
        %594 = vmatpush1.bf16.msra.mxu0 0
        %595 = vmatprep.subr.bf16.mxu0 0
        %596 = vmatpush1.bf16.msra.mxu0 0
        %597 = vmatprep.subr.bf16.mxu0 0
        %598 = vmatpush1.bf16.msra.mxu0 0
        %599 = vmatprep.subr.bf16.mxu0 0
        %600 = vmatpush1.bf16.msra.mxu0 0
        %601 = vmatprep.subr.bf16.mxu0 0
        %602 = vmatpush1.bf16.msra.mxu0 0
        %603 = vmatprep.subr.bf16.mxu0 0
        %604 = vmatpush1.bf16.msra.mxu0 0
        %605 = vmatprep.subr.bf16.mxu0 0
        %606 = vmatpush1.bf16.msra.mxu0 0
        %607 = vmatprep.subr.bf16.mxu0 0
        %608 = vmatpush1.bf16.msra.mxu0 0
        %609 = vmatprep.mubr.bf16.mxu0 0
        %610 = vmatmul.mubr.bf16.gmra.mrb[0].mxu0 %v572
        %v611 = vpop.f32.mrb[0].mxu0
        %v612 = vadd.f32 0.0, %v611
        %v613 = vpop.f32.mrb[0].mxu0
        %v614 = vpop.f32.mrb[0].mxu0
        %v615 = vadd.f32 0.0, %v614
        %v616 = vpop.f32.mrb[0].mxu0
        %617 = vmatprep.mubr.bf16.mxu0 0
        %618 = vmatmul.mubr.bf16.gmra.mrb[0].mxu0 %v575
        %v619 = vpop.f32.mrb[0].mxu0
        %v620 = vadd.f32 0.0, %v619
        %v621 = vpop.f32.mrb[0].mxu0
        %v622 = vpop.f32.mrb[0].mxu0
        %v623 = vadd.f32 0.0, %v622
        %v624 = vpop.f32.mrb[0].mxu0
        %625 = vdwg.mxu0
        %v630 = vunpack.c.l.b16 %v532
        %v631 = vunpack.c.l.b16 %v533
        %v632 = vunpack.c.l.b16 %v534
        %v633 = vunpack.c.l.b16 %v535
        %v634 = vpack.c.b16 %v631, %v630
        %v635 = vpack.c.b16 %v633, %v632
        %v639 = vsel %vm570, %v530, 0
        %v642 = vsel %vm570, %v531, 0
        %644 = vmatprep.subr.bf16.mxu0 0
        %645 = vmatpush1.bf16.msra.mxu0 %v634
        %646 = vmatprep.subr.bf16.mxu0 0
        %647 = vmatpush1.bf16.msra.mxu0 %v635
        %648 = vmatprep.subr.bf16.mxu0 0
        %649 = vmatpush1.bf16.msra.mxu0 0
        %650 = vmatprep.subr.bf16.mxu0 0
        %651 = vmatpush1.bf16.msra.mxu0 0
        %652 = vmatprep.subr.bf16.mxu0 0
        %653 = vmatpush1.bf16.msra.mxu0 0
        %654 = vmatprep.subr.bf16.mxu0 0
        %655 = vmatpush1.bf16.msra.mxu0 0
        %656 = vmatprep.subr.bf16.mxu0 0
        %657 = vmatpush1.bf16.msra.mxu0 0
        %658 = vmatprep.subr.bf16.mxu0 0
        %659 = vmatpush1.bf16.msra.mxu0 0
        %660 = vmatprep.subr.bf16.mxu0 0
        %661 = vmatpush1.bf16.msra.mxu0 0
        %662 = vmatprep.subr.bf16.mxu0 0
        %663 = vmatpush1.bf16.msra.mxu0 0
        %664 = vmatprep.subr.bf16.mxu0 0
        %665 = vmatpush1.bf16.msra.mxu0 0
        %666 = vmatprep.subr.bf16.mxu0 0
        %667 = vmatpush1.bf16.msra.mxu0 0
        %668 = vmatprep.subr.bf16.mxu0 0
        %669 = vmatpush1.bf16.msra.mxu0 0
        %670 = vmatprep.subr.bf16.mxu0 0
        %671 = vmatpush1.bf16.msra.mxu0 0
        %672 = vmatprep.subr.bf16.mxu0 0
        %673 = vmatpush1.bf16.msra.mxu0 0
        %674 = vmatprep.subr.bf16.mxu0 0
        %675 = vmatpush1.bf16.msra.mxu0 0
        %676 = vmatprep.mubr.bf16.mxu0 0
        %677 = vmatmul.mubr.bf16.gmra.mrb[0].mxu0 %v639
        %v678 = vpop.f32.mrb[0].mxu0
        %v679 = vadd.f32 %v612, %v678
        %v680 = vpop.f32.mrb[0].mxu0
        %v681 = vpop.f32.mrb[0].mxu0
        %v682 = vadd.f32 %v615, %v681
        %v683 = vpop.f32.mrb[0].mxu0
        %684 = vmatprep.mubr.bf16.mxu0 0
        %685 = vmatmul.mubr.bf16.gmra.mrb[0].mxu0 %v642
        %v686 = vpop.f32.mrb[0].mxu0
        %v687 = vadd.f32 %v620, %v686
        %v688 = vpop.f32.mrb[0].mxu0
        %v689 = vpop.f32.mrb[0].mxu0
        %v690 = vadd.f32 %v623, %v689
        %v691 = vpop.f32.mrb[0].mxu0
        %692 = vdwg.mxu0
        %v693 = vld [vmem:[%s495] sm:$0xff]
        %v694 = vld [vmem:[%s495 + $0x8] sm:$0xff]
        %v695 = vld [vmem:[%s495 + $0x10] sm:$0xff]
        %v696 = vld [vmem:[%s495 + $0x18] sm:$0xff]
        %v697 = vpack.c.bf16 %v694, %v693
        %v698 = vpack.c.bf16 %v696, %v695
        %s699 = scalar_lea.vmem %s4, 48
        %v700 = vld [vmem:[%s699] sm:$0xf]
        %v701 = vld [vmem:[%s699 + $0x4] sm:$0xf]
        %v702 = vld [vmem:[%s699 + $0x8] sm:$0xf]
        %v703 = vld [vmem:[%s699 + $0xc] sm:$0xf]
        %v708 = vunpack.c.l.b16 %v700
        %v709 = vunpack.c.l.b16 %v701
        %v710 = vunpack.c.l.b16 %v702
        %v711 = vunpack.c.l.b16 %v703
        %v712 = vpack.c.b16 %v709, %v708
        %v713 = vpack.c.b16 %v711, %v710
        %v717 = vsel %vm570, %v697, 0
        %v720 = vsel %vm570, %v698, 0
        %722 = vmatprep.subr.bf16.mxu0 0
        %723 = vmatpush1.bf16.msra.mxu0 %v712
        %724 = vmatprep.subr.bf16.mxu0 0
        %725 = vmatpush1.bf16.msra.mxu0 %v713
        %726 = vmatprep.subr.bf16.mxu0 0
        %727 = vmatpush1.bf16.msra.mxu0 0
        %728 = vmatprep.subr.bf16.mxu0 0
        %729 = vmatpush1.bf16.msra.mxu0 0
        %730 = vmatprep.subr.bf16.mxu0 0
        %731 = vmatpush1.bf16.msra.mxu0 0
        %732 = vmatprep.subr.bf16.mxu0 0
        %733 = vmatpush1.bf16.msra.mxu0 0
        %734 = vmatprep.subr.bf16.mxu0 0
        %735 = vmatpush1.bf16.msra.mxu0 0
        %736 = vmatprep.subr.bf16.mxu0 0
        %737 = vmatpush1.bf16.msra.mxu0 0
        %738 = vmatprep.subr.bf16.mxu0 0
        %739 = vmatpush1.bf16.msra.mxu0 0
        %740 = vmatprep.subr.bf16.mxu0 0
        %741 = vmatpush1.bf16.msra.mxu0 0
        %742 = vmatprep.subr.bf16.mxu0 0
        %743 = vmatpush1.bf16.msra.mxu0 0
        %744 = vmatprep.subr.bf16.mxu0 0
        %745 = vmatpush1.bf16.msra.mxu0 0
        %746 = vmatprep.subr.bf16.mxu0 0
        %747 = vmatpush1.bf16.msra.mxu0 0
        %748 = vmatprep.subr.bf16.mxu0 0
        %749 = vmatpush1.bf16.msra.mxu0 0
        %750 = vmatprep.subr.bf16.mxu0 0
        %751 = vmatpush1.bf16.msra.mxu0 0
        %752 = vmatprep.subr.bf16.mxu0 0
        %753 = vmatpush1.bf16.msra.mxu0 0
        %754 = vmatprep.mubr.bf16.mxu0 0
        %755 = vmatmul.mubr.bf16.gmra.mrb[0].mxu0 %v717
        %v756 = vpop.f32.mrb[0].mxu0
        %v757 = vadd.f32 0.0, %v756
        %v758 = vpop.f32.mrb[0].mxu0
        %v759 = vpop.f32.mrb[0].mxu0
        %v760 = vadd.f32 0.0, %v759
        %v761 = vpop.f32.mrb[0].mxu0
        %762 = vmatprep.mubr.bf16.mxu0 0
        %763 = vmatmul.mubr.bf16.gmra.mrb[0].mxu0 %v720
        %v764 = vpop.f32.mrb[0].mxu0
        %v765 = vadd.f32 0.0, %v764
        %v766 = vpop.f32.mrb[0].mxu0
        %v767 = vpop.f32.mrb[0].mxu0
        %v768 = vadd.f32 0.0, %v767
        %v769 = vpop.f32.mrb[0].mxu0
        %770 = vdwg.mxu0
        %v775 = vunpack.c.l.b16 %v543
        %v776 = vunpack.c.l.b16 %v544
        %v777 = vunpack.c.l.b16 %v545
        %v778 = vunpack.c.l.b16 %v546
        %v779 = vpack.c.b16 %v776, %v775
        %v780 = vpack.c.b16 %v778, %v777
        %v784 = vsel %vm570, %v540, 0
        %v787 = vsel %vm570, %v541, 0
        %789 = vmatprep.subr.bf16.mxu0 0
        %790 = vmatpush1.bf16.msra.mxu0 %v779
        %791 = vmatprep.subr.bf16.mxu0 0
        %792 = vmatpush1.bf16.msra.mxu0 %v780
        %793 = vmatprep.subr.bf16.mxu0 0
        %794 = vmatpush1.bf16.msra.mxu0 0
        %795 = vmatprep.subr.bf16.mxu0 0
        %796 = vmatpush1.bf16.msra.mxu0 0
        %797 = vmatprep.subr.bf16.mxu0 0
        %798 = vmatpush1.bf16.msra.mxu0 0
        %799 = vmatprep.subr.bf16.mxu0 0
        %800 = vmatpush1.bf16.msra.mxu0 0
        %801 = vmatprep.subr.bf16.mxu0 0
        %802 = vmatpush1.bf16.msra.mxu0 0
        %803 = vmatprep.subr.bf16.mxu0 0
        %804 = vmatpush1.bf16.msra.mxu0 0
        %805 = vmatprep.subr.bf16.mxu0 0
        %806 = vmatpush1.bf16.msra.mxu0 0
        %807 = vmatprep.subr.bf16.mxu0 0
        %808 = vmatpush1.bf16.msra.mxu0 0
        %809 = vmatprep.subr.bf16.mxu0 0
        %810 = vmatpush1.bf16.msra.mxu0 0
        %811 = vmatprep.subr.bf16.mxu0 0
        %812 = vmatpush1.bf16.msra.mxu0 0
        %813 = vmatprep.subr.bf16.mxu0 0
        %814 = vmatpush1.bf16.msra.mxu0 0
        %815 = vmatprep.subr.bf16.mxu0 0
        %816 = vmatpush1.bf16.msra.mxu0 0
        %817 = vmatprep.subr.bf16.mxu0 0
        %818 = vmatpush1.bf16.msra.mxu0 0
        %819 = vmatprep.subr.bf16.mxu0 0
        %820 = vmatpush1.bf16.msra.mxu0 0
        %821 = vmatprep.mubr.bf16.mxu0 0
        %822 = vmatmul.mubr.bf16.gmra.mrb[0].mxu0 %v784
        %v823 = vpop.f32.mrb[0].mxu0
        %v824 = vadd.f32 %v757, %v823
        %v825 = vpop.f32.mrb[0].mxu0
        %v826 = vpop.f32.mrb[0].mxu0
        %v827 = vadd.f32 %v760, %v826
        %v828 = vpop.f32.mrb[0].mxu0
        %829 = vmatprep.mubr.bf16.mxu0 0
        %830 = vmatmul.mubr.bf16.gmra.mrb[0].mxu0 %v787
        %v831 = vpop.f32.mrb[0].mxu0
        %v832 = vadd.f32 %v765, %v831
        %v833 = vpop.f32.mrb[0].mxu0
        %v834 = vpop.f32.mrb[0].mxu0
        %v835 = vadd.f32 %v768, %v834
        %v836 = vpop.f32.mrb[0].mxu0
        %837 = vdwg.mxu0
        %v838 = vld [vmem:[%s6] sm:$0x1]
        %v840 = vlaneseq
        %v841 = vshrl.u32 %v840, 7
        %v842 = vsub.s32 0, %v841
        %v843 = vrot.slane %v838, %v842
        %v845 = vadd.f32 %v679, %v843
        %v846 = vadd.f32 %v682, %v843
        %v847 = vadd.f32 %v687, %v843
        %v848 = vadd.f32 %v690, %v843
        %849 = vst [vmem:[#allocation2] sm:$0xff] %v845
        %850 = vst [vmem:[#allocation2 + $0x8] sm:$0xff] %v846
        %851 = vst [vmem:[#allocation2 + $0x10] sm:$0xff] %v847
        %852 = vst [vmem:[#allocation2 + $0x18] sm:$0xff] %v848
        %s853 = scalar_lea.vmem %s6, 1
        %v854 = vld [vmem:[%s853] sm:$0x1]
        %v856 = vlaneseq
        %v857 = vshrl.u32 %v856, 7
        %v858 = vsub.s32 0, %v857
        %v859 = vrot.slane %v854, %v858
        %v861 = vadd.f32 %v824, %v859
        %v862 = vadd.f32 %v827, %v859
        %v863 = vadd.f32 %v832, %v859
        %v864 = vadd.f32 %v835, %v859
        %s865 = scalar_lea.vmem [#allocation2], 32
        %866 = vst [vmem:[%s865] sm:$0xff] %v861
        %867 = vst [vmem:[%s865 + $0x8] sm:$0xff] %v862
        %868 = vst [vmem:[%s865 + $0x10] sm:$0xff] %v863
        %869 = vst [vmem:[%s865 + $0x18] sm:$0xff] %v864
        %v870 = vld [vmem:[%s5] sm:$0xf]
        %v871 = vld [vmem:[%s5 + $0x4] sm:$0xf]
        %v872 = vld [vmem:[%s5 + $0x8] sm:$0xf]
        %v873 = vld [vmem:[%s5 + $0xc] sm:$0xf]
        %v874 = vld [vmem:[%s5 + $0x10] sm:$0xf]
        %v875 = vld [vmem:[%s5 + $0x14] sm:$0xf]
        %v876 = vld [vmem:[%s5 + $0x18] sm:$0xf]
        %v877 = vld [vmem:[%s5 + $0x1c] sm:$0xf]
        %v878 = vld [vmem:[#allocation3] sm:$0xff]
        %v879 = vld [vmem:[#allocation3 + $0x8] sm:$0xff]
        %v880 = vld [vmem:[#allocation5] sm:$0xff]
        %v881 = vld [vmem:[#allocation5 + $0x8] sm:$0xff]
        %v882 = vld [vmem:[#allocation2] sm:$0xff]
        %v883 = vpack.c.bf16 %v878, %v878
        %v888 = vunpack.c.l.b16 %v870
        %v889 = vunpack.c.l.b16 %v871
        %v890 = vunpack.c.l.b16 %v872
        %v891 = vunpack.c.l.b16 %v873
        %v892 = vpack.c.b16 %v889, %v888
        %v893 = vpack.c.b16 %v891, %v890
        %v897 = vsel %vm570, %v883, 0
        %899 = vmatprep.subr.bf16.mxu0 0
        %900 = vmatpush1.bf16.msra.mxu0 %v892
        %901 = vmatprep.subr.bf16.mxu0 0
        %902 = vmatpush1.bf16.msra.mxu0 %v893
        %903 = vmatprep.subr.bf16.mxu0 0
        %904 = vmatpush1.bf16.msra.mxu0 0
        %905 = vmatprep.subr.bf16.mxu0 0
        %906 = vmatpush1.bf16.msra.mxu0 0
        %907 = vmatprep.subr.bf16.mxu0 0
        %908 = vmatpush1.bf16.msra.mxu0 0
        %909 = vmatprep.subr.bf16.mxu0 0
        %910 = vmatpush1.bf16.msra.mxu0 0
        %911 = vmatprep.subr.bf16.mxu0 0
        %912 = vmatpush1.bf16.msra.mxu0 0
        %913 = vmatprep.subr.bf16.mxu0 0
        %914 = vmatpush1.bf16.msra.mxu0 0
        %915 = vmatprep.subr.bf16.mxu0 0
        %916 = vmatpush1.bf16.msra.mxu0 0
        %917 = vmatprep.subr.bf16.mxu0 0
        %918 = vmatpush1.bf16.msra.mxu0 0
        %919 = vmatprep.subr.bf16.mxu0 0
        %920 = vmatpush1.bf16.msra.mxu0 0
        %921 = vmatprep.subr.bf16.mxu0 0
        %922 = vmatpush1.bf16.msra.mxu0 0
        %923 = vmatprep.subr.bf16.mxu0 0
        %924 = vmatpush1.bf16.msra.mxu0 0
        %925 = vmatprep.subr.bf16.mxu0 0
        %926 = vmatpush1.bf16.msra.mxu0 0
        %927 = vmatprep.subr.bf16.mxu0 0
        %928 = vmatpush1.bf16.msra.mxu0 0
        %929 = vmatprep.subr.bf16.mxu0 0
        %930 = vmatpush1.bf16.msra.mxu0 0
        %931 = vmatprep.mubr.bf16.mxu0 0
        %932 = vmatmul.mubr.bf16.gmra.mrb[0].mxu0 %v897
        %v933 = vpop.f32.mrb[0].mxu0
        %v934 = vadd.f32 0.0, %v933
        %v935 = vpop.f32.mrb[0].mxu0
        %v936 = vpop.f32.mrb[0].mxu0
        %v937 = vpop.f32.mrb[0].mxu0
        %938 = vdwg.mxu0
        %v939 = vadd.f32 %v882, %v934
        %s940 = sadd.s32 24, 32
        %s941 = scalar_lea.vmem [#allocation2], %s940
        %v942 = vld [vmem:[%s941] sm:$0xff]
        %v943 = vpack.c.bf16 %v879, %v879
        %v948 = vunpack.c.l.b16 %v874
        %v949 = vunpack.c.l.b16 %v875
        %v950 = vunpack.c.l.b16 %v876
        %v951 = vunpack.c.l.b16 %v877
        %v952 = vpack.c.b16 %v949, %v948
        %v953 = vpack.c.b16 %v951, %v950
        %v957 = vsel %vm570, %v943, 0
        %959 = vmatprep.subr.bf16.mxu0 0
        %960 = vmatpush1.bf16.msra.mxu0 %v952
        %961 = vmatprep.subr.bf16.mxu0 0
        %962 = vmatpush1.bf16.msra.mxu0 %v953
        %963 = vmatprep.subr.bf16.mxu0 0
        %964 = vmatpush1.bf16.msra.mxu0 0
        %965 = vmatprep.subr.bf16.mxu0 0
        %966 = vmatpush1.bf16.msra.mxu0 0
        %967 = vmatprep.subr.bf16.mxu0 0
        %968 = vmatpush1.bf16.msra.mxu0 0
        %969 = vmatprep.subr.bf16.mxu0 0
        %970 = vmatpush1.bf16.msra.mxu0 0
        %971 = vmatprep.subr.bf16.mxu0 0
        %972 = vmatpush1.bf16.msra.mxu0 0
        %973 = vmatprep.subr.bf16.mxu0 0
        %974 = vmatpush1.bf16.msra.mxu0 0
        %975 = vmatprep.subr.bf16.mxu0 0
        %976 = vmatpush1.bf16.msra.mxu0 0
        %977 = vmatprep.subr.bf16.mxu0 0
        %978 = vmatpush1.bf16.msra.mxu0 0
        %979 = vmatprep.subr.bf16.mxu0 0
        %980 = vmatpush1.bf16.msra.mxu0 0
        %981 = vmatprep.subr.bf16.mxu0 0
        %982 = vmatpush1.bf16.msra.mxu0 0
        %983 = vmatprep.subr.bf16.mxu0 0
        %984 = vmatpush1.bf16.msra.mxu0 0
        %985 = vmatprep.subr.bf16.mxu0 0
        %986 = vmatpush1.bf16.msra.mxu0 0
        %987 = vmatprep.subr.bf16.mxu0 0
        %988 = vmatpush1.bf16.msra.mxu0 0
        %989 = vmatprep.subr.bf16.mxu0 0
        %990 = vmatpush1.bf16.msra.mxu0 0
        %991 = vmatprep.mubr.bf16.mxu0 0
        %992 = vmatmul.mubr.bf16.gmra.mrb[0].mxu0 %v957
        %v993 = vpop.f32.mrb[0].mxu0
        %v994 = vadd.f32 0.0, %v993
        %v995 = vpop.f32.mrb[0].mxu0
        %v996 = vpop.f32.mrb[0].mxu0
        %v997 = vpop.f32.mrb[0].mxu0
        %998 = vdwg.mxu0
        %v999 = vadd.f32 %v942, %v994
        %v1000 = vxor.u32 %v939, 2147483648
        %v1001 = vxor.u32 %v999, 2147483648
        %v1002 = vmul.f32 %v1000, 1.442695
        %v1003 = vpow.pop %v1002
        %v1004 = vmul.f32 %v1001, 1.442695
        %v1005 = vpow.pop %v1004
        %v1006 = vadd.f32 %v1003, 1.0
        %v1007 = vadd.f32 %v1005, 1.0
        %v1008 = vrcp.pop %v1006
        %v1009 = vmul.f32 1.0, %v1008
        %v1010 = vrcp.pop %v1007
        %v1011 = vmul.f32 1.0, %v1010
        %v1012 = vtanh.pop %v939
        %v1013 = vtanh.pop %v999
        %1016 = vrot.lane.b32.xlu0 %v880, 32
        %v1017 = vpop.permute.xlu0 %1016
        %1018 = vrot.lane.b32.xlu0 %v881, 32
        %v1019 = vpop.permute.xlu0 %1018
        %v1022 = vmul.f32 %v1009, %v1017
        %v1023 = vmul.f32 %v1011, %v1019
        %1026 = vrot.lane.b32.xlu0 %v1012, 32
        %v1027 = vpop.permute.xlu0 %1026
        %1028 = vrot.lane.b32.xlu0 %v1013, 32
        %v1029 = vpop.permute.xlu0 %1028
        %v1032 = vmul.f32 %v1009, %v1027
        %v1033 = vmul.f32 %v1011, %v1029
        %1036 = vrot.lane.b32.xlu0 %v1032, 32
        %v1037 = vpop.permute.xlu0 %1036
        %1038 = vrot.lane.b32.xlu0 %v1033, 32
        %v1039 = vpop.permute.xlu0 %1038
        %v1042 = vadd.f32 %v1022, %v1037
        %v1043 = vadd.f32 %v1023, %v1039
        %v1044 = vtanh.pop %v1042
        %v1045 = vtanh.pop %v1043
        %1048 = vrot.lane.b32.xlu0 %v1044, 32
        %v1049 = vpop.permute.xlu0 %1048
        %1050 = vrot.lane.b32.xlu0 %v1045, 32
        %v1051 = vpop.permute.xlu0 %1050
        %v1054 = vmul.f32 %v1009, %v1049
        %v1055 = vmul.f32 %v1011, %v1051
        %1057 = vrot.lane.b32.xlu0 %v1054, 64
        %v1058 = vpop.permute.xlu0 %1057
        %1060 = vst.msk [vmem:[%s502] sm:$0xff] %vm570, %v1058
        %1062 = vrot.lane.b32.xlu0 %v1055, 64
        %v1063 = vpop.permute.xlu0 %1062
        %s1065 = scalar_lea.vmem %s509, 24
        %1066 = vst.msk [vmem:[%s1065] sm:$0xff] %vm570, %v1063
        %s1067 = scalar_lea.vmem [#allocation2], 8
        %v1068 = vld [vmem:[%s1067] sm:$0xff]
        %v1069 = vpack.c.bf16 %v1054, %v1054
        %1071 = vrot.lane.b32.xlu0 %v1069, 64
        %v1072 = vpop.permute.xlu0 %1071
        %v1074 = vsel %vm570, %v1072, 0
        %1076 = vmatprep.subr.bf16.mxu0 0
        %1077 = vmatpush1.bf16.msra.mxu0 %v892
        %1078 = vmatprep.subr.bf16.mxu0 0
        %1079 = vmatpush1.bf16.msra.mxu0 %v893
        %1080 = vmatprep.subr.bf16.mxu0 0
        %1081 = vmatpush1.bf16.msra.mxu0 0
        %1082 = vmatprep.subr.bf16.mxu0 0
        %1083 = vmatpush1.bf16.msra.mxu0 0
        %1084 = vmatprep.subr.bf16.mxu0 0
        %1085 = vmatpush1.bf16.msra.mxu0 0
        %1086 = vmatprep.subr.bf16.mxu0 0
        %1087 = vmatpush1.bf16.msra.mxu0 0
        %1088 = vmatprep.subr.bf16.mxu0 0
        %1089 = vmatpush1.bf16.msra.mxu0 0
        %1090 = vmatprep.subr.bf16.mxu0 0
        %1091 = vmatpush1.bf16.msra.mxu0 0
        %1092 = vmatprep.subr.bf16.mxu0 0
        %1093 = vmatpush1.bf16.msra.mxu0 0
        %1094 = vmatprep.subr.bf16.mxu0 0
        %1095 = vmatpush1.bf16.msra.mxu0 0
        %1096 = vmatprep.subr.bf16.mxu0 0
        %1097 = vmatpush1.bf16.msra.mxu0 0
        %1098 = vmatprep.subr.bf16.mxu0 0
        %1099 = vmatpush1.bf16.msra.mxu0 0
        %1100 = vmatprep.subr.bf16.mxu0 0
        %1101 = vmatpush1.bf16.msra.mxu0 0
        %1102 = vmatprep.subr.bf16.mxu0 0
        %1103 = vmatpush1.bf16.msra.mxu0 0
        %1104 = vmatprep.subr.bf16.mxu0 0
        %1105 = vmatpush1.bf16.msra.mxu0 0
        %1106 = vmatprep.subr.bf16.mxu0 0
        %1107 = vmatpush1.bf16.msra.mxu0 0
        %1108 = vmatprep.mubr.bf16.mxu0 0
        %1109 = vmatmul.mubr.bf16.gmra.mrb[0].mxu0 %v1074
        %v1110 = vpop.f32.mrb[0].mxu0
        %v1111 = vadd.f32 0.0, %v1110
        %v1112 = vpop.f32.mrb[0].mxu0
        %v1113 = vpop.f32.mrb[0].mxu0
        %v1114 = vpop.f32.mrb[0].mxu0
        %1115 = vdwg.mxu0
        %v1116 = vadd.f32 %v1068, %v1111
        %s1117 = sadd.s32 16, 32
        %s1118 = scalar_lea.vmem [#allocation2], %s1117
        %v1119 = vld [vmem:[%s1118] sm:$0xff]
        %v1120 = vpack.c.bf16 %v1055, %v1055
        %1122 = vrot.lane.b32.xlu0 %v1120, 64
        %v1123 = vpop.permute.xlu0 %1122
        %v1125 = vsel %vm570, %v1123, 0
        %1127 = vmatprep.subr.bf16.mxu0 0
        %1128 = vmatpush1.bf16.msra.mxu0 %v952
        %1129 = vmatprep.subr.bf16.mxu0 0
        %1130 = vmatpush1.bf16.msra.mxu0 %v953
        %1131 = vmatprep.subr.bf16.mxu0 0
        %1132 = vmatpush1.bf16.msra.mxu0 0
        %1133 = vmatprep.subr.bf16.mxu0 0
        %1134 = vmatpush1.bf16.msra.mxu0 0
        %1135 = vmatprep.subr.bf16.mxu0 0
        %1136 = vmatpush1.bf16.msra.mxu0 0
        %1137 = vmatprep.subr.bf16.mxu0 0
        %1138 = vmatpush1.bf16.msra.mxu0 0
        %1139 = vmatprep.subr.bf16.mxu0 0
        %1140 = vmatpush1.bf16.msra.mxu0 0
        %1141 = vmatprep.subr.bf16.mxu0 0
        %1142 = vmatpush1.bf16.msra.mxu0 0
        %1143 = vmatprep.subr.bf16.mxu0 0
        %1144 = vmatpush1.bf16.msra.mxu0 0
        %1145 = vmatprep.subr.bf16.mxu0 0
        %1146 = vmatpush1.bf16.msra.mxu0 0
        %1147 = vmatprep.subr.bf16.mxu0 0
        %1148 = vmatpush1.bf16.msra.mxu0 0
        %1149 = vmatprep.subr.bf16.mxu0 0
        %1150 = vmatpush1.bf16.msra.mxu0 0
        %1151 = vmatprep.subr.bf16.mxu0 0
        %1152 = vmatpush1.bf16.msra.mxu0 0
        %1153 = vmatprep.subr.bf16.mxu0 0
        %1154 = vmatpush1.bf16.msra.mxu0 0
        %1155 = vmatprep.subr.bf16.mxu0 0
        %1156 = vmatpush1.bf16.msra.mxu0 0
        %1157 = vmatprep.subr.bf16.mxu0 0
        %1158 = vmatpush1.bf16.msra.mxu0 0
        %1159 = vmatprep.mubr.bf16.mxu0 0
        %1160 = vmatmul.mubr.bf16.gmra.mrb[0].mxu0 %v1125
        %v1161 = vpop.f32.mrb[0].mxu0
        %v1162 = vadd.f32 0.0, %v1161
        %v1163 = vpop.f32.mrb[0].mxu0
        %v1164 = vpop.f32.mrb[0].mxu0
        %v1165 = vpop.f32.mrb[0].mxu0
        %1166 = vdwg.mxu0
        %v1167 = vadd.f32 %v1119, %v1162
        %v1168 = vxor.u32 %v1116, 2147483648
        %v1169 = vxor.u32 %v1167, 2147483648
        %v1170 = vmul.f32 %v1168, 1.442695
        %v1171 = vpow.pop %v1170
        %v1172 = vmul.f32 %v1169, 1.442695
        %v1173 = vpow.pop %v1172
        %v1174 = vadd.f32 %v1171, 1.0
        %v1175 = vadd.f32 %v1173, 1.0
        %v1176 = vrcp.pop %v1174
        %v1177 = vmul.f32 1.0, %v1176
        %v1178 = vrcp.pop %v1175
        %v1179 = vmul.f32 1.0, %v1178
        %v1180 = vtanh.pop %v1116
        %v1181 = vtanh.pop %v1167
        %v1182 = vmul.f32 %v1177, %v1042
        %v1183 = vmul.f32 %v1179, %v1043
        %1186 = vrot.lane.b32.xlu0 %v1180, 32
        %v1187 = vpop.permute.xlu0 %1186
        %1188 = vrot.lane.b32.xlu0 %v1181, 32
        %v1189 = vpop.permute.xlu0 %1188
        %v1192 = vmul.f32 %v1177, %v1187
        %v1193 = vmul.f32 %v1179, %v1189
        %1196 = vrot.lane.b32.xlu0 %v1192, 32
        %v1197 = vpop.permute.xlu0 %1196
        %1198 = vrot.lane.b32.xlu0 %v1193, 32
        %v1199 = vpop.permute.xlu0 %1198
        %v1202 = vadd.f32 %v1182, %v1197
        %v1203 = vadd.f32 %v1183, %v1199
        %v1204 = vtanh.pop %v1202
        %v1205 = vtanh.pop %v1203
        %1208 = vrot.lane.b32.xlu0 %v1204, 32
        %v1209 = vpop.permute.xlu0 %1208
        %1210 = vrot.lane.b32.xlu0 %v1205, 32
        %v1211 = vpop.permute.xlu0 %1210
        %v1214 = vmul.f32 %v1177, %v1209
        %v1215 = vmul.f32 %v1179, %v1211
        %1217 = vrot.lane.b32.xlu0 %v1214, 64
        %v1218 = vpop.permute.xlu0 %1217
        %s1220 = scalar_lea.vmem %s502, 8
        %1221 = vst.msk [vmem:[%s1220] sm:$0xff] %vm570, %v1218
        %1223 = vrot.lane.b32.xlu0 %v1215, 64
        %v1224 = vpop.permute.xlu0 %1223
        %s1226 = scalar_lea.vmem %s509, 16
        %1227 = vst.msk [vmem:[%s1226] sm:$0xff] %vm570, %v1224
        %s1228 = scalar_lea.vmem [#allocation2], 16
        %v1229 = vld [vmem:[%s1228] sm:$0xff]
        %v1230 = vpack.c.bf16 %v1214, %v1214
        %1232 = vrot.lane.b32.xlu0 %v1230, 64
        %v1233 = vpop.permute.xlu0 %1232
        %v1235 = vsel %vm570, %v1233, 0
        %1237 = vmatprep.subr.bf16.mxu0 0
        %1238 = vmatpush1.bf16.msra.mxu0 %v892
        %1239 = vmatprep.subr.bf16.mxu0 0
        %1240 = vmatpush1.bf16.msra.mxu0 %v893
        %1241 = vmatprep.subr.bf16.mxu0 0
        %1242 = vmatpush1.bf16.msra.mxu0 0
        %1243 = vmatprep.subr.bf16.mxu0 0
        %1244 = vmatpush1.bf16.msra.mxu0 0
        %1245 = vmatprep.subr.bf16.mxu0 0
        %1246 = vmatpush1.bf16.msra.mxu0 0
        %1247 = vmatprep.subr.bf16.mxu0 0
        %1248 = vmatpush1.bf16.msra.mxu0 0
        %1249 = vmatprep.subr.bf16.mxu0 0
        %1250 = vmatpush1.bf16.msra.mxu0 0
        %1251 = vmatprep.subr.bf16.mxu0 0
        %1252 = vmatpush1.bf16.msra.mxu0 0
        %1253 = vmatprep.subr.bf16.mxu0 0
        %1254 = vmatpush1.bf16.msra.mxu0 0
        %1255 = vmatprep.subr.bf16.mxu0 0
        %1256 = vmatpush1.bf16.msra.mxu0 0
        %1257 = vmatprep.subr.bf16.mxu0 0
        %1258 = vmatpush1.bf16.msra.mxu0 0
        %1259 = vmatprep.subr.bf16.mxu0 0
        %1260 = vmatpush1.bf16.msra.mxu0 0
        %1261 = vmatprep.subr.bf16.mxu0 0
        %1262 = vmatpush1.bf16.msra.mxu0 0
        %1263 = vmatprep.subr.bf16.mxu0 0
        %1264 = vmatpush1.bf16.msra.mxu0 0
        %1265 = vmatprep.subr.bf16.mxu0 0
        %1266 = vmatpush1.bf16.msra.mxu0 0
        %1267 = vmatprep.subr.bf16.mxu0 0
        %1268 = vmatpush1.bf16.msra.mxu0 0
        %1269 = vmatprep.mubr.bf16.mxu0 0
        %1270 = vmatmul.mubr.bf16.gmra.mrb[0].mxu0 %v1235
        %v1271 = vpop.f32.mrb[0].mxu0
        %v1272 = vadd.f32 0.0, %v1271
        %v1273 = vpop.f32.mrb[0].mxu0
        %v1274 = vpop.f32.mrb[0].mxu0
        %v1275 = vpop.f32.mrb[0].mxu0
        %1276 = vdwg.mxu0
        %v1277 = vadd.f32 %v1229, %v1272
        %s1278 = sadd.s32 8, 32
        %s1279 = scalar_lea.vmem [#allocation2], %s1278
        %v1280 = vld [vmem:[%s1279] sm:$0xff]
        %v1281 = vpack.c.bf16 %v1215, %v1215
        %1283 = vrot.lane.b32.xlu0 %v1281, 64
        %v1284 = vpop.permute.xlu0 %1283
        %v1286 = vsel %vm570, %v1284, 0
        %1288 = vmatprep.subr.bf16.mxu0 0
        %1289 = vmatpush1.bf16.msra.mxu0 %v952
        %1290 = vmatprep.subr.bf16.mxu0 0
        %1291 = vmatpush1.bf16.msra.mxu0 %v953
        %1292 = vmatprep.subr.bf16.mxu0 0
        %1293 = vmatpush1.bf16.msra.mxu0 0
        %1294 = vmatprep.subr.bf16.mxu0 0
        %1295 = vmatpush1.bf16.msra.mxu0 0
        %1296 = vmatprep.subr.bf16.mxu0 0
        %1297 = vmatpush1.bf16.msra.mxu0 0
        %1298 = vmatprep.subr.bf16.mxu0 0
        %1299 = vmatpush1.bf16.msra.mxu0 0
        %1300 = vmatprep.subr.bf16.mxu0 0
        %1301 = vmatpush1.bf16.msra.mxu0 0
        %1302 = vmatprep.subr.bf16.mxu0 0
        %1303 = vmatpush1.bf16.msra.mxu0 0
        %1304 = vmatprep.subr.bf16.mxu0 0
        %1305 = vmatpush1.bf16.msra.mxu0 0
        %1306 = vmatprep.subr.bf16.mxu0 0
        %1307 = vmatpush1.bf16.msra.mxu0 0
        %1308 = vmatprep.subr.bf16.mxu0 0
        %1309 = vmatpush1.bf16.msra.mxu0 0
        %1310 = vmatprep.subr.bf16.mxu0 0
        %1311 = vmatpush1.bf16.msra.mxu0 0
        %1312 = vmatprep.subr.bf16.mxu0 0
        %1313 = vmatpush1.bf16.msra.mxu0 0
        %1314 = vmatprep.subr.bf16.mxu0 0
        %1315 = vmatpush1.bf16.msra.mxu0 0
        %1316 = vmatprep.subr.bf16.mxu0 0
        %1317 = vmatpush1.bf16.msra.mxu0 0
        %1318 = vmatprep.subr.bf16.mxu0 0
        %1319 = vmatpush1.bf16.msra.mxu0 0
        %1320 = vmatprep.mubr.bf16.mxu0 0
        %1321 = vmatmul.mubr.bf16.gmra.mrb[0].mxu0 %v1286
        %v1322 = vpop.f32.mrb[0].mxu0
        %v1323 = vadd.f32 0.0, %v1322
        %v1324 = vpop.f32.mrb[0].mxu0
        %v1325 = vpop.f32.mrb[0].mxu0
        %v1326 = vpop.f32.mrb[0].mxu0
        %1327 = vdwg.mxu0
        %v1328 = vadd.f32 %v1280, %v1323
        %v1329 = vxor.u32 %v1277, 2147483648
        %v1330 = vxor.u32 %v1328, 2147483648
        %v1331 = vmul.f32 %v1329, 1.442695
        %v1332 = vpow.pop %v1331
        %v1333 = vmul.f32 %v1330, 1.442695
        %v1334 = vpow.pop %v1333
        %v1335 = vadd.f32 %v1332, 1.0
        %v1336 = vadd.f32 %v1334, 1.0
        %v1337 = vrcp.pop %v1335
        %v1338 = vmul.f32 1.0, %v1337
        %v1339 = vrcp.pop %v1336
        %v1340 = vmul.f32 1.0, %v1339
        %v1341 = vtanh.pop %v1277
        %v1342 = vtanh.pop %v1328
        %v1343 = vmul.f32 %v1338, %v1202
        %v1344 = vmul.f32 %v1340, %v1203
        %1347 = vrot.lane.b32.xlu0 %v1341, 32
        %v1348 = vpop.permute.xlu0 %1347
        %1349 = vrot.lane.b32.xlu0 %v1342, 32
        %v1350 = vpop.permute.xlu0 %1349
        %v1353 = vmul.f32 %v1338, %v1348
        %v1354 = vmul.f32 %v1340, %v1350
        %1357 = vrot.lane.b32.xlu0 %v1353, 32
        %v1358 = vpop.permute.xlu0 %1357
        %1359 = vrot.lane.b32.xlu0 %v1354, 32
        %v1360 = vpop.permute.xlu0 %1359
        %v1363 = vadd.f32 %v1343, %v1358
        %v1364 = vadd.f32 %v1344, %v1360
        %v1365 = vtanh.pop %v1363
        %v1366 = vtanh.pop %v1364
        %1369 = vrot.lane.b32.xlu0 %v1365, 32
        %v1370 = vpop.permute.xlu0 %1369
        %1371 = vrot.lane.b32.xlu0 %v1366, 32
        %v1372 = vpop.permute.xlu0 %1371
        %v1375 = vmul.f32 %v1338, %v1370
        %v1376 = vmul.f32 %v1340, %v1372
        %1378 = vrot.lane.b32.xlu0 %v1375, 64
        %v1379 = vpop.permute.xlu0 %1378
        %s1381 = scalar_lea.vmem %s502, 16
        %1382 = vst.msk [vmem:[%s1381] sm:$0xff] %vm570, %v1379
        %1384 = vrot.lane.b32.xlu0 %v1376, 64
        %v1385 = vpop.permute.xlu0 %1384
        %s1387 = scalar_lea.vmem %s509, 8
        %1388 = vst.msk [vmem:[%s1387] sm:$0xff] %vm570, %v1385
        %s1389 = scalar_lea.vmem [#allocation2], 24
        %v1390 = vld [vmem:[%s1389] sm:$0xff]
        %v1391 = vpack.c.bf16 %v1375, %v1375
        %1393 = vrot.lane.b32.xlu0 %v1391, 64
        %v1394 = vpop.permute.xlu0 %1393
        %v1396 = vsel %vm570, %v1394, 0
        %1398 = vmatprep.subr.bf16.mxu0 0
        %1399 = vmatpush1.bf16.msra.mxu0 %v892
        %1400 = vmatprep.subr.bf16.mxu0 0
        %1401 = vmatpush1.bf16.msra.mxu0 %v893
        %1402 = vmatprep.subr.bf16.mxu0 0
        %1403 = vmatpush1.bf16.msra.mxu0 0
        %1404 = vmatprep.subr.bf16.mxu0 0
        %1405 = vmatpush1.bf16.msra.mxu0 0
        %1406 = vmatprep.subr.bf16.mxu0 0
        %1407 = vmatpush1.bf16.msra.mxu0 0
        %1408 = vmatprep.subr.bf16.mxu0 0
        %1409 = vmatpush1.bf16.msra.mxu0 0
        %1410 = vmatprep.subr.bf16.mxu0 0
        %1411 = vmatpush1.bf16.msra.mxu0 0
        %1412 = vmatprep.subr.bf16.mxu0 0
        %1413 = vmatpush1.bf16.msra.mxu0 0
        %1414 = vmatprep.subr.bf16.mxu0 0
        %1415 = vmatpush1.bf16.msra.mxu0 0
        %1416 = vmatprep.subr.bf16.mxu0 0
        %1417 = vmatpush1.bf16.msra.mxu0 0
        %1418 = vmatprep.subr.bf16.mxu0 0
        %1419 = vmatpush1.bf16.msra.mxu0 0
        %1420 = vmatprep.subr.bf16.mxu0 0
        %1421 = vmatpush1.bf16.msra.mxu0 0
        %1422 = vmatprep.subr.bf16.mxu0 0
        %1423 = vmatpush1.bf16.msra.mxu0 0
        %1424 = vmatprep.subr.bf16.mxu0 0
        %1425 = vmatpush1.bf16.msra.mxu0 0
        %1426 = vmatprep.subr.bf16.mxu0 0
        %1427 = vmatpush1.bf16.msra.mxu0 0
        %1428 = vmatprep.subr.bf16.mxu0 0
        %1429 = vmatpush1.bf16.msra.mxu0 0
        %1430 = vmatprep.mubr.bf16.mxu0 0
        %1431 = vmatmul.mubr.bf16.gmra.mrb[0].mxu0 %v1396
        %v1432 = vpop.f32.mrb[0].mxu0
        %v1433 = vadd.f32 0.0, %v1432
        %v1434 = vpop.f32.mrb[0].mxu0
        %v1435 = vpop.f32.mrb[0].mxu0
        %v1436 = vpop.f32.mrb[0].mxu0
        %1437 = vdwg.mxu0
        %v1438 = vadd.f32 %v1390, %v1433
        %s1439 = sadd.s32 0, 32
        %s1440 = scalar_lea.vmem [#allocation2], %s1439
        %v1441 = vld [vmem:[%s1440] sm:$0xff]
        %v1442 = vpack.c.bf16 %v1376, %v1376
        %1444 = vrot.lane.b32.xlu0 %v1442, 64
        %v1445 = vpop.permute.xlu0 %1444
        %v1447 = vsel %vm570, %v1445, 0
        %1449 = vmatprep.subr.bf16.mxu0 0
        %1450 = vmatpush1.bf16.msra.mxu0 %v952
        %1451 = vmatprep.subr.bf16.mxu0 0
        %1452 = vmatpush1.bf16.msra.mxu0 %v953
        %1453 = vmatprep.subr.bf16.mxu0 0
        %1454 = vmatpush1.bf16.msra.mxu0 0
        %1455 = vmatprep.subr.bf16.mxu0 0
        %1456 = vmatpush1.bf16.msra.mxu0 0
        %1457 = vmatprep.subr.bf16.mxu0 0
        %1458 = vmatpush1.bf16.msra.mxu0 0
        %1459 = vmatprep.subr.bf16.mxu0 0
        %1460 = vmatpush1.bf16.msra.mxu0 0
        %1461 = vmatprep.subr.bf16.mxu0 0
        %1462 = vmatpush1.bf16.msra.mxu0 0
        %1463 = vmatprep.subr.bf16.mxu0 0
        %1464 = vmatpush1.bf16.msra.mxu0 0
        %1465 = vmatprep.subr.bf16.mxu0 0
        %1466 = vmatpush1.bf16.msra.mxu0 0
        %1467 = vmatprep.subr.bf16.mxu0 0
        %1468 = vmatpush1.bf16.msra.mxu0 0
        %1469 = vmatprep.subr.bf16.mxu0 0
        %1470 = vmatpush1.bf16.msra.mxu0 0
        %1471 = vmatprep.subr.bf16.mxu0 0
        %1472 = vmatpush1.bf16.msra.mxu0 0
        %1473 = vmatprep.subr.bf16.mxu0 0
        %1474 = vmatpush1.bf16.msra.mxu0 0
        %1475 = vmatprep.subr.bf16.mxu0 0
        %1476 = vmatpush1.bf16.msra.mxu0 0
        %1477 = vmatprep.subr.bf16.mxu0 0
        %1478 = vmatpush1.bf16.msra.mxu0 0
        %1479 = vmatprep.subr.bf16.mxu0 0
        %1480 = vmatpush1.bf16.msra.mxu0 0
        %1481 = vmatprep.mubr.bf16.mxu0 0
        %1482 = vmatmul.mubr.bf16.gmra.mrb[0].mxu0 %v1447
        %v1483 = vpop.f32.mrb[0].mxu0
        %v1484 = vadd.f32 0.0, %v1483
        %v1485 = vpop.f32.mrb[0].mxu0
        %v1486 = vpop.f32.mrb[0].mxu0
        %v1487 = vpop.f32.mrb[0].mxu0
        %1488 = vdwg.mxu0
        %v1489 = vadd.f32 %v1441, %v1484
        %v1490 = vxor.u32 %v1438, 2147483648
        %v1491 = vxor.u32 %v1489, 2147483648
        %v1492 = vmul.f32 %v1490, 1.442695
        %v1493 = vpow.pop %v1492
        %v1494 = vmul.f32 %v1491, 1.442695
        %v1495 = vpow.pop %v1494
        %v1496 = vadd.f32 %v1493, 1.0
        %v1497 = vadd.f32 %v1495, 1.0
        %v1498 = vrcp.pop %v1496
        %v1499 = vmul.f32 1.0, %v1498
        %v1500 = vrcp.pop %v1497
        %v1501 = vmul.f32 1.0, %v1500
        %v1502 = vtanh.pop %v1438
        %v1503 = vtanh.pop %v1489
        %v1504 = vmul.f32 %v1499, %v1363
        %v1505 = vmul.f32 %v1501, %v1364
        %1508 = vrot.lane.b32.xlu0 %v1502, 32
        %v1509 = vpop.permute.xlu0 %1508
        %1510 = vrot.lane.b32.xlu0 %v1503, 32
        %v1511 = vpop.permute.xlu0 %1510
        %v1514 = vmul.f32 %v1499, %v1509
        %v1515 = vmul.f32 %v1501, %v1511
        %1518 = vrot.lane.b32.xlu0 %v1514, 32
        %v1519 = vpop.permute.xlu0 %1518
        %1520 = vrot.lane.b32.xlu0 %v1515, 32
        %v1521 = vpop.permute.xlu0 %1520
        %v1524 = vadd.f32 %v1504, %v1519
        %v1525 = vadd.f32 %v1505, %v1521
        %v1526 = vtanh.pop %v1524
        %v1527 = vtanh.pop %v1525
        %1530 = vrot.lane.b32.xlu0 %v1526, 32
        %v1531 = vpop.permute.xlu0 %1530
        %1532 = vrot.lane.b32.xlu0 %v1527, 32
        %v1533 = vpop.permute.xlu0 %1532
        %v1536 = vmul.f32 %v1499, %v1531
        %v1537 = vmul.f32 %v1501, %v1533
        %1539 = vrot.lane.b32.xlu0 %v1536, 64
        %v1540 = vpop.permute.xlu0 %1539
        %s1542 = scalar_lea.vmem %s502, 24
        %1543 = vst.msk [vmem:[%s1542] sm:$0xff] %vm570, %v1540
        %1545 = vrot.lane.b32.xlu0 %v1537, 64
        %v1546 = vpop.permute.xlu0 %1545
        %1548 = vst.msk [vmem:[%s509] sm:$0xff] %vm570, %v1546
        %1549 = vst.msk [vmem:[#allocation3] sm:$0xff] %vm570, %v1540
        %1550 = vst.msk [vmem:[#allocation3 + $0x8] sm:$0xff] %vm570, %v1546
        %1553 = vrot.lane.b32.xlu0 %v1524, 96
        %v1554 = vpop.permute.xlu0 %1553
        %1555 = vrot.lane.b32.xlu0 %v1525, 96
        %v1556 = vpop.permute.xlu0 %1555
        %1559 = vst.msk [vmem:[#allocation5] sm:$0xff] %vm570, %v1554
        %1560 = vst.msk [vmem:[#allocation5 + $0x8] sm:$0xff] %vm570, %v1556
        %s1561 = smul.u32 4, %s26
        %p1562 = scmp.lt.s32.totalorder %s1561, 7
        %s1563 = scalar_select %p1562, %s1561, 7
        %s1564 = smul.addr %s1563, 8
        %s1565 = scalar_lea.vmem %s9, %s1564
        %s1566 = ssub.s32 1, %s26
        %s1567 = smul.u32 4, %s1566
        %p1568 = scmp.lt.s32.totalorder %s1567, 7
        %s1569 = scalar_select %p1568, %s1567, 7
        %s1570 = smul.addr %s1569, 8
        %s1571 = scalar_lea.vmem %s10, %s1570
        // Predicated region
        $region61: #{model_forward.10} parent=55 // pred_check
          %p1572 = pneg %p257
        $region62: #{model_forward.10} parent=55 // pred_check_branch
          %1574 = sbr.rel (%p1572) target = $region64
        $region63: #{model_forward.10} parent=55 // pred_region
          %s1575 = smul.u32 4, %s26
        $region64: #{model_forward.10} parent=55 // pred_fallthru
          _
        // Predicated region
        $region65: #{model_forward.10} parent=55 // pred_check
          %p1576 = pneg %p285
        $region66: #{model_forward.10} parent=55 // pred_check_branch
          %1578 = sbr.rel (%p1576) target = $region68
        $region67: #{model_forward.10} parent=55 // pred_region
          %s1579 = ssub.s32 1, %s26
          %s1580 = smul.u32 4, %s1579
        $region68: #{model_forward.10} parent=55 // pred_fallthru
          _
        // Predicated region
        $region69: #{model_forward.10} parent=55 // pred_check
          %p1581 = pneg %p306
        $region70: #{model_forward.10} parent=55 // pred_check_branch
          %1583 = sbr.rel (%p1581) target = $region72
        $region71: #{model_forward.10} parent=55 // pred_region
          %s1585 = ssub.s32 256, 256
          %1586 = vsyncadd [#allocation4], %s1585
          %s1587 = sshll.u32 [#allocation3], 4
          %s1588 = int_to_ptr.vmem [resolvable:$true] %s1587
          %1593 = dma.vmem_to_hbm [thread:$0]  %s1588, 256, %s11, [#allocation4], 128, 128, 8
        $region72: #{model_forward.10} parent=55 // pred_fallthru
          _
        // Predicated region
        $region73: #{model_forward.10} parent=55 // pred_check
          %p1594 = pneg %p327
        $region74: #{model_forward.10} parent=55 // pred_check_branch
          %1596 = sbr.rel (%p1594) target = $region76
        $region75: #{model_forward.10} parent=55 // pred_region
          %s1598 = ssub.s32 256, 256
          %1599 = vsyncadd [#allocation6], %s1598
          %s1600 = sshll.u32 [#allocation5], 4
          %s1601 = int_to_ptr.vmem [resolvable:$true] %s1600
          %1606 = dma.vmem_to_hbm [thread:$0]  %s1601, 256, %s12, [#allocation6], 128, 128, 8
        $region76: #{model_forward.10} parent=55 // pred_fallthru
          _
        // Predicated region
        $region77: #{model_forward.10} parent=55 // pred_check
          %p1607 = pneg %p306
        $region78: #{model_forward.10} parent=55 // pred_check_branch
          %1609 = sbr.rel (%p1607) target = $region80
        $region79: #{model_forward.10} parent=55 // pred_region
          %1610 = dma.done [#allocation4], 256
        $region80: #{model_forward.10} parent=55 // pred_fallthru
          _
        // Predicated region
        $region81: #{model_forward.10} parent=55 // pred_check
          %p1611 = pneg %p327
        $region82: #{model_forward.10} parent=55 // pred_check_branch
          %1613 = sbr.rel (%p1611) target = $region84
        $region83: #{model_forward.10} parent=55 // pred_region
          %1614 = dma.done [#allocation6], 256
        $region84: #{model_forward.10} parent=55 // pred_fallthru
          _
      $region56: #{model_forward.10} parent=5 // pred_fallthru
        _
      %p1615 = scmp.le.s32.totalorder 2, %s21
      // Predicated region
      $region85: #{model_forward.10} parent=5 // pred_check
        %p1616 = pneg %p1615
      $region86: #{model_forward.10} parent=5 // pred_check_branch
        %1618 = sbr.rel (%p1616) target = $region88
      $region87: #{model_forward.10} parent=5 // pred_region
        %s1619 = ssub.s32 %s21, 2
        // Predicated region
        $region89: #{model_forward.10} parent=87 // pred_check
          %p1620 = pneg %p263
        $region90: #{model_forward.10} parent=87 // pred_check_branch
          %1622 = sbr.rel (%p1620) target = $region92
        $region91: #{model_forward.10} parent=87 // pred_region
          %s1623 = smul.u32 4, %s27
          %p1624 = scmp.lt.s32.totalorder %s1623, 7
          %s1625 = scalar_select %p1624, %s1623, 7
          %s1626 = smul.addr %s1625, 8
          %s1627 = scalar_lea.vmem %s9, %s1626
        $region92: #{model_forward.10} parent=87 // pred_fallthru
          _
        // Predicated region
        $region93: #{model_forward.10} parent=87 // pred_check
          %p1628 = pneg %p291
        $region94: #{model_forward.10} parent=87 // pred_check_branch
          %1630 = sbr.rel (%p1628) target = $region96
        $region95: #{model_forward.10} parent=87 // pred_region
          %s1631 = ssub.s32 1, %s27
          %s1632 = smul.u32 4, %s1631
          %p1633 = scmp.lt.s32.totalorder %s1632, 7
          %s1634 = scalar_select %p1633, %s1632, 7
          %s1635 = smul.addr %s1634, 8
          %s1636 = scalar_lea.vmem %s10, %s1635
        $region96: #{model_forward.10} parent=87 // pred_fallthru
          _
      $region88: #{model_forward.10} parent=5 // pred_fallthru
        _
    $region6: #{model_forward.10} parent=1 // loop_footer
      %s25 = sadd.s32 1, %s21
    $region7: #{model_forward.10} parent=1 // loop_footer_branch
      %20 = sbr.rel target = $region3
    $region8: #{model_forward.10} parent=1 // loop_exit
      _
    %1637 = vsyncpa [#allocation4], 1
    %s1638 = scalar_lea.sflag [#allocation4], 1
    %1639 = vsyncpa %s1638, 1
    %1640 = vsyncpa [#allocation6], 1

</llo_original>
